<compile_context>
chip_gen: v6e
topology: v6e:2x2x1
jax: 0.10.0
libtpu: 0.0.40
codegen_flags: <defaults>
</compile_context>

<pallas_src>
import math
import numpy as np
import jax
import jax.numpy as jnp
from jax import lax
from jax.experimental import pallas as pl
from jax.experimental.pallas import tpu as pltpu


def _softplus(x):
    return jnp.maximum(x, 0.0) + jnp.log1p(jnp.exp(-jnp.abs(x)))


def _round_up(x, m):
    return (x + m - 1) // m * m


def _perm_ch_to_hc(Cdim, H):
    # old row = c*H + h  ->  new row = h*Cdim + c
    return np.arange(Cdim * H).reshape(Cdim, H).transpose(1, 0).reshape(-1)


def _perm_chp_to_hcp(H, P):
    # old row = coord*(H*P) + h*P + p  ->  new row = h*(3*P) + coord*P + p
    return np.arange(3 * H * P).reshape(3, H, P).transpose(1, 0, 2).reshape(-1)


def _pick_vmem_limit_bytes():
    # v5e/v6e have 128 MiB physical VMEM, v7x only 64 MiB; keep ~16 MiB of
    # headroom for compiler-internal scratch, cap at ~100 MiB.
    try:
        cap = pltpu.get_tpu_info().vmem_capacity_bytes
    except Exception:
        cap = 64 * 1024 * 1024
    return int(max(32 * 1024 * 1024, min(cap - 16 * 1024 * 1024, 100 * 1024 * 1024)))


# ----------------------------------------------------------------------------
# Pallas kernel factory.  One (batch, query-tile, head-group) step per point.
# ----------------------------------------------------------------------------
def make_ipa_kernel(*, c_z, C, C8, PQ, PV, G, QP, KB, VB, cz8, CATP, mxu_dtype):

    def mm(a, b):                       # (M,K) x (K,N) -> (M,N)
        return jnp.dot(a.astype(mxu_dtype), b.astype(mxu_dtype),
                       preferred_element_type=jnp.float32)

    def mm_t(a, b):                     # contract leading: (K,M) x (K,N) -> (M,N)
        return lax.dot_general(a.astype(mxu_dtype), b.astype(mxu_dtype),
                               (((0,), (0,)), ((), ())),
                               preferred_element_type=jnp.float32)

    def mm_r(a, b):                     # contract trailing: (M,K) x (N,K) -> (M,N)
        return lax.dot_general(a.astype(mxu_dtype), b.astype(mxu_dtype),
                               (((1,), (1,)), ((), ())),
                               preferred_element_type=jnp.float32)

    def apply_pts(x, P, tr, tt):
        # local -> global:  out[i] = sum_j R[n,i,j] * x[j] + t[n,i]
        rows = []
        for i in range(3):
            acc = tt[i:i + 1, :]
            for j in range(3):
                acc = acc + tr[i, j:j + 1, :] * x[j * P:(j + 1) * P]
            rows.append(acc)
        return jnp.concatenate(rows, axis=0)            # (3*P, lanes)

    def invapply_pts(x, P, tr, tt):
        # global -> local:  out[i] = sum_j R[n,j,i] * (x[j] - t[n,j])
        rows = []
        for i in range(3):
            acc = tr[0, i:i + 1, :] * (x[0:P] - tt[0:1, :])
            for j in range(1, 3):
                acc = acc + tr[j, i:i + 1, :] * (x[j * P:(j + 1) * P] - tt[j:j + 1, :])
            rows.append(acc)
        return jnp.concatenate(rows, axis=0)            # (3*P, lanes)

    apad = KB - (C + 3 * PQ)

    def kernel(sq_ref, z_ref, bias_ref, kb_ref, vb_ref, trq_ref, ttq_ref,
               wqs_ref, wst_ref, wsn_ref, bs_ref,
               out_ref, acc_ref, nrm2_ref):
        hg = pl.program_id(2)
        n_hg = pl.num_programs(2)

        @pl.when(hg == 0)
        def _init():
            acc_ref[...] = jnp.zeros_like(acc_ref)
            nrm2_ref[...] = jnp.zeros_like(nrm2_ref)

        sq = sq_ref[0]                  # (c_s, TQ)   query-tile residues
        trq = trq_ref[0]                # (3, 3, TQ)  query rigid rotations
        ttq = ttq_ref[0]                # (3, TQ)     query rigid translations
        tq = sq.shape[-1]

        # One MXU matmul projects q / q-points for ALL G heads of this group.
        # (q rows are pre-scaled by w_l/sqrt(C) in the wrapper.)
        qs = mm(wqs_ref[...], sq)       # (G*QP, TQ)

        cat_pieces = []
        for g in range(G):
            b0 = g * QP
            q_h = qs[b0:b0 + C]
            qp_h = qs[b0 + C8:b0 + C8 + 3 * PQ]
            qg = apply_pts(qp_h, PQ, trq, ttq)           # (3*PQ, TQ)

            a_parts = [q_h, qg]
            if apad:
                a_parts.append(jnp.zeros((apad, tq), jnp.float32))
            a_side = jnp.concatenate(a_parts, axis=0)    # (KB, TQ)

            # Fused logits: w_l*qk/sqrt(C) + 2*w_l*g*qg.kg in one MXU matmul
            # (kg rows pre-scaled by 2*w_l*g in the wrapper).  The pair bias,
            # the -w_l*g*|kg|^2 row term and the key-pad mask are pre-folded
            # into bias_ref; the |qg|^2 per-query constant cancels in softmax.
            logits = mm_t(a_side, kb_ref[0, g]) + bias_ref[0, g]   # (TQ, N)

            mrow = jnp.max(logits, axis=-1, keepdims=True)
            e = jnp.exp(logits - mrow)
            a_h = e * pl.reciprocal(jnp.sum(e, axis=-1, keepdims=True),
                                    approx=True)

            # o1[c, i] = sum_j a[i, j] * z[c, i, j] : channel-wise 2-D tiles
            # (no (c_z, TQ, N) broadcast temporary).
            o1_rows = [jnp.sum(a_h * z_ref[0, c].astype(jnp.float32),
                               axis=-1)[None, :]
                       for c in range(c_z)]

            # o2 and the o3 pre-image share one attention x [v; vg] matmul.
            av = mm_r(vb_ref[0, g], a_h)                 # (VB, TQ)
            o2 = av[0:C]
            o3 = invapply_pts(av[C8:C8 + 3 * PV], PV, trq, ttq)   # (3*PV, TQ)
            nrm2_ref[...] += jnp.sum(o3 * o3, axis=0, keepdims=True)

            cat_pieces.extend(o1_rows)
            if cz8 > c_z:
                cat_pieces.append(jnp.zeros((cz8 - c_z, tq), jnp.float32))
            cat_pieces.append(o2)
            if C8 > C:
                cat_pieces.append(jnp.zeros((C8 - C, tq), jnp.float32))
            cat_pieces.append(o3)
            if CATP > cz8 + C8 + 3 * PV:
                cat_pieces.append(
                    jnp.zeros((CATP - cz8 - C8 - 3 * PV, tq), jnp.float32))

        cat = jnp.concatenate(cat_pieces, axis=0)        # (G*CATP, TQ)
        # All G heads' shares of the output 1x1 conv in one matmul (K=G*CATP).
        acc_ref[...] += mm_t(wst_ref[...], cat)          # (c_s, TQ)

        @pl.when(hg == n_hg - 1)
        def _fin():
            nrm = jnp.sqrt(nrm2_ref[...])                # (1, TQ)
            out_ref[0] = acc_ref[...] + wsn_ref[...] * nrm + bs_ref[...]

    return kernel


# ----------------------------------------------------------------------------
# Wrapper: pad, hoist key-side / pair-bias precompute, reorder weights, call.
# ----------------------------------------------------------------------------
def ipa_pallas(s, z, t_r, t_t, params, *, mxu_dtype=jnp.bfloat16,
               heads_per_step=4):
    f32 = jnp.float32
    hi = lax.Precision.HIGHEST
    B, c_s, N = s.shape
    c_z = z.shape[1]
    H, C, PQ, PV = params["H"], params["C"], params["PQ"], params["PV"]
    w_c = math.sqrt(2.0 / (9.0 * PQ))
    w_l = math.sqrt(1.0 / 3.0)
    inv_sqrt_c = 1.0 / math.sqrt(C)
    D_in = c_z * H + C * H + 3 * H * PV + 1

    # head-group size: G*QP = 128 fills the v5e MXU; use 8 on v6e/v7x if H allows.
    G = max(1, min(heads_per_step, H))
    while H % G:
        G -= 1
    n_hg = H // G

    # --- pad residue axis to lane-dense tiles --------------------------------
    TQ = 128
    Npad = _round_up(N, TQ)
    n_qt = Npad // TQ
    pad_n = Npad - N
    s_p = jnp.pad(s, ((0, 0), (0, 0), (0, pad_n)))
    z_p = jnp.pad(z, ((0, 0), (0, 0), (0, pad_n), (0, pad_n)))
    tr_p = jnp.pad(t_r, ((0, 0), (0, pad_n), (0, 0), (0, 0)))
    tt_p = jnp.pad(t_t, ((0, 0), (0, pad_n), (0, 0)))

    # --- head-major weights ---------------------------------------------------
    p_c = _perm_ch_to_hc(C, H)
    p_qp = _perm_chp_to_hcp(H, PQ)
    p_vp = _perm_chp_to_hcp(H, PV)
    wq = params["Wq"][p_c].reshape(H, C, c_s)
    wk = params["Wk"][p_c].reshape(H, C, c_s)
    wv = params["Wv"][p_c].reshape(H, C, c_s)
    wqp = params["Wqp"][p_qp].reshape(H, 3, PQ, c_s)
    wkp = params["Wkp"][p_qp].reshape(H, 3, PQ, c_s)
    wvp = params["Wvp"][p_vp].reshape(H, 3, PV, c_s)

    # --- key-side precompute (depends only on (b, h) -> hoisted out of kernel)
    g_h = _softplus(params["gamma"][:, 0, 0]) * (w_c * 0.5)          # (H,)
    tt_keys = jnp.transpose(tt_p, (0, 2, 1))                         # (B,3,Npad)

    k = jnp.einsum('hdc,bcn->bhdn', wk, s_p, precision=hi)           # (B,H,C,Npad)
    v = jnp.einsum('hdc,bcn->bhdn', wv, s_p, precision=hi)
    kp = jnp.einsum('hjpc,bcn->bhjpn', wkp, s_p, precision=hi)       # (B,H,3,PQ,Npad)
    vp = jnp.einsum('hjpc,bcn->bhjpn', wvp, s_p, precision=hi)
    kg = (jnp.einsum('bnij,bhjpn->bhipn', tr_p, kp, precision=hi)
          + tt_keys[:, None, :, None, :])                            # global key pts
    vg = (jnp.einsum('bnij,bhjpn->bhipn', tr_p, vp, precision=hi)
          + tt_keys[:, None, :, None, :])                            # global value pts
    kg2 = jnp.sum(kg * kg, axis=(2, 3))                              # (B,H,Npad)
    kg = kg.reshape(B, H, 3 * PQ, Npad)
    vg = vg.reshape(B, H, 3 * PV, Npad)

    C8 = _round_up(C, 8)
    cz8 = _round_up(c_z, 8)
    KB = _round_up(C + 3 * PQ, 8)
    VB = _round_up(C8 + 3 * PV, 8)
    QP = _round_up(C8 + 3 * PQ, 8)
    CAT0 = cz8 + C8 + 3 * PV
    CATP = _round_up(CAT0, 8)

    # fold the per-head point-attention scale into kg so the kernel needs no
    # per-head scalars at all.
    kg_scaled = kg * (2.0 * w_l * g_h)[None, :, None, None]
    kb_parts = [k, kg_scaled]
    if KB > C + 3 * PQ:
        kb_parts.append(jnp.zeros((B, H, KB - (C + 3 * PQ), Npad), f32))
    kb = jnp.concatenate(kb_parts, axis=2)                           # (B,H,KB,Npad)

    vb_parts = [v]
    if C8 > C:
        vb_parts.append(jnp.zeros((B, H, C8 - C, Npad), f32))
    vb_parts.append(vg)
    if VB > C8 + 3 * PV:
        vb_parts.append(jnp.zeros((B, H, VB - C8 - 3 * PV, Npad), f32))
    vb = jnp.concatenate(vb_parts, axis=2)                           # (B,H,VB,Npad)

    # --- pair bias + |kg|^2 row term + key-pad mask, pre-folded (f32) --------
    key_mask = jnp.where(jnp.arange(Npad) < N, 0.0, -1e9).astype(f32)
    pair_b = jnp.einsum('hc,bcij->bhij', params["Wb"], z_p, precision=hi)
    bias = (w_l * pair_b
            - (w_l * g_h)[None, :, None, None] * kg2[:, :, None, :]
            + key_mask[None, None, None, :])                         # (B,H,Npad,Npad)

    # --- q-side stacked weights (w_l/sqrt(C) folded into the q rows) ---------
    wqs_parts = [wq * (w_l * inv_sqrt_c)]
    if C8 > C:
        wqs_parts.append(jnp.zeros((H, C8 - C, c_s), f32))
    wqs_parts.append(wqp.reshape(H, 3 * PQ, c_s))
    if QP > C8 + 3 * PQ:
        wqs_parts.append(jnp.zeros((H, QP - C8 - 3 * PQ, c_s), f32))
    wq_stack = jnp.concatenate(wqs_parts, axis=1).reshape(H * QP, c_s)

    # --- output projection: per-head column blocks, transposed ---------------
    Ws = params["Ws"]
    cols_o1 = np.array([[c * H + h for c in range(c_z)] for h in range(H)])
    cols_o2 = np.array([[H * c_z + c * H + h for c in range(C)] for h in range(H)])
    cols_o3 = np.array([[H * c_z + H * C + coord * (H * PV) + h * PV + p
                         for coord in range(3) for p in range(PV)]
                        for h in range(H)])
    w_o1 = jnp.transpose(Ws[:, cols_o1], (1, 2, 0))                  # (H,c_z,c_s)
    w_o2 = jnp.transpose(Ws[:, cols_o2], (1, 2, 0))                  # (H,C,c_s)
    w_o3 = jnp.transpose(Ws[:, cols_o3], (1, 2, 0))                  # (H,3PV,c_s)
    ws_parts = [w_o1]
    if cz8 > c_z:
        ws_parts.append(jnp.zeros((H, cz8 - c_z, c_s), f32))
    ws_parts.append(w_o2)
    if C8 > C:
        ws_parts.append(jnp.zeros((H, C8 - C, c_s), f32))
    ws_parts.append(w_o3)
    if CATP > CAT0:
        ws_parts.append(jnp.zeros((H, CATP - CAT0, c_s), f32))
    ws_stack = jnp.concatenate(ws_parts, axis=1).reshape(H * CATP, c_s)

    ws_nrm = Ws[:, D_in - 1:D_in]                                    # (c_s, 1)
    bs2 = params["bs"][:, None]                                      # (c_s, 1)

    # --- cast MXU / streamed operands ----------------------------------------
    kb = kb.astype(mxu_dtype)
    vb = vb.astype(mxu_dtype)
    z_k = z_p.astype(mxu_dtype)
    wq_stack = wq_stack.astype(mxu_dtype)
    ws_stack = ws_stack.astype(mxu_dtype)
    tr_kernel = jnp.transpose(tr_p, (0, 2, 3, 1))                    # (B,3,3,Npad)
    tt_kernel = tt_keys                                              # (B,3,Npad)

    kernel = make_ipa_kernel(c_z=c_z, C=C, C8=C8, PQ=PQ, PV=PV, G=G, QP=QP,
                             KB=KB, VB=VB, cz8=cz8, CATP=CATP,
                             mxu_dtype=mxu_dtype)

    out = pl.pallas_call(
        kernel,
        grid=(B, n_qt, n_hg),
        in_specs=[
            pl.BlockSpec((1, c_s, TQ), lambda b, q, hg: (b, 0, q)),            # s (q tile)
            pl.BlockSpec((1, c_z, TQ, Npad), lambda b, q, hg: (b, 0, q, 0)),   # z tile
            pl.BlockSpec((1, G, TQ, Npad), lambda b, q, hg: (b, hg, q, 0)),    # bias tile
            pl.BlockSpec((1, G, KB, Npad), lambda b, q, hg: (b, hg, 0, 0)),    # [k; kg*2wlg]
            pl.BlockSpec((1, G, VB, Npad), lambda b, q, hg: (b, hg, 0, 0)),    # [v; vg]
            pl.BlockSpec((1, 3, 3, TQ), lambda b, q, hg: (b, 0, 0, q)),        # t_r (queries)
            pl.BlockSpec((1, 3, TQ), lambda b, q, hg: (b, 0, q)),              # t_t (queries)
            pl.BlockSpec((G * QP, c_s), lambda b, q, hg: (hg, 0)),             # q-side weights
            pl.BlockSpec((G * CATP, c_s), lambda b, q, hg: (hg, 0)),           # out-proj weights
            pl.BlockSpec((c_s, 1), lambda b, q, hg: (0, 0)),                   # Ws norm column
            pl.BlockSpec((c_s, 1), lambda b, q, hg: (0, 0)),                   # conv bias
        ],
        out_specs=pl.BlockSpec((1, c_s, TQ), lambda b, q, hg: (b, 0, q)),
        out_shape=jax.ShapeDtypeStruct((B, c_s, Npad), jnp.float32),
        scratch_shapes=[pltpu.VMEM((c_s, TQ), jnp.float32),   # output accumulator
                        pltpu.VMEM((1, TQ), jnp.float32)],    # sum of o3^2 over heads
        compiler_params=pltpu.CompilerParams(
            dimension_semantics=("parallel", "parallel", "arbitrary"),
            vmem_limit_bytes=_pick_vmem_limit_bytes()),
    )(s_p, z_k, bias, kb, vb, tr_kernel, tt_kernel,
      wq_stack, ws_stack, ws_nrm, bs2)

    return out[:, :, :N]


# ----------------------------------------------------------------------------
# Pure-JAX reference mirroring the PyTorch module exactly (verification only).
# ----------------------------------------------------------------------------
def ipa_reference(s, z, t_r, t_t, params):
    B, c_s, N = s.shape
    c_z = z.shape[1]
    H, C, PQ, PV = params["H"], params["C"], params["PQ"], params["PV"]
    w_c = math.sqrt(2.0 / (9.0 * PQ))
    w_l = math.sqrt(1.0 / 3.0)
    hi = jax.lax.Precision.HIGHEST

    def conv1d(w, x):
        return jnp.einsum('oc,bcn->bon', w, x, precision=hi)

    q = conv1d(params["Wq"], s).reshape(B, C, H, N)
    k = conv1d(params["Wk"], s).reshape(B, C, H, N)
    v = conv1d(params["Wv"], s).reshape(B, C, H, N)
    qp = conv1d(params["Wqp"], s).reshape(B, 3, H, PQ, N)
    kp = conv1d(params["Wkp"], s).reshape(B, 3, H, PQ, N)
    vp = conv1d(params["Wvp"], s).reshape(B, 3, H, PV, N)

    def apply_t(x):
        y = jnp.einsum('bnij,bjhpn->bihpn', t_r, x, precision=hi)
        return y + jnp.transpose(t_t, (0, 2, 1))[:, :, None, None, :]

    qg, kg, vg = apply_t(qp), apply_t(kp), apply_t(vp)
    diff = qg[..., :, None] - kg[..., None, :]
    d2 = jnp.sum(jnp.sum(diff * diff, axis=1), axis=-3)
    tmp = _softplus(params["gamma"])[None] * (w_c / 2.0) * d2
    bz = jnp.einsum('hc,bcij->bhij', params["Wb"], z, precision=hi)
    qk = jnp.einsum('bchi,bchj->bhij', q, k, precision=hi) / math.sqrt(C)
    a = jax.nn.softmax(w_l * (qk + bz - tmp), axis=-1)

    o1 = jnp.einsum('bhij,bcij->bchi', a, z, precision=hi).reshape(B, c_z * H, N)
    o2 = jnp.einsum('bhij,bchj->bchi', a, v, precision=hi).reshape(B, C * H, N)
    o3_ = jnp.einsum('bhij,bchpj->bchpi', a, vg, precision=hi)
    tr_inv = jnp.swapaxes(t_r, -1, -2)
    tt_inv = jnp.einsum('bnij,bnj->bni', -tr_inv, t_t, precision=hi)
    o3 = (jnp.einsum('bnij,bjhpn->bihpn', tr_inv, o3_, precision=hi)
          + jnp.transpose(tt_inv, (0, 2, 1))[:, :, None, None, :])
    o3 = o3.reshape(B, 3 * H * PV, N)
    nrm = jnp.sqrt(jnp.sum(o3 * o3, axis=1, keepdims=True))
    cat = jnp.concatenate([o1, o2, o3, nrm], axis=1)
    return (jnp.einsum('oc,bcn->bon', params["Ws"], cat, precision=hi)
            + params["bs"][None, :, None])


def _quat_to_rotmat(q):
    w, x, y, z = q[..., 0], q[..., 1], q[..., 2], q[..., 3]
    return jnp.stack([
        jnp.stack([1 - 2 * (y * y + z * z), 2 * (x * y - z * w), 2 * (x * z + y * w)], axis=-1),
        jnp.stack([2 * (x * y + z * w), 1 - 2 * (x * x + z * z), 2 * (y * z - x * w)], axis=-1),
        jnp.stack([2 * (x * z - y * w), 2 * (y * z + x * w), 1 - 2 * (x * x + y * y)], axis=-1),
    ], axis=-2)


if __name__ == "__main__":
    B, N = 2, 16
    c_s, c_z = 32, 8
    H, C, PQ, PV = 12, 16, 4, 8
    D_in = c_z * H + C * H + 3 * H * PV + 1
    f32 = jnp.float32

    key = jax.random.PRNGKey(0)
    keys = jax.random.split(key, 16)
    params = {
        "H": H, "C": C, "PQ": PQ, "PV": PV,
        "Wq": jax.random.normal(keys[0], (C * H, c_s), f32) / math.sqrt(c_s),
        "Wk": jax.random.normal(keys[1], (C * H, c_s), f32) / math.sqrt(c_s),
        "Wv": jax.random.normal(keys[2], (C * H, c_s), f32) / math.sqrt(c_s),
        "Wqp": jax.random.normal(keys[3], (3 * H * PQ, c_s), f32) / math.sqrt(c_s),
        "Wkp": jax.random.normal(keys[4], (3 * H * PQ, c_s), f32) / math.sqrt(c_s),
        "Wvp": jax.random.normal(keys[5], (3 * H * PV, c_s), f32) / math.sqrt(c_s),
        "Wb": jax.random.normal(keys[6], (H, c_z), f32) / math.sqrt(c_z),
        "gamma": jax.random.normal(keys[7], (H, 1, 1), f32) * 0.5,
        "Ws": jax.random.normal(keys[8], (c_s, D_in), f32) / math.sqrt(D_in),
        "bs": jax.random.normal(keys[9], (c_s,), f32) * 0.1,
    }

    s = jax.random.normal(keys[10], (B, c_s, N), f32)
    z = jax.random.normal(keys[11], (B, c_z, N, N), f32)
    quat = jax.random.normal(keys[12], (B, N, 4), f32)
    quat = quat / jnp.linalg.norm(quat, axis=-1, keepdims=True)
    t_r = _quat_to_rotmat(quat)                              # (B, N, 3, 3)
    t_t = jax.random.normal(keys[13], (B, N, 3), f32)        # (B, N, 3)

    # default (bf16 MXU operands) and exact-ish (f32 MXU operands) paths
    out = jax.block_until_ready(ipa_pallas(s, z, t_r, t_t, params))
    out_f32 = jax.block_until_ready(
        ipa_pallas(s, z, t_r, t_t, params, mxu_dtype=jnp.float32))
    ref = jax.block_until_ready(ipa_reference(s, z, t_r, t_t, params))

    assert out.shape == (B, c_s, N) and out.dtype == jnp.float32

    # f32 MXU path: only the EUP approx reciprocal in softmax is approximate.
    if not bool(jnp.allclose(out_f32, ref, atol=2e-2, rtol=2e-2)):
        err = float(jnp.max(jnp.abs(out_f32 - ref)))
        raise AssertionError(f"f32 Pallas IPA mismatch vs reference: max abs err = {err}")

    # bf16 MXU path (default / perf): normwise + loose elementwise bounds
    # sized for bf16 operand rounding with f32 accumulation.
    rel = float(jnp.linalg.norm(out - ref) / jnp.linalg.norm(ref))
    max_err = float(jnp.max(jnp.abs(out - ref)))
    if not (rel < 5e-2 and max_err < 2.5e-1):
        raise AssertionError(
            f"bf16 Pallas IPA mismatch vs reference: rel l2 = {rel}, max abs = {max_err}")

    print("KERNEL_OK")
</pallas_src>

<mosaic_0001>
module attributes {stable_mosaic.version = 11 : i64} {
  func.func @kernel(%arg0: i32, %arg1: i32, %arg2: i32, %arg3: memref<1x32x128xf32, #tpu.memory_space<vmem>>, %arg4: memref<1x8x128x128xbf16, #tpu.memory_space<vmem>>, %arg5: memref<1x4x128x128xf32, #tpu.memory_space<vmem>>, %arg6: memref<1x4x32x128xbf16, #tpu.memory_space<vmem>>, %arg7: memref<1x4x40x128xbf16, #tpu.memory_space<vmem>>, %arg8: memref<1x3x3x128xf32, #tpu.memory_space<vmem>>, %arg9: memref<1x3x128xf32, #tpu.memory_space<vmem>>, %arg10: memref<128x32xbf16, #tpu.memory_space<vmem>>, %arg11: memref<192x32xbf16, #tpu.memory_space<vmem>>, %arg12: memref<32x1xf32, #tpu.memory_space<vmem>>, %arg13: memref<32x1xf32, #tpu.memory_space<vmem>>, %arg14: memref<1x32x128xf32, #tpu.memory_space<vmem>>, %arg15: memref<32x128xf32, #tpu.memory_space<vmem>>, %arg16: memref<1x128xf32, #tpu.memory_space<vmem>>) attributes {dimension_semantics = [#tpu.dimension_semantics<parallel>, #tpu.dimension_semantics<parallel>, #tpu.dimension_semantics<arbitrary>], iteration_bounds = array<i64: 2, 1, 3>, scalar_prefetch = 0 : i64, scratch_operands = 2 : i64, tpu.core_type = #tpu.core_type<tc>, window_params = [{transform_indices = @transform_0, window_bounds = array<i64: 1, 32, 128>}, {transform_indices = @transform_1, window_bounds = array<i64: 1, 8, 128, 128>}, {transform_indices = @transform_2, window_bounds = array<i64: 1, 4, 128, 128>}, {transform_indices = @transform_3, window_bounds = array<i64: 1, 4, 32, 128>}, {transform_indices = @transform_4, window_bounds = array<i64: 1, 4, 40, 128>}, {transform_indices = @transform_5, window_bounds = array<i64: 1, 3, 3, 128>}, {transform_indices = @transform_6, window_bounds = array<i64: 1, 3, 128>}, {transform_indices = @transform_7, window_bounds = array<i64: 128, 32>}, {transform_indices = @transform_8, window_bounds = array<i64: 192, 32>}, {pipeline_mode = #tpu.pipeline_mode<synchronous>, transform_indices = @transform_9, window_bounds = array<i64: 32, 1>}, {pipeline_mode = #tpu.pipeline_mode<synchronous>, transform_indices = @transform_10, window_bounds = array<i64: 32, 1>}, {transform_indices = @transform_11, window_bounds = array<i64: 1, 32, 128>}]} {
    %c0_i32 = arith.constant 0 : i32
    %0 = arith.cmpi eq, %arg2, %c0_i32 : i32
    %1 = arith.extui %0 : i1 to i32
    %c0_i32_0 = arith.constant 0 : i32
    %2 = arith.cmpi ne, %1, %c0_i32_0 : i32
    scf.if %2 {
      %cst_261 = arith.constant 0.000000e+00 : f32
      %909 = vector.broadcast %cst_261 : f32 to vector<32x128xf32>
      %c0_262 = arith.constant 0 : index
      %c0_263 = arith.constant 0 : index
      %910 = vector.load %arg15[%c0_262, %c0_263] : memref<32x128xf32, #tpu.memory_space<vmem>>, vector<32x128xf32>
      tpu.vector_store %arg15[%c0_262, %c0_263], %909 {strides = array<i32>} : memref<32x128xf32, #tpu.memory_space<vmem>>, vector<32x128xf32>,
      %cst_264 = arith.constant 0.000000e+00 : f32
      %911 = vector.broadcast %cst_264 : f32 to vector<1x128xf32>
      %c0_265 = arith.constant 0 : index
      %c0_266 = arith.constant 0 : index
      %912 = vector.load %arg16[%c0_265, %c0_266] : memref<1x128xf32, #tpu.memory_space<vmem>>, vector<1x128xf32>
      tpu.vector_store %arg16[%c0_265, %c0_266], %911 {strides = array<i32>} : memref<1x128xf32, #tpu.memory_space<vmem>>, vector<1x128xf32>,
    } else {
    }
    %c0 = arith.constant 0 : index
    %c0_1 = arith.constant 0 : index
    %c0_2 = arith.constant 0 : index
    %3 = vector.load %arg3[%c0, %c0_1, %c0_2] : memref<1x32x128xf32, #tpu.memory_space<vmem>>, vector<1x32x128xf32>
    %4 = vector.shape_cast %3 : vector<1x32x128xf32> to vector<32x128xf32>
    %c0_3 = arith.constant 0 : index
    %c0_4 = arith.constant 0 : index
    %c0_5 = arith.constant 0 : index
    %c0_6 = arith.constant 0 : index
    %5 = vector.load %arg8[%c0_3, %c0_4, %c0_5, %c0_6] : memref<1x3x3x128xf32, #tpu.memory_space<vmem>>, vector<1x3x3x128xf32>
    %6 = vector.shape_cast %5 : vector<1x3x3x128xf32> to vector<3x3x128xf32>
    %c0_7 = arith.constant 0 : index
    %c0_8 = arith.constant 0 : index
    %c0_9 = arith.constant 0 : index
    %7 = vector.load %arg9[%c0_7, %c0_8, %c0_9] : memref<1x3x128xf32, #tpu.memory_space<vmem>>, vector<1x3x128xf32>
    %8 = vector.shape_cast %7 : vector<1x3x128xf32> to vector<3x128xf32>
    %c0_10 = arith.constant 0 : index
    %c0_11 = arith.constant 0 : index
    %9 = vector.load %arg10[%c0_10, %c0_11] : memref<128x32xbf16, #tpu.memory_space<vmem>>, vector<128x32xbf16>
    %10 = arith.truncf %4 : vector<32x128xf32> to vector<32x128xbf16>
    %cst = arith.constant dense<0.000000e+00> : vector<128x128xf32>
    %11 = tpu.matmul %9, %10, %cst {dimension_numbers = #tpu.dot_dimension_numbers<[1], [0], [0], [1], [0, 0, 1, 1], [], []>} : vector<128x32xbf16>, vector<32x128xbf16>, vector<128x128xf32> -> vector<128x128xf32>
    %12 = vector.extract_strided_slice %11 {offsets = [0, 0], sizes = [16, 128], strides = [1, 1]} : vector<128x128xf32> to vector<16x128xf32>
    %13 = vector.extract_strided_slice %11 {offsets = [16, 0], sizes = [12, 128], strides = [1, 1]} : vector<128x128xf32> to vector<12x128xf32>
    %14 = vector.extract_strided_slice %8 {offsets = [0, 0], sizes = [1, 128], strides = [1, 1]} : vector<3x128xf32> to vector<1x128xf32>
    %15 = vector.extract_strided_slice %6 {offsets = [0, 0, 0], sizes = [1, 1, 128], strides = [1, 1, 1]} : vector<3x3x128xf32> to vector<1x1x128xf32>
    %16 = vector.shape_cast %15 : vector<1x1x128xf32> to vector<1x128xf32>
    %17 = vector.extract_strided_slice %13 {offsets = [0, 0], sizes = [4, 128], strides = [1, 1]} : vector<12x128xf32> to vector<4x128xf32>
    %18 = vector.broadcast %16 : vector<1x128xf32> to vector<4x128xf32>
    %19 = arith.mulf %18, %17 : vector<4x128xf32>
    %20 = vector.broadcast %14 : vector<1x128xf32> to vector<4x128xf32>
    %21 = arith.addf %20, %19 : vector<4x128xf32>
    %22 = vector.extract_strided_slice %6 {offsets = [0, 1, 0], sizes = [1, 1, 128], strides = [1, 1, 1]} : vector<3x3x128xf32> to vector<1x1x128xf32>
    %23 = vector.shape_cast %22 : vector<1x1x128xf32> to vector<1x128xf32>
    %24 = vector.extract_strided_slice %13 {offsets = [4, 0], sizes = [4, 128], strides = [1, 1]} : vector<12x128xf32> to vector<4x128xf32>
    %25 = vector.broadcast %23 : vector<1x128xf32> to vector<4x128xf32>
    %26 = arith.mulf %25, %24 : vector<4x128xf32>
    %27 = arith.addf %21, %26 : vector<4x128xf32>
    %28 = vector.extract_strided_slice %6 {offsets = [0, 2, 0], sizes = [1, 1, 128], strides = [1, 1, 1]} : vector<3x3x128xf32> to vector<1x1x128xf32>
    %29 = vector.shape_cast %28 : vector<1x1x128xf32> to vector<1x128xf32>
    %30 = vector.extract_strided_slice %13 {offsets = [8, 0], sizes = [4, 128], strides = [1, 1]} : vector<12x128xf32> to vector<4x128xf32>
    %31 = vector.broadcast %29 : vector<1x128xf32> to vector<4x128xf32>
    %32 = arith.mulf %31, %30 : vector<4x128xf32>
    %33 = arith.addf %27, %32 : vector<4x128xf32>
    %34 = vector.extract_strided_slice %8 {offsets = [1, 0], sizes = [1, 128], strides = [1, 1]} : vector<3x128xf32> to vector<1x128xf32>
    %35 = vector.extract_strided_slice %6 {offsets = [1, 0, 0], sizes = [1, 1, 128], strides = [1, 1, 1]} : vector<3x3x128xf32> to vector<1x1x128xf32>
    %36 = vector.shape_cast %35 : vector<1x1x128xf32> to vector<1x128xf32>
    %37 = vector.extract_strided_slice %13 {offsets = [0, 0], sizes = [4, 128], strides = [1, 1]} : vector<12x128xf32> to vector<4x128xf32>
    %38 = vector.broadcast %36 : vector<1x128xf32> to vector<4x128xf32>
    %39 = arith.mulf %38, %37 : vector<4x128xf32>
    %40 = vector.broadcast %34 : vector<1x128xf32> to vector<4x128xf32>
    %41 = arith.addf %40, %39 : vector<4x128xf32>
    %42 = vector.extract_strided_slice %6 {offsets = [1, 1, 0], sizes = [1, 1, 128], strides = [1, 1, 1]} : vector<3x3x128xf32> to vector<1x1x128xf32>
    %43 = vector.shape_cast %42 : vector<1x1x128xf32> to vector<1x128xf32>
    %44 = vector.extract_strided_slice %13 {offsets = [4, 0], sizes = [4, 128], strides = [1, 1]} : vector<12x128xf32> to vector<4x128xf32>
    %45 = vector.broadcast %43 : vector<1x128xf32> to vector<4x128xf32>
    %46 = arith.mulf %45, %44 : vector<4x128xf32>
    %47 = arith.addf %41, %46 : vector<4x128xf32>
    %48 = vector.extract_strided_slice %6 {offsets = [1, 2, 0], sizes = [1, 1, 128], strides = [1, 1, 1]} : vector<3x3x128xf32> to vector<1x1x128xf32>
    %49 = vector.shape_cast %48 : vector<1x1x128xf32> to vector<1x128xf32>
    %50 = vector.extract_strided_slice %13 {offsets = [8, 0], sizes = [4, 128], strides = [1, 1]} : vector<12x128xf32> to vector<4x128xf32>
    %51 = vector.broadcast %49 : vector<1x128xf32> to vector<4x128xf32>
    %52 = arith.mulf %51, %50 : vector<4x128xf32>
    %53 = arith.addf %47, %52 : vector<4x128xf32>
    %54 = vector.extract_strided_slice %8 {offsets = [2, 0], sizes = [1, 128], strides = [1, 1]} : vector<3x128xf32> to vector<1x128xf32>
    %55 = vector.extract_strided_slice %6 {offsets = [2, 0, 0], sizes = [1, 1, 128], strides = [1, 1, 1]} : vector<3x3x128xf32> to vector<1x1x128xf32>
    %56 = vector.shape_cast %55 : vector<1x1x128xf32> to vector<1x128xf32>
    %57 = vector.extract_strided_slice %13 {offsets = [0, 0], sizes = [4, 128], strides = [1, 1]} : vector<12x128xf32> to vector<4x128xf32>
    %58 = vector.broadcast %56 : vector<1x128xf32> to vector<4x128xf32>
    %59 = arith.mulf %58, %57 : vector<4x128xf32>
    %60 = vector.broadcast %54 : vector<1x128xf32> to vector<4x128xf32>
    %61 = arith.addf %60, %59 : vector<4x128xf32>
    %62 = vector.extract_strided_slice %6 {offsets = [2, 1, 0], sizes = [1, 1, 128], strides = [1, 1, 1]} : vector<3x3x128xf32> to vector<1x1x128xf32>
    %63 = vector.shape_cast %62 : vector<1x1x128xf32> to vector<1x128xf32>
    %64 = vector.extract_strided_slice %13 {offsets = [4, 0], sizes = [4, 128], strides = [1, 1]} : vector<12x128xf32> to vector<4x128xf32>
    %65 = vector.broadcast %63 : vector<1x128xf32> to vector<4x128xf32>
    %66 = arith.mulf %65, %64 : vector<4x128xf32>
    %67 = arith.addf %61, %66 : vector<4x128xf32>
    %68 = vector.extract_strided_slice %6 {offsets = [2, 2, 0], sizes = [1, 1, 128], strides = [1, 1, 1]} : vector<3x3x128xf32> to vector<1x1x128xf32>
    %69 = vector.shape_cast %68 : vector<1x1x128xf32> to vector<1x128xf32>
    %70 = vector.extract_strided_slice %13 {offsets = [8, 0], sizes = [4, 128], strides = [1, 1]} : vector<12x128xf32> to vector<4x128xf32>
    %71 = vector.broadcast %69 : vector<1x128xf32> to vector<4x128xf32>
    %72 = arith.mulf %71, %70 : vector<4x128xf32>
    %73 = arith.addf %67, %72 : vector<4x128xf32>
    %74 = tpu.concatenate %33, %53, %73 in 0 : vector<4x128xf32>, vector<4x128xf32>, vector<4x128xf32> -> vector<12x128xf32>
    %cst_12 = arith.constant 0.000000e+00 : f32
    %75 = vector.broadcast %cst_12 : f32 to vector<4x128xf32>
    %76 = tpu.concatenate %12, %74, %75 in 0 : vector<16x128xf32>, vector<12x128xf32>, vector<4x128xf32> -> vector<32x128xf32>
    %c0_13 = arith.constant 0 : index
    %c0_14 = arith.constant 0 : index
    %c0_15 = arith.constant 0 : index
    %c0_16 = arith.constant 0 : index
    %77 = vector.load %arg6[%c0_13, %c0_14, %c0_15, %c0_16] : memref<1x4x32x128xbf16, #tpu.memory_space<vmem>>, vector<1x1x32x128xbf16>
    %78 = vector.shape_cast %77 : vector<1x1x32x128xbf16> to vector<32x128xbf16>
    %79 = arith.truncf %76 : vector<32x128xf32> to vector<32x128xbf16>
    %cst_17 = arith.constant dense<0.000000e+00> : vector<128x128xf32>
    %80 = tpu.matmul %79, %78, %cst_17 {dimension_numbers = #tpu.dot_dimension_numbers<[0], [0], [1], [1], [0, 1, 1, 1], [], []>} : vector<32x128xbf16>, vector<32x128xbf16>, vector<128x128xf32> -> vector<128x128xf32>
    %c0_18 = arith.constant 0 : index
    %c0_19 = arith.constant 0 : index
    %c0_20 = arith.constant 0 : index
    %c0_21 = arith.constant 0 : index
    %81 = vector.load %arg5[%c0_18, %c0_19, %c0_20, %c0_21] : memref<1x4x128x128xf32, #tpu.memory_space<vmem>>, vector<1x1x128x128xf32>
    %82 = vector.shape_cast %81 : vector<1x1x128x128xf32> to vector<128x128xf32>
    %83 = arith.addf %80, %82 : vector<128x128xf32>
    %cst_22 = arith.constant dense<0xFF800000> : vector<128xf32>
    %84 = vector.multi_reduction <maximumf>, %83, %cst_22 [1] : vector<128x128xf32> to vector<128xf32>
    %85 = vector.shape_cast %84 : vector<128xf32> to vector<128x1xf32>
    %86 = vector.broadcast %85 : vector<128x1xf32> to vector<128x128xf32>
    %87 = arith.subf %83, %86 : vector<128x128xf32>
    %88 = math.exp %87 : vector<128x128xf32>
    %cst_23 = arith.constant dense<0.000000e+00> : vector<128xf32>
    %89 = vector.multi_reduction <add>, %88, %cst_23 [1] : vector<128x128xf32> to vector<128xf32>
    %90 = vector.shape_cast %89 : vector<128xf32> to vector<128x1xf32>
    %91 = tpu.reciprocal %90 {approx = true} : vector<128x1xf32> -> vector<128x1xf32>
    %92 = vector.broadcast %91 : vector<128x1xf32> to vector<128x128xf32>
    %93 = arith.mulf %88, %92 : vector<128x128xf32>
    %c0_24 = arith.constant 0 : index
    %c0_25 = arith.constant 0 : index
    %c0_26 = arith.constant 0 : index
    %c0_27 = arith.constant 0 : index
    %94 = vector.load %arg4[%c0_24, %c0_25, %c0_26, %c0_27] : memref<1x8x128x128xbf16, #tpu.memory_space<vmem>>, vector<1x1x128x128xbf16>
    %95 = vector.shape_cast %94 : vector<1x1x128x128xbf16> to vector<128x128xbf16>
    %96 = arith.extf %95 : vector<128x128xbf16> to vector<128x128xf32>
    %97 = arith.mulf %93, %96 : vector<128x128xf32>
    %cst_28 = arith.constant dense<0.000000e+00> : vector<128xf32>
    %98 = vector.multi_reduction <add>, %97, %cst_28 [1] : vector<128x128xf32> to vector<128xf32>
    %99 = vector.shape_cast %98 : vector<128xf32> to vector<1x128xf32>
    %c0_29 = arith.constant 0 : index
    %c1 = arith.constant 1 : index
    %c0_30 = arith.constant 0 : index
    %c0_31 = arith.constant 0 : index
    %100 = vector.load %arg4[%c0_29, %c1, %c0_30, %c0_31] : memref<1x8x128x128xbf16, #tpu.memory_space<vmem>>, vector<1x1x128x128xbf16>
    %101 = vector.shape_cast %100 : vector<1x1x128x128xbf16> to vector<128x128xbf16>
    %102 = arith.extf %101 : vector<128x128xbf16> to vector<128x128xf32>
    %103 = arith.mulf %93, %102 : vector<128x128xf32>
    %cst_32 = arith.constant dense<0.000000e+00> : vector<128xf32>
    %104 = vector.multi_reduction <add>, %103, %cst_32 [1] : vector<128x128xf32> to vector<128xf32>
    %105 = vector.shape_cast %104 : vector<128xf32> to vector<1x128xf32>
    %c0_33 = arith.constant 0 : index
    %c2 = arith.constant 2 : index
    %c0_34 = arith.constant 0 : index
    %c0_35 = arith.constant 0 : index
    %106 = vector.load %arg4[%c0_33, %c2, %c0_34, %c0_35] : memref<1x8x128x128xbf16, #tpu.memory_space<vmem>>, vector<1x1x128x128xbf16>
    %107 = vector.shape_cast %106 : vector<1x1x128x128xbf16> to vector<128x128xbf16>
    %108 = arith.extf %107 : vector<128x128xbf16> to vector<128x128xf32>
    %109 = arith.mulf %93, %108 : vector<128x128xf32>
    %cst_36 = arith.constant dense<0.000000e+00> : vector<128xf32>
    %110 = vector.multi_reduction <add>, %109, %cst_36 [1] : vector<128x128xf32> to vector<128xf32>
    %111 = vector.shape_cast %110 : vector<128xf32> to vector<1x128xf32>
    %c0_37 = arith.constant 0 : index
    %c3 = arith.constant 3 : index
    %c0_38 = arith.constant 0 : index
    %c0_39 = arith.constant 0 : index
    %112 = vector.load %arg4[%c0_37, %c3, %c0_38, %c0_39] : memref<1x8x128x128xbf16, #tpu.memory_space<vmem>>, vector<1x1x128x128xbf16>
    %113 = vector.shape_cast %112 : vector<1x1x128x128xbf16> to vector<128x128xbf16>
    %114 = arith.extf %113 : vector<128x128xbf16> to vector<128x128xf32>
    %115 = arith.mulf %93, %114 : vector<128x128xf32>
    %cst_40 = arith.constant dense<0.000000e+00> : vector<128xf32>
    %116 = vector.multi_reduction <add>, %115, %cst_40 [1] : vector<128x128xf32> to vector<128xf32>
    %117 = vector.shape_cast %116 : vector<128xf32> to vector<1x128xf32>
    %c0_41 = arith.constant 0 : index
    %c4 = arith.constant 4 : index
    %c0_42 = arith.constant 0 : index
    %c0_43 = arith.constant 0 : index
    %118 = vector.load %arg4[%c0_41, %c4, %c0_42, %c0_43] : memref<1x8x128x128xbf16, #tpu.memory_space<vmem>>, vector<1x1x128x128xbf16>
    %119 = vector.shape_cast %118 : vector<1x1x128x128xbf16> to vector<128x128xbf16>
    %120 = arith.extf %119 : vector<128x128xbf16> to vector<128x128xf32>
    %121 = arith.mulf %93, %120 : vector<128x128xf32>
    %cst_44 = arith.constant dense<0.000000e+00> : vector<128xf32>
    %122 = vector.multi_reduction <add>, %121, %cst_44 [1] : vector<128x128xf32> to vector<128xf32>
    %123 = vector.shape_cast %122 : vector<128xf32> to vector<1x128xf32>
    %c0_45 = arith.constant 0 : index
    %c5 = arith.constant 5 : index
    %c0_46 = arith.constant 0 : index
    %c0_47 = arith.constant 0 : index
    %124 = vector.load %arg4[%c0_45, %c5, %c0_46, %c0_47] : memref<1x8x128x128xbf16, #tpu.memory_space<vmem>>, vector<1x1x128x128xbf16>
    %125 = vector.shape_cast %124 : vector<1x1x128x128xbf16> to vector<128x128xbf16>
    %126 = arith.extf %125 : vector<128x128xbf16> to vector<128x128xf32>
    %127 = arith.mulf %93, %126 : vector<128x128xf32>
    %cst_48 = arith.constant dense<0.000000e+00> : vector<128xf32>
    %128 = vector.multi_reduction <add>, %127, %cst_48 [1] : vector<128x128xf32> to vector<128xf32>
    %129 = vector.shape_cast %128 : vector<128xf32> to vector<1x128xf32>
    %c0_49 = arith.constant 0 : index
    %c6 = arith.constant 6 : index
    %c0_50 = arith.constant 0 : index
    %c0_51 = arith.constant 0 : index
    %130 = vector.load %arg4[%c0_49, %c6, %c0_50, %c0_51] : memref<1x8x128x128xbf16, #tpu.memory_space<vmem>>, vector<1x1x128x128xbf16>
    %131 = vector.shape_cast %130 : vector<1x1x128x128xbf16> to vector<128x128xbf16>
    %132 = arith.extf %131 : vector<128x128xbf16> to vector<128x128xf32>
    %133 = arith.mulf %93, %132 : vector<128x128xf32>
    %cst_52 = arith.constant dense<0.000000e+00> : vector<128xf32>
    %134 = vector.multi_reduction <add>, %133, %cst_52 [1] : vector<128x128xf32> to vector<128xf32>
    %135 = vector.shape_cast %134 : vector<128xf32> to vector<1x128xf32>
    %c0_53 = arith.constant 0 : index
    %c7 = arith.constant 7 : index
    %c0_54 = arith.constant 0 : index
    %c0_55 = arith.constant 0 : index
    %136 = vector.load %arg4[%c0_53, %c7, %c0_54, %c0_55] : memref<1x8x128x128xbf16, #tpu.memory_space<vmem>>, vector<1x1x128x128xbf16>
    %137 = vector.shape_cast %136 : vector<1x1x128x128xbf16> to vector<128x128xbf16>
    %138 = arith.extf %137 : vector<128x128xbf16> to vector<128x128xf32>
    %139 = arith.mulf %93, %138 : vector<128x128xf32>
    %cst_56 = arith.constant dense<0.000000e+00> : vector<128xf32>
    %140 = vector.multi_reduction <add>, %139, %cst_56 [1] : vector<128x128xf32> to vector<128xf32>
    %141 = vector.shape_cast %140 : vector<128xf32> to vector<1x128xf32>
    %c0_57 = arith.constant 0 : index
    %c0_58 = arith.constant 0 : index
    %c0_59 = arith.constant 0 : index
    %c0_60 = arith.constant 0 : index
    %142 = vector.load %arg7[%c0_57, %c0_58, %c0_59, %c0_60] : memref<1x4x40x128xbf16, #tpu.memory_space<vmem>>, vector<1x1x40x128xbf16>
    %143 = vector.shape_cast %142 : vector<1x1x40x128xbf16> to vector<40x128xbf16>
    %144 = arith.truncf %93 : vector<128x128xf32> to vector<128x128xbf16>
    %cst_61 = arith.constant dense<0.000000e+00> : vector<40x128xf32>
    %145 = tpu.matmul %143, %144, %cst_61 {dimension_numbers = #tpu.dot_dimension_numbers<[1], [1], [0], [0], [0, 0, 1, 0], [], []>} : vector<40x128xbf16>, vector<128x128xbf16>, vector<40x128xf32> -> vector<40x128xf32>
    %146 = vector.extract_strided_slice %145 {offsets = [0, 0], sizes = [16, 128], strides = [1, 1]} : vector<40x128xf32> to vector<16x128xf32>
    %147 = vector.extract_strided_slice %145 {offsets = [16, 0], sizes = [24, 128], strides = [1, 1]} : vector<40x128xf32> to vector<24x128xf32>
    %148 = vector.extract_strided_slice %6 {offsets = [0, 0, 0], sizes = [1, 1, 128], strides = [1, 1, 1]} : vector<3x3x128xf32> to vector<1x1x128xf32>
    %149 = vector.shape_cast %148 : vector<1x1x128xf32> to vector<1x128xf32>
    %150 = vector.extract_strided_slice %147 {offsets = [0, 0], sizes = [8, 128], strides = [1, 1]} : vector<24x128xf32> to vector<8x128xf32>
    %151 = vector.extract_strided_slice %8 {offsets = [0, 0], sizes = [1, 128], strides = [1, 1]} : vector<3x128xf32> to vector<1x128xf32>
    %152 = vector.broadcast %151 : vector<1x128xf32> to vector<8x128xf32>
    %153 = arith.subf %150, %152 : vector<8x128xf32>
    %154 = vector.broadcast %149 : vector<1x128xf32> to vector<8x128xf32>
    %155 = arith.mulf %154, %153 : vector<8x128xf32>
    %156 = vector.extract_strided_slice %6 {offsets = [1, 0, 0], sizes = [1, 1, 128], strides = [1, 1, 1]} : vector<3x3x128xf32> to vector<1x1x128xf32>
    %157 = vector.shape_cast %156 : vector<1x1x128xf32> to vector<1x128xf32>
    %158 = vector.extract_strided_slice %147 {offsets = [8, 0], sizes = [8, 128], strides = [1, 1]} : vector<24x128xf32> to vector<8x128xf32>
    %159 = vector.extract_strided_slice %8 {offsets = [1, 0], sizes = [1, 128], strides = [1, 1]} : vector<3x128xf32> to vector<1x128xf32>
    %160 = vector.broadcast %159 : vector<1x128xf32> to vector<8x128xf32>
    %161 = arith.subf %158, %160 : vector<8x128xf32>
    %162 = vector.broadcast %157 : vector<1x128xf32> to vector<8x128xf32>
    %163 = arith.mulf %162, %161 : vector<8x128xf32>
    %164 = arith.addf %155, %163 : vector<8x128xf32>
    %165 = vector.extract_strided_slice %6 {offsets = [2, 0, 0], sizes = [1, 1, 128], strides = [1, 1, 1]} : vector<3x3x128xf32> to vector<1x1x128xf32>
    %166 = vector.shape_cast %165 : vector<1x1x128xf32> to vector<1x128xf32>
    %167 = vector.extract_strided_slice %147 {offsets = [16, 0], sizes = [8, 128], strides = [1, 1]} : vector<24x128xf32> to vector<8x128xf32>
    %168 = vector.extract_strided_slice %8 {offsets = [2, 0], sizes = [1, 128], strides = [1, 1]} : vector<3x128xf32> to vector<1x128xf32>
    %169 = vector.broadcast %168 : vector<1x128xf32> to vector<8x128xf32>
    %170 = arith.subf %167, %169 : vector<8x128xf32>
    %171 = vector.broadcast %166 : vector<1x128xf32> to vector<8x128xf32>
    %172 = arith.mulf %171, %170 : vector<8x128xf32>
    %173 = arith.addf %164, %172 : vector<8x128xf32>
    %174 = vector.extract_strided_slice %6 {offsets = [0, 1, 0], sizes = [1, 1, 128], strides = [1, 1, 1]} : vector<3x3x128xf32> to vector<1x1x128xf32>
    %175 = vector.shape_cast %174 : vector<1x1x128xf32> to vector<1x128xf32>
    %176 = vector.extract_strided_slice %147 {offsets = [0, 0], sizes = [8, 128], strides = [1, 1]} : vector<24x128xf32> to vector<8x128xf32>
    %177 = vector.extract_strided_slice %8 {offsets = [0, 0], sizes = [1, 128], strides = [1, 1]} : vector<3x128xf32> to vector<1x128xf32>
    %178 = vector.broadcast %177 : vector<1x128xf32> to vector<8x128xf32>
    %179 = arith.subf %176, %178 : vector<8x128xf32>
    %180 = vector.broadcast %175 : vector<1x128xf32> to vector<8x128xf32>
    %181 = arith.mulf %180, %179 : vector<8x128xf32>
    %182 = vector.extract_strided_slice %6 {offsets = [1, 1, 0], sizes = [1, 1, 128], strides = [1, 1, 1]} : vector<3x3x128xf32> to vector<1x1x128xf32>
    %183 = vector.shape_cast %182 : vector<1x1x128xf32> to vector<1x128xf32>
    %184 = vector.extract_strided_slice %147 {offsets = [8, 0], sizes = [8, 128], strides = [1, 1]} : vector<24x128xf32> to vector<8x128xf32>
    %185 = vector.extract_strided_slice %8 {offsets = [1, 0], sizes = [1, 128], strides = [1, 1]} : vector<3x128xf32> to vector<1x128xf32>
    %186 = vector.broadcast %185 : vector<1x128xf32> to vector<8x128xf32>
    %187 = arith.subf %184, %186 : vector<8x128xf32>
    %188 = vector.broadcast %183 : vector<1x128xf32> to vector<8x128xf32>
    %189 = arith.mulf %188, %187 : vector<8x128xf32>
    %190 = arith.addf %181, %189 : vector<8x128xf32>
    %191 = vector.extract_strided_slice %6 {offsets = [2, 1, 0], sizes = [1, 1, 128], strides = [1, 1, 1]} : vector<3x3x128xf32> to vector<1x1x128xf32>
    %192 = vector.shape_cast %191 : vector<1x1x128xf32> to vector<1x128xf32>
    %193 = vector.extract_strided_slice %147 {offsets = [16, 0], sizes = [8, 128], strides = [1, 1]} : vector<24x128xf32> to vector<8x128xf32>
    %194 = vector.extract_strided_slice %8 {offsets = [2, 0], sizes = [1, 128], strides = [1, 1]} : vector<3x128xf32> to vector<1x128xf32>
    %195 = vector.broadcast %194 : vector<1x128xf32> to vector<8x128xf32>
    %196 = arith.subf %193, %195 : vector<8x128xf32>
    %197 = vector.broadcast %192 : vector<1x128xf32> to vector<8x128xf32>
    %198 = arith.mulf %197, %196 : vector<8x128xf32>
    %199 = arith.addf %190, %198 : vector<8x128xf32>
    %200 = vector.extract_strided_slice %6 {offsets = [0, 2, 0], sizes = [1, 1, 128], strides = [1, 1, 1]} : vector<3x3x128xf32> to vector<1x1x128xf32>
    %201 = vector.shape_cast %200 : vector<1x1x128xf32> to vector<1x128xf32>
    %202 = vector.extract_strided_slice %147 {offsets = [0, 0], sizes = [8, 128], strides = [1, 1]} : vector<24x128xf32> to vector<8x128xf32>
    %203 = vector.extract_strided_slice %8 {offsets = [0, 0], sizes = [1, 128], strides = [1, 1]} : vector<3x128xf32> to vector<1x128xf32>
    %204 = vector.broadcast %203 : vector<1x128xf32> to vector<8x128xf32>
    %205 = arith.subf %202, %204 : vector<8x128xf32>
    %206 = vector.broadcast %201 : vector<1x128xf32> to vector<8x128xf32>
    %207 = arith.mulf %206, %205 : vector<8x128xf32>
    %208 = vector.extract_strided_slice %6 {offsets = [1, 2, 0], sizes = [1, 1, 128], strides = [1, 1, 1]} : vector<3x3x128xf32> to vector<1x1x128xf32>
    %209 = vector.shape_cast %208 : vector<1x1x128xf32> to vector<1x128xf32>
    %210 = vector.extract_strided_slice %147 {offsets = [8, 0], sizes = [8, 128], strides = [1, 1]} : vector<24x128xf32> to vector<8x128xf32>
    %211 = vector.extract_strided_slice %8 {offsets = [1, 0], sizes = [1, 128], strides = [1, 1]} : vector<3x128xf32> to vector<1x128xf32>
    %212 = vector.broadcast %211 : vector<1x128xf32> to vector<8x128xf32>
    %213 = arith.subf %210, %212 : vector<8x128xf32>
    %214 = vector.broadcast %209 : vector<1x128xf32> to vector<8x128xf32>
    %215 = arith.mulf %214, %213 : vector<8x128xf32>
    %216 = arith.addf %207, %215 : vector<8x128xf32>
    %217 = vector.extract_strided_slice %6 {offsets = [2, 2, 0], sizes = [1, 1, 128], strides = [1, 1, 1]} : vector<3x3x128xf32> to vector<1x1x128xf32>
    %218 = vector.shape_cast %217 : vector<1x1x128xf32> to vector<1x128xf32>
    %219 = vector.extract_strided_slice %147 {offsets = [16, 0], sizes = [8, 128], strides = [1, 1]} : vector<24x128xf32> to vector<8x128xf32>
    %220 = vector.extract_strided_slice %8 {offsets = [2, 0], sizes = [1, 128], strides = [1, 1]} : vector<3x128xf32> to vector<1x128xf32>
    %221 = vector.broadcast %220 : vector<1x128xf32> to vector<8x128xf32>
    %222 = arith.subf %219, %221 : vector<8x128xf32>
    %223 = vector.broadcast %218 : vector<1x128xf32> to vector<8x128xf32>
    %224 = arith.mulf %223, %222 : vector<8x128xf32>
    %225 = arith.addf %216, %224 : vector<8x128xf32>
    %226 = tpu.concatenate %173, %199, %225 in 0 : vector<8x128xf32>, vector<8x128xf32>, vector<8x128xf32> -> vector<24x128xf32>
    %c0_62 = arith.constant 0 : index
    %c0_63 = arith.constant 0 : index
    %227 = vector.load %arg16[%c0_62, %c0_63] : memref<1x128xf32, #tpu.memory_space<vmem>>, vector<1x128xf32>
    %228 = arith.mulf %226, %226 : vector<24x128xf32>
    %cst_64 = arith.constant dense<0.000000e+00> : vector<128xf32>
    %229 = vector.multi_reduction <add>, %228, %cst_64 [0] : vector<24x128xf32> to vector<128xf32>
    %230 = vector.shape_cast %229 : vector<128xf32> to vector<1x128xf32>
    %231 = arith.addf %227, %230 : vector<1x128xf32>
    %c0_65 = arith.constant 0 : index
    %c0_66 = arith.constant 0 : index
    %232 = vector.load %arg16[%c0_65, %c0_66] : memref<1x128xf32, #tpu.memory_space<vmem>>, vector<1x128xf32>
    tpu.vector_store %arg16[%c0_65, %c0_66], %231 {strides = array<i32>} : memref<1x128xf32, #tpu.memory_space<vmem>>, vector<1x128xf32>,
    %233 = vector.extract_strided_slice %11 {offsets = [32, 0], sizes = [16, 128], strides = [1, 1]} : vector<128x128xf32> to vector<16x128xf32>
    %234 = vector.extract_strided_slice %11 {offsets = [48, 0], sizes = [12, 128], strides = [1, 1]} : vector<128x128xf32> to vector<12x128xf32>
    %235 = vector.extract_strided_slice %8 {offsets = [0, 0], sizes = [1, 128], strides = [1, 1]} : vector<3x128xf32> to vector<1x128xf32>
    %236 = vector.extract_strided_slice %6 {offsets = [0, 0, 0], sizes = [1, 1, 128], strides = [1, 1, 1]} : vector<3x3x128xf32> to vector<1x1x128xf32>
    %237 = vector.shape_cast %236 : vector<1x1x128xf32> to vector<1x128xf32>
    %238 = vector.extract_strided_slice %234 {offsets = [0, 0], sizes = [4, 128], strides = [1, 1]} : vector<12x128xf32> to vector<4x128xf32>
    %239 = vector.broadcast %237 : vector<1x128xf32> to vector<4x128xf32>
    %240 = arith.mulf %239, %238 : vector<4x128xf32>
    %241 = vector.broadcast %235 : vector<1x128xf32> to vector<4x128xf32>
    %242 = arith.addf %241, %240 : vector<4x128xf32>
    %243 = vector.extract_strided_slice %6 {offsets = [0, 1, 0], sizes = [1, 1, 128], strides = [1, 1, 1]} : vector<3x3x128xf32> to vector<1x1x128xf32>
    %244 = vector.shape_cast %243 : vector<1x1x128xf32> to vector<1x128xf32>
    %245 = vector.extract_strided_slice %234 {offsets = [4, 0], sizes = [4, 128], strides = [1, 1]} : vector<12x128xf32> to vector<4x128xf32>
    %246 = vector.broadcast %244 : vector<1x128xf32> to vector<4x128xf32>
    %247 = arith.mulf %246, %245 : vector<4x128xf32>
    %248 = arith.addf %242, %247 : vector<4x128xf32>
    %249 = vector.extract_strided_slice %6 {offsets = [0, 2, 0], sizes = [1, 1, 128], strides = [1, 1, 1]} : vector<3x3x128xf32> to vector<1x1x128xf32>
    %250 = vector.shape_cast %249 : vector<1x1x128xf32> to vector<1x128xf32>
    %251 = vector.extract_strided_slice %234 {offsets = [8, 0], sizes = [4, 128], strides = [1, 1]} : vector<12x128xf32> to vector<4x128xf32>
    %252 = vector.broadcast %250 : vector<1x128xf32> to vector<4x128xf32>
    %253 = arith.mulf %252, %251 : vector<4x128xf32>
    %254 = arith.addf %248, %253 : vector<4x128xf32>
    %255 = vector.extract_strided_slice %8 {offsets = [1, 0], sizes = [1, 128], strides = [1, 1]} : vector<3x128xf32> to vector<1x128xf32>
    %256 = vector.extract_strided_slice %6 {offsets = [1, 0, 0], sizes = [1, 1, 128], strides = [1, 1, 1]} : vector<3x3x128xf32> to vector<1x1x128xf32>
    %257 = vector.shape_cast %256 : vector<1x1x128xf32> to vector<1x128xf32>
    %258 = vector.extract_strided_slice %234 {offsets = [0, 0], sizes = [4, 128], strides = [1, 1]} : vector<12x128xf32> to vector<4x128xf32>
    %259 = vector.broadcast %257 : vector<1x128xf32> to vector<4x128xf32>
    %260 = arith.mulf %259, %258 : vector<4x128xf32>
    %261 = vector.broadcast %255 : vector<1x128xf32> to vector<4x128xf32>
    %262 = arith.addf %261, %260 : vector<4x128xf32>
    %263 = vector.extract_strided_slice %6 {offsets = [1, 1, 0], sizes = [1, 1, 128], strides = [1, 1, 1]} : vector<3x3x128xf32> to vector<1x1x128xf32>
    %264 = vector.shape_cast %263 : vector<1x1x128xf32> to vector<1x128xf32>
    %265 = vector.extract_strided_slice %234 {offsets = [4, 0], sizes = [4, 128], strides = [1, 1]} : vector<12x128xf32> to vector<4x128xf32>
    %266 = vector.broadcast %264 : vector<1x128xf32> to vector<4x128xf32>
    %267 = arith.mulf %266, %265 : vector<4x128xf32>
    %268 = arith.addf %262, %267 : vector<4x128xf32>
    %269 = vector.extract_strided_slice %6 {offsets = [1, 2, 0], sizes = [1, 1, 128], strides = [1, 1, 1]} : vector<3x3x128xf32> to vector<1x1x128xf32>
    %270 = vector.shape_cast %269 : vector<1x1x128xf32> to vector<1x128xf32>
    %271 = vector.extract_strided_slice %234 {offsets = [8, 0], sizes = [4, 128], strides = [1, 1]} : vector<12x128xf32> to vector<4x128xf32>
    %272 = vector.broadcast %270 : vector<1x128xf32> to vector<4x128xf32>
    %273 = arith.mulf %272, %271 : vector<4x128xf32>
    %274 = arith.addf %268, %273 : vector<4x128xf32>
    %275 = vector.extract_strided_slice %8 {offsets = [2, 0], sizes = [1, 128], strides = [1, 1]} : vector<3x128xf32> to vector<1x128xf32>
    %276 = vector.extract_strided_slice %6 {offsets = [2, 0, 0], sizes = [1, 1, 128], strides = [1, 1, 1]} : vector<3x3x128xf32> to vector<1x1x128xf32>
    %277 = vector.shape_cast %276 : vector<1x1x128xf32> to vector<1x128xf32>
    %278 = vector.extract_strided_slice %234 {offsets = [0, 0], sizes = [4, 128], strides = [1, 1]} : vector<12x128xf32> to vector<4x128xf32>
    %279 = vector.broadcast %277 : vector<1x128xf32> to vector<4x128xf32>
    %280 = arith.mulf %279, %278 : vector<4x128xf32>
    %281 = vector.broadcast %275 : vector<1x128xf32> to vector<4x128xf32>
    %282 = arith.addf %281, %280 : vector<4x128xf32>
    %283 = vector.extract_strided_slice %6 {offsets = [2, 1, 0], sizes = [1, 1, 128], strides = [1, 1, 1]} : vector<3x3x128xf32> to vector<1x1x128xf32>
    %284 = vector.shape_cast %283 : vector<1x1x128xf32> to vector<1x128xf32>
    %285 = vector.extract_strided_slice %234 {offsets = [4, 0], sizes = [4, 128], strides = [1, 1]} : vector<12x128xf32> to vector<4x128xf32>
    %286 = vector.broadcast %284 : vector<1x128xf32> to vector<4x128xf32>
    %287 = arith.mulf %286, %285 : vector<4x128xf32>
    %288 = arith.addf %282, %287 : vector<4x128xf32>
    %289 = vector.extract_strided_slice %6 {offsets = [2, 2, 0], sizes = [1, 1, 128], strides = [1, 1, 1]} : vector<3x3x128xf32> to vector<1x1x128xf32>
    %290 = vector.shape_cast %289 : vector<1x1x128xf32> to vector<1x128xf32>
    %291 = vector.extract_strided_slice %234 {offsets = [8, 0], sizes = [4, 128], strides = [1, 1]} : vector<12x128xf32> to vector<4x128xf32>
    %292 = vector.broadcast %290 : vector<1x128xf32> to vector<4x128xf32>
    %293 = arith.mulf %292, %291 : vector<4x128xf32>
    %294 = arith.addf %288, %293 : vector<4x128xf32>
    %295 = tpu.concatenate %254, %274, %294 in 0 : vector<4x128xf32>, vector<4x128xf32>, vector<4x128xf32> -> vector<12x128xf32>
    %cst_67 = arith.constant 0.000000e+00 : f32
    %296 = vector.broadcast %cst_67 : f32 to vector<4x128xf32>
    %297 = tpu.concatenate %233, %295, %296 in 0 : vector<16x128xf32>, vector<12x128xf32>, vector<4x128xf32> -> vector<32x128xf32>
    %c0_68 = arith.constant 0 : index
    %c1_69 = arith.constant 1 : index
    %c0_70 = arith.constant 0 : index
    %c0_71 = arith.constant 0 : index
    %298 = vector.load %arg6[%c0_68, %c1_69, %c0_70, %c0_71] : memref<1x4x32x128xbf16, #tpu.memory_space<vmem>>, vector<1x1x32x128xbf16>
    %299 = vector.shape_cast %298 : vector<1x1x32x128xbf16> to vector<32x128xbf16>
    %300 = arith.truncf %297 : vector<32x128xf32> to vector<32x128xbf16>
    %cst_72 = arith.constant dense<0.000000e+00> : vector<128x128xf32>
    %301 = tpu.matmul %300, %299, %cst_72 {dimension_numbers = #tpu.dot_dimension_numbers<[0], [0], [1], [1], [0, 1, 1, 1], [], []>} : vector<32x128xbf16>, vector<32x128xbf16>, vector<128x128xf32> -> vector<128x128xf32>
    %c0_73 = arith.constant 0 : index
    %c1_74 = arith.constant 1 : index
    %c0_75 = arith.constant 0 : index
    %c0_76 = arith.constant 0 : index
    %302 = vector.load %arg5[%c0_73, %c1_74, %c0_75, %c0_76] : memref<1x4x128x128xf32, #tpu.memory_space<vmem>>, vector<1x1x128x128xf32>
    %303 = vector.shape_cast %302 : vector<1x1x128x128xf32> to vector<128x128xf32>
    %304 = arith.addf %301, %303 : vector<128x128xf32>
    %cst_77 = arith.constant dense<0xFF800000> : vector<128xf32>
    %305 = vector.multi_reduction <maximumf>, %304, %cst_77 [1] : vector<128x128xf32> to vector<128xf32>
    %306 = vector.shape_cast %305 : vector<128xf32> to vector<128x1xf32>
    %307 = vector.broadcast %306 : vector<128x1xf32> to vector<128x128xf32>
    %308 = arith.subf %304, %307 : vector<128x128xf32>
    %309 = math.exp %308 : vector<128x128xf32>
    %cst_78 = arith.constant dense<0.000000e+00> : vector<128xf32>
    %310 = vector.multi_reduction <add>, %309, %cst_78 [1] : vector<128x128xf32> to vector<128xf32>
    %311 = vector.shape_cast %310 : vector<128xf32> to vector<128x1xf32>
    %312 = tpu.reciprocal %311 {approx = true} : vector<128x1xf32> -> vector<128x1xf32>
    %313 = vector.broadcast %312 : vector<128x1xf32> to vector<128x128xf32>
    %314 = arith.mulf %309, %313 : vector<128x128xf32>
    %c0_79 = arith.constant 0 : index
    %c0_80 = arith.constant 0 : index
    %c0_81 = arith.constant 0 : index
    %c0_82 = arith.constant 0 : index
    %315 = vector.load %arg4[%c0_79, %c0_80, %c0_81, %c0_82] : memref<1x8x128x128xbf16, #tpu.memory_space<vmem>>, vector<1x1x128x128xbf16>
    %316 = vector.shape_cast %315 : vector<1x1x128x128xbf16> to vector<128x128xbf16>
    %317 = arith.extf %316 : vector<128x128xbf16> to vector<128x128xf32>
    %318 = arith.mulf %314, %317 : vector<128x128xf32>
    %cst_83 = arith.constant dense<0.000000e+00> : vector<128xf32>
    %319 = vector.multi_reduction <add>, %318, %cst_83 [1] : vector<128x128xf32> to vector<128xf32>
    %320 = vector.shape_cast %319 : vector<128xf32> to vector<1x128xf32>
    %c0_84 = arith.constant 0 : index
    %c1_85 = arith.constant 1 : index
    %c0_86 = arith.constant 0 : index
    %c0_87 = arith.constant 0 : index
    %321 = vector.load %arg4[%c0_84, %c1_85, %c0_86, %c0_87] : memref<1x8x128x128xbf16, #tpu.memory_space<vmem>>, vector<1x1x128x128xbf16>
    %322 = vector.shape_cast %321 : vector<1x1x128x128xbf16> to vector<128x128xbf16>
    %323 = arith.extf %322 : vector<128x128xbf16> to vector<128x128xf32>
    %324 = arith.mulf %314, %323 : vector<128x128xf32>
    %cst_88 = arith.constant dense<0.000000e+00> : vector<128xf32>
    %325 = vector.multi_reduction <add>, %324, %cst_88 [1] : vector<128x128xf32> to vector<128xf32>
    %326 = vector.shape_cast %325 : vector<128xf32> to vector<1x128xf32>
    %c0_89 = arith.constant 0 : index
    %c2_90 = arith.constant 2 : index
    %c0_91 = arith.constant 0 : index
    %c0_92 = arith.constant 0 : index
    %327 = vector.load %arg4[%c0_89, %c2_90, %c0_91, %c0_92] : memref<1x8x128x128xbf16, #tpu.memory_space<vmem>>, vector<1x1x128x128xbf16>
    %328 = vector.shape_cast %327 : vector<1x1x128x128xbf16> to vector<128x128xbf16>
    %329 = arith.extf %328 : vector<128x128xbf16> to vector<128x128xf32>
    %330 = arith.mulf %314, %329 : vector<128x128xf32>
    %cst_93 = arith.constant dense<0.000000e+00> : vector<128xf32>
    %331 = vector.multi_reduction <add>, %330, %cst_93 [1] : vector<128x128xf32> to vector<128xf32>
    %332 = vector.shape_cast %331 : vector<128xf32> to vector<1x128xf32>
    %c0_94 = arith.constant 0 : index
    %c3_95 = arith.constant 3 : index
    %c0_96 = arith.constant 0 : index
    %c0_97 = arith.constant 0 : index
    %333 = vector.load %arg4[%c0_94, %c3_95, %c0_96, %c0_97] : memref<1x8x128x128xbf16, #tpu.memory_space<vmem>>, vector<1x1x128x128xbf16>
    %334 = vector.shape_cast %333 : vector<1x1x128x128xbf16> to vector<128x128xbf16>
    %335 = arith.extf %334 : vector<128x128xbf16> to vector<128x128xf32>
    %336 = arith.mulf %314, %335 : vector<128x128xf32>
    %cst_98 = arith.constant dense<0.000000e+00> : vector<128xf32>
    %337 = vector.multi_reduction <add>, %336, %cst_98 [1] : vector<128x128xf32> to vector<128xf32>
    %338 = vector.shape_cast %337 : vector<128xf32> to vector<1x128xf32>
    %c0_99 = arith.constant 0 : index
    %c4_100 = arith.constant 4 : index
    %c0_101 = arith.constant 0 : index
    %c0_102 = arith.constant 0 : index
    %339 = vector.load %arg4[%c0_99, %c4_100, %c0_101, %c0_102] : memref<1x8x128x128xbf16, #tpu.memory_space<vmem>>, vector<1x1x128x128xbf16>
    %340 = vector.shape_cast %339 : vector<1x1x128x128xbf16> to vector<128x128xbf16>
    %341 = arith.extf %340 : vector<128x128xbf16> to vector<128x128xf32>
    %342 = arith.mulf %314, %341 : vector<128x128xf32>
    %cst_103 = arith.constant dense<0.000000e+00> : vector<128xf32>
    %343 = vector.multi_reduction <add>, %342, %cst_103 [1] : vector<128x128xf32> to vector<128xf32>
    %344 = vector.shape_cast %343 : vector<128xf32> to vector<1x128xf32>
    %c0_104 = arith.constant 0 : index
    %c5_105 = arith.constant 5 : index
    %c0_106 = arith.constant 0 : index
    %c0_107 = arith.constant 0 : index
    %345 = vector.load %arg4[%c0_104, %c5_105, %c0_106, %c0_107] : memref<1x8x128x128xbf16, #tpu.memory_space<vmem>>, vector<1x1x128x128xbf16>
    %346 = vector.shape_cast %345 : vector<1x1x128x128xbf16> to vector<128x128xbf16>
    %347 = arith.extf %346 : vector<128x128xbf16> to vector<128x128xf32>
    %348 = arith.mulf %314, %347 : vector<128x128xf32>
    %cst_108 = arith.constant dense<0.000000e+00> : vector<128xf32>
    %349 = vector.multi_reduction <add>, %348, %cst_108 [1] : vector<128x128xf32> to vector<128xf32>
    %350 = vector.shape_cast %349 : vector<128xf32> to vector<1x128xf32>
    %c0_109 = arith.constant 0 : index
    %c6_110 = arith.constant 6 : index
    %c0_111 = arith.constant 0 : index
    %c0_112 = arith.constant 0 : index
    %351 = vector.load %arg4[%c0_109, %c6_110, %c0_111, %c0_112] : memref<1x8x128x128xbf16, #tpu.memory_space<vmem>>, vector<1x1x128x128xbf16>
    %352 = vector.shape_cast %351 : vector<1x1x128x128xbf16> to vector<128x128xbf16>
    %353 = arith.extf %352 : vector<128x128xbf16> to vector<128x128xf32>
    %354 = arith.mulf %314, %353 : vector<128x128xf32>
    %cst_113 = arith.constant dense<0.000000e+00> : vector<128xf32>
    %355 = vector.multi_reduction <add>, %354, %cst_113 [1] : vector<128x128xf32> to vector<128xf32>
    %356 = vector.shape_cast %355 : vector<128xf32> to vector<1x128xf32>
    %c0_114 = arith.constant 0 : index
    %c7_115 = arith.constant 7 : index
    %c0_116 = arith.constant 0 : index
    %c0_117 = arith.constant 0 : index
    %357 = vector.load %arg4[%c0_114, %c7_115, %c0_116, %c0_117] : memref<1x8x128x128xbf16, #tpu.memory_space<vmem>>, vector<1x1x128x128xbf16>
    %358 = vector.shape_cast %357 : vector<1x1x128x128xbf16> to vector<128x128xbf16>
    %359 = arith.extf %358 : vector<128x128xbf16> to vector<128x128xf32>
    %360 = arith.mulf %314, %359 : vector<128x128xf32>
    %cst_118 = arith.constant dense<0.000000e+00> : vector<128xf32>
    %361 = vector.multi_reduction <add>, %360, %cst_118 [1] : vector<128x128xf32> to vector<128xf32>
    %362 = vector.shape_cast %361 : vector<128xf32> to vector<1x128xf32>
    %c0_119 = arith.constant 0 : index
    %c1_120 = arith.constant 1 : index
    %c0_121 = arith.constant 0 : index
    %c0_122 = arith.constant 0 : index
    %363 = vector.load %arg7[%c0_119, %c1_120, %c0_121, %c0_122] : memref<1x4x40x128xbf16, #tpu.memory_space<vmem>>, vector<1x1x40x128xbf16>
    %364 = vector.shape_cast %363 : vector<1x1x40x128xbf16> to vector<40x128xbf16>
    %365 = arith.truncf %314 : vector<128x128xf32> to vector<128x128xbf16>
    %cst_123 = arith.constant dense<0.000000e+00> : vector<40x128xf32>
    %366 = tpu.matmul %364, %365, %cst_123 {dimension_numbers = #tpu.dot_dimension_numbers<[1], [1], [0], [0], [0, 0, 1, 0], [], []>} : vector<40x128xbf16>, vector<128x128xbf16>, vector<40x128xf32> -> vector<40x128xf32>
    %367 = vector.extract_strided_slice %366 {offsets = [0, 0], sizes = [16, 128], strides = [1, 1]} : vector<40x128xf32> to vector<16x128xf32>
    %368 = vector.extract_strided_slice %366 {offsets = [16, 0], sizes = [24, 128], strides = [1, 1]} : vector<40x128xf32> to vector<24x128xf32>
    %369 = vector.extract_strided_slice %6 {offsets = [0, 0, 0], sizes = [1, 1, 128], strides = [1, 1, 1]} : vector<3x3x128xf32> to vector<1x1x128xf32>
    %370 = vector.shape_cast %369 : vector<1x1x128xf32> to vector<1x128xf32>
    %371 = vector.extract_strided_slice %368 {offsets = [0, 0], sizes = [8, 128], strides = [1, 1]} : vector<24x128xf32> to vector<8x128xf32>
    %372 = vector.extract_strided_slice %8 {offsets = [0, 0], sizes = [1, 128], strides = [1, 1]} : vector<3x128xf32> to vector<1x128xf32>
    %373 = vector.broadcast %372 : vector<1x128xf32> to vector<8x128xf32>
    %374 = arith.subf %371, %373 : vector<8x128xf32>
    %375 = vector.broadcast %370 : vector<1x128xf32> to vector<8x128xf32>
    %376 = arith.mulf %375, %374 : vector<8x128xf32>
    %377 = vector.extract_strided_slice %6 {offsets = [1, 0, 0], sizes = [1, 1, 128], strides = [1, 1, 1]} : vector<3x3x128xf32> to vector<1x1x128xf32>
    %378 = vector.shape_cast %377 : vector<1x1x128xf32> to vector<1x128xf32>
    %379 = vector.extract_strided_slice %368 {offsets = [8, 0], sizes = [8, 128], strides = [1, 1]} : vector<24x128xf32> to vector<8x128xf32>
    %380 = vector.extract_strided_slice %8 {offsets = [1, 0], sizes = [1, 128], strides = [1, 1]} : vector<3x128xf32> to vector<1x128xf32>
    %381 = vector.broadcast %380 : vector<1x128xf32> to vector<8x128xf32>
    %382 = arith.subf %379, %381 : vector<8x128xf32>
    %383 = vector.broadcast %378 : vector<1x128xf32> to vector<8x128xf32>
    %384 = arith.mulf %383, %382 : vector<8x128xf32>
    %385 = arith.addf %376, %384 : vector<8x128xf32>
    %386 = vector.extract_strided_slice %6 {offsets = [2, 0, 0], sizes = [1, 1, 128], strides = [1, 1, 1]} : vector<3x3x128xf32> to vector<1x1x128xf32>
    %387 = vector.shape_cast %386 : vector<1x1x128xf32> to vector<1x128xf32>
    %388 = vector.extract_strided_slice %368 {offsets = [16, 0], sizes = [8, 128], strides = [1, 1]} : vector<24x128xf32> to vector<8x128xf32>
    %389 = vector.extract_strided_slice %8 {offsets = [2, 0], sizes = [1, 128], strides = [1, 1]} : vector<3x128xf32> to vector<1x128xf32>
    %390 = vector.broadcast %389 : vector<1x128xf32> to vector<8x128xf32>
    %391 = arith.subf %388, %390 : vector<8x128xf32>
    %392 = vector.broadcast %387 : vector<1x128xf32> to vector<8x128xf32>
    %393 = arith.mulf %392, %391 : vector<8x128xf32>
    %394 = arith.addf %385, %393 : vector<8x128xf32>
    %395 = vector.extract_strided_slice %6 {offsets = [0, 1, 0], sizes = [1, 1, 128], strides = [1, 1, 1]} : vector<3x3x128xf32> to vector<1x1x128xf32>
    %396 = vector.shape_cast %395 : vector<1x1x128xf32> to vector<1x128xf32>
    %397 = vector.extract_strided_slice %368 {offsets = [0, 0], sizes = [8, 128], strides = [1, 1]} : vector<24x128xf32> to vector<8x128xf32>
    %398 = vector.extract_strided_slice %8 {offsets = [0, 0], sizes = [1, 128], strides = [1, 1]} : vector<3x128xf32> to vector<1x128xf32>
    %399 = vector.broadcast %398 : vector<1x128xf32> to vector<8x128xf32>
    %400 = arith.subf %397, %399 : vector<8x128xf32>
    %401 = vector.broadcast %396 : vector<1x128xf32> to vector<8x128xf32>
    %402 = arith.mulf %401, %400 : vector<8x128xf32>
    %403 = vector.extract_strided_slice %6 {offsets = [1, 1, 0], sizes = [1, 1, 128], strides = [1, 1, 1]} : vector<3x3x128xf32> to vector<1x1x128xf32>
    %404 = vector.shape_cast %403 : vector<1x1x128xf32> to vector<1x128xf32>
    %405 = vector.extract_strided_slice %368 {offsets = [8, 0], sizes = [8, 128], strides = [1, 1]} : vector<24x128xf32> to vector<8x128xf32>
    %406 = vector.extract_strided_slice %8 {offsets = [1, 0], sizes = [1, 128], strides = [1, 1]} : vector<3x128xf32> to vector<1x128xf32>
    %407 = vector.broadcast %406 : vector<1x128xf32> to vector<8x128xf32>
    %408 = arith.subf %405, %407 : vector<8x128xf32>
    %409 = vector.broadcast %404 : vector<1x128xf32> to vector<8x128xf32>
    %410 = arith.mulf %409, %408 : vector<8x128xf32>
    %411 = arith.addf %402, %410 : vector<8x128xf32>
    %412 = vector.extract_strided_slice %6 {offsets = [2, 1, 0], sizes = [1, 1, 128], strides = [1, 1, 1]} : vector<3x3x128xf32> to vector<1x1x128xf32>
    %413 = vector.shape_cast %412 : vector<1x1x128xf32> to vector<1x128xf32>
    %414 = vector.extract_strided_slice %368 {offsets = [16, 0], sizes = [8, 128], strides = [1, 1]} : vector<24x128xf32> to vector<8x128xf32>
    %415 = vector.extract_strided_slice %8 {offsets = [2, 0], sizes = [1, 128], strides = [1, 1]} : vector<3x128xf32> to vector<1x128xf32>
    %416 = vector.broadcast %415 : vector<1x128xf32> to vector<8x128xf32>
    %417 = arith.subf %414, %416 : vector<8x128xf32>
    %418 = vector.broadcast %413 : vector<1x128xf32> to vector<8x128xf32>
    %419 = arith.mulf %418, %417 : vector<8x128xf32>
    %420 = arith.addf %411, %419 : vector<8x128xf32>
    %421 = vector.extract_strided_slice %6 {offsets = [0, 2, 0], sizes = [1, 1, 128], strides = [1, 1, 1]} : vector<3x3x128xf32> to vector<1x1x128xf32>
    %422 = vector.shape_cast %421 : vector<1x1x128xf32> to vector<1x128xf32>
    %423 = vector.extract_strided_slice %368 {offsets = [0, 0], sizes = [8, 128], strides = [1, 1]} : vector<24x128xf32> to vector<8x128xf32>
    %424 = vector.extract_strided_slice %8 {offsets = [0, 0], sizes = [1, 128], strides = [1, 1]} : vector<3x128xf32> to vector<1x128xf32>
    %425 = vector.broadcast %424 : vector<1x128xf32> to vector<8x128xf32>
    %426 = arith.subf %423, %425 : vector<8x128xf32>
    %427 = vector.broadcast %422 : vector<1x128xf32> to vector<8x128xf32>
    %428 = arith.mulf %427, %426 : vector<8x128xf32>
    %429 = vector.extract_strided_slice %6 {offsets = [1, 2, 0], sizes = [1, 1, 128], strides = [1, 1, 1]} : vector<3x3x128xf32> to vector<1x1x128xf32>
    %430 = vector.shape_cast %429 : vector<1x1x128xf32> to vector<1x128xf32>
    %431 = vector.extract_strided_slice %368 {offsets = [8, 0], sizes = [8, 128], strides = [1, 1]} : vector<24x128xf32> to vector<8x128xf32>
    %432 = vector.extract_strided_slice %8 {offsets = [1, 0], sizes = [1, 128], strides = [1, 1]} : vector<3x128xf32> to vector<1x128xf32>
    %433 = vector.broadcast %432 : vector<1x128xf32> to vector<8x128xf32>
    %434 = arith.subf %431, %433 : vector<8x128xf32>
    %435 = vector.broadcast %430 : vector<1x128xf32> to vector<8x128xf32>
    %436 = arith.mulf %435, %434 : vector<8x128xf32>
    %437 = arith.addf %428, %436 : vector<8x128xf32>
    %438 = vector.extract_strided_slice %6 {offsets = [2, 2, 0], sizes = [1, 1, 128], strides = [1, 1, 1]} : vector<3x3x128xf32> to vector<1x1x128xf32>
    %439 = vector.shape_cast %438 : vector<1x1x128xf32> to vector<1x128xf32>
    %440 = vector.extract_strided_slice %368 {offsets = [16, 0], sizes = [8, 128], strides = [1, 1]} : vector<24x128xf32> to vector<8x128xf32>
    %441 = vector.extract_strided_slice %8 {offsets = [2, 0], sizes = [1, 128], strides = [1, 1]} : vector<3x128xf32> to vector<1x128xf32>
    %442 = vector.broadcast %441 : vector<1x128xf32> to vector<8x128xf32>
    %443 = arith.subf %440, %442 : vector<8x128xf32>
    %444 = vector.broadcast %439 : vector<1x128xf32> to vector<8x128xf32>
    %445 = arith.mulf %444, %443 : vector<8x128xf32>
    %446 = arith.addf %437, %445 : vector<8x128xf32>
    %447 = tpu.concatenate %394, %420, %446 in 0 : vector<8x128xf32>, vector<8x128xf32>, vector<8x128xf32> -> vector<24x128xf32>
    %c0_124 = arith.constant 0 : index
    %c0_125 = arith.constant 0 : index
    %448 = vector.load %arg16[%c0_124, %c0_125] : memref<1x128xf32, #tpu.memory_space<vmem>>, vector<1x128xf32>
    %449 = arith.mulf %447, %447 : vector<24x128xf32>
    %cst_126 = arith.constant dense<0.000000e+00> : vector<128xf32>
    %450 = vector.multi_reduction <add>, %449, %cst_126 [0] : vector<24x128xf32> to vector<128xf32>
    %451 = vector.shape_cast %450 : vector<128xf32> to vector<1x128xf32>
    %452 = arith.addf %448, %451 : vector<1x128xf32>
    %c0_127 = arith.constant 0 : index
    %c0_128 = arith.constant 0 : index
    %453 = vector.load %arg16[%c0_127, %c0_128] : memref<1x128xf32, #tpu.memory_space<vmem>>, vector<1x128xf32>
    tpu.vector_store %arg16[%c0_127, %c0_128], %452 {strides = array<i32>} : memref<1x128xf32, #tpu.memory_space<vmem>>, vector<1x128xf32>,
    %454 = vector.extract_strided_slice %11 {offsets = [64, 0], sizes = [16, 128], strides = [1, 1]} : vector<128x128xf32> to vector<16x128xf32>
    %455 = vector.extract_strided_slice %11 {offsets = [80, 0], sizes = [12, 128], strides = [1, 1]} : vector<128x128xf32> to vector<12x128xf32>
    %456 = vector.extract_strided_slice %8 {offsets = [0, 0], sizes = [1, 128], strides = [1, 1]} : vector<3x128xf32> to vector<1x128xf32>
    %457 = vector.extract_strided_slice %6 {offsets = [0, 0, 0], sizes = [1, 1, 128], strides = [1, 1, 1]} : vector<3x3x128xf32> to vector<1x1x128xf32>
    %458 = vector.shape_cast %457 : vector<1x1x128xf32> to vector<1x128xf32>
    %459 = vector.extract_strided_slice %455 {offsets = [0, 0], sizes = [4, 128], strides = [1, 1]} : vector<12x128xf32> to vector<4x128xf32>
    %460 = vector.broadcast %458 : vector<1x128xf32> to vector<4x128xf32>
    %461 = arith.mulf %460, %459 : vector<4x128xf32>
    %462 = vector.broadcast %456 : vector<1x128xf32> to vector<4x128xf32>
    %463 = arith.addf %462, %461 : vector<4x128xf32>
    %464 = vector.extract_strided_slice %6 {offsets = [0, 1, 0], sizes = [1, 1, 128], strides = [1, 1, 1]} : vector<3x3x128xf32> to vector<1x1x128xf32>
    %465 = vector.shape_cast %464 : vector<1x1x128xf32> to vector<1x128xf32>
    %466 = vector.extract_strided_slice %455 {offsets = [4, 0], sizes = [4, 128], strides = [1, 1]} : vector<12x128xf32> to vector<4x128xf32>
    %467 = vector.broadcast %465 : vector<1x128xf32> to vector<4x128xf32>
    %468 = arith.mulf %467, %466 : vector<4x128xf32>
    %469 = arith.addf %463, %468 : vector<4x128xf32>
    %470 = vector.extract_strided_slice %6 {offsets = [0, 2, 0], sizes = [1, 1, 128], strides = [1, 1, 1]} : vector<3x3x128xf32> to vector<1x1x128xf32>
    %471 = vector.shape_cast %470 : vector<1x1x128xf32> to vector<1x128xf32>
    %472 = vector.extract_strided_slice %455 {offsets = [8, 0], sizes = [4, 128], strides = [1, 1]} : vector<12x128xf32> to vector<4x128xf32>
    %473 = vector.broadcast %471 : vector<1x128xf32> to vector<4x128xf32>
    %474 = arith.mulf %473, %472 : vector<4x128xf32>
    %475 = arith.addf %469, %474 : vector<4x128xf32>
    %476 = vector.extract_strided_slice %8 {offsets = [1, 0], sizes = [1, 128], strides = [1, 1]} : vector<3x128xf32> to vector<1x128xf32>
    %477 = vector.extract_strided_slice %6 {offsets = [1, 0, 0], sizes = [1, 1, 128], strides = [1, 1, 1]} : vector<3x3x128xf32> to vector<1x1x128xf32>
    %478 = vector.shape_cast %477 : vector<1x1x128xf32> to vector<1x128xf32>
    %479 = vector.extract_strided_slice %455 {offsets = [0, 0], sizes = [4, 128], strides = [1, 1]} : vector<12x128xf32> to vector<4x128xf32>
    %480 = vector.broadcast %478 : vector<1x128xf32> to vector<4x128xf32>
    %481 = arith.mulf %480, %479 : vector<4x128xf32>
    %482 = vector.broadcast %476 : vector<1x128xf32> to vector<4x128xf32>
    %483 = arith.addf %482, %481 : vector<4x128xf32>
    %484 = vector.extract_strided_slice %6 {offsets = [1, 1, 0], sizes = [1, 1, 128], strides = [1, 1, 1]} : vector<3x3x128xf32> to vector<1x1x128xf32>
    %485 = vector.shape_cast %484 : vector<1x1x128xf32> to vector<1x128xf32>
    %486 = vector.extract_strided_slice %455 {offsets = [4, 0], sizes = [4, 128], strides = [1, 1]} : vector<12x128xf32> to vector<4x128xf32>
    %487 = vector.broadcast %485 : vector<1x128xf32> to vector<4x128xf32>
    %488 = arith.mulf %487, %486 : vector<4x128xf32>
    %489 = arith.addf %483, %488 : vector<4x128xf32>
    %490 = vector.extract_strided_slice %6 {offsets = [1, 2, 0], sizes = [1, 1, 128], strides = [1, 1, 1]} : vector<3x3x128xf32> to vector<1x1x128xf32>
    %491 = vector.shape_cast %490 : vector<1x1x128xf32> to vector<1x128xf32>
    %492 = vector.extract_strided_slice %455 {offsets = [8, 0], sizes = [4, 128], strides = [1, 1]} : vector<12x128xf32> to vector<4x128xf32>
    %493 = vector.broadcast %491 : vector<1x128xf32> to vector<4x128xf32>
    %494 = arith.mulf %493, %492 : vector<4x128xf32>
    %495 = arith.addf %489, %494 : vector<4x128xf32>
    %496 = vector.extract_strided_slice %8 {offsets = [2, 0], sizes = [1, 128], strides = [1, 1]} : vector<3x128xf32> to vector<1x128xf32>
    %497 = vector.extract_strided_slice %6 {offsets = [2, 0, 0], sizes = [1, 1, 128], strides = [1, 1, 1]} : vector<3x3x128xf32> to vector<1x1x128xf32>
    %498 = vector.shape_cast %497 : vector<1x1x128xf32> to vector<1x128xf32>
    %499 = vector.extract_strided_slice %455 {offsets = [0, 0], sizes = [4, 128], strides = [1, 1]} : vector<12x128xf32> to vector<4x128xf32>
    %500 = vector.broadcast %498 : vector<1x128xf32> to vector<4x128xf32>
    %501 = arith.mulf %500, %499 : vector<4x128xf32>
    %502 = vector.broadcast %496 : vector<1x128xf32> to vector<4x128xf32>
    %503 = arith.addf %502, %501 : vector<4x128xf32>
    %504 = vector.extract_strided_slice %6 {offsets = [2, 1, 0], sizes = [1, 1, 128], strides = [1, 1, 1]} : vector<3x3x128xf32> to vector<1x1x128xf32>
    %505 = vector.shape_cast %504 : vector<1x1x128xf32> to vector<1x128xf32>
    %506 = vector.extract_strided_slice %455 {offsets = [4, 0], sizes = [4, 128], strides = [1, 1]} : vector<12x128xf32> to vector<4x128xf32>
    %507 = vector.broadcast %505 : vector<1x128xf32> to vector<4x128xf32>
    %508 = arith.mulf %507, %506 : vector<4x128xf32>
    %509 = arith.addf %503, %508 : vector<4x128xf32>
    %510 = vector.extract_strided_slice %6 {offsets = [2, 2, 0], sizes = [1, 1, 128], strides = [1, 1, 1]} : vector<3x3x128xf32> to vector<1x1x128xf32>
    %511 = vector.shape_cast %510 : vector<1x1x128xf32> to vector<1x128xf32>
    %512 = vector.extract_strided_slice %455 {offsets = [8, 0], sizes = [4, 128], strides = [1, 1]} : vector<12x128xf32> to vector<4x128xf32>
    %513 = vector.broadcast %511 : vector<1x128xf32> to vector<4x128xf32>
    %514 = arith.mulf %513, %512 : vector<4x128xf32>
    %515 = arith.addf %509, %514 : vector<4x128xf32>
    %516 = tpu.concatenate %475, %495, %515 in 0 : vector<4x128xf32>, vector<4x128xf32>, vector<4x128xf32> -> vector<12x128xf32>
    %cst_129 = arith.constant 0.000000e+00 : f32
    %517 = vector.broadcast %cst_129 : f32 to vector<4x128xf32>
    %518 = tpu.concatenate %454, %516, %517 in 0 : vector<16x128xf32>, vector<12x128xf32>, vector<4x128xf32> -> vector<32x128xf32>
    %c0_130 = arith.constant 0 : index
    %c2_131 = arith.constant 2 : index
    %c0_132 = arith.constant 0 : index
    %c0_133 = arith.constant 0 : index
    %519 = vector.load %arg6[%c0_130, %c2_131, %c0_132, %c0_133] : memref<1x4x32x128xbf16, #tpu.memory_space<vmem>>, vector<1x1x32x128xbf16>
    %520 = vector.shape_cast %519 : vector<1x1x32x128xbf16> to vector<32x128xbf16>
    %521 = arith.truncf %518 : vector<32x128xf32> to vector<32x128xbf16>
    %cst_134 = arith.constant dense<0.000000e+00> : vector<128x128xf32>
    %522 = tpu.matmul %521, %520, %cst_134 {dimension_numbers = #tpu.dot_dimension_numbers<[0], [0], [1], [1], [0, 1, 1, 1], [], []>} : vector<32x128xbf16>, vector<32x128xbf16>, vector<128x128xf32> -> vector<128x128xf32>
    %c0_135 = arith.constant 0 : index
    %c2_136 = arith.constant 2 : index
    %c0_137 = arith.constant 0 : index
    %c0_138 = arith.constant 0 : index
    %523 = vector.load %arg5[%c0_135, %c2_136, %c0_137, %c0_138] : memref<1x4x128x128xf32, #tpu.memory_space<vmem>>, vector<1x1x128x128xf32>
    %524 = vector.shape_cast %523 : vector<1x1x128x128xf32> to vector<128x128xf32>
    %525 = arith.addf %522, %524 : vector<128x128xf32>
    %cst_139 = arith.constant dense<0xFF800000> : vector<128xf32>
    %526 = vector.multi_reduction <maximumf>, %525, %cst_139 [1] : vector<128x128xf32> to vector<128xf32>
    %527 = vector.shape_cast %526 : vector<128xf32> to vector<128x1xf32>
    %528 = vector.broadcast %527 : vector<128x1xf32> to vector<128x128xf32>
    %529 = arith.subf %525, %528 : vector<128x128xf32>
    %530 = math.exp %529 : vector<128x128xf32>
    %cst_140 = arith.constant dense<0.000000e+00> : vector<128xf32>
    %531 = vector.multi_reduction <add>, %530, %cst_140 [1] : vector<128x128xf32> to vector<128xf32>
    %532 = vector.shape_cast %531 : vector<128xf32> to vector<128x1xf32>
    %533 = tpu.reciprocal %532 {approx = true} : vector<128x1xf32> -> vector<128x1xf32>
    %534 = vector.broadcast %533 : vector<128x1xf32> to vector<128x128xf32>
    %535 = arith.mulf %530, %534 : vector<128x128xf32>
    %c0_141 = arith.constant 0 : index
    %c0_142 = arith.constant 0 : index
    %c0_143 = arith.constant 0 : index
    %c0_144 = arith.constant 0 : index
    %536 = vector.load %arg4[%c0_141, %c0_142, %c0_143, %c0_144] : memref<1x8x128x128xbf16, #tpu.memory_space<vmem>>, vector<1x1x128x128xbf16>
    %537 = vector.shape_cast %536 : vector<1x1x128x128xbf16> to vector<128x128xbf16>
    %538 = arith.extf %537 : vector<128x128xbf16> to vector<128x128xf32>
    %539 = arith.mulf %535, %538 : vector<128x128xf32>
    %cst_145 = arith.constant dense<0.000000e+00> : vector<128xf32>
    %540 = vector.multi_reduction <add>, %539, %cst_145 [1] : vector<128x128xf32> to vector<128xf32>
    %541 = vector.shape_cast %540 : vector<128xf32> to vector<1x128xf32>
    %c0_146 = arith.constant 0 : index
    %c1_147 = arith.constant 1 : index
    %c0_148 = arith.constant 0 : index
    %c0_149 = arith.constant 0 : index
    %542 = vector.load %arg4[%c0_146, %c1_147, %c0_148, %c0_149] : memref<1x8x128x128xbf16, #tpu.memory_space<vmem>>, vector<1x1x128x128xbf16>
    %543 = vector.shape_cast %542 : vector<1x1x128x128xbf16> to vector<128x128xbf16>
    %544 = arith.extf %543 : vector<128x128xbf16> to vector<128x128xf32>
    %545 = arith.mulf %535, %544 : vector<128x128xf32>
    %cst_150 = arith.constant dense<0.000000e+00> : vector<128xf32>
    %546 = vector.multi_reduction <add>, %545, %cst_150 [1] : vector<128x128xf32> to vector<128xf32>
    %547 = vector.shape_cast %546 : vector<128xf32> to vector<1x128xf32>
    %c0_151 = arith.constant 0 : index
    %c2_152 = arith.constant 2 : index
    %c0_153 = arith.constant 0 : index
    %c0_154 = arith.constant 0 : index
    %548 = vector.load %arg4[%c0_151, %c2_152, %c0_153, %c0_154] : memref<1x8x128x128xbf16, #tpu.memory_space<vmem>>, vector<1x1x128x128xbf16>
    %549 = vector.shape_cast %548 : vector<1x1x128x128xbf16> to vector<128x128xbf16>
    %550 = arith.extf %549 : vector<128x128xbf16> to vector<128x128xf32>
    %551 = arith.mulf %535, %550 : vector<128x128xf32>
    %cst_155 = arith.constant dense<0.000000e+00> : vector<128xf32>
    %552 = vector.multi_reduction <add>, %551, %cst_155 [1] : vector<128x128xf32> to vector<128xf32>
    %553 = vector.shape_cast %552 : vector<128xf32> to vector<1x128xf32>
    %c0_156 = arith.constant 0 : index
    %c3_157 = arith.constant 3 : index
    %c0_158 = arith.constant 0 : index
    %c0_159 = arith.constant 0 : index
    %554 = vector.load %arg4[%c0_156, %c3_157, %c0_158, %c0_159] : memref<1x8x128x128xbf16, #tpu.memory_space<vmem>>, vector<1x1x128x128xbf16>
    %555 = vector.shape_cast %554 : vector<1x1x128x128xbf16> to vector<128x128xbf16>
    %556 = arith.extf %555 : vector<128x128xbf16> to vector<128x128xf32>
    %557 = arith.mulf %535, %556 : vector<128x128xf32>
    %cst_160 = arith.constant dense<0.000000e+00> : vector<128xf32>
    %558 = vector.multi_reduction <add>, %557, %cst_160 [1] : vector<128x128xf32> to vector<128xf32>
    %559 = vector.shape_cast %558 : vector<128xf32> to vector<1x128xf32>
    %c0_161 = arith.constant 0 : index
    %c4_162 = arith.constant 4 : index
    %c0_163 = arith.constant 0 : index
    %c0_164 = arith.constant 0 : index
    %560 = vector.load %arg4[%c0_161, %c4_162, %c0_163, %c0_164] : memref<1x8x128x128xbf16, #tpu.memory_space<vmem>>, vector<1x1x128x128xbf16>
    %561 = vector.shape_cast %560 : vector<1x1x128x128xbf16> to vector<128x128xbf16>
    %562 = arith.extf %561 : vector<128x128xbf16> to vector<128x128xf32>
    %563 = arith.mulf %535, %562 : vector<128x128xf32>
    %cst_165 = arith.constant dense<0.000000e+00> : vector<128xf32>
    %564 = vector.multi_reduction <add>, %563, %cst_165 [1] : vector<128x128xf32> to vector<128xf32>
    %565 = vector.shape_cast %564 : vector<128xf32> to vector<1x128xf32>
    %c0_166 = arith.constant 0 : index
    %c5_167 = arith.constant 5 : index
    %c0_168 = arith.constant 0 : index
    %c0_169 = arith.constant 0 : index
    %566 = vector.load %arg4[%c0_166, %c5_167, %c0_168, %c0_169] : memref<1x8x128x128xbf16, #tpu.memory_space<vmem>>, vector<1x1x128x128xbf16>
    %567 = vector.shape_cast %566 : vector<1x1x128x128xbf16> to vector<128x128xbf16>
    %568 = arith.extf %567 : vector<128x128xbf16> to vector<128x128xf32>
    %569 = arith.mulf %535, %568 : vector<128x128xf32>
    %cst_170 = arith.constant dense<0.000000e+00> : vector<128xf32>
    %570 = vector.multi_reduction <add>, %569, %cst_170 [1] : vector<128x128xf32> to vector<128xf32>
    %571 = vector.shape_cast %570 : vector<128xf32> to vector<1x128xf32>
    %c0_171 = arith.constant 0 : index
    %c6_172 = arith.constant 6 : index
    %c0_173 = arith.constant 0 : index
    %c0_174 = arith.constant 0 : index
    %572 = vector.load %arg4[%c0_171, %c6_172, %c0_173, %c0_174] : memref<1x8x128x128xbf16, #tpu.memory_space<vmem>>, vector<1x1x128x128xbf16>
    %573 = vector.shape_cast %572 : vector<1x1x128x128xbf16> to vector<128x128xbf16>
    %574 = arith.extf %573 : vector<128x128xbf16> to vector<128x128xf32>
    %575 = arith.mulf %535, %574 : vector<128x128xf32>
    %cst_175 = arith.constant dense<0.000000e+00> : vector<128xf32>
    %576 = vector.multi_reduction <add>, %575, %cst_175 [1] : vector<128x128xf32> to vector<128xf32>
    %577 = vector.shape_cast %576 : vector<128xf32> to vector<1x128xf32>
    %c0_176 = arith.constant 0 : index
    %c7_177 = arith.constant 7 : index
    %c0_178 = arith.constant 0 : index
    %c0_179 = arith.constant 0 : index
    %578 = vector.load %arg4[%c0_176, %c7_177, %c0_178, %c0_179] : memref<1x8x128x128xbf16, #tpu.memory_space<vmem>>, vector<1x1x128x128xbf16>
    %579 = vector.shape_cast %578 : vector<1x1x128x128xbf16> to vector<128x128xbf16>
    %580 = arith.extf %579 : vector<128x128xbf16> to vector<128x128xf32>
    %581 = arith.mulf %535, %580 : vector<128x128xf32>
    %cst_180 = arith.constant dense<0.000000e+00> : vector<128xf32>
    %582 = vector.multi_reduction <add>, %581, %cst_180 [1] : vector<128x128xf32> to vector<128xf32>
    %583 = vector.shape_cast %582 : vector<128xf32> to vector<1x128xf32>
    %c0_181 = arith.constant 0 : index
    %c2_182 = arith.constant 2 : index
    %c0_183 = arith.constant 0 : index
    %c0_184 = arith.constant 0 : index
    %584 = vector.load %arg7[%c0_181, %c2_182, %c0_183, %c0_184] : memref<1x4x40x128xbf16, #tpu.memory_space<vmem>>, vector<1x1x40x128xbf16>
    %585 = vector.shape_cast %584 : vector<1x1x40x128xbf16> to vector<40x128xbf16>
    %586 = arith.truncf %535 : vector<128x128xf32> to vector<128x128xbf16>
    %cst_185 = arith.constant dense<0.000000e+00> : vector<40x128xf32>
    %587 = tpu.matmul %585, %586, %cst_185 {dimension_numbers = #tpu.dot_dimension_numbers<[1], [1], [0], [0], [0, 0, 1, 0], [], []>} : vector<40x128xbf16>, vector<128x128xbf16>, vector<40x128xf32> -> vector<40x128xf32>
    %588 = vector.extract_strided_slice %587 {offsets = [0, 0], sizes = [16, 128], strides = [1, 1]} : vector<40x128xf32> to vector<16x128xf32>
    %589 = vector.extract_strided_slice %587 {offsets = [16, 0], sizes = [24, 128], strides = [1, 1]} : vector<40x128xf32> to vector<24x128xf32>
    %590 = vector.extract_strided_slice %6 {offsets = [0, 0, 0], sizes = [1, 1, 128], strides = [1, 1, 1]} : vector<3x3x128xf32> to vector<1x1x128xf32>
    %591 = vector.shape_cast %590 : vector<1x1x128xf32> to vector<1x128xf32>
    %592 = vector.extract_strided_slice %589 {offsets = [0, 0], sizes = [8, 128], strides = [1, 1]} : vector<24x128xf32> to vector<8x128xf32>
    %593 = vector.extract_strided_slice %8 {offsets = [0, 0], sizes = [1, 128], strides = [1, 1]} : vector<3x128xf32> to vector<1x128xf32>
    %594 = vector.broadcast %593 : vector<1x128xf32> to vector<8x128xf32>
    %595 = arith.subf %592, %594 : vector<8x128xf32>
    %596 = vector.broadcast %591 : vector<1x128xf32> to vector<8x128xf32>
    %597 = arith.mulf %596, %595 : vector<8x128xf32>
    %598 = vector.extract_strided_slice %6 {offsets = [1, 0, 0], sizes = [1, 1, 128], strides = [1, 1, 1]} : vector<3x3x128xf32> to vector<1x1x128xf32>
    %599 = vector.shape_cast %598 : vector<1x1x128xf32> to vector<1x128xf32>
    %600 = vector.extract_strided_slice %589 {offsets = [8, 0], sizes = [8, 128], strides = [1, 1]} : vector<24x128xf32> to vector<8x128xf32>
    %601 = vector.extract_strided_slice %8 {offsets = [1, 0], sizes = [1, 128], strides = [1, 1]} : vector<3x128xf32> to vector<1x128xf32>
    %602 = vector.broadcast %601 : vector<1x128xf32> to vector<8x128xf32>
    %603 = arith.subf %600, %602 : vector<8x128xf32>
    %604 = vector.broadcast %599 : vector<1x128xf32> to vector<8x128xf32>
    %605 = arith.mulf %604, %603 : vector<8x128xf32>
    %606 = arith.addf %597, %605 : vector<8x128xf32>
    %607 = vector.extract_strided_slice %6 {offsets = [2, 0, 0], sizes = [1, 1, 128], strides = [1, 1, 1]} : vector<3x3x128xf32> to vector<1x1x128xf32>
    %608 = vector.shape_cast %607 : vector<1x1x128xf32> to vector<1x128xf32>
    %609 = vector.extract_strided_slice %589 {offsets = [16, 0], sizes = [8, 128], strides = [1, 1]} : vector<24x128xf32> to vector<8x128xf32>
    %610 = vector.extract_strided_slice %8 {offsets = [2, 0], sizes = [1, 128], strides = [1, 1]} : vector<3x128xf32> to vector<1x128xf32>
    %611 = vector.broadcast %610 : vector<1x128xf32> to vector<8x128xf32>
    %612 = arith.subf %609, %611 : vector<8x128xf32>
    %613 = vector.broadcast %608 : vector<1x128xf32> to vector<8x128xf32>
    %614 = arith.mulf %613, %612 : vector<8x128xf32>
    %615 = arith.addf %606, %614 : vector<8x128xf32>
    %616 = vector.extract_strided_slice %6 {offsets = [0, 1, 0], sizes = [1, 1, 128], strides = [1, 1, 1]} : vector<3x3x128xf32> to vector<1x1x128xf32>
    %617 = vector.shape_cast %616 : vector<1x1x128xf32> to vector<1x128xf32>
    %618 = vector.extract_strided_slice %589 {offsets = [0, 0], sizes = [8, 128], strides = [1, 1]} : vector<24x128xf32> to vector<8x128xf32>
    %619 = vector.extract_strided_slice %8 {offsets = [0, 0], sizes = [1, 128], strides = [1, 1]} : vector<3x128xf32> to vector<1x128xf32>
    %620 = vector.broadcast %619 : vector<1x128xf32> to vector<8x128xf32>
    %621 = arith.subf %618, %620 : vector<8x128xf32>
    %622 = vector.broadcast %617 : vector<1x128xf32> to vector<8x128xf32>
    %623 = arith.mulf %622, %621 : vector<8x128xf32>
    %624 = vector.extract_strided_slice %6 {offsets = [1, 1, 0], sizes = [1, 1, 128], strides = [1, 1, 1]} : vector<3x3x128xf32> to vector<1x1x128xf32>
    %625 = vector.shape_cast %624 : vector<1x1x128xf32> to vector<1x128xf32>
    %626 = vector.extract_strided_slice %589 {offsets = [8, 0], sizes = [8, 128], strides = [1, 1]} : vector<24x128xf32> to vector<8x128xf32>
    %627 = vector.extract_strided_slice %8 {offsets = [1, 0], sizes = [1, 128], strides = [1, 1]} : vector<3x128xf32> to vector<1x128xf32>
    %628 = vector.broadcast %627 : vector<1x128xf32> to vector<8x128xf32>
    %629 = arith.subf %626, %628 : vector<8x128xf32>
    %630 = vector.broadcast %625 : vector<1x128xf32> to vector<8x128xf32>
    %631 = arith.mulf %630, %629 : vector<8x128xf32>
    %632 = arith.addf %623, %631 : vector<8x128xf32>
    %633 = vector.extract_strided_slice %6 {offsets = [2, 1, 0], sizes = [1, 1, 128], strides = [1, 1, 1]} : vector<3x3x128xf32> to vector<1x1x128xf32>
    %634 = vector.shape_cast %633 : vector<1x1x128xf32> to vector<1x128xf32>
    %635 = vector.extract_strided_slice %589 {offsets = [16, 0], sizes = [8, 128], strides = [1, 1]} : vector<24x128xf32> to vector<8x128xf32>
    %636 = vector.extract_strided_slice %8 {offsets = [2, 0], sizes = [1, 128], strides = [1, 1]} : vector<3x128xf32> to vector<1x128xf32>
    %637 = vector.broadcast %636 : vector<1x128xf32> to vector<8x128xf32>
    %638 = arith.subf %635, %637 : vector<8x128xf32>
    %639 = vector.broadcast %634 : vector<1x128xf32> to vector<8x128xf32>
    %640 = arith.mulf %639, %638 : vector<8x128xf32>
    %641 = arith.addf %632, %640 : vector<8x128xf32>
    %642 = vector.extract_strided_slice %6 {offsets = [0, 2, 0], sizes = [1, 1, 128], strides = [1, 1, 1]} : vector<3x3x128xf32> to vector<1x1x128xf32>
    %643 = vector.shape_cast %642 : vector<1x1x128xf32> to vector<1x128xf32>
    %644 = vector.extract_strided_slice %589 {offsets = [0, 0], sizes = [8, 128], strides = [1, 1]} : vector<24x128xf32> to vector<8x128xf32>
    %645 = vector.extract_strided_slice %8 {offsets = [0, 0], sizes = [1, 128], strides = [1, 1]} : vector<3x128xf32> to vector<1x128xf32>
    %646 = vector.broadcast %645 : vector<1x128xf32> to vector<8x128xf32>
    %647 = arith.subf %644, %646 : vector<8x128xf32>
    %648 = vector.broadcast %643 : vector<1x128xf32> to vector<8x128xf32>
    %649 = arith.mulf %648, %647 : vector<8x128xf32>
    %650 = vector.extract_strided_slice %6 {offsets = [1, 2, 0], sizes = [1, 1, 128], strides = [1, 1, 1]} : vector<3x3x128xf32> to vector<1x1x128xf32>
    %651 = vector.shape_cast %650 : vector<1x1x128xf32> to vector<1x128xf32>
    %652 = vector.extract_strided_slice %589 {offsets = [8, 0], sizes = [8, 128], strides = [1, 1]} : vector<24x128xf32> to vector<8x128xf32>
    %653 = vector.extract_strided_slice %8 {offsets = [1, 0], sizes = [1, 128], strides = [1, 1]} : vector<3x128xf32> to vector<1x128xf32>
    %654 = vector.broadcast %653 : vector<1x128xf32> to vector<8x128xf32>
    %655 = arith.subf %652, %654 : vector<8x128xf32>
    %656 = vector.broadcast %651 : vector<1x128xf32> to vector<8x128xf32>
    %657 = arith.mulf %656, %655 : vector<8x128xf32>
    %658 = arith.addf %649, %657 : vector<8x128xf32>
    %659 = vector.extract_strided_slice %6 {offsets = [2, 2, 0], sizes = [1, 1, 128], strides = [1, 1, 1]} : vector<3x3x128xf32> to vector<1x1x128xf32>
    %660 = vector.shape_cast %659 : vector<1x1x128xf32> to vector<1x128xf32>
    %661 = vector.extract_strided_slice %589 {offsets = [16, 0], sizes = [8, 128], strides = [1, 1]} : vector<24x128xf32> to vector<8x128xf32>
    %662 = vector.extract_strided_slice %8 {offsets = [2, 0], sizes = [1, 128], strides = [1, 1]} : vector<3x128xf32> to vector<1x128xf32>
    %663 = vector.broadcast %662 : vector<1x128xf32> to vector<8x128xf32>
    %664 = arith.subf %661, %663 : vector<8x128xf32>
    %665 = vector.broadcast %660 : vector<1x128xf32> to vector<8x128xf32>
    %666 = arith.mulf %665, %664 : vector<8x128xf32>
    %667 = arith.addf %658, %666 : vector<8x128xf32>
    %668 = tpu.concatenate %615, %641, %667 in 0 : vector<8x128xf32>, vector<8x128xf32>, vector<8x128xf32> -> vector<24x128xf32>
    %c0_186 = arith.constant 0 : index
    %c0_187 = arith.constant 0 : index
    %669 = vector.load %arg16[%c0_186, %c0_187] : memref<1x128xf32, #tpu.memory_space<vmem>>, vector<1x128xf32>
    %670 = arith.mulf %668, %668 : vector<24x128xf32>
    %cst_188 = arith.constant dense<0.000000e+00> : vector<128xf32>
    %671 = vector.multi_reduction <add>, %670, %cst_188 [0] : vector<24x128xf32> to vector<128xf32>
    %672 = vector.shape_cast %671 : vector<128xf32> to vector<1x128xf32>
    %673 = arith.addf %669, %672 : vector<1x128xf32>
    %c0_189 = arith.constant 0 : index
    %c0_190 = arith.constant 0 : index
    %674 = vector.load %arg16[%c0_189, %c0_190] : memref<1x128xf32, #tpu.memory_space<vmem>>, vector<1x128xf32>
    tpu.vector_store %arg16[%c0_189, %c0_190], %673 {strides = array<i32>} : memref<1x128xf32, #tpu.memory_space<vmem>>, vector<1x128xf32>,
    %675 = vector.extract_strided_slice %11 {offsets = [96, 0], sizes = [16, 128], strides = [1, 1]} : vector<128x128xf32> to vector<16x128xf32>
    %676 = vector.extract_strided_slice %11 {offsets = [112, 0], sizes = [12, 128], strides = [1, 1]} : vector<128x128xf32> to vector<12x128xf32>
    %677 = vector.extract_strided_slice %8 {offsets = [0, 0], sizes = [1, 128], strides = [1, 1]} : vector<3x128xf32> to vector<1x128xf32>
    %678 = vector.extract_strided_slice %6 {offsets = [0, 0, 0], sizes = [1, 1, 128], strides = [1, 1, 1]} : vector<3x3x128xf32> to vector<1x1x128xf32>
    %679 = vector.shape_cast %678 : vector<1x1x128xf32> to vector<1x128xf32>
    %680 = vector.extract_strided_slice %676 {offsets = [0, 0], sizes = [4, 128], strides = [1, 1]} : vector<12x128xf32> to vector<4x128xf32>
    %681 = vector.broadcast %679 : vector<1x128xf32> to vector<4x128xf32>
    %682 = arith.mulf %681, %680 : vector<4x128xf32>
    %683 = vector.broadcast %677 : vector<1x128xf32> to vector<4x128xf32>
    %684 = arith.addf %683, %682 : vector<4x128xf32>
    %685 = vector.extract_strided_slice %6 {offsets = [0, 1, 0], sizes = [1, 1, 128], strides = [1, 1, 1]} : vector<3x3x128xf32> to vector<1x1x128xf32>
    %686 = vector.shape_cast %685 : vector<1x1x128xf32> to vector<1x128xf32>
    %687 = vector.extract_strided_slice %676 {offsets = [4, 0], sizes = [4, 128], strides = [1, 1]} : vector<12x128xf32> to vector<4x128xf32>
    %688 = vector.broadcast %686 : vector<1x128xf32> to vector<4x128xf32>
    %689 = arith.mulf %688, %687 : vector<4x128xf32>
    %690 = arith.addf %684, %689 : vector<4x128xf32>
    %691 = vector.extract_strided_slice %6 {offsets = [0, 2, 0], sizes = [1, 1, 128], strides = [1, 1, 1]} : vector<3x3x128xf32> to vector<1x1x128xf32>
    %692 = vector.shape_cast %691 : vector<1x1x128xf32> to vector<1x128xf32>
    %693 = vector.extract_strided_slice %676 {offsets = [8, 0], sizes = [4, 128], strides = [1, 1]} : vector<12x128xf32> to vector<4x128xf32>
    %694 = vector.broadcast %692 : vector<1x128xf32> to vector<4x128xf32>
    %695 = arith.mulf %694, %693 : vector<4x128xf32>
    %696 = arith.addf %690, %695 : vector<4x128xf32>
    %697 = vector.extract_strided_slice %8 {offsets = [1, 0], sizes = [1, 128], strides = [1, 1]} : vector<3x128xf32> to vector<1x128xf32>
    %698 = vector.extract_strided_slice %6 {offsets = [1, 0, 0], sizes = [1, 1, 128], strides = [1, 1, 1]} : vector<3x3x128xf32> to vector<1x1x128xf32>
    %699 = vector.shape_cast %698 : vector<1x1x128xf32> to vector<1x128xf32>
    %700 = vector.extract_strided_slice %676 {offsets = [0, 0], sizes = [4, 128], strides = [1, 1]} : vector<12x128xf32> to vector<4x128xf32>
    %701 = vector.broadcast %699 : vector<1x128xf32> to vector<4x128xf32>
    %702 = arith.mulf %701, %700 : vector<4x128xf32>
    %703 = vector.broadcast %697 : vector<1x128xf32> to vector<4x128xf32>
    %704 = arith.addf %703, %702 : vector<4x128xf32>
    %705 = vector.extract_strided_slice %6 {offsets = [1, 1, 0], sizes = [1, 1, 128], strides = [1, 1, 1]} : vector<3x3x128xf32> to vector<1x1x128xf32>
    %706 = vector.shape_cast %705 : vector<1x1x128xf32> to vector<1x128xf32>
    %707 = vector.extract_strided_slice %676 {offsets = [4, 0], sizes = [4, 128], strides = [1, 1]} : vector<12x128xf32> to vector<4x128xf32>
    %708 = vector.broadcast %706 : vector<1x128xf32> to vector<4x128xf32>
    %709 = arith.mulf %708, %707 : vector<4x128xf32>
    %710 = arith.addf %704, %709 : vector<4x128xf32>
    %711 = vector.extract_strided_slice %6 {offsets = [1, 2, 0], sizes = [1, 1, 128], strides = [1, 1, 1]} : vector<3x3x128xf32> to vector<1x1x128xf32>
    %712 = vector.shape_cast %711 : vector<1x1x128xf32> to vector<1x128xf32>
    %713 = vector.extract_strided_slice %676 {offsets = [8, 0], sizes = [4, 128], strides = [1, 1]} : vector<12x128xf32> to vector<4x128xf32>
    %714 = vector.broadcast %712 : vector<1x128xf32> to vector<4x128xf32>
    %715 = arith.mulf %714, %713 : vector<4x128xf32>
    %716 = arith.addf %710, %715 : vector<4x128xf32>
    %717 = vector.extract_strided_slice %8 {offsets = [2, 0], sizes = [1, 128], strides = [1, 1]} : vector<3x128xf32> to vector<1x128xf32>
    %718 = vector.extract_strided_slice %6 {offsets = [2, 0, 0], sizes = [1, 1, 128], strides = [1, 1, 1]} : vector<3x3x128xf32> to vector<1x1x128xf32>
    %719 = vector.shape_cast %718 : vector<1x1x128xf32> to vector<1x128xf32>
    %720 = vector.extract_strided_slice %676 {offsets = [0, 0], sizes = [4, 128], strides = [1, 1]} : vector<12x128xf32> to vector<4x128xf32>
    %721 = vector.broadcast %719 : vector<1x128xf32> to vector<4x128xf32>
    %722 = arith.mulf %721, %720 : vector<4x128xf32>
    %723 = vector.broadcast %717 : vector<1x128xf32> to vector<4x128xf32>
    %724 = arith.addf %723, %722 : vector<4x128xf32>
    %725 = vector.extract_strided_slice %6 {offsets = [2, 1, 0], sizes = [1, 1, 128], strides = [1, 1, 1]} : vector<3x3x128xf32> to vector<1x1x128xf32>
    %726 = vector.shape_cast %725 : vector<1x1x128xf32> to vector<1x128xf32>
    %727 = vector.extract_strided_slice %676 {offsets = [4, 0], sizes = [4, 128], strides = [1, 1]} : vector<12x128xf32> to vector<4x128xf32>
    %728 = vector.broadcast %726 : vector<1x128xf32> to vector<4x128xf32>
    %729 = arith.mulf %728, %727 : vector<4x128xf32>
    %730 = arith.addf %724, %729 : vector<4x128xf32>
    %731 = vector.extract_strided_slice %6 {offsets = [2, 2, 0], sizes = [1, 1, 128], strides = [1, 1, 1]} : vector<3x3x128xf32> to vector<1x1x128xf32>
    %732 = vector.shape_cast %731 : vector<1x1x128xf32> to vector<1x128xf32>
    %733 = vector.extract_strided_slice %676 {offsets = [8, 0], sizes = [4, 128], strides = [1, 1]} : vector<12x128xf32> to vector<4x128xf32>
    %734 = vector.broadcast %732 : vector<1x128xf32> to vector<4x128xf32>
    %735 = arith.mulf %734, %733 : vector<4x128xf32>
    %736 = arith.addf %730, %735 : vector<4x128xf32>
    %737 = tpu.concatenate %696, %716, %736 in 0 : vector<4x128xf32>, vector<4x128xf32>, vector<4x128xf32> -> vector<12x128xf32>
    %cst_191 = arith.constant 0.000000e+00 : f32
    %738 = vector.broadcast %cst_191 : f32 to vector<4x128xf32>
    %739 = tpu.concatenate %675, %737, %738 in 0 : vector<16x128xf32>, vector<12x128xf32>, vector<4x128xf32> -> vector<32x128xf32>
    %c0_192 = arith.constant 0 : index
    %c3_193 = arith.constant 3 : index
    %c0_194 = arith.constant 0 : index
    %c0_195 = arith.constant 0 : index
    %740 = vector.load %arg6[%c0_192, %c3_193, %c0_194, %c0_195] : memref<1x4x32x128xbf16, #tpu.memory_space<vmem>>, vector<1x1x32x128xbf16>
    %741 = vector.shape_cast %740 : vector<1x1x32x128xbf16> to vector<32x128xbf16>
    %742 = arith.truncf %739 : vector<32x128xf32> to vector<32x128xbf16>
    %cst_196 = arith.constant dense<0.000000e+00> : vector<128x128xf32>
    %743 = tpu.matmul %742, %741, %cst_196 {dimension_numbers = #tpu.dot_dimension_numbers<[0], [0], [1], [1], [0, 1, 1, 1], [], []>} : vector<32x128xbf16>, vector<32x128xbf16>, vector<128x128xf32> -> vector<128x128xf32>
    %c0_197 = arith.constant 0 : index
    %c3_198 = arith.constant 3 : index
    %c0_199 = arith.constant 0 : index
    %c0_200 = arith.constant 0 : index
    %744 = vector.load %arg5[%c0_197, %c3_198, %c0_199, %c0_200] : memref<1x4x128x128xf32, #tpu.memory_space<vmem>>, vector<1x1x128x128xf32>
    %745 = vector.shape_cast %744 : vector<1x1x128x128xf32> to vector<128x128xf32>
    %746 = arith.addf %743, %745 : vector<128x128xf32>
    %cst_201 = arith.constant dense<0xFF800000> : vector<128xf32>
    %747 = vector.multi_reduction <maximumf>, %746, %cst_201 [1] : vector<128x128xf32> to vector<128xf32>
    %748 = vector.shape_cast %747 : vector<128xf32> to vector<128x1xf32>
    %749 = vector.broadcast %748 : vector<128x1xf32> to vector<128x128xf32>
    %750 = arith.subf %746, %749 : vector<128x128xf32>
    %751 = math.exp %750 : vector<128x128xf32>
    %cst_202 = arith.constant dense<0.000000e+00> : vector<128xf32>
    %752 = vector.multi_reduction <add>, %751, %cst_202 [1] : vector<128x128xf32> to vector<128xf32>
    %753 = vector.shape_cast %752 : vector<128xf32> to vector<128x1xf32>
    %754 = tpu.reciprocal %753 {approx = true} : vector<128x1xf32> -> vector<128x1xf32>
    %755 = vector.broadcast %754 : vector<128x1xf32> to vector<128x128xf32>
    %756 = arith.mulf %751, %755 : vector<128x128xf32>
    %c0_203 = arith.constant 0 : index
    %c0_204 = arith.constant 0 : index
    %c0_205 = arith.constant 0 : index
    %c0_206 = arith.constant 0 : index
    %757 = vector.load %arg4[%c0_203, %c0_204, %c0_205, %c0_206] : memref<1x8x128x128xbf16, #tpu.memory_space<vmem>>, vector<1x1x128x128xbf16>
    %758 = vector.shape_cast %757 : vector<1x1x128x128xbf16> to vector<128x128xbf16>
    %759 = arith.extf %758 : vector<128x128xbf16> to vector<128x128xf32>
    %760 = arith.mulf %756, %759 : vector<128x128xf32>
    %cst_207 = arith.constant dense<0.000000e+00> : vector<128xf32>
    %761 = vector.multi_reduction <add>, %760, %cst_207 [1] : vector<128x128xf32> to vector<128xf32>
    %762 = vector.shape_cast %761 : vector<128xf32> to vector<1x128xf32>
    %c0_208 = arith.constant 0 : index
    %c1_209 = arith.constant 1 : index
    %c0_210 = arith.constant 0 : index
    %c0_211 = arith.constant 0 : index
    %763 = vector.load %arg4[%c0_208, %c1_209, %c0_210, %c0_211] : memref<1x8x128x128xbf16, #tpu.memory_space<vmem>>, vector<1x1x128x128xbf16>
    %764 = vector.shape_cast %763 : vector<1x1x128x128xbf16> to vector<128x128xbf16>
    %765 = arith.extf %764 : vector<128x128xbf16> to vector<128x128xf32>
    %766 = arith.mulf %756, %765 : vector<128x128xf32>
    %cst_212 = arith.constant dense<0.000000e+00> : vector<128xf32>
    %767 = vector.multi_reduction <add>, %766, %cst_212 [1] : vector<128x128xf32> to vector<128xf32>
    %768 = vector.shape_cast %767 : vector<128xf32> to vector<1x128xf32>
    %c0_213 = arith.constant 0 : index
    %c2_214 = arith.constant 2 : index
    %c0_215 = arith.constant 0 : index
    %c0_216 = arith.constant 0 : index
    %769 = vector.load %arg4[%c0_213, %c2_214, %c0_215, %c0_216] : memref<1x8x128x128xbf16, #tpu.memory_space<vmem>>, vector<1x1x128x128xbf16>
    %770 = vector.shape_cast %769 : vector<1x1x128x128xbf16> to vector<128x128xbf16>
    %771 = arith.extf %770 : vector<128x128xbf16> to vector<128x128xf32>
    %772 = arith.mulf %756, %771 : vector<128x128xf32>
    %cst_217 = arith.constant dense<0.000000e+00> : vector<128xf32>
    %773 = vector.multi_reduction <add>, %772, %cst_217 [1] : vector<128x128xf32> to vector<128xf32>
    %774 = vector.shape_cast %773 : vector<128xf32> to vector<1x128xf32>
    %c0_218 = arith.constant 0 : index
    %c3_219 = arith.constant 3 : index
    %c0_220 = arith.constant 0 : index
    %c0_221 = arith.constant 0 : index
    %775 = vector.load %arg4[%c0_218, %c3_219, %c0_220, %c0_221] : memref<1x8x128x128xbf16, #tpu.memory_space<vmem>>, vector<1x1x128x128xbf16>
    %776 = vector.shape_cast %775 : vector<1x1x128x128xbf16> to vector<128x128xbf16>
    %777 = arith.extf %776 : vector<128x128xbf16> to vector<128x128xf32>
    %778 = arith.mulf %756, %777 : vector<128x128xf32>
    %cst_222 = arith.constant dense<0.000000e+00> : vector<128xf32>
    %779 = vector.multi_reduction <add>, %778, %cst_222 [1] : vector<128x128xf32> to vector<128xf32>
    %780 = vector.shape_cast %779 : vector<128xf32> to vector<1x128xf32>
    %c0_223 = arith.constant 0 : index
    %c4_224 = arith.constant 4 : index
    %c0_225 = arith.constant 0 : index
    %c0_226 = arith.constant 0 : index
    %781 = vector.load %arg4[%c0_223, %c4_224, %c0_225, %c0_226] : memref<1x8x128x128xbf16, #tpu.memory_space<vmem>>, vector<1x1x128x128xbf16>
    %782 = vector.shape_cast %781 : vector<1x1x128x128xbf16> to vector<128x128xbf16>
    %783 = arith.extf %782 : vector<128x128xbf16> to vector<128x128xf32>
    %784 = arith.mulf %756, %783 : vector<128x128xf32>
    %cst_227 = arith.constant dense<0.000000e+00> : vector<128xf32>
    %785 = vector.multi_reduction <add>, %784, %cst_227 [1] : vector<128x128xf32> to vector<128xf32>
    %786 = vector.shape_cast %785 : vector<128xf32> to vector<1x128xf32>
    %c0_228 = arith.constant 0 : index
    %c5_229 = arith.constant 5 : index
    %c0_230 = arith.constant 0 : index
    %c0_231 = arith.constant 0 : index
    %787 = vector.load %arg4[%c0_228, %c5_229, %c0_230, %c0_231] : memref<1x8x128x128xbf16, #tpu.memory_space<vmem>>, vector<1x1x128x128xbf16>
    %788 = vector.shape_cast %787 : vector<1x1x128x128xbf16> to vector<128x128xbf16>
    %789 = arith.extf %788 : vector<128x128xbf16> to vector<128x128xf32>
    %790 = arith.mulf %756, %789 : vector<128x128xf32>
    %cst_232 = arith.constant dense<0.000000e+00> : vector<128xf32>
    %791 = vector.multi_reduction <add>, %790, %cst_232 [1] : vector<128x128xf32> to vector<128xf32>
    %792 = vector.shape_cast %791 : vector<128xf32> to vector<1x128xf32>
    %c0_233 = arith.constant 0 : index
    %c6_234 = arith.constant 6 : index
    %c0_235 = arith.constant 0 : index
    %c0_236 = arith.constant 0 : index
    %793 = vector.load %arg4[%c0_233, %c6_234, %c0_235, %c0_236] : memref<1x8x128x128xbf16, #tpu.memory_space<vmem>>, vector<1x1x128x128xbf16>
    %794 = vector.shape_cast %793 : vector<1x1x128x128xbf16> to vector<128x128xbf16>
    %795 = arith.extf %794 : vector<128x128xbf16> to vector<128x128xf32>
    %796 = arith.mulf %756, %795 : vector<128x128xf32>
    %cst_237 = arith.constant dense<0.000000e+00> : vector<128xf32>
    %797 = vector.multi_reduction <add>, %796, %cst_237 [1] : vector<128x128xf32> to vector<128xf32>
    %798 = vector.shape_cast %797 : vector<128xf32> to vector<1x128xf32>
    %c0_238 = arith.constant 0 : index
    %c7_239 = arith.constant 7 : index
    %c0_240 = arith.constant 0 : index
    %c0_241 = arith.constant 0 : index
    %799 = vector.load %arg4[%c0_238, %c7_239, %c0_240, %c0_241] : memref<1x8x128x128xbf16, #tpu.memory_space<vmem>>, vector<1x1x128x128xbf16>
    %800 = vector.shape_cast %799 : vector<1x1x128x128xbf16> to vector<128x128xbf16>
    %801 = arith.extf %800 : vector<128x128xbf16> to vector<128x128xf32>
    %802 = arith.mulf %756, %801 : vector<128x128xf32>
    %cst_242 = arith.constant dense<0.000000e+00> : vector<128xf32>
    %803 = vector.multi_reduction <add>, %802, %cst_242 [1] : vector<128x128xf32> to vector<128xf32>
    %804 = vector.shape_cast %803 : vector<128xf32> to vector<1x128xf32>
    %c0_243 = arith.constant 0 : index
    %c3_244 = arith.constant 3 : index
    %c0_245 = arith.constant 0 : index
    %c0_246 = arith.constant 0 : index
    %805 = vector.load %arg7[%c0_243, %c3_244, %c0_245, %c0_246] : memref<1x4x40x128xbf16, #tpu.memory_space<vmem>>, vector<1x1x40x128xbf16>
    %806 = vector.shape_cast %805 : vector<1x1x40x128xbf16> to vector<40x128xbf16>
    %807 = arith.truncf %756 : vector<128x128xf32> to vector<128x128xbf16>
    %cst_247 = arith.constant dense<0.000000e+00> : vector<40x128xf32>
    %808 = tpu.matmul %806, %807, %cst_247 {dimension_numbers = #tpu.dot_dimension_numbers<[1], [1], [0], [0], [0, 0, 1, 0], [], []>} : vector<40x128xbf16>, vector<128x128xbf16>, vector<40x128xf32> -> vector<40x128xf32>
    %809 = vector.extract_strided_slice %808 {offsets = [0, 0], sizes = [16, 128], strides = [1, 1]} : vector<40x128xf32> to vector<16x128xf32>
    %810 = vector.extract_strided_slice %808 {offsets = [16, 0], sizes = [24, 128], strides = [1, 1]} : vector<40x128xf32> to vector<24x128xf32>
    %811 = vector.extract_strided_slice %6 {offsets = [0, 0, 0], sizes = [1, 1, 128], strides = [1, 1, 1]} : vector<3x3x128xf32> to vector<1x1x128xf32>
    %812 = vector.shape_cast %811 : vector<1x1x128xf32> to vector<1x128xf32>
    %813 = vector.extract_strided_slice %810 {offsets = [0, 0], sizes = [8, 128], strides = [1, 1]} : vector<24x128xf32> to vector<8x128xf32>
    %814 = vector.extract_strided_slice %8 {offsets = [0, 0], sizes = [1, 128], strides = [1, 1]} : vector<3x128xf32> to vector<1x128xf32>
    %815 = vector.broadcast %814 : vector<1x128xf32> to vector<8x128xf32>
    %816 = arith.subf %813, %815 : vector<8x128xf32>
    %817 = vector.broadcast %812 : vector<1x128xf32> to vector<8x128xf32>
    %818 = arith.mulf %817, %816 : vector<8x128xf32>
    %819 = vector.extract_strided_slice %6 {offsets = [1, 0, 0], sizes = [1, 1, 128], strides = [1, 1, 1]} : vector<3x3x128xf32> to vector<1x1x128xf32>
    %820 = vector.shape_cast %819 : vector<1x1x128xf32> to vector<1x128xf32>
    %821 = vector.extract_strided_slice %810 {offsets = [8, 0], sizes = [8, 128], strides = [1, 1]} : vector<24x128xf32> to vector<8x128xf32>
    %822 = vector.extract_strided_slice %8 {offsets = [1, 0], sizes = [1, 128], strides = [1, 1]} : vector<3x128xf32> to vector<1x128xf32>
    %823 = vector.broadcast %822 : vector<1x128xf32> to vector<8x128xf32>
    %824 = arith.subf %821, %823 : vector<8x128xf32>
    %825 = vector.broadcast %820 : vector<1x128xf32> to vector<8x128xf32>
    %826 = arith.mulf %825, %824 : vector<8x128xf32>
    %827 = arith.addf %818, %826 : vector<8x128xf32>
    %828 = vector.extract_strided_slice %6 {offsets = [2, 0, 0], sizes = [1, 1, 128], strides = [1, 1, 1]} : vector<3x3x128xf32> to vector<1x1x128xf32>
    %829 = vector.shape_cast %828 : vector<1x1x128xf32> to vector<1x128xf32>
    %830 = vector.extract_strided_slice %810 {offsets = [16, 0], sizes = [8, 128], strides = [1, 1]} : vector<24x128xf32> to vector<8x128xf32>
    %831 = vector.extract_strided_slice %8 {offsets = [2, 0], sizes = [1, 128], strides = [1, 1]} : vector<3x128xf32> to vector<1x128xf32>
    %832 = vector.broadcast %831 : vector<1x128xf32> to vector<8x128xf32>
    %833 = arith.subf %830, %832 : vector<8x128xf32>
    %834 = vector.broadcast %829 : vector<1x128xf32> to vector<8x128xf32>
    %835 = arith.mulf %834, %833 : vector<8x128xf32>
    %836 = arith.addf %827, %835 : vector<8x128xf32>
    %837 = vector.extract_strided_slice %6 {offsets = [0, 1, 0], sizes = [1, 1, 128], strides = [1, 1, 1]} : vector<3x3x128xf32> to vector<1x1x128xf32>
    %838 = vector.shape_cast %837 : vector<1x1x128xf32> to vector<1x128xf32>
    %839 = vector.extract_strided_slice %810 {offsets = [0, 0], sizes = [8, 128], strides = [1, 1]} : vector<24x128xf32> to vector<8x128xf32>
    %840 = vector.extract_strided_slice %8 {offsets = [0, 0], sizes = [1, 128], strides = [1, 1]} : vector<3x128xf32> to vector<1x128xf32>
    %841 = vector.broadcast %840 : vector<1x128xf32> to vector<8x128xf32>
    %842 = arith.subf %839, %841 : vector<8x128xf32>
    %843 = vector.broadcast %838 : vector<1x128xf32> to vector<8x128xf32>
    %844 = arith.mulf %843, %842 : vector<8x128xf32>
    %845 = vector.extract_strided_slice %6 {offsets = [1, 1, 0], sizes = [1, 1, 128], strides = [1, 1, 1]} : vector<3x3x128xf32> to vector<1x1x128xf32>
    %846 = vector.shape_cast %845 : vector<1x1x128xf32> to vector<1x128xf32>
    %847 = vector.extract_strided_slice %810 {offsets = [8, 0], sizes = [8, 128], strides = [1, 1]} : vector<24x128xf32> to vector<8x128xf32>
    %848 = vector.extract_strided_slice %8 {offsets = [1, 0], sizes = [1, 128], strides = [1, 1]} : vector<3x128xf32> to vector<1x128xf32>
    %849 = vector.broadcast %848 : vector<1x128xf32> to vector<8x128xf32>
    %850 = arith.subf %847, %849 : vector<8x128xf32>
    %851 = vector.broadcast %846 : vector<1x128xf32> to vector<8x128xf32>
    %852 = arith.mulf %851, %850 : vector<8x128xf32>
    %853 = arith.addf %844, %852 : vector<8x128xf32>
    %854 = vector.extract_strided_slice %6 {offsets = [2, 1, 0], sizes = [1, 1, 128], strides = [1, 1, 1]} : vector<3x3x128xf32> to vector<1x1x128xf32>
    %855 = vector.shape_cast %854 : vector<1x1x128xf32> to vector<1x128xf32>
    %856 = vector.extract_strided_slice %810 {offsets = [16, 0], sizes = [8, 128], strides = [1, 1]} : vector<24x128xf32> to vector<8x128xf32>
    %857 = vector.extract_strided_slice %8 {offsets = [2, 0], sizes = [1, 128], strides = [1, 1]} : vector<3x128xf32> to vector<1x128xf32>
    %858 = vector.broadcast %857 : vector<1x128xf32> to vector<8x128xf32>
    %859 = arith.subf %856, %858 : vector<8x128xf32>
    %860 = vector.broadcast %855 : vector<1x128xf32> to vector<8x128xf32>
    %861 = arith.mulf %860, %859 : vector<8x128xf32>
    %862 = arith.addf %853, %861 : vector<8x128xf32>
    %863 = vector.extract_strided_slice %6 {offsets = [0, 2, 0], sizes = [1, 1, 128], strides = [1, 1, 1]} : vector<3x3x128xf32> to vector<1x1x128xf32>
    %864 = vector.shape_cast %863 : vector<1x1x128xf32> to vector<1x128xf32>
    %865 = vector.extract_strided_slice %810 {offsets = [0, 0], sizes = [8, 128], strides = [1, 1]} : vector<24x128xf32> to vector<8x128xf32>
    %866 = vector.extract_strided_slice %8 {offsets = [0, 0], sizes = [1, 128], strides = [1, 1]} : vector<3x128xf32> to vector<1x128xf32>
    %867 = vector.broadcast %866 : vector<1x128xf32> to vector<8x128xf32>
    %868 = arith.subf %865, %867 : vector<8x128xf32>
    %869 = vector.broadcast %864 : vector<1x128xf32> to vector<8x128xf32>
    %870 = arith.mulf %869, %868 : vector<8x128xf32>
    %871 = vector.extract_strided_slice %6 {offsets = [1, 2, 0], sizes = [1, 1, 128], strides = [1, 1, 1]} : vector<3x3x128xf32> to vector<1x1x128xf32>
    %872 = vector.shape_cast %871 : vector<1x1x128xf32> to vector<1x128xf32>
    %873 = vector.extract_strided_slice %810 {offsets = [8, 0], sizes = [8, 128], strides = [1, 1]} : vector<24x128xf32> to vector<8x128xf32>
    %874 = vector.extract_strided_slice %8 {offsets = [1, 0], sizes = [1, 128], strides = [1, 1]} : vector<3x128xf32> to vector<1x128xf32>
    %875 = vector.broadcast %874 : vector<1x128xf32> to vector<8x128xf32>
    %876 = arith.subf %873, %875 : vector<8x128xf32>
    %877 = vector.broadcast %872 : vector<1x128xf32> to vector<8x128xf32>
    %878 = arith.mulf %877, %876 : vector<8x128xf32>
    %879 = arith.addf %870, %878 : vector<8x128xf32>
    %880 = vector.extract_strided_slice %6 {offsets = [2, 2, 0], sizes = [1, 1, 128], strides = [1, 1, 1]} : vector<3x3x128xf32> to vector<1x1x128xf32>
    %881 = vector.shape_cast %880 : vector<1x1x128xf32> to vector<1x128xf32>
    %882 = vector.extract_strided_slice %810 {offsets = [16, 0], sizes = [8, 128], strides = [1, 1]} : vector<24x128xf32> to vector<8x128xf32>
    %883 = vector.extract_strided_slice %8 {offsets = [2, 0], sizes = [1, 128], strides = [1, 1]} : vector<3x128xf32> to vector<1x128xf32>
    %884 = vector.broadcast %883 : vector<1x128xf32> to vector<8x128xf32>
    %885 = arith.subf %882, %884 : vector<8x128xf32>
    %886 = vector.broadcast %881 : vector<1x128xf32> to vector<8x128xf32>
    %887 = arith.mulf %886, %885 : vector<8x128xf32>
    %888 = arith.addf %879, %887 : vector<8x128xf32>
    %889 = tpu.concatenate %836, %862, %888 in 0 : vector<8x128xf32>, vector<8x128xf32>, vector<8x128xf32> -> vector<24x128xf32>
    %c0_248 = arith.constant 0 : index
    %c0_249 = arith.constant 0 : index
    %890 = vector.load %arg16[%c0_248, %c0_249] : memref<1x128xf32, #tpu.memory_space<vmem>>, vector<1x128xf32>
    %891 = arith.mulf %889, %889 : vector<24x128xf32>
    %cst_250 = arith.constant dense<0.000000e+00> : vector<128xf32>
    %892 = vector.multi_reduction <add>, %891, %cst_250 [0] : vector<24x128xf32> to vector<128xf32>
    %893 = vector.shape_cast %892 : vector<128xf32> to vector<1x128xf32>
    %894 = arith.addf %890, %893 : vector<1x128xf32>
    %c0_251 = arith.constant 0 : index
    %c0_252 = arith.constant 0 : index
    %895 = vector.load %arg16[%c0_251, %c0_252] : memref<1x128xf32, #tpu.memory_space<vmem>>, vector<1x128xf32>
    tpu.vector_store %arg16[%c0_251, %c0_252], %894 {strides = array<i32>} : memref<1x128xf32, #tpu.memory_space<vmem>>, vector<1x128xf32>,
    %896 = tpu.concatenate %99, %105, %111, %117, %123, %129, %135, %141, %146, %226, %320, %326, %332, %338, %344, %350 in 0 : vector<1x128xf32>, vector<1x128xf32>, vector<1x128xf32>, vector<1x128xf32>, vector<1x128xf32>, vector<1x128xf32>, vector<1x128xf32>, vector<1x128xf32>, vector<16x128xf32>, vector<24x128xf32>, vector<1x128xf32>, vector<1x128xf32>, vector<1x128xf32>, vector<1x128xf32>, vector<1x128xf32>, vector<1x128xf32> -> vector<54x128xf32>
    %897 = tpu.concatenate %356, %362, %367, %447, %541, %547, %553, %559, %565, %571, %577, %583, %588, %668, %762, %768 in 0 : vector<1x128xf32>, vector<1x128xf32>, vector<16x128xf32>, vector<24x128xf32>, vector<1x128xf32>, vector<1x128xf32>, vector<1x128xf32>, vector<1x128xf32>, vector<1x128xf32>, vector<1x128xf32>, vector<1x128xf32>, vector<1x128xf32>, vector<16x128xf32>, vector<24x128xf32>, vector<1x128xf32>, vector<1x128xf32> -> vector<92x128xf32>
    %898 = tpu.concatenate %774, %780, %786, %792, %798, %804, %809, %889 in 0 : vector<1x128xf32>, vector<1x128xf32>, vector<1x128xf32>, vector<1x128xf32>, vector<1x128xf32>, vector<1x128xf32>, vector<16x128xf32>, vector<24x128xf32> -> vector<46x128xf32>
    %899 = tpu.concatenate %896, %897, %898 in 0 : vector<54x128xf32>, vector<92x128xf32>, vector<46x128xf32> -> vector<192x128xf32>
    %c0_253 = arith.constant 0 : index
    %c0_254 = arith.constant 0 : index
    %900 = vector.load %arg15[%c0_253, %c0_254] : memref<32x128xf32, #tpu.memory_space<vmem>>, vector<32x128xf32>
    %c0_255 = arith.constant 0 : index
    %c0_256 = arith.constant 0 : index
    %901 = vector.load %arg11[%c0_255, %c0_256] : memref<192x32xbf16, #tpu.memory_space<vmem>>, vector<192x32xbf16>
    %902 = arith.truncf %899 : vector<192x128xf32> to vector<192x128xbf16>
    %cst_257 = arith.constant dense<0.000000e+00> : vector<32x128xf32>
    %903 = tpu.matmul %901, %902, %cst_257 {dimension_numbers = #tpu.dot_dimension_numbers<[0], [0], [1], [1], [0, 1, 1, 1], [], []>} : vector<192x32xbf16>, vector<192x128xbf16>, vector<32x128xf32> -> vector<32x128xf32>
    %904 = arith.addf %900, %903 : vector<32x128xf32>
    %c0_258 = arith.constant 0 : index
    %c0_259 = arith.constant 0 : index
    %905 = vector.load %arg15[%c0_258, %c0_259] : memref<32x128xf32, #tpu.memory_space<vmem>>, vector<32x128xf32>
    tpu.vector_store %arg15[%c0_258, %c0_259], %904 {strides = array<i32>} : memref<32x128xf32, #tpu.memory_space<vmem>>, vector<32x128xf32>,
    %c2_i32 = arith.constant 2 : i32
    %906 = arith.cmpi eq, %arg2, %c2_i32 : i32
    %907 = arith.extui %906 : i1 to i32
    %c0_i32_260 = arith.constant 0 : i32
    %908 = arith.cmpi ne, %907, %c0_i32_260 : i32
    scf.if %908 {
      %c0_261 = arith.constant 0 : index
      %c0_262 = arith.constant 0 : index
      %909 = vector.load %arg16[%c0_261, %c0_262] : memref<1x128xf32, #tpu.memory_space<vmem>>, vector<1x128xf32>
      %910 = math.sqrt %909 : vector<1x128xf32>
      %c0_263 = arith.constant 0 : index
      %c0_264 = arith.constant 0 : index
      %911 = vector.load %arg15[%c0_263, %c0_264] : memref<32x128xf32, #tpu.memory_space<vmem>>, vector<32x128xf32>
      %c0_265 = arith.constant 0 : index
      %c0_266 = arith.constant 0 : index
      %912 = vector.load %arg12[%c0_265, %c0_266] : memref<32x1xf32, #tpu.memory_space<vmem>>, vector<32x1xf32>
      %913 = vector.broadcast %912 : vector<32x1xf32> to vector<32x128xf32>
      %914 = vector.broadcast %910 : vector<1x128xf32> to vector<32x128xf32>
      %915 = arith.mulf %913, %914 : vector<32x128xf32>
      %916 = arith.addf %911, %915 : vector<32x128xf32>
      %c0_267 = arith.constant 0 : index
      %c0_268 = arith.constant 0 : index
      %917 = vector.load %arg13[%c0_267, %c0_268] : memref<32x1xf32, #tpu.memory_space<vmem>>, vector<32x1xf32>
      %918 = vector.broadcast %917 : vector<32x1xf32> to vector<32x128xf32>
      %919 = arith.addf %916, %918 : vector<32x128xf32>
      %c0_269 = arith.constant 0 : index
      %c0_270 = arith.constant 0 : index
      %c0_271 = arith.constant 0 : index
      %920 = vector.load %arg14[%c0_269, %c0_270, %c0_271] : memref<1x32x128xf32, #tpu.memory_space<vmem>>, vector<1x32x128xf32>
      %921 = vector.shape_cast %920 : vector<1x32x128xf32> to vector<32x128xf32>
      %922 = vector.shape_cast %919 : vector<32x128xf32> to vector<1x32x128xf32>
      tpu.vector_store %arg14[%c0_269, %c0_270, %c0_271], %922 {strides = array<i32>} : memref<1x32x128xf32, #tpu.memory_space<vmem>>, vector<1x32x128xf32>,
    } else {
    }
    return
  }
  func.func @transform_0(%arg0: i32, %arg1: i32, %arg2: i32) -> (i32, i32, i32) {
    %c0_i32 = arith.constant 0 : i32
    %c0_i32_0 = arith.constant 0 : i32
    return %arg0, %c0_i32, %arg1 : i32, i32, i32
  }
  func.func @transform_1(%arg0: i32, %arg1: i32, %arg2: i32) -> (i32, i32, i32, i32) {
    %c0_i32 = arith.constant 0 : i32
    %c0_i32_0 = arith.constant 0 : i32
    %c0_i32_1 = arith.constant 0 : i32
    return %arg0, %c0_i32, %arg1, %c0_i32_0 : i32, i32, i32, i32
  }
  func.func @transform_2(%arg0: i32, %arg1: i32, %arg2: i32) -> (i32, i32, i32, i32) {
    %c0_i32 = arith.constant 0 : i32
    %c0_i32_0 = arith.constant 0 : i32
    return %arg0, %arg2, %arg1, %c0_i32 : i32, i32, i32, i32
  }
  func.func @transform_3(%arg0: i32, %arg1: i32, %arg2: i32) -> (i32, i32, i32, i32) {
    %c0_i32 = arith.constant 0 : i32
    %c0_i32_0 = arith.constant 0 : i32
    %c0_i32_1 = arith.constant 0 : i32
    return %arg0, %arg2, %c0_i32, %c0_i32_0 : i32, i32, i32, i32
  }
  func.func @transform_4(%arg0: i32, %arg1: i32, %arg2: i32) -> (i32, i32, i32, i32) {
    %c0_i32 = arith.constant 0 : i32
    %c0_i32_0 = arith.constant 0 : i32
    %c0_i32_1 = arith.constant 0 : i32
    return %arg0, %arg2, %c0_i32, %c0_i32_0 : i32, i32, i32, i32
  }
  func.func @transform_5(%arg0: i32, %arg1: i32, %arg2: i32) -> (i32, i32, i32, i32) {
    %c0_i32 = arith.constant 0 : i32
    %c0_i32_0 = arith.constant 0 : i32
    %c0_i32_1 = arith.constant 0 : i32
    return %arg0, %c0_i32, %c0_i32_0, %arg1 : i32, i32, i32, i32
  }
  func.func @transform_6(%arg0: i32, %arg1: i32, %arg2: i32) -> (i32, i32, i32) {
    %c0_i32 = arith.constant 0 : i32
    %c0_i32_0 = arith.constant 0 : i32
    return %arg0, %c0_i32, %arg1 : i32, i32, i32
  }
  func.func @transform_7(%arg0: i32, %arg1: i32, %arg2: i32) -> (i32, i32) {
    %c0_i32 = arith.constant 0 : i32
    %c0_i32_0 = arith.constant 0 : i32
    return %arg2, %c0_i32 : i32, i32
  }
  func.func @transform_8(%arg0: i32, %arg1: i32, %arg2: i32) -> (i32, i32) {
    %c0_i32 = arith.constant 0 : i32
    %c0_i32_0 = arith.constant 0 : i32
    return %arg2, %c0_i32 : i32, i32
  }
  func.func @transform_9(%arg0: i32, %arg1: i32, %arg2: i32) -> (i32, i32) {
    %c0_i32 = arith.constant 0 : i32
    %c0_i32_0 = arith.constant 0 : i32
    %c0_i32_1 = arith.constant 0 : i32
    return %c0_i32, %c0_i32_0 : i32, i32
  }
  func.func @transform_10(%arg0: i32, %arg1: i32, %arg2: i32) -> (i32, i32) {
    %c0_i32 = arith.constant 0 : i32
    %c0_i32_0 = arith.constant 0 : i32
    %c0_i32_1 = arith.constant 0 : i32
    return %c0_i32, %c0_i32_0 : i32, i32
  }
  func.func @transform_11(%arg0: i32, %arg1: i32, %arg2: i32) -> (i32, i32, i32) {
    %c0_i32 = arith.constant 0 : i32
    %c0_i32_0 = arith.constant 0 : i32
    return %arg0, %c0_i32, %arg1 : i32, i32, i32
  }
}

</mosaic_0001>

<llo_original>
// kernel: tpu_custom_call.1
$region0: #{tpu_custom_call.1}
  #allocation0 [shape = 'u32[]', space=smem, size = 0x4, offset = 0x4, fixed_abs, tag = 'smem constant byte address 0x4 - core index']
  #allocation1 [shape = 'u32[144,128]{1,0:T(1,128)}', space=vmem, size = 0x12000, scoped, tag = 'internal scratch']
  #allocation2 [shape = 'f32[32,128]{1,0:T(8,128)}', space=vmem, size = 0x4000, scoped, tag = 'scratch operand']
  #allocation3 [shape = 'f32[1,128]{1,0:T(1,128)}', space=vmem, size = 0x200, scoped, tag = 'scratch operand']
  %s0 = inlined_call_operand.hbm [shape: f32[2,32,128], index: 0, kind: input, shape index: {}]
  %s1 = inlined_call_operand.hbm [shape: bf16[2,8,128,128], index: 1, kind: input, shape index: {}]
  %s2 = inlined_call_operand.hbm [shape: f32[2,12,128,128], index: 2, kind: input, shape index: {}]
  %s3 = inlined_call_operand.hbm [shape: bf16[2,12,32,128], index: 3, kind: input, shape index: {}]
  %s4 = inlined_call_operand.hbm [shape: bf16[2,12,40,128], index: 4, kind: input, shape index: {}]
  %s5 = inlined_call_operand.vmem [shape: f32[2,3,3,128], index: 5, kind: input, shape index: {}]
  %s6 = inlined_call_operand.vmem [shape: f32[2,3,128], index: 6, kind: input, shape index: {}]
  %s7 = inlined_call_operand.vmem [shape: bf16[384,32], index: 7, kind: input, shape index: {}]
  %s8 = inlined_call_operand.vmem [shape: bf16[576,32], index: 8, kind: input, shape index: {}]
  %s9 = inlined_call_operand.vmem [shape: f32[32,1], index: 9, kind: input, shape index: {}]
  %s10 = inlined_call_operand.vmem [shape: f32[32,1], index: 10, kind: input, shape index: {}]
  %s11 = inlined_call_operand.hbm [shape: f32[2,32,128], index: 11, kind: output, shape index: {}]
  %s12 = sld [smem:[#allocation0]]
  $region105: #{tpu_custom_call.1} parent=0
    _
  %s14 = ssub.s32 1, %s12
  %s15 = scalar_select 0, %s14, %s12
  $region1: #{tpu_custom_call.1} parent=0
    #allocation4 [shape = 'u8[32768]{0}', space=vmem, size = 0x8000, scoped, tag = 'input window, operand 0']
    #allocation5 [shape = 's32[2]{0}', space=sflag, size = 0x8, scoped, tag = 'scoped memory for tpu_custom_call.1']
    #allocation6 [shape = 's32[2]{0}', space=sflag, size = 0x8, scoped, tag = 'scoped memory for tpu_custom_call.1']
    #allocation7 [shape = 'u8[524288]{0}', space=vmem, size = 0x80000, scoped, tag = 'input window, operand 1']
    #allocation8 [shape = 's32[2]{0}', space=sflag, size = 0x8, scoped, tag = 'scoped memory for tpu_custom_call.1']
    #allocation9 [shape = 'u8[524288]{0}', space=vmem, size = 0x80000, scoped, tag = 'input window, operand 2']
    #allocation10 [shape = 'u8[65536]{0}', space=vmem, size = 0x10000, scoped, tag = 'input window, operand 3']
    #allocation11 [shape = 's32[2]{0}', space=sflag, size = 0x8, scoped, tag = 'scoped memory for tpu_custom_call.1']
    #allocation12 [shape = 'u8[81920]{0}', space=vmem, size = 0x14000, scoped, tag = 'input window, operand 4']
    #allocation13 [shape = 'u8[32768]{0}', space=vmem, size = 0x8000, scoped, tag = 'output window, operand 0']
    %16 = vsyncpa [#allocation5], 0
    %s17 = scalar_lea.sflag [#allocation5], 1
    %18 = vsyncpa %s17, 0
    %19 = vsyncpa [#allocation8], 0
    %s20 = scalar_lea.sflag [#allocation8], 1
    %21 = vsyncpa %s20, 0
    %22 = vsyncpa [#allocation11], 0
    %s23 = scalar_lea.sflag [#allocation11], 1
    %24 = vsyncpa %s23, 0
    %25 = vsyncpa [#allocation6], 0
    %s26 = scalar_lea.sflag [#allocation6], 1
    %27 = vsyncpa %s26, 0
    loop: start=0, step=1, limit=8
    $region2: #{tpu_custom_call.1} parent=1 // loop_pre_header
      _
    $region3: #{tpu_custom_call.1} parent=1 // loop_header
      %s29 = sphi 0, %s33
      %p30 = scmp.ge.s32.totalorder %s29, 8
      %s36 = sphi 0, %s55
      %s37 = sphi 0, %s51
      %s38 = sphi 0, %s47
      %s39 = sphi 0, %s36
      %s40 = sphi 0, %s37
      %s41 = sphi 0, %s38
      %s42 = sphi 0, %s39
      %s43 = sphi 0, %s40
      %s44 = sphi 0, %s41
      %s60 = sphi 0, %s62
      %s63 = sphi 0, %s60
      %s64 = sphi 0, %s63
      %s80 = sphi 0, %s64
      %s88 = sphi 0, %s90
      %s91 = sphi 0, %s88
      %s92 = sphi 0, %s91
      %s108 = sphi 0, %s92
      %s118 = sphi 0, %s120
      %s121 = sphi 0, %s118
      %s122 = sphi 0, %s121
      %s138 = sphi 0, %s122
      %s146 = sphi 0, %s148
      %s149 = sphi 0, %s146
      %s150 = sphi 0, %s149
      %s166 = sphi 0, %s150
      %s174 = sphi 0, %s176
      %s177 = sphi 0, %s174
      %s178 = sphi 0, %s177
      %s194 = sphi 0, %s178
      %s202 = sphi 0, %s204
      %s205 = sphi 0, %s202
      %s206 = sphi 0, %s205
      %s222 = sphi 0, %s206
      %s230 = sphi 0, %s232
      %s233 = sphi 0, %s230
      %s234 = sphi 0, %s233
      %s250 = sphi 0, %s234
      %s256 = sphi 0, %s258
      %s259 = sphi 0, %s256
      %s260 = sphi 0, %s259
      %s276 = sphi 0, %s260
      %s282 = sphi 0, %s284
      %s285 = sphi 0, %s282
      %s286 = sphi 0, %s285
      %s302 = sphi 0, %s286
      %s306 = sphi 0, %s306
      %s308 = sphi 0, %s306
      %s309 = sphi 0, %s308
      %s323 = sphi 0, %s309
      %s327 = sphi 0, %s327
      %s329 = sphi 0, %s327
      %s330 = sphi 0, %s329
      %s344 = sphi 0, %s330
      %s352 = sphi 0, %s354
      %s355 = sphi 0, %s352
      %s356 = sphi 0, %s355
      %s372 = sphi 0, %s356
    $region4: #{tpu_custom_call.1} parent=1 // loop_header_branch
      %32 = sbr.rel (%p30) target = $region8
    $region5: #{tpu_custom_call.1} parent=1 // loop_body
      %s34 = ssub.s32 %s29, 1
      %s35 = ssub.s32 %s29, 2
      %s45 = sadd.s32 1, %s38
      %p46 = scmp.ge.s32.totalorder %s45, 3
      %s47 = scalar_select %p46, 0, %s45
      %s48 = sadd.s32 1, %s37
      %s49 = scalar_select %p46, %s48, %s37
      %p50 = scmp.ge.s32.totalorder %s49, 1
      %s51 = scalar_select %p50, 0, %s49
      %s52 = sadd.s32 1, %s36
      %s53 = scalar_select %p50, %s52, %s36
      %p54 = scmp.ge.s32.totalorder %s53, 2
      %s55 = scalar_select %p54, 0, %s53
      %s56 = ssub.s32 %s36, %s55
      %s57 = ssub.s32 %s37, %s51
      %s58 = sor.u32 %s56, %s57
      %p59 = scmp.eq.s32.totalorder %s58, 0
      %s61 = sadd.s32 %s60, 1
      %s62 = scalar_select %p59, %s60, %s61
      %p65 = pneg %p59
      %p66 = scmp.eq.s32.totalorder %s29, 5
      %p67 = por %p65, %p66
      %p68 = scmp.ne.s32.totalorder %s60, %s63
      %p69 = scmp.eq.s32.totalorder %s29, 0
      %p70 = por %p68, %p69
      %p71 = scmp.ne.s32.totalorder %s60, %s63
      %p72 = scmp.eq.s32.totalorder %s34, 5
      %p73 = por %p71, %p72
      %p74 = scmp.ne.s32.totalorder %s63, %s64
      %p75 = scmp.eq.s32.totalorder %s34, 0
      %p76 = por %p74, %p75
      %p77 = scmp.ne.s32.totalorder %s63, %s64
      %p78 = scmp.eq.s32.totalorder %s35, 5
      %p79 = por %p77, %p78
      %p81 = scmp.ne.s32.totalorder %s64, %s80
      %p82 = scmp.eq.s32.totalorder %s35, 0
      %p83 = por %p81, %p82
      %s84 = ssub.s32 %s36, %s55
      %s85 = ssub.s32 %s37, %s51
      %s86 = sor.u32 %s84, %s85
      %p87 = scmp.eq.s32.totalorder %s86, 0
      %s89 = sadd.s32 %s88, 1
      %s90 = scalar_select %p87, %s88, %s89
      %p93 = pneg %p87
      %p94 = scmp.eq.s32.totalorder %s29, 5
      %p95 = por %p93, %p94
      %p96 = scmp.ne.s32.totalorder %s88, %s91
      %p97 = scmp.eq.s32.totalorder %s29, 0
      %p98 = por %p96, %p97
      %p99 = scmp.ne.s32.totalorder %s88, %s91
      %p100 = scmp.eq.s32.totalorder %s34, 5
      %p101 = por %p99, %p100
      %p102 = scmp.ne.s32.totalorder %s91, %s92
      %p103 = scmp.eq.s32.totalorder %s34, 0
      %p104 = por %p102, %p103
      %p105 = scmp.ne.s32.totalorder %s91, %s92
      %p106 = scmp.eq.s32.totalorder %s35, 5
      %p107 = por %p105, %p106
      %p109 = scmp.ne.s32.totalorder %s92, %s108
      %p110 = scmp.eq.s32.totalorder %s35, 0
      %p111 = por %p109, %p110
      %s112 = ssub.s32 %s36, %s55
      %s113 = ssub.s32 %s38, %s47
      %s114 = sor.u32 %s112, %s113
      %s115 = ssub.s32 %s37, %s51
      %s116 = sor.u32 %s114, %s115
      %p117 = scmp.eq.s32.totalorder %s116, 0
      %s119 = sadd.s32 %s118, 1
      %s120 = scalar_select %p117, %s118, %s119
      %p123 = pneg %p117
      %p124 = scmp.eq.s32.totalorder %s29, 5
      %p125 = por %p123, %p124
      %p126 = scmp.ne.s32.totalorder %s118, %s121
      %p127 = scmp.eq.s32.totalorder %s29, 0
      %p128 = por %p126, %p127
      %p129 = scmp.ne.s32.totalorder %s118, %s121
      %p130 = scmp.eq.s32.totalorder %s34, 5
      %p131 = por %p129, %p130
      %p132 = scmp.ne.s32.totalorder %s121, %s122
      %p133 = scmp.eq.s32.totalorder %s34, 0
      %p134 = por %p132, %p133
      %p135 = scmp.ne.s32.totalorder %s121, %s122
      %p136 = scmp.eq.s32.totalorder %s35, 5
      %p137 = por %p135, %p136
      %p139 = scmp.ne.s32.totalorder %s122, %s138
      %p140 = scmp.eq.s32.totalorder %s35, 0
      %p141 = por %p139, %p140
      %s142 = ssub.s32 %s36, %s55
      %s143 = ssub.s32 %s38, %s47
      %s144 = sor.u32 %s142, %s143
      %p145 = scmp.eq.s32.totalorder %s144, 0
      %s147 = sadd.s32 %s146, 1
      %s148 = scalar_select %p145, %s146, %s147
      %p151 = pneg %p145
      %p152 = scmp.eq.s32.totalorder %s29, 5
      %p153 = por %p151, %p152
      %p154 = scmp.ne.s32.totalorder %s146, %s149
      %p155 = scmp.eq.s32.totalorder %s29, 0
      %p156 = por %p154, %p155
      %p157 = scmp.ne.s32.totalorder %s146, %s149
      %p158 = scmp.eq.s32.totalorder %s34, 5
      %p159 = por %p157, %p158
      %p160 = scmp.ne.s32.totalorder %s149, %s150
      %p161 = scmp.eq.s32.totalorder %s34, 0
      %p162 = por %p160, %p161
      %p163 = scmp.ne.s32.totalorder %s149, %s150
      %p164 = scmp.eq.s32.totalorder %s35, 5
      %p165 = por %p163, %p164
      %p167 = scmp.ne.s32.totalorder %s150, %s166
      %p168 = scmp.eq.s32.totalorder %s35, 0
      %p169 = por %p167, %p168
      %s170 = ssub.s32 %s36, %s55
      %s171 = ssub.s32 %s38, %s47
      %s172 = sor.u32 %s170, %s171
      %p173 = scmp.eq.s32.totalorder %s172, 0
      %s175 = sadd.s32 %s174, 1
      %s176 = scalar_select %p173, %s174, %s175
      %p179 = pneg %p173
      %p180 = scmp.eq.s32.totalorder %s29, 5
      %p181 = por %p179, %p180
      %p182 = scmp.ne.s32.totalorder %s174, %s177
      %p183 = scmp.eq.s32.totalorder %s29, 0
      %p184 = por %p182, %p183
      %p185 = scmp.ne.s32.totalorder %s174, %s177
      %p186 = scmp.eq.s32.totalorder %s34, 5
      %p187 = por %p185, %p186
      %p188 = scmp.ne.s32.totalorder %s177, %s178
      %p189 = scmp.eq.s32.totalorder %s34, 0
      %p190 = por %p188, %p189
      %p191 = scmp.ne.s32.totalorder %s177, %s178
      %p192 = scmp.eq.s32.totalorder %s35, 5
      %p193 = por %p191, %p192
      %p195 = scmp.ne.s32.totalorder %s178, %s194
      %p196 = scmp.eq.s32.totalorder %s35, 0
      %p197 = por %p195, %p196
      %s198 = ssub.s32 %s36, %s55
      %s199 = ssub.s32 %s37, %s51
      %s200 = sor.u32 %s198, %s199
      %p201 = scmp.eq.s32.totalorder %s200, 0
      %s203 = sadd.s32 %s202, 1
      %s204 = scalar_select %p201, %s202, %s203
      %p207 = pneg %p201
      %p208 = scmp.eq.s32.totalorder %s29, 5
      %p209 = por %p207, %p208
      %p210 = scmp.ne.s32.totalorder %s202, %s205
      %p211 = scmp.eq.s32.totalorder %s29, 0
      %p212 = por %p210, %p211
      %p213 = scmp.ne.s32.totalorder %s202, %s205
      %p214 = scmp.eq.s32.totalorder %s34, 5
      %p215 = por %p213, %p214
      %p216 = scmp.ne.s32.totalorder %s205, %s206
      %p217 = scmp.eq.s32.totalorder %s34, 0
      %p218 = por %p216, %p217
      %p219 = scmp.ne.s32.totalorder %s205, %s206
      %p220 = scmp.eq.s32.totalorder %s35, 5
      %p221 = por %p219, %p220
      %p223 = scmp.ne.s32.totalorder %s206, %s222
      %p224 = scmp.eq.s32.totalorder %s35, 0
      %p225 = por %p223, %p224
      %s226 = ssub.s32 %s36, %s55
      %s227 = ssub.s32 %s37, %s51
      %s228 = sor.u32 %s226, %s227
      %p229 = scmp.eq.s32.totalorder %s228, 0
      %s231 = sadd.s32 %s230, 1
      %s232 = scalar_select %p229, %s230, %s231
      %p235 = pneg %p229
      %p236 = scmp.eq.s32.totalorder %s29, 5
      %p237 = por %p235, %p236
      %p238 = scmp.ne.s32.totalorder %s230, %s233
      %p239 = scmp.eq.s32.totalorder %s29, 0
      %p240 = por %p238, %p239
      %p241 = scmp.ne.s32.totalorder %s230, %s233
      %p242 = scmp.eq.s32.totalorder %s34, 5
      %p243 = por %p241, %p242
      %p244 = scmp.ne.s32.totalorder %s233, %s234
      %p245 = scmp.eq.s32.totalorder %s34, 0
      %p246 = por %p244, %p245
      %p247 = scmp.ne.s32.totalorder %s233, %s234
      %p248 = scmp.eq.s32.totalorder %s35, 5
      %p249 = por %p247, %p248
      %p251 = scmp.ne.s32.totalorder %s234, %s250
      %p252 = scmp.eq.s32.totalorder %s35, 0
      %p253 = por %p251, %p252
      %s254 = ssub.s32 %s38, %s47
      %p255 = scmp.eq.s32.totalorder %s254, 0
      %s257 = sadd.s32 %s256, 1
      %s258 = scalar_select %p255, %s256, %s257
      %p261 = pneg %p255
      %p262 = scmp.eq.s32.totalorder %s29, 5
      %p263 = por %p261, %p262
      %p264 = scmp.ne.s32.totalorder %s256, %s259
      %p265 = scmp.eq.s32.totalorder %s29, 0
      %p266 = por %p264, %p265
      %p267 = scmp.ne.s32.totalorder %s256, %s259
      %p268 = scmp.eq.s32.totalorder %s34, 5
      %p269 = por %p267, %p268
      %p270 = scmp.ne.s32.totalorder %s259, %s260
      %p271 = scmp.eq.s32.totalorder %s34, 0
      %p272 = por %p270, %p271
      %p273 = scmp.ne.s32.totalorder %s259, %s260
      %p274 = scmp.eq.s32.totalorder %s35, 5
      %p275 = por %p273, %p274
      %p277 = scmp.ne.s32.totalorder %s260, %s276
      %p278 = scmp.eq.s32.totalorder %s35, 0
      %p279 = por %p277, %p278
      %s280 = ssub.s32 %s38, %s47
      %p281 = scmp.eq.s32.totalorder %s280, 0
      %s283 = sadd.s32 %s282, 1
      %s284 = scalar_select %p281, %s282, %s283
      %p287 = pneg %p281
      %p288 = scmp.eq.s32.totalorder %s29, 5
      %p289 = por %p287, %p288
      %p290 = scmp.ne.s32.totalorder %s282, %s285
      %p291 = scmp.eq.s32.totalorder %s29, 0
      %p292 = por %p290, %p291
      %p293 = scmp.ne.s32.totalorder %s282, %s285
      %p294 = scmp.eq.s32.totalorder %s34, 5
      %p295 = por %p293, %p294
      %p296 = scmp.ne.s32.totalorder %s285, %s286
      %p297 = scmp.eq.s32.totalorder %s34, 0
      %p298 = por %p296, %p297
      %p299 = scmp.ne.s32.totalorder %s285, %s286
      %p300 = scmp.eq.s32.totalorder %s35, 5
      %p301 = por %p299, %p300
      %p303 = scmp.ne.s32.totalorder %s286, %s302
      %p304 = scmp.eq.s32.totalorder %s35, 0
      %p305 = por %p303, %p304
      %s307 = sadd.s32 %s306, 1
      %p310 = scmp.eq.s32.totalorder %s29, 5
      %p311 = scmp.ne.s32.totalorder %s306, %s308
      %p312 = scmp.eq.s32.totalorder %s29, 0
      %p313 = por %p311, %p312
      %p314 = scmp.ne.s32.totalorder %s306, %s308
      %p315 = scmp.eq.s32.totalorder %s34, 5
      %p316 = por %p314, %p315
      %p317 = scmp.ne.s32.totalorder %s308, %s309
      %p318 = scmp.eq.s32.totalorder %s34, 0
      %p319 = por %p317, %p318
      %p320 = scmp.ne.s32.totalorder %s308, %s309
      %p321 = scmp.eq.s32.totalorder %s35, 5
      %p322 = por %p320, %p321
      %p324 = scmp.ne.s32.totalorder %s309, %s323
      %p325 = scmp.eq.s32.totalorder %s35, 0
      %p326 = por %p324, %p325
      %s328 = sadd.s32 %s327, 1
      %p331 = scmp.eq.s32.totalorder %s29, 5
      %p332 = scmp.ne.s32.totalorder %s327, %s329
      %p333 = scmp.eq.s32.totalorder %s29, 0
      %p334 = por %p332, %p333
      %p335 = scmp.ne.s32.totalorder %s327, %s329
      %p336 = scmp.eq.s32.totalorder %s34, 5
      %p337 = por %p335, %p336
      %p338 = scmp.ne.s32.totalorder %s329, %s330
      %p339 = scmp.eq.s32.totalorder %s34, 0
      %p340 = por %p338, %p339
      %p341 = scmp.ne.s32.totalorder %s329, %s330
      %p342 = scmp.eq.s32.totalorder %s35, 5
      %p343 = por %p341, %p342
      %p345 = scmp.ne.s32.totalorder %s330, %s344
      %p346 = scmp.eq.s32.totalorder %s35, 0
      %p347 = por %p345, %p346
      %s348 = ssub.s32 %s36, %s55
      %s349 = ssub.s32 %s37, %s51
      %s350 = sor.u32 %s348, %s349
      %p351 = scmp.eq.s32.totalorder %s350, 0
      %s353 = sadd.s32 %s352, 1
      %s354 = scalar_select %p351, %s352, %s353
      %p357 = pneg %p351
      %p358 = scmp.eq.s32.totalorder %s29, 5
      %p359 = por %p357, %p358
      %p360 = scmp.ne.s32.totalorder %s352, %s355
      %p361 = scmp.eq.s32.totalorder %s29, 0
      %p362 = por %p360, %p361
      %p363 = scmp.ne.s32.totalorder %s352, %s355
      %p364 = scmp.eq.s32.totalorder %s34, 5
      %p365 = por %p363, %p364
      %p366 = scmp.ne.s32.totalorder %s355, %s356
      %p367 = scmp.eq.s32.totalorder %s34, 0
      %p368 = por %p366, %p367
      %p369 = scmp.ne.s32.totalorder %s355, %s356
      %p370 = scmp.eq.s32.totalorder %s35, 5
      %p371 = por %p369, %p370
      %p373 = scmp.ne.s32.totalorder %s356, %s372
      %p374 = scmp.eq.s32.totalorder %s35, 0
      %p375 = por %p373, %p374
      %p376 = scmp.le.s32.totalorder 1, %s29
      %p377 = scmp.lt.s32.totalorder %s29, 7
      %p378 = pnand %p376, %p377
      %p379 = pneg %p378
      // Predicated region
      $region9: #{tpu_custom_call.1} parent=5 // pred_check
        _
      $region10: #{tpu_custom_call.1} parent=5 // pred_check_branch
        %381 = sbr.rel (%p378) target = $region12
      $region11: #{tpu_custom_call.1} parent=5 // pred_region
        %s382 = ssub.s32 %s29, 1
        // Predicated region
        $region13: #{tpu_custom_call.1} parent=11 // pred_check
          %p383 = pneg %p319
        $region14: #{tpu_custom_call.1} parent=11 // pred_check_branch
          %385 = sbr.rel (%p383) target = $region16
        $region15: #{tpu_custom_call.1} parent=11 // pred_region
          _
        $region16: #{tpu_custom_call.1} parent=11 // pred_fallthru
          _
        // Predicated region
        $region17: #{tpu_custom_call.1} parent=11 // pred_check
          %p386 = pneg %p340
        $region18: #{tpu_custom_call.1} parent=11 // pred_check_branch
          %388 = sbr.rel (%p386) target = $region20
        $region19: #{tpu_custom_call.1} parent=11 // pred_region
          _
        $region20: #{tpu_custom_call.1} parent=11 // pred_fallthru
          _
      $region12: #{tpu_custom_call.1} parent=5 // pred_fallthru
        _
      %p389 = scmp.lt.s32.totalorder %s29, 6
      // Predicated region
      $region21: #{tpu_custom_call.1} parent=5 // pred_check
        %p390 = pneg %p389
      $region22: #{tpu_custom_call.1} parent=5 // pred_check_branch
        %392 = sbr.rel (%p390) target = $region24
      $region23: #{tpu_custom_call.1} parent=5 // pred_region
        // Predicated region
        $region25: #{tpu_custom_call.1} parent=23 // pred_check
          %p393 = pneg %p70
        $region26: #{tpu_custom_call.1} parent=23 // pred_check_branch
          %395 = sbr.rel (%p393) target = $region28
        $region27: #{tpu_custom_call.1} parent=23 // pred_region
          %s396 = sand.u32 %s60, 1
          %s397 = scalar_lea.sflag [#allocation5], %s396
          %s398 = sand.u32 %s60, 1
          %s399 = smul.addr %s398, 32
          %s400 = scalar_lea.vmem [#allocation4], %s399
          %s402 = ssub.s32 512, 512
          %403 = vsyncadd %s397, %s402
          %s404 = smul.addr %s36, 4
          %s405 = sadd.s32 %s37, %s404
          %s406 = smul.addr %s405, 128
          %s407 = scalar_lea.hbm %s0, %s406
          %s408 = sshll.u32 %s400, 4
          %s409 = int_to_ptr.vmem [resolvable:$true] %s408
          %414 = dma.hbm_to_vmem [thread:$0]  %s407, 512, %s409, %s397, 128, 128, 8
        $region28: #{tpu_custom_call.1} parent=23 // pred_fallthru
          _
        // Predicated region
        $region29: #{tpu_custom_call.1} parent=23 // pred_check
          %p415 = pneg %p98
        $region30: #{tpu_custom_call.1} parent=23 // pred_check_branch
          %417 = sbr.rel (%p415) target = $region32
        $region31: #{tpu_custom_call.1} parent=23 // pred_region
          %s418 = sand.u32 %s29, 1
          %s419 = scalar_lea.sflag [#allocation8], %s418
          %s420 = sand.u32 %s88, 1
          %s421 = smul.addr %s420, 512
          %s422 = scalar_lea.vmem [#allocation7], %s421
          %s423 = smul.u32 16, %s37
          %s425 = ssub.s32 8192, 8192
          %426 = vsyncadd %s419, %s425
          %s427 = smul.addr %s36, 128
          %s428 = sadd.s32 %s423, %s427
          %s429 = smul.addr %s428, 64
          %s430 = scalar_lea.hbm %s1, %s429
          %s431 = sshll.u32 %s422, 4
          %s432 = int_to_ptr.vmem [resolvable:$true] %s431
          %437 = dma.hbm_to_vmem [thread:$0]  %s430, 8192, %s432, %s419, 64, 64, 4
        $region32: #{tpu_custom_call.1} parent=23 // pred_fallthru
          _
        // Predicated region
        $region33: #{tpu_custom_call.1} parent=23 // pred_check
          %p438 = pneg %p128
        $region34: #{tpu_custom_call.1} parent=23 // pred_check_branch
          %440 = sbr.rel (%p438) target = $region36
        $region35: #{tpu_custom_call.1} parent=23 // pred_region
          %s441 = sand.u32 %s29, 1
          %s442 = scalar_lea.sflag [#allocation8], %s441
          %s443 = sand.u32 %s118, 1
          %s444 = smul.addr %s443, 512
          %s445 = scalar_lea.vmem [#allocation9], %s444
          %s446 = smul.u32 4, %s38
          %s447 = smul.u32 16, %s37
          %s449 = ssub.s32 8192, 8192
          %450 = vsyncadd %s442, %s449
          %s451 = smul.addr %s446, 16
          %s452 = sadd.s32 %s447, %s451
          %s453 = smul.addr %s36, 192
          %s454 = sadd.s32 %s452, %s453
          %s455 = smul.addr %s454, 128
          %s456 = scalar_lea.hbm %s2, %s455
          %s457 = sshll.u32 %s445, 4
          %s458 = int_to_ptr.vmem [resolvable:$true] %s457
          %463 = dma.hbm_to_vmem [thread:$0]  %s456, 8192, %s458, %s442, 128, 128, 8
        $region36: #{tpu_custom_call.1} parent=23 // pred_fallthru
          _
        // Predicated region
        $region37: #{tpu_custom_call.1} parent=23 // pred_check
          %p464 = pneg %p156
        $region38: #{tpu_custom_call.1} parent=23 // pred_check_branch
          %466 = sbr.rel (%p464) target = $region40
        $region39: #{tpu_custom_call.1} parent=23 // pred_region
          %s467 = sand.u32 %s29, 1
          %s468 = scalar_lea.sflag [#allocation11], %s467
          %s469 = sand.u32 %s146, 1
          %s470 = smul.addr %s469, 64
          %s471 = scalar_lea.vmem [#allocation10], %s470
          %s472 = smul.u32 4, %s38
          %s474 = ssub.s32 1024, 1024
          %475 = vsyncadd %s468, %s474
          %s476 = smul.addr %s472, 4
          %s477 = smul.addr %s36, 48
          %s478 = sadd.s32 %s476, %s477
          %s479 = smul.addr %s478, 64
          %s480 = scalar_lea.hbm %s3, %s479
          %s481 = sshll.u32 %s471, 4
          %s482 = int_to_ptr.vmem [resolvable:$true] %s481
          %487 = dma.hbm_to_vmem [thread:$0]  %s480, 1024, %s482, %s468, 64, 64, 4
        $region40: #{tpu_custom_call.1} parent=23 // pred_fallthru
          _
        // Predicated region
        $region41: #{tpu_custom_call.1} parent=23 // pred_check
          %p488 = pneg %p184
        $region42: #{tpu_custom_call.1} parent=23 // pred_check_branch
          %490 = sbr.rel (%p488) target = $region44
        $region43: #{tpu_custom_call.1} parent=23 // pred_region
          %s491 = sand.u32 %s29, 1
          %s492 = scalar_lea.sflag [#allocation11], %s491
          %s493 = sand.u32 %s174, 1
          %s494 = smul.addr %s493, 80
          %s495 = scalar_lea.vmem [#allocation12], %s494
          %s496 = smul.u32 4, %s38
          %s498 = ssub.s32 1280, 1280
          %499 = vsyncadd %s492, %s498
          %s500 = smul.addr %s496, 5
          %s501 = smul.addr %s36, 60
          %s502 = sadd.s32 %s500, %s501
          %s503 = smul.addr %s502, 64
          %s504 = scalar_lea.hbm %s4, %s503
          %s505 = sshll.u32 %s495, 4
          %s506 = int_to_ptr.vmem [resolvable:$true] %s505
          %511 = dma.hbm_to_vmem [thread:$0]  %s504, 1280, %s506, %s492, 64, 64, 4
        $region44: #{tpu_custom_call.1} parent=23 // pred_fallthru
          _
        // Predicated region
        $region45: #{tpu_custom_call.1} parent=23 // pred_check
          %p512 = pneg %p212
        $region46: #{tpu_custom_call.1} parent=23 // pred_check_branch
          %514 = sbr.rel (%p512) target = $region48
        $region47: #{tpu_custom_call.1} parent=23 // pred_region
          %p515 = scmp.lt.s32.totalorder %s36, 1
          %s516 = scalar_select %p515, %s36, 1
          %p517 = scmp.lt.s32.totalorder %s37, 0
          %s518 = scalar_select %p517, %s37, 0
          %s519 = smul.addr %s516, 3
          %s520 = sadd.s32 %s518, %s519
          %s521 = smul.addr %s520, 4
          %s522 = scalar_lea.vmem %s5, %s521
        $region48: #{tpu_custom_call.1} parent=23 // pred_fallthru
          _
        // Predicated region
        $region49: #{tpu_custom_call.1} parent=23 // pred_check
          %p523 = pneg %p240
        $region50: #{tpu_custom_call.1} parent=23 // pred_check_branch
          %525 = sbr.rel (%p523) target = $region52
        $region51: #{tpu_custom_call.1} parent=23 // pred_region
          %p526 = scmp.lt.s32.totalorder %s36, 1
          %s527 = scalar_select %p526, %s36, 1
          %p528 = scmp.lt.s32.totalorder %s37, 0
          %s529 = scalar_select %p528, %s37, 0
          %s530 = sadd.s32 %s529, %s527
          %s531 = smul.addr %s530, 4
          %s532 = scalar_lea.vmem %s6, %s531
        $region52: #{tpu_custom_call.1} parent=23 // pred_fallthru
          _
        // Predicated region
        $region53: #{tpu_custom_call.1} parent=23 // pred_check
          %p533 = pneg %p266
        $region54: #{tpu_custom_call.1} parent=23 // pred_check_branch
          %535 = sbr.rel (%p533) target = $region56
        $region55: #{tpu_custom_call.1} parent=23 // pred_region
          %s536 = smul.u32 16, %s38
          %p537 = scmp.lt.s32.totalorder %s536, 47
          %s538 = scalar_select %p537, %s536, 47
          %s539 = smul.addr %s538, 4
          %s540 = scalar_lea.vmem %s7, %s539
          %s541 = smul.u32 16, %s38
        $region56: #{tpu_custom_call.1} parent=23 // pred_fallthru
          _
        // Predicated region
        $region57: #{tpu_custom_call.1} parent=23 // pred_check
          %p542 = pneg %p292
        $region58: #{tpu_custom_call.1} parent=23 // pred_check_branch
          %544 = sbr.rel (%p542) target = $region60
        $region59: #{tpu_custom_call.1} parent=23 // pred_region
          %s545 = smul.u32 24, %s38
          %p546 = scmp.lt.s32.totalorder %s545, 71
          %s547 = scalar_select %p546, %s545, 71
          %s548 = smul.addr %s547, 4
          %s549 = scalar_lea.vmem %s8, %s548
          %s550 = smul.u32 24, %s38
        $region60: #{tpu_custom_call.1} parent=23 // pred_fallthru
          _
      $region24: #{tpu_custom_call.1} parent=5 // pred_fallthru
        _
      %p551 = scmp.le.s32.totalorder 1, %s29
      %p552 = scmp.lt.s32.totalorder %s29, 7
      %p553 = pnand %p551, %p552
      %p554 = pneg %p553
      // Predicated region
      $region61: #{tpu_custom_call.1} parent=5 // pred_check
        _
      $region62: #{tpu_custom_call.1} parent=5 // pred_check_branch
        %556 = sbr.rel (%p553) target = $region64
      $region63: #{tpu_custom_call.1} parent=5 // pred_region
        %s557 = ssub.s32 %s29, 1
        %s558 = sand.u32 %s63, 1
        %s559 = scalar_lea.sflag [#allocation5], %s558
        %s560 = sand.u32 %s63, 1
        %s561 = smul.addr %s560, 32
        %s562 = scalar_lea.vmem [#allocation4], %s561
        // Predicated region
        $region65: #{tpu_custom_call.1} parent=63 // pred_check
          %p563 = pneg %p76
        $region66: #{tpu_custom_call.1} parent=63 // pred_check_branch
          %565 = sbr.rel (%p563) target = $region68
        $region67: #{tpu_custom_call.1} parent=63 // pred_region
          %566 = dma.done %s559, 512
        $region68: #{tpu_custom_call.1} parent=63 // pred_fallthru
          _
        %s567 = sand.u32 %s34, 1
        %s568 = scalar_lea.sflag [#allocation8], %s567
        %s569 = sand.u32 %s91, 1
        %s570 = smul.addr %s569, 512
        %s571 = scalar_lea.vmem [#allocation7], %s570
        // Predicated region
        $region69: #{tpu_custom_call.1} parent=63 // pred_check
          %p572 = pneg %p104
        $region70: #{tpu_custom_call.1} parent=63 // pred_check_branch
          %574 = sbr.rel (%p572) target = $region72
        $region71: #{tpu_custom_call.1} parent=63 // pred_region
          %575 = dma.done %s568, 8192
        $region72: #{tpu_custom_call.1} parent=63 // pred_fallthru
          _
        %s576 = sand.u32 %s34, 1
        %s577 = scalar_lea.sflag [#allocation8], %s576
        %s578 = sand.u32 %s121, 1
        %s579 = smul.addr %s578, 512
        %s580 = scalar_lea.vmem [#allocation9], %s579
        // Predicated region
        $region73: #{tpu_custom_call.1} parent=63 // pred_check
          %p581 = pneg %p134
        $region74: #{tpu_custom_call.1} parent=63 // pred_check_branch
          %583 = sbr.rel (%p581) target = $region76
        $region75: #{tpu_custom_call.1} parent=63 // pred_region
          %584 = dma.done %s577, 8192
        $region76: #{tpu_custom_call.1} parent=63 // pred_fallthru
          _
        %s585 = sand.u32 %s34, 1
        %s586 = scalar_lea.sflag [#allocation11], %s585
        %s587 = sand.u32 %s149, 1
        %s588 = smul.addr %s587, 64
        %s589 = scalar_lea.vmem [#allocation10], %s588
        // Predicated region
        $region77: #{tpu_custom_call.1} parent=63 // pred_check
          %p590 = pneg %p162
        $region78: #{tpu_custom_call.1} parent=63 // pred_check_branch
          %592 = sbr.rel (%p590) target = $region80
        $region79: #{tpu_custom_call.1} parent=63 // pred_region
          %593 = dma.done %s586, 1024
        $region80: #{tpu_custom_call.1} parent=63 // pred_fallthru
          _
        %s594 = sand.u32 %s34, 1
        %s595 = scalar_lea.sflag [#allocation11], %s594
        %s596 = sand.u32 %s177, 1
        %s597 = smul.addr %s596, 80
        %s598 = scalar_lea.vmem [#allocation12], %s597
        // Predicated region
        $region81: #{tpu_custom_call.1} parent=63 // pred_check
          %p599 = pneg %p190
        $region82: #{tpu_custom_call.1} parent=63 // pred_check_branch
          %601 = sbr.rel (%p599) target = $region84
        $region83: #{tpu_custom_call.1} parent=63 // pred_region
          %602 = dma.done %s595, 1280
        $region84: #{tpu_custom_call.1} parent=63 // pred_fallthru
          _
        %s603 = sand.u32 %s63, 1
        %s604 = scalar_lea.sflag [#allocation5], %s603
        %s605 = sand.u32 %s63, 1
        %s606 = smul.addr %s605, 32
        %s607 = scalar_lea.vmem [#allocation4], %s606
        %p608 = pneg %p76
        %p609 = pneg %p73
        %s610 = sand.u32 %s34, 1
        %s611 = scalar_lea.sflag [#allocation8], %s610
        %s612 = sand.u32 %s91, 1
        %s613 = smul.addr %s612, 512
        %s614 = scalar_lea.vmem [#allocation7], %s613
        %p615 = pneg %p104
        %p616 = pneg %p101
        %s617 = sand.u32 %s34, 1
        %s618 = scalar_lea.sflag [#allocation8], %s617
        %s619 = sand.u32 %s121, 1
        %s620 = smul.addr %s619, 512
        %s621 = scalar_lea.vmem [#allocation9], %s620
        %p622 = pneg %p134
        %p623 = pneg %p131
        %s624 = sand.u32 %s34, 1
        %s625 = scalar_lea.sflag [#allocation11], %s624
        %s626 = sand.u32 %s149, 1
        %s627 = smul.addr %s626, 64
        %s628 = scalar_lea.vmem [#allocation10], %s627
        %p629 = pneg %p162
        %p630 = pneg %p159
        %s631 = sand.u32 %s34, 1
        %s632 = scalar_lea.sflag [#allocation11], %s631
        %s633 = sand.u32 %s177, 1
        %s634 = smul.addr %s633, 80
        %s635 = scalar_lea.vmem [#allocation12], %s634
        %p636 = pneg %p190
        %p637 = pneg %p187
        %p638 = scmp.lt.s32.totalorder %s39, 1
        %s639 = scalar_select %p638, %s39, 1
        %p640 = scmp.lt.s32.totalorder %s40, 0
        %s641 = scalar_select %p640, %s40, 0
        %s642 = smul.addr %s639, 3
        %s643 = sadd.s32 %s641, %s642
        %s644 = smul.addr %s643, 4
        %s645 = scalar_lea.vmem %s5, %s644
        %p646 = pneg %p218
        %p647 = pneg %p215
        %p648 = scmp.lt.s32.totalorder %s39, 1
        %s649 = scalar_select %p648, %s39, 1
        %p650 = scmp.lt.s32.totalorder %s40, 0
        %s651 = scalar_select %p650, %s40, 0
        %s652 = sadd.s32 %s651, %s649
        %s653 = smul.addr %s652, 4
        %s654 = scalar_lea.vmem %s6, %s653
        %p655 = pneg %p246
        %p656 = pneg %p243
        %s657 = smul.u32 16, %s41
        %p658 = scmp.lt.s32.totalorder %s657, 47
        %s659 = scalar_select %p658, %s657, 47
        %s660 = smul.addr %s659, 4
        %s661 = scalar_lea.vmem %s7, %s660
        %p662 = pneg %p272
        %p663 = pneg %p269
        %s664 = smul.u32 24, %s41
        %p665 = scmp.lt.s32.totalorder %s664, 71
        %s666 = scalar_select %p665, %s664, 71
        %s667 = smul.addr %s666, 4
        %s668 = scalar_lea.vmem %s8, %s667
        %p669 = pneg %p298
        %p670 = pneg %p295
        %p671 = pneg %p319
        %p672 = pneg %p316
        %p673 = pneg %p340
        %p674 = pneg %p337
        %p675 = pneg %p368
        %p676 = pneg %p365
        %s677 = sand.u32 %s355, 1
        %s678 = scalar_lea.sflag [#allocation6], %s677
        %s679 = sand.u32 %s355, 1
        %s680 = smul.addr %s679, 32
        %s681 = scalar_lea.vmem [#allocation13], %s680
        %s682 = smul.u32 16, %s40
        %s683 = smul.u32 4, %s41
        %s684 = smul.u32 16, %s40
        %s685 = smul.u32 4, %s41
        %s686 = smul.u32 4, %s41
        %p687 = scmp.lt.s32.totalorder %s39, 1
        %s688 = scalar_select %p687, %s39, 1
        %p689 = scmp.lt.s32.totalorder %s40, 0
        %s690 = scalar_select %p689, %s40, 0
        %s691 = smul.addr %s688, 3
        %s692 = sadd.s32 %s690, %s691
        %s693 = smul.addr %s692, 4
        %s694 = scalar_lea.vmem %s5, %s693
        %p695 = scmp.lt.s32.totalorder %s39, 1
        %s696 = scalar_select %p695, %s39, 1
        %p697 = scmp.lt.s32.totalorder %s40, 0
        %s698 = scalar_select %p697, %s40, 0
        %s699 = sadd.s32 %s698, %s696
        %s700 = smul.addr %s699, 4
        %s701 = scalar_lea.vmem %s6, %s700
        %s702 = smul.u32 16, %s41
        %p703 = scmp.lt.s32.totalorder %s702, 47
        %s704 = scalar_select %p703, %s702, 47
        %s705 = smul.addr %s704, 4
        %s706 = scalar_lea.vmem %s7, %s705
        %s707 = smul.u32 16, %s41
        %s708 = smul.u32 24, %s41
        %p709 = scmp.lt.s32.totalorder %s708, 71
        %s710 = scalar_select %p709, %s708, 71
        %s711 = smul.addr %s710, 4
        %s712 = scalar_lea.vmem %s8, %s711
        %s713 = smul.u32 24, %s41
        %p715 = scmp.eq.s32.totalorder %s41, 0
        // Predicated region
        $region85: #{tpu_custom_call.1} parent=63 // pred_check
          %p716 = pneg %p715
        $region86: #{tpu_custom_call.1} parent=63 // pred_check_branch
          %718 = sbr.rel (%p716) target = $region88
        $region87: #{tpu_custom_call.1} parent=63 // pred_region
          %719 = vst [vmem:[#allocation2] sm:$0xff] 0.0
          %720 = vst [vmem:[#allocation2 + $0x8] sm:$0xff] 0.0
          %721 = vst [vmem:[#allocation2 + $0x10] sm:$0xff] 0.0
          %722 = vst [vmem:[#allocation2 + $0x18] sm:$0xff] 0.0
          %723 = vst [vmem:[#allocation3] sm:$0x1] 0.0
        $region88: #{tpu_custom_call.1} parent=63 // pred_fallthru
          _
        %v724 = vld [vmem:[%s562] sm:$0xff]
        %v725 = vld [vmem:[%s562 + $0x8] sm:$0xff]
        %v726 = vld [vmem:[%s562 + $0x10] sm:$0xff]
        %v727 = vld [vmem:[%s562 + $0x18] sm:$0xff]
        %v728 = vld [vmem:[%s694] sm:$0x7]
        %v729 = vld [vmem:[%s694 + $0x4] sm:$0x7]
        %v730 = vld [vmem:[%s694 + $0x8] sm:$0x7]
        %v731 = vld [vmem:[%s701] sm:$0x7]
        %v732 = vld [vmem:[%s706] sm:$0xf]
        %v733 = vld [vmem:[%s706 + $0x4] sm:$0xf]
        %v734 = vld [vmem:[%s706 + $0x8] sm:$0xf]
        %v735 = vld [vmem:[%s706 + $0xc] sm:$0xf]
        %v736 = vld [vmem:[%s706 + $0x10] sm:$0xf]
        %v737 = vld [vmem:[%s706 + $0x14] sm:$0xf]
        %v738 = vld [vmem:[%s706 + $0x18] sm:$0xf]
        %v739 = vld [vmem:[%s706 + $0x1c] sm:$0xf]
        %v740 = vld [vmem:[%s706 + $0x20] sm:$0xf]
        %v741 = vld [vmem:[%s706 + $0x24] sm:$0xf]
        %v742 = vld [vmem:[%s706 + $0x28] sm:$0xf]
        %v743 = vld [vmem:[%s706 + $0x2c] sm:$0xf]
        %v744 = vld [vmem:[%s706 + $0x30] sm:$0xf]
        %v745 = vld [vmem:[%s706 + $0x34] sm:$0xf]
        %v746 = vld [vmem:[%s706 + $0x38] sm:$0xf]
        %v747 = vld [vmem:[%s706 + $0x3c] sm:$0xf]
        %v748 = vpack.c.bf16 %v725, %v724
        %v749 = vpack.c.bf16 %v727, %v726
        %v766 = vunpack.c.l.b16 %v732
        %v767 = vunpack.c.l.b16 %v733
        %v768 = vunpack.c.l.b16 %v734
        %v769 = vunpack.c.l.b16 %v735
        %v770 = vunpack.c.l.b16 %v736
        %v771 = vunpack.c.l.b16 %v737
        %v772 = vunpack.c.l.b16 %v738
        %v773 = vunpack.c.l.b16 %v739
        %v774 = vunpack.c.l.b16 %v740
        %v775 = vunpack.c.l.b16 %v741
        %v776 = vunpack.c.l.b16 %v742
        %v777 = vunpack.c.l.b16 %v743
        %v778 = vunpack.c.l.b16 %v744
        %v779 = vunpack.c.l.b16 %v745
        %v780 = vunpack.c.l.b16 %v746
        %v781 = vunpack.c.l.b16 %v747
        %v782 = vpack.c.b16 %v767, %v766
        %v783 = vpack.c.b16 %v769, %v768
        %v784 = vpack.c.b16 %v771, %v770
        %v785 = vpack.c.b16 %v773, %v772
        %v786 = vpack.c.b16 %v775, %v774
        %v787 = vpack.c.b16 %v777, %v776
        %v788 = vpack.c.b16 %v779, %v778
        %v789 = vpack.c.b16 %v781, %v780
        %vm790 = vcmask 261120
        %v792 = vsel %vm790, %v782, 0
        %v795 = vsel %vm790, %v783, 0
        %v798 = vsel %vm790, %v784, 0
        %v801 = vsel %vm790, %v785, 0
        %v804 = vsel %vm790, %v786, 0
        %v807 = vsel %vm790, %v787, 0
        %v810 = vsel %vm790, %v788, 0
        %v813 = vsel %vm790, %v789, 0
        %815 = vmatprep.subr.bf16.mxu0 0
        %816 = vmatpush1.bf16.msra.mxu0 0
        %817 = vmatprep.subr.bf16.mxu0 0
        %818 = vmatpush1.bf16.msra.mxu0 0
        %819 = vmatprep.subr.bf16.mxu0 0
        %820 = vmatpush1.bf16.msra.mxu0 0
        %821 = vmatprep.subr.bf16.mxu0 0
        %822 = vmatpush1.bf16.msra.mxu0 0
        %823 = vmatprep.subr.bf16.mxu0 0
        %824 = vmatpush1.bf16.msra.mxu0 0
        %825 = vmatprep.subr.bf16.mxu0 0
        %826 = vmatpush1.bf16.msra.mxu0 0
        %827 = vmatprep.subr.bf16.mxu0 0
        %828 = vmatpush1.bf16.msra.mxu0 %v749
        %829 = vmatprep.subr.bf16.mxu0 0
        %830 = vmatpush1.bf16.msra.mxu0 %v748
        %831 = vmatprep.subr.bf16.mxu0 0
        %832 = vmatpush2.bf16.msra.mxu0 0
        %833 = vmatprep.subr.bf16.mxu0 0
        %834 = vmatpush2.bf16.msra.mxu0 0
        %835 = vmatprep.subr.bf16.mxu0 0
        %836 = vmatpush2.bf16.msra.mxu0 0
        %837 = vmatprep.subr.bf16.mxu0 0
        %838 = vmatpush2.bf16.msra.mxu0 0
        %839 = vmatprep.subr.bf16.mxu0 0
        %840 = vmatpush2.bf16.msra.mxu0 0
        %841 = vmatprep.subr.bf16.mxu0 0
        %842 = vmatpush2.bf16.msra.mxu0 0
        %843 = vmatprep.subr.bf16.mxu0 0
        %844 = vmatpush2.bf16.msra.mxu0 0
        %845 = vmatprep.subr.bf16.mxu0 0
        %846 = vmatpush2.bf16.msra.mxu0 0
        %847 = vmatprep.mubr.bf16.mxu0 0
        %848 = vmatmul.mubr.bf16.gmra.mxu0 %v792
        %v849 = vpop.f32.mrf.mxu0
        %v850 = vadd.f32 0.0, %v849
        %v851 = vpop.f32.mrf.mxu0
        %v852 = vpop.f32.mrf.mxu0
        %v853 = vadd.f32 0.0, %v852
        %v854 = vpop.f32.mrf.mxu0
        %855 = vmatprep.mubr.bf16.mxu0 0
        %856 = vmatmul.mubr.bf16.gmra.mxu0 %v795
        %v857 = vpop.f32.mrf.mxu0
        %v858 = vadd.f32 0.0, %v857
        %v859 = vpop.f32.mrf.mxu0
        %v860 = vpop.f32.mrf.mxu0
        %v861 = vadd.f32 0.0, %v860
        %v862 = vpop.f32.mrf.mxu0
        %863 = vmatprep.mubr.bf16.mxu0 0
        %864 = vmatmul.mubr.bf16.gmra.mxu0 %v798
        %v865 = vpop.f32.mrf.mxu0
        %v866 = vadd.f32 0.0, %v865
        %v867 = vpop.f32.mrf.mxu0
        %v868 = vpop.f32.mrf.mxu0
        %v869 = vadd.f32 0.0, %v868
        %v870 = vpop.f32.mrf.mxu0
        %871 = vmatprep.mubr.bf16.mxu0 0
        %872 = vmatmul.mubr.bf16.gmra.mxu0 %v801
        %v873 = vpop.f32.mrf.mxu0
        %v874 = vadd.f32 0.0, %v873
        %v875 = vpop.f32.mrf.mxu0
        %v876 = vpop.f32.mrf.mxu0
        %v877 = vadd.f32 0.0, %v876
        %v878 = vpop.f32.mrf.mxu0
        %879 = vmatprep.mubr.bf16.mxu0 0
        %880 = vmatmul.mubr.bf16.gmra.mxu0 %v804
        %v881 = vpop.f32.mrf.mxu0
        %v882 = vadd.f32 0.0, %v881
        %v883 = vpop.f32.mrf.mxu0
        %v884 = vpop.f32.mrf.mxu0
        %v885 = vadd.f32 0.0, %v884
        %v886 = vpop.f32.mrf.mxu0
        %887 = vmatprep.mubr.bf16.mxu0 0
        %888 = vmatmul.mubr.bf16.gmra.mxu0 %v807
        %v889 = vpop.f32.mrf.mxu0
        %v890 = vadd.f32 0.0, %v889
        %v891 = vpop.f32.mrf.mxu0
        %v892 = vpop.f32.mrf.mxu0
        %v893 = vadd.f32 0.0, %v892
        %v894 = vpop.f32.mrf.mxu0
        %895 = vmatprep.mubr.bf16.mxu0 0
        %896 = vmatmul.mubr.bf16.gmra.mxu0 %v810
        %v897 = vpop.f32.mrf.mxu0
        %v898 = vadd.f32 0.0, %v897
        %v899 = vpop.f32.mrf.mxu0
        %v900 = vpop.f32.mrf.mxu0
        %v901 = vadd.f32 0.0, %v900
        %v902 = vpop.f32.mrf.mxu0
        %903 = vmatprep.mubr.bf16.mxu0 0
        %904 = vmatmul.mubr.bf16.gmra.mxu0 %v813
        %v905 = vpop.f32.mrf.mxu0
        %v906 = vadd.f32 0.0, %v905
        %v907 = vpop.f32.mrf.mxu0
        %v908 = vpop.f32.mrf.mxu0
        %v909 = vadd.f32 0.0, %v908
        %v910 = vpop.f32.mrf.mxu0
        %911 = vdwg.mxu0
        %v912 = vlaneseq
        %v913 = vshrl.u32 %v912, 7
        %v914 = vsub.s32 0, %v913
        %v915 = vrot.slane %v728, %v914
        %v916 = vmul.f32 %v915, %v858
        %v917 = vlaneseq
        %v918 = vshrl.u32 %v917, 7
        %v919 = vsub.s32 0, %v918
        %v920 = vrot.slane %v731, %v919
        %v921 = vadd.f32 %v920, %v916
        %v922 = vlaneseq
        %v923 = vshrl.u32 %v922, 7
        %v924 = vsub.s32 1, %v923
        %v925 = vrot.slane %v728, %v924
        %v926 = vmul.f32 %v925, %v858
        %v928 = vrot.slane %v926, 4
        %v930 = vadd.f32 %v921, %v928
        %v931 = vlaneseq
        %v932 = vshrl.u32 %v931, 7
        %v933 = vsub.s32 2, %v932
        %v934 = vrot.slane %v728, %v933
        %v935 = vmul.f32 %v934, %v861
        %v936 = vadd.f32 %v930, %v935
        %v937 = vlaneseq
        %v938 = vshrl.u32 %v937, 7
        %v939 = vsub.s32 0, %v938
        %v940 = vrot.slane %v729, %v939
        %v941 = vmul.f32 %v940, %v858
        %v942 = vlaneseq
        %v943 = vshrl.u32 %v942, 7
        %v944 = vsub.s32 1, %v943
        %v945 = vrot.slane %v731, %v944
        %v946 = vadd.f32 %v945, %v941
        %v947 = vlaneseq
        %v948 = vshrl.u32 %v947, 7
        %v949 = vsub.s32 1, %v948
        %v950 = vrot.slane %v729, %v949
        %v951 = vmul.f32 %v950, %v858
        %v953 = vrot.slane %v951, 4
        %v955 = vadd.f32 %v946, %v953
        %v956 = vlaneseq
        %v957 = vshrl.u32 %v956, 7
        %v958 = vsub.s32 2, %v957
        %v959 = vrot.slane %v729, %v958
        %v960 = vmul.f32 %v959, %v861
        %v961 = vadd.f32 %v955, %v960
        %v962 = vlaneseq
        %v963 = vshrl.u32 %v962, 7
        %v964 = vsub.s32 0, %v963
        %v965 = vrot.slane %v730, %v964
        %v966 = vmul.f32 %v965, %v858
        %v967 = vlaneseq
        %v968 = vshrl.u32 %v967, 7
        %v969 = vsub.s32 2, %v968
        %v970 = vrot.slane %v731, %v969
        %v971 = vadd.f32 %v970, %v966
        %v972 = vlaneseq
        %v973 = vshrl.u32 %v972, 7
        %v974 = vsub.s32 1, %v973
        %v975 = vrot.slane %v730, %v974
        %v976 = vmul.f32 %v975, %v858
        %v978 = vrot.slane %v976, 4
        %v980 = vadd.f32 %v971, %v978
        %v981 = vlaneseq
        %v982 = vshrl.u32 %v981, 7
        %v983 = vsub.s32 2, %v982
        %v984 = vrot.slane %v730, %v983
        %v985 = vmul.f32 %v984, %v861
        %v986 = vadd.f32 %v980, %v985
        %v988 = vrot.slane %v961, 4
        %vm990 = vcmask 1043456
        %v991 = vsel %vm990, %v936, %v988
        %v992 = vsel %vm990, %v986, 0.0
        %v993 = vld [vmem:[%s589] sm:$0xf]
        %v994 = vld [vmem:[%s589 + $0x4] sm:$0xf]
        %v995 = vld [vmem:[%s589 + $0x8] sm:$0xf]
        %v996 = vld [vmem:[%s589 + $0xc] sm:$0xf]
        %v997 = vpack.c.bf16 %v853, %v850
        %v998 = vpack.c.bf16 %v992, %v991
        %v999 = vld [vmem:[%s580] sm:$0xff]
        %v1000 = vld [vmem:[%s580 + $0x8] sm:$0xff]
        %v1001 = vld [vmem:[%s580 + $0x10] sm:$0xff]
        %v1002 = vld [vmem:[%s580 + $0x18] sm:$0xff]
        %v1003 = vld [vmem:[%s580 + $0x20] sm:$0xff]
        %v1004 = vld [vmem:[%s580 + $0x28] sm:$0xff]
        %v1005 = vld [vmem:[%s580 + $0x30] sm:$0xff]
        %v1006 = vld [vmem:[%s580 + $0x38] sm:$0xff]
        %v1007 = vld [vmem:[%s580 + $0x40] sm:$0xff]
        %v1008 = vld [vmem:[%s580 + $0x48] sm:$0xff]
        %v1009 = vld [vmem:[%s580 + $0x50] sm:$0xff]
        %v1010 = vld [vmem:[%s580 + $0x58] sm:$0xff]
        %v1011 = vld [vmem:[%s580 + $0x60] sm:$0xff]
        %v1012 = vld [vmem:[%s580 + $0x68] sm:$0xff]
        %v1013 = vld [vmem:[%s580 + $0x70] sm:$0xff]
        %v1014 = vld [vmem:[%s580 + $0x78] sm:$0xff]
        %1015 = vxpose.xlu0.c.b16.start [1/8] %v997, 128
        %1016 = vxpose.xlu0.c.b16.cont [2/8] %v998, 128
        %1017 = vxpose.xlu0.c.b16.cont [3/8] 0, 128
        %1018 = vxpose.xlu0.c.b16.cont [4/8] 0, 128
        %1019 = vxpose.xlu0.c.b16.cont [5/8] 0, 128
        %1020 = vxpose.xlu0.c.b16.cont [6/8] 0, 128
        %1021 = vxpose.xlu0.c.b16.cont [7/8] 0, 128
        %1022 = vxpose.xlu0.c.b16.end [8/8] 0, 128
        %v1023 = vpop.trf.xlu0
        %v1024 = vpop.trf.xlu0
        %v1025 = vpop.trf.xlu0
        %v1026 = vpop.trf.xlu0
        %v1027 = vpop.trf.xlu0
        %v1028 = vpop.trf.xlu0
        %v1029 = vpop.trf.xlu0
        %v1030 = vpop.trf.xlu0
        %v1035 = vunpack.c.l.b16 %v993
        %v1036 = vunpack.c.l.b16 %v994
        %v1037 = vunpack.c.l.b16 %v995
        %v1038 = vunpack.c.l.b16 %v996
        %v1039 = vpack.c.b16 %v1036, %v1035
        %v1040 = vpack.c.b16 %v1038, %v1037
        %v1044 = vsel %vm790, %v1023, 0
        %v1047 = vsel %vm790, %v1024, 0
        %v1050 = vsel %vm790, %v1025, 0
        %v1053 = vsel %vm790, %v1026, 0
        %v1056 = vsel %vm790, %v1027, 0
        %v1059 = vsel %vm790, %v1028, 0
        %v1062 = vsel %vm790, %v1029, 0
        %v1065 = vsel %vm790, %v1030, 0
        %1067 = vmatprep.subr.bf16.mxu0 0
        %1068 = vmatpush1.bf16.msra.mxu0 0
        %1069 = vmatprep.subr.bf16.mxu0 0
        %1070 = vmatpush1.bf16.msra.mxu0 0
        %1071 = vmatprep.subr.bf16.mxu0 0
        %1072 = vmatpush1.bf16.msra.mxu0 0
        %1073 = vmatprep.subr.bf16.mxu0 0
        %1074 = vmatpush1.bf16.msra.mxu0 0
        %1075 = vmatprep.subr.bf16.mxu0 0
        %1076 = vmatpush1.bf16.msra.mxu0 0
        %1077 = vmatprep.subr.bf16.mxu0 0
        %1078 = vmatpush1.bf16.msra.mxu0 0
        %1079 = vmatprep.subr.bf16.mxu0 0
        %1080 = vmatpush1.bf16.msra.mxu0 %v1040
        %1081 = vmatprep.subr.bf16.mxu0 0
        %1082 = vmatpush1.bf16.msra.mxu0 %v1039
        %1083 = vmatprep.subr.bf16.mxu0 0
        %1084 = vmatpush2.bf16.msra.mxu0 0
        %1085 = vmatprep.subr.bf16.mxu0 0
        %1086 = vmatpush2.bf16.msra.mxu0 0
        %1087 = vmatprep.subr.bf16.mxu0 0
        %1088 = vmatpush2.bf16.msra.mxu0 0
        %1089 = vmatprep.subr.bf16.mxu0 0
        %1090 = vmatpush2.bf16.msra.mxu0 0
        %1091 = vmatprep.subr.bf16.mxu0 0
        %1092 = vmatpush2.bf16.msra.mxu0 0
        %1093 = vmatprep.subr.bf16.mxu0 0
        %1094 = vmatpush2.bf16.msra.mxu0 0
        %1095 = vmatprep.subr.bf16.mxu0 0
        %1096 = vmatpush2.bf16.msra.mxu0 0
        %1097 = vmatprep.subr.bf16.mxu0 0
        %1098 = vmatpush2.bf16.msra.mxu0 0
        %1099 = vmatprep.mubr.bf16.mxu0 0
        %1100 = vmatmul.mubr.bf16.gmra.mxu0 %v1044
        %v1101 = vpop.f32.mrf.mxu0
        %v1102 = vadd.f32 %v999, %v1101
        %v1103 = vpop.f32.mrf.mxu0
        %v1104 = vpop.f32.mrf.mxu0
        %v1105 = vadd.f32 %v1000, %v1104
        %v1106 = vpop.f32.mrf.mxu0
        %1107 = vmatprep.mubr.bf16.mxu0 0
        %1108 = vmatmul.mubr.bf16.gmra.mxu0 %v1047
        %v1109 = vpop.f32.mrf.mxu0
        %v1110 = vadd.f32 %v1001, %v1109
        %v1111 = vpop.f32.mrf.mxu0
        %v1112 = vpop.f32.mrf.mxu0
        %v1113 = vadd.f32 %v1002, %v1112
        %v1114 = vpop.f32.mrf.mxu0
        %1115 = vmatprep.mubr.bf16.mxu0 0
        %1116 = vmatmul.mubr.bf16.gmra.mxu0 %v1050
        %v1117 = vpop.f32.mrf.mxu0
        %v1118 = vadd.f32 %v1003, %v1117
        %v1119 = vpop.f32.mrf.mxu0
        %v1120 = vpop.f32.mrf.mxu0
        %v1121 = vadd.f32 %v1004, %v1120
        %v1122 = vpop.f32.mrf.mxu0
        %1123 = vmatprep.mubr.bf16.mxu0 0
        %1124 = vmatmul.mubr.bf16.gmra.mxu0 %v1053
        %v1125 = vpop.f32.mrf.mxu0
        %v1126 = vadd.f32 %v1005, %v1125
        %v1127 = vpop.f32.mrf.mxu0
        %v1128 = vpop.f32.mrf.mxu0
        %v1129 = vadd.f32 %v1006, %v1128
        %v1130 = vpop.f32.mrf.mxu0
        %1131 = vmatprep.mubr.bf16.mxu0 0
        %1132 = vmatmul.mubr.bf16.gmra.mxu0 %v1056
        %v1133 = vpop.f32.mrf.mxu0
        %v1134 = vadd.f32 %v1007, %v1133
        %v1135 = vpop.f32.mrf.mxu0
        %v1136 = vpop.f32.mrf.mxu0
        %v1137 = vadd.f32 %v1008, %v1136
        %v1138 = vpop.f32.mrf.mxu0
        %1139 = vmatprep.mubr.bf16.mxu0 0
        %1140 = vmatmul.mubr.bf16.gmra.mxu0 %v1059
        %v1141 = vpop.f32.mrf.mxu0
        %v1142 = vadd.f32 %v1009, %v1141
        %v1143 = vpop.f32.mrf.mxu0
        %v1144 = vpop.f32.mrf.mxu0
        %v1145 = vadd.f32 %v1010, %v1144
        %v1146 = vpop.f32.mrf.mxu0
        %1147 = vmatprep.mubr.bf16.mxu0 0
        %1148 = vmatmul.mubr.bf16.gmra.mxu0 %v1062
        %v1149 = vpop.f32.mrf.mxu0
        %v1150 = vadd.f32 %v1011, %v1149
        %v1151 = vpop.f32.mrf.mxu0
        %v1152 = vpop.f32.mrf.mxu0
        %v1153 = vadd.f32 %v1012, %v1152
        %v1154 = vpop.f32.mrf.mxu0
        %1155 = vmatprep.mubr.bf16.mxu0 0
        %1156 = vmatmul.mubr.bf16.gmra.mxu0 %v1065
        %v1157 = vpop.f32.mrf.mxu0
        %v1158 = vadd.f32 %v1013, %v1157
        %v1159 = vpop.f32.mrf.mxu0
        %v1160 = vpop.f32.mrf.mxu0
        %v1161 = vadd.f32 %v1014, %v1160
        %v1162 = vpop.f32.mrf.mxu0
        %1163 = vdwg.mxu0
        %1164 = vmax.xlane.f32.xlu0 %v1102
        %v1165 = vpop.xlane.xlu0 %1164
        %1166 = vmax.xlane.f32.xlu0 %v1105
        %v1167 = vpop.xlane.xlu0 %1166
        %1168 = vmax.xlane.f32.xlu0 %v1110
        %v1169 = vpop.xlane.xlu0 %1168
        %1170 = vmax.xlane.f32.xlu0 %v1113
        %v1171 = vpop.xlane.xlu0 %1170
        %1172 = vmax.xlane.f32.xlu0 %v1118
        %v1173 = vpop.xlane.xlu0 %1172
        %1174 = vmax.xlane.f32.xlu0 %v1121
        %v1175 = vpop.xlane.xlu0 %1174
        %1176 = vmax.xlane.f32.xlu0 %v1126
        %v1177 = vpop.xlane.xlu0 %1176
        %1178 = vmax.xlane.f32.xlu0 %v1129
        %v1179 = vpop.xlane.xlu0 %1178
        %1180 = vmax.xlane.f32.xlu0 %v1134
        %v1181 = vpop.xlane.xlu0 %1180
        %1182 = vmax.xlane.f32.xlu0 %v1137
        %v1183 = vpop.xlane.xlu0 %1182
        %1184 = vmax.xlane.f32.xlu0 %v1142
        %v1185 = vpop.xlane.xlu0 %1184
        %1186 = vmax.xlane.f32.xlu0 %v1145
        %v1187 = vpop.xlane.xlu0 %1186
        %1188 = vmax.xlane.f32.xlu0 %v1150
        %v1189 = vpop.xlane.xlu0 %1188
        %1190 = vmax.xlane.f32.xlu0 %v1153
        %v1191 = vpop.xlane.xlu0 %1190
        %1192 = vmax.xlane.f32.xlu0 %v1158
        %v1193 = vpop.xlane.xlu0 %1192
        %1194 = vmax.xlane.f32.xlu0 %v1161
        %v1195 = vpop.xlane.xlu0 %1194
        %v1196 = vsub.f32 %v1102, %v1165
        %v1197 = vsub.f32 %v1105, %v1167
        %v1198 = vsub.f32 %v1110, %v1169
        %v1199 = vsub.f32 %v1113, %v1171
        %v1200 = vsub.f32 %v1118, %v1173
        %v1201 = vsub.f32 %v1121, %v1175
        %v1202 = vsub.f32 %v1126, %v1177
        %v1203 = vsub.f32 %v1129, %v1179
        %v1204 = vsub.f32 %v1134, %v1181
        %v1205 = vsub.f32 %v1137, %v1183
        %v1206 = vsub.f32 %v1142, %v1185
        %v1207 = vsub.f32 %v1145, %v1187
        %v1208 = vsub.f32 %v1150, %v1189
        %v1209 = vsub.f32 %v1153, %v1191
        %v1210 = vsub.f32 %v1158, %v1193
        %v1211 = vsub.f32 %v1161, %v1195
        %v1212 = vmul.f32 %v1196, 1.442695
        %v1213 = vpow.pop %v1212
        %v1214 = vmul.f32 %v1197, 1.442695
        %v1215 = vpow.pop %v1214
        %v1216 = vmul.f32 %v1198, 1.442695
        %v1217 = vpow.pop %v1216
        %v1218 = vmul.f32 %v1199, 1.442695
        %v1219 = vpow.pop %v1218
        %v1220 = vmul.f32 %v1200, 1.442695
        %v1221 = vpow.pop %v1220
        %v1222 = vmul.f32 %v1201, 1.442695
        %v1223 = vpow.pop %v1222
        %v1224 = vmul.f32 %v1202, 1.442695
        %v1225 = vpow.pop %v1224
        %v1226 = vmul.f32 %v1203, 1.442695
        %v1227 = vpow.pop %v1226
        %v1228 = vmul.f32 %v1204, 1.442695
        %v1229 = vpow.pop %v1228
        %v1230 = vmul.f32 %v1205, 1.442695
        %v1231 = vpow.pop %v1230
        %v1232 = vmul.f32 %v1206, 1.442695
        %v1233 = vpow.pop %v1232
        %v1234 = vmul.f32 %v1207, 1.442695
        %v1235 = vpow.pop %v1234
        %v1236 = vmul.f32 %v1208, 1.442695
        %v1237 = vpow.pop %v1236
        %v1238 = vmul.f32 %v1209, 1.442695
        %v1239 = vpow.pop %v1238
        %v1240 = vmul.f32 %v1210, 1.442695
        %v1241 = vpow.pop %v1240
        %v1242 = vmul.f32 %v1211, 1.442695
        %v1243 = vpow.pop %v1242
        %1244 = vadd.xlane.f32.xlu0 %v1213
        %v1245 = vpop.xlane.xlu0 %1244
        %1246 = vadd.xlane.f32.xlu0 %v1215
        %v1247 = vpop.xlane.xlu0 %1246
        %1248 = vadd.xlane.f32.xlu0 %v1217
        %v1249 = vpop.xlane.xlu0 %1248
        %1250 = vadd.xlane.f32.xlu0 %v1219
        %v1251 = vpop.xlane.xlu0 %1250
        %1252 = vadd.xlane.f32.xlu0 %v1221
        %v1253 = vpop.xlane.xlu0 %1252
        %1254 = vadd.xlane.f32.xlu0 %v1223
        %v1255 = vpop.xlane.xlu0 %1254
        %1256 = vadd.xlane.f32.xlu0 %v1225
        %v1257 = vpop.xlane.xlu0 %1256
        %1258 = vadd.xlane.f32.xlu0 %v1227
        %v1259 = vpop.xlane.xlu0 %1258
        %1260 = vadd.xlane.f32.xlu0 %v1229
        %v1261 = vpop.xlane.xlu0 %1260
        %1262 = vadd.xlane.f32.xlu0 %v1231
        %v1263 = vpop.xlane.xlu0 %1262
        %1264 = vadd.xlane.f32.xlu0 %v1233
        %v1265 = vpop.xlane.xlu0 %1264
        %1266 = vadd.xlane.f32.xlu0 %v1235
        %v1267 = vpop.xlane.xlu0 %1266
        %1268 = vadd.xlane.f32.xlu0 %v1237
        %v1269 = vpop.xlane.xlu0 %1268
        %1270 = vadd.xlane.f32.xlu0 %v1239
        %v1271 = vpop.xlane.xlu0 %1270
        %1272 = vadd.xlane.f32.xlu0 %v1241
        %v1273 = vpop.xlane.xlu0 %1272
        %1274 = vadd.xlane.f32.xlu0 %v1243
        %v1275 = vpop.xlane.xlu0 %1274
        %v1276 = vrcp.pop %v1245
        %v1277 = vrcp.pop %v1247
        %v1278 = vrcp.pop %v1249
        %v1279 = vrcp.pop %v1251
        %v1280 = vrcp.pop %v1253
        %v1281 = vrcp.pop %v1255
        %v1282 = vrcp.pop %v1257
        %v1283 = vrcp.pop %v1259
        %v1284 = vrcp.pop %v1261
        %v1285 = vrcp.pop %v1263
        %v1286 = vrcp.pop %v1265
        %v1287 = vrcp.pop %v1267
        %v1288 = vrcp.pop %v1269
        %v1289 = vrcp.pop %v1271
        %v1290 = vrcp.pop %v1273
        %v1291 = vrcp.pop %v1275
        %v1292 = vmul.f32 %v1213, %v1276
        %v1293 = vmul.f32 %v1215, %v1277
        %v1294 = vmul.f32 %v1217, %v1278
        %v1295 = vmul.f32 %v1219, %v1279
        %v1296 = vmul.f32 %v1221, %v1280
        %v1297 = vmul.f32 %v1223, %v1281
        %v1298 = vmul.f32 %v1225, %v1282
        %v1299 = vmul.f32 %v1227, %v1283
        %v1300 = vmul.f32 %v1229, %v1284
        %v1301 = vmul.f32 %v1231, %v1285
        %v1302 = vmul.f32 %v1233, %v1286
        %v1303 = vmul.f32 %v1235, %v1287
        %v1304 = vmul.f32 %v1237, %v1288
        %v1305 = vmul.f32 %v1239, %v1289
        %v1306 = vmul.f32 %v1241, %v1290
        %v1307 = vmul.f32 %v1243, %v1291
        %v1308 = vld [vmem:[%s571] sm:$0xf]
        %v1309 = vld [vmem:[%s571 + $0x4] sm:$0xf]
        %v1310 = vld [vmem:[%s571 + $0x8] sm:$0xf]
        %v1311 = vld [vmem:[%s571 + $0xc] sm:$0xf]
        %v1312 = vld [vmem:[%s571 + $0x10] sm:$0xf]
        %v1313 = vld [vmem:[%s571 + $0x14] sm:$0xf]
        %v1314 = vld [vmem:[%s571 + $0x18] sm:$0xf]
        %v1315 = vld [vmem:[%s571 + $0x1c] sm:$0xf]
        %v1316 = vld [vmem:[%s571 + $0x20] sm:$0xf]
        %v1317 = vld [vmem:[%s571 + $0x24] sm:$0xf]
        %v1318 = vld [vmem:[%s571 + $0x28] sm:$0xf]
        %v1319 = vld [vmem:[%s571 + $0x2c] sm:$0xf]
        %v1320 = vld [vmem:[%s571 + $0x30] sm:$0xf]
        %v1321 = vld [vmem:[%s571 + $0x34] sm:$0xf]
        %v1322 = vld [vmem:[%s571 + $0x38] sm:$0xf]
        %v1323 = vld [vmem:[%s571 + $0x3c] sm:$0xf]
        %v1324 = vunpack.c.l.bf16 %v1308
        %v1325 = vunpack.c.l.bf16 %v1309
        %v1326 = vunpack.c.l.bf16 %v1310
        %v1327 = vunpack.c.l.bf16 %v1311
        %v1328 = vunpack.c.l.bf16 %v1312
        %v1329 = vunpack.c.l.bf16 %v1313
        %v1330 = vunpack.c.l.bf16 %v1314
        %v1331 = vunpack.c.l.bf16 %v1315
        %v1332 = vunpack.c.l.bf16 %v1316
        %v1333 = vunpack.c.l.bf16 %v1317
        %v1334 = vunpack.c.l.bf16 %v1318
        %v1335 = vunpack.c.l.bf16 %v1319
        %v1336 = vunpack.c.l.bf16 %v1320
        %v1337 = vunpack.c.l.bf16 %v1321
        %v1338 = vunpack.c.l.bf16 %v1322
        %v1339 = vunpack.c.l.bf16 %v1323
        %v1340 = vmul.f32 %v1292, %v1324
        %v1341 = vmul.f32 %v1293, %v1325
        %v1342 = vmul.f32 %v1294, %v1326
        %v1343 = vmul.f32 %v1295, %v1327
        %v1344 = vmul.f32 %v1296, %v1328
        %v1345 = vmul.f32 %v1297, %v1329
        %v1346 = vmul.f32 %v1298, %v1330
        %v1347 = vmul.f32 %v1299, %v1331
        %v1348 = vmul.f32 %v1300, %v1332
        %v1349 = vmul.f32 %v1301, %v1333
        %v1350 = vmul.f32 %v1302, %v1334
        %v1351 = vmul.f32 %v1303, %v1335
        %v1352 = vmul.f32 %v1304, %v1336
        %v1353 = vmul.f32 %v1305, %v1337
        %v1354 = vmul.f32 %v1306, %v1338
        %v1355 = vmul.f32 %v1307, %v1339
        %1356 = vadd.xlane.f32.xlu0 %v1340
        %v1357 = vpop.xlane.xlu0 %1356
        %1358 = vadd.xlane.f32.xlu0 %v1341
        %v1359 = vpop.xlane.xlu0 %1358
        %1360 = vadd.xlane.f32.xlu0 %v1342
        %v1361 = vpop.xlane.xlu0 %1360
        %1362 = vadd.xlane.f32.xlu0 %v1343
        %v1363 = vpop.xlane.xlu0 %1362
        %1364 = vadd.xlane.f32.xlu0 %v1344
        %v1365 = vpop.xlane.xlu0 %1364
        %1366 = vadd.xlane.f32.xlu0 %v1345
        %v1367 = vpop.xlane.xlu0 %1366
        %1368 = vadd.xlane.f32.xlu0 %v1346
        %v1369 = vpop.xlane.xlu0 %1368
        %1370 = vadd.xlane.f32.xlu0 %v1347
        %v1371 = vpop.xlane.xlu0 %1370
        %1372 = vadd.xlane.f32.xlu0 %v1348
        %v1373 = vpop.xlane.xlu0 %1372
        %1374 = vadd.xlane.f32.xlu0 %v1349
        %v1375 = vpop.xlane.xlu0 %1374
        %1376 = vadd.xlane.f32.xlu0 %v1350
        %v1377 = vpop.xlane.xlu0 %1376
        %1378 = vadd.xlane.f32.xlu0 %v1351
        %v1379 = vpop.xlane.xlu0 %1378
        %1380 = vadd.xlane.f32.xlu0 %v1352
        %v1381 = vpop.xlane.xlu0 %1380
        %1382 = vadd.xlane.f32.xlu0 %v1353
        %v1383 = vpop.xlane.xlu0 %1382
        %1384 = vadd.xlane.f32.xlu0 %v1354
        %v1385 = vpop.xlane.xlu0 %1384
        %1386 = vadd.xlane.f32.xlu0 %v1355
        %v1387 = vpop.xlane.xlu0 %1386
        %s1388 = scalar_lea.vmem %s571, 64 [#allocation7]
        %v1389 = vld [vmem:[%s1388] sm:$0xf]
        %v1390 = vld [vmem:[%s1388 + $0x4] sm:$0xf]
        %v1391 = vld [vmem:[%s1388 + $0x8] sm:$0xf]
        %v1392 = vld [vmem:[%s1388 + $0xc] sm:$0xf]
        %v1393 = vld [vmem:[%s1388 + $0x10] sm:$0xf]
        %v1394 = vld [vmem:[%s1388 + $0x14] sm:$0xf]
        %v1395 = vld [vmem:[%s1388 + $0x18] sm:$0xf]
        %v1396 = vld [vmem:[%s1388 + $0x1c] sm:$0xf]
        %v1397 = vld [vmem:[%s1388 + $0x20] sm:$0xf]
        %v1398 = vld [vmem:[%s1388 + $0x24] sm:$0xf]
        %v1399 = vld [vmem:[%s1388 + $0x28] sm:$0xf]
        %v1400 = vld [vmem:[%s1388 + $0x2c] sm:$0xf]
        %v1401 = vld [vmem:[%s1388 + $0x30] sm:$0xf]
        %v1402 = vld [vmem:[%s1388 + $0x34] sm:$0xf]
        %v1403 = vld [vmem:[%s1388 + $0x38] sm:$0xf]
        %v1404 = vld [vmem:[%s1388 + $0x3c] sm:$0xf]
        %v1405 = vunpack.c.l.bf16 %v1389
        %v1406 = vunpack.c.l.bf16 %v1390
        %v1407 = vunpack.c.l.bf16 %v1391
        %v1408 = vunpack.c.l.bf16 %v1392
        %v1409 = vunpack.c.l.bf16 %v1393
        %v1410 = vunpack.c.l.bf16 %v1394
        %v1411 = vunpack.c.l.bf16 %v1395
        %v1412 = vunpack.c.l.bf16 %v1396
        %v1413 = vunpack.c.l.bf16 %v1397
        %v1414 = vunpack.c.l.bf16 %v1398
        %v1415 = vunpack.c.l.bf16 %v1399
        %v1416 = vunpack.c.l.bf16 %v1400
        %v1417 = vunpack.c.l.bf16 %v1401
        %v1418 = vunpack.c.l.bf16 %v1402
        %v1419 = vunpack.c.l.bf16 %v1403
        %v1420 = vunpack.c.l.bf16 %v1404
        %v1421 = vmul.f32 %v1292, %v1405
        %v1422 = vmul.f32 %v1293, %v1406
        %v1423 = vmul.f32 %v1294, %v1407
        %v1424 = vmul.f32 %v1295, %v1408
        %v1425 = vmul.f32 %v1296, %v1409
        %v1426 = vmul.f32 %v1297, %v1410
        %v1427 = vmul.f32 %v1298, %v1411
        %v1428 = vmul.f32 %v1299, %v1412
        %v1429 = vmul.f32 %v1300, %v1413
        %v1430 = vmul.f32 %v1301, %v1414
        %v1431 = vmul.f32 %v1302, %v1415
        %v1432 = vmul.f32 %v1303, %v1416
        %v1433 = vmul.f32 %v1304, %v1417
        %v1434 = vmul.f32 %v1305, %v1418
        %v1435 = vmul.f32 %v1306, %v1419
        %v1436 = vmul.f32 %v1307, %v1420
        %1437 = vadd.xlane.f32.xlu0 %v1421
        %v1438 = vpop.xlane.xlu0 %1437
        %1439 = vadd.xlane.f32.xlu0 %v1422
        %v1440 = vpop.xlane.xlu0 %1439
        %1441 = vadd.xlane.f32.xlu0 %v1423
        %v1442 = vpop.xlane.xlu0 %1441
        %1443 = vadd.xlane.f32.xlu0 %v1424
        %v1444 = vpop.xlane.xlu0 %1443
        %1445 = vadd.xlane.f32.xlu0 %v1425
        %v1446 = vpop.xlane.xlu0 %1445
        %1447 = vadd.xlane.f32.xlu0 %v1426
        %v1448 = vpop.xlane.xlu0 %1447
        %1449 = vadd.xlane.f32.xlu0 %v1427
        %v1450 = vpop.xlane.xlu0 %1449
        %1451 = vadd.xlane.f32.xlu0 %v1428
        %v1452 = vpop.xlane.xlu0 %1451
        %1453 = vadd.xlane.f32.xlu0 %v1429
        %v1454 = vpop.xlane.xlu0 %1453
        %1455 = vadd.xlane.f32.xlu0 %v1430
        %v1456 = vpop.xlane.xlu0 %1455
        %1457 = vadd.xlane.f32.xlu0 %v1431
        %v1458 = vpop.xlane.xlu0 %1457
        %1459 = vadd.xlane.f32.xlu0 %v1432
        %v1460 = vpop.xlane.xlu0 %1459
        %1461 = vadd.xlane.f32.xlu0 %v1433
        %v1462 = vpop.xlane.xlu0 %1461
        %1463 = vadd.xlane.f32.xlu0 %v1434
        %v1464 = vpop.xlane.xlu0 %1463
        %1465 = vadd.xlane.f32.xlu0 %v1435
        %v1466 = vpop.xlane.xlu0 %1465
        %1467 = vadd.xlane.f32.xlu0 %v1436
        %v1468 = vpop.xlane.xlu0 %1467
        %s1469 = scalar_lea.vmem %s571, 128 [#allocation7]
        %v1470 = vld [vmem:[%s1469] sm:$0xf]
        %v1471 = vld [vmem:[%s1469 + $0x4] sm:$0xf]
        %v1472 = vld [vmem:[%s1469 + $0x8] sm:$0xf]
        %v1473 = vld [vmem:[%s1469 + $0xc] sm:$0xf]
        %v1474 = vld [vmem:[%s1469 + $0x10] sm:$0xf]
        %v1475 = vld [vmem:[%s1469 + $0x14] sm:$0xf]
        %v1476 = vld [vmem:[%s1469 + $0x18] sm:$0xf]
        %v1477 = vld [vmem:[%s1469 + $0x1c] sm:$0xf]
        %v1478 = vld [vmem:[%s1469 + $0x20] sm:$0xf]
        %v1479 = vld [vmem:[%s1469 + $0x24] sm:$0xf]
        %v1480 = vld [vmem:[%s1469 + $0x28] sm:$0xf]
        %v1481 = vld [vmem:[%s1469 + $0x2c] sm:$0xf]
        %v1482 = vld [vmem:[%s1469 + $0x30] sm:$0xf]
        %v1483 = vld [vmem:[%s1469 + $0x34] sm:$0xf]
        %v1484 = vld [vmem:[%s1469 + $0x38] sm:$0xf]
        %v1485 = vld [vmem:[%s1469 + $0x3c] sm:$0xf]
        %v1486 = vunpack.c.l.bf16 %v1470
        %v1487 = vunpack.c.l.bf16 %v1471
        %v1488 = vunpack.c.l.bf16 %v1472
        %v1489 = vunpack.c.l.bf16 %v1473
        %v1490 = vunpack.c.l.bf16 %v1474
        %v1491 = vunpack.c.l.bf16 %v1475
        %v1492 = vunpack.c.l.bf16 %v1476
        %v1493 = vunpack.c.l.bf16 %v1477
        %v1494 = vunpack.c.l.bf16 %v1478
        %v1495 = vunpack.c.l.bf16 %v1479
        %v1496 = vunpack.c.l.bf16 %v1480
        %v1497 = vunpack.c.l.bf16 %v1481
        %v1498 = vunpack.c.l.bf16 %v1482
        %v1499 = vunpack.c.l.bf16 %v1483
        %v1500 = vunpack.c.l.bf16 %v1484
        %v1501 = vunpack.c.l.bf16 %v1485
        %v1502 = vmul.f32 %v1292, %v1486
        %v1503 = vmul.f32 %v1293, %v1487
        %v1504 = vmul.f32 %v1294, %v1488
        %v1505 = vmul.f32 %v1295, %v1489
        %v1506 = vmul.f32 %v1296, %v1490
        %v1507 = vmul.f32 %v1297, %v1491
        %v1508 = vmul.f32 %v1298, %v1492
        %v1509 = vmul.f32 %v1299, %v1493
        %v1510 = vmul.f32 %v1300, %v1494
        %v1511 = vmul.f32 %v1301, %v1495
        %v1512 = vmul.f32 %v1302, %v1496
        %v1513 = vmul.f32 %v1303, %v1497
        %v1514 = vmul.f32 %v1304, %v1498
        %v1515 = vmul.f32 %v1305, %v1499
        %v1516 = vmul.f32 %v1306, %v1500
        %v1517 = vmul.f32 %v1307, %v1501
        %1518 = vadd.xlane.f32.xlu0 %v1502
        %v1519 = vpop.xlane.xlu0 %1518
        %1520 = vadd.xlane.f32.xlu0 %v1503
        %v1521 = vpop.xlane.xlu0 %1520
        %1522 = vadd.xlane.f32.xlu0 %v1504
        %v1523 = vpop.xlane.xlu0 %1522
        %1524 = vadd.xlane.f32.xlu0 %v1505
        %v1525 = vpop.xlane.xlu0 %1524
        %1526 = vadd.xlane.f32.xlu0 %v1506
        %v1527 = vpop.xlane.xlu0 %1526
        %1528 = vadd.xlane.f32.xlu0 %v1507
        %v1529 = vpop.xlane.xlu0 %1528
        %1530 = vadd.xlane.f32.xlu0 %v1508
        %v1531 = vpop.xlane.xlu0 %1530
        %1532 = vadd.xlane.f32.xlu0 %v1509
        %v1533 = vpop.xlane.xlu0 %1532
        %1534 = vadd.xlane.f32.xlu0 %v1510
        %v1535 = vpop.xlane.xlu0 %1534
        %1536 = vadd.xlane.f32.xlu0 %v1511
        %v1537 = vpop.xlane.xlu0 %1536
        %1538 = vadd.xlane.f32.xlu0 %v1512
        %v1539 = vpop.xlane.xlu0 %1538
        %1540 = vadd.xlane.f32.xlu0 %v1513
        %v1541 = vpop.xlane.xlu0 %1540
        %1542 = vadd.xlane.f32.xlu0 %v1514
        %v1543 = vpop.xlane.xlu0 %1542
        %1544 = vadd.xlane.f32.xlu0 %v1515
        %v1545 = vpop.xlane.xlu0 %1544
        %1546 = vadd.xlane.f32.xlu0 %v1516
        %v1547 = vpop.xlane.xlu0 %1546
        %1548 = vadd.xlane.f32.xlu0 %v1517
        %v1549 = vpop.xlane.xlu0 %1548
        %s1550 = scalar_lea.vmem %s571, 192 [#allocation7]
        %v1551 = vld [vmem:[%s1550] sm:$0xf]
        %v1552 = vld [vmem:[%s1550 + $0x4] sm:$0xf]
        %v1553 = vld [vmem:[%s1550 + $0x8] sm:$0xf]
        %v1554 = vld [vmem:[%s1550 + $0xc] sm:$0xf]
        %v1555 = vld [vmem:[%s1550 + $0x10] sm:$0xf]
        %v1556 = vld [vmem:[%s1550 + $0x14] sm:$0xf]
        %v1557 = vld [vmem:[%s1550 + $0x18] sm:$0xf]
        %v1558 = vld [vmem:[%s1550 + $0x1c] sm:$0xf]
        %v1559 = vld [vmem:[%s1550 + $0x20] sm:$0xf]
        %v1560 = vld [vmem:[%s1550 + $0x24] sm:$0xf]
        %v1561 = vld [vmem:[%s1550 + $0x28] sm:$0xf]
        %v1562 = vld [vmem:[%s1550 + $0x2c] sm:$0xf]
        %v1563 = vld [vmem:[%s1550 + $0x30] sm:$0xf]
        %v1564 = vld [vmem:[%s1550 + $0x34] sm:$0xf]
        %v1565 = vld [vmem:[%s1550 + $0x38] sm:$0xf]
        %v1566 = vld [vmem:[%s1550 + $0x3c] sm:$0xf]
        %v1567 = vunpack.c.l.bf16 %v1551
        %v1568 = vunpack.c.l.bf16 %v1552
        %v1569 = vunpack.c.l.bf16 %v1553
        %v1570 = vunpack.c.l.bf16 %v1554
        %v1571 = vunpack.c.l.bf16 %v1555
        %v1572 = vunpack.c.l.bf16 %v1556
        %v1573 = vunpack.c.l.bf16 %v1557
        %v1574 = vunpack.c.l.bf16 %v1558
        %v1575 = vunpack.c.l.bf16 %v1559
        %v1576 = vunpack.c.l.bf16 %v1560
        %v1577 = vunpack.c.l.bf16 %v1561
        %v1578 = vunpack.c.l.bf16 %v1562
        %v1579 = vunpack.c.l.bf16 %v1563
        %v1580 = vunpack.c.l.bf16 %v1564
        %v1581 = vunpack.c.l.bf16 %v1565
        %v1582 = vunpack.c.l.bf16 %v1566
        %v1583 = vmul.f32 %v1292, %v1567
        %v1584 = vmul.f32 %v1293, %v1568
        %v1585 = vmul.f32 %v1294, %v1569
        %v1586 = vmul.f32 %v1295, %v1570
        %v1587 = vmul.f32 %v1296, %v1571
        %v1588 = vmul.f32 %v1297, %v1572
        %v1589 = vmul.f32 %v1298, %v1573
        %v1590 = vmul.f32 %v1299, %v1574
        %v1591 = vmul.f32 %v1300, %v1575
        %v1592 = vmul.f32 %v1301, %v1576
        %v1593 = vmul.f32 %v1302, %v1577
        %v1594 = vmul.f32 %v1303, %v1578
        %v1595 = vmul.f32 %v1304, %v1579
        %v1596 = vmul.f32 %v1305, %v1580
        %v1597 = vmul.f32 %v1306, %v1581
        %v1598 = vmul.f32 %v1307, %v1582
        %1599 = vadd.xlane.f32.xlu0 %v1583
        %v1600 = vpop.xlane.xlu0 %1599
        %1601 = vadd.xlane.f32.xlu0 %v1584
        %v1602 = vpop.xlane.xlu0 %1601
        %1603 = vadd.xlane.f32.xlu0 %v1585
        %v1604 = vpop.xlane.xlu0 %1603
        %1605 = vadd.xlane.f32.xlu0 %v1586
        %v1606 = vpop.xlane.xlu0 %1605
        %1607 = vadd.xlane.f32.xlu0 %v1587
        %v1608 = vpop.xlane.xlu0 %1607
        %1609 = vadd.xlane.f32.xlu0 %v1588
        %v1610 = vpop.xlane.xlu0 %1609
        %1611 = vadd.xlane.f32.xlu0 %v1589
        %v1612 = vpop.xlane.xlu0 %1611
        %1613 = vadd.xlane.f32.xlu0 %v1590
        %v1614 = vpop.xlane.xlu0 %1613
        %1615 = vadd.xlane.f32.xlu0 %v1591
        %v1616 = vpop.xlane.xlu0 %1615
        %1617 = vadd.xlane.f32.xlu0 %v1592
        %v1618 = vpop.xlane.xlu0 %1617
        %1619 = vadd.xlane.f32.xlu0 %v1593
        %v1620 = vpop.xlane.xlu0 %1619
        %1621 = vadd.xlane.f32.xlu0 %v1594
        %v1622 = vpop.xlane.xlu0 %1621
        %1623 = vadd.xlane.f32.xlu0 %v1595
        %v1624 = vpop.xlane.xlu0 %1623
        %1625 = vadd.xlane.f32.xlu0 %v1596
        %v1626 = vpop.xlane.xlu0 %1625
        %1627 = vadd.xlane.f32.xlu0 %v1597
        %v1628 = vpop.xlane.xlu0 %1627
        %1629 = vadd.xlane.f32.xlu0 %v1598
        %v1630 = vpop.xlane.xlu0 %1629
        %s1631 = scalar_lea.vmem %s571, 256 [#allocation7]
        %v1632 = vld [vmem:[%s1631] sm:$0xf]
        %v1633 = vld [vmem:[%s1631 + $0x4] sm:$0xf]
        %v1634 = vld [vmem:[%s1631 + $0x8] sm:$0xf]
        %v1635 = vld [vmem:[%s1631 + $0xc] sm:$0xf]
        %v1636 = vld [vmem:[%s1631 + $0x10] sm:$0xf]
        %v1637 = vld [vmem:[%s1631 + $0x14] sm:$0xf]
        %v1638 = vld [vmem:[%s1631 + $0x18] sm:$0xf]
        %v1639 = vld [vmem:[%s1631 + $0x1c] sm:$0xf]
        %v1640 = vld [vmem:[%s1631 + $0x20] sm:$0xf]
        %v1641 = vld [vmem:[%s1631 + $0x24] sm:$0xf]
        %v1642 = vld [vmem:[%s1631 + $0x28] sm:$0xf]
        %v1643 = vld [vmem:[%s1631 + $0x2c] sm:$0xf]
        %v1644 = vld [vmem:[%s1631 + $0x30] sm:$0xf]
        %v1645 = vld [vmem:[%s1631 + $0x34] sm:$0xf]
        %v1646 = vld [vmem:[%s1631 + $0x38] sm:$0xf]
        %v1647 = vld [vmem:[%s1631 + $0x3c] sm:$0xf]
        %v1648 = vunpack.c.l.bf16 %v1632
        %v1649 = vunpack.c.l.bf16 %v1633
        %v1650 = vunpack.c.l.bf16 %v1634
        %v1651 = vunpack.c.l.bf16 %v1635
        %v1652 = vunpack.c.l.bf16 %v1636
        %v1653 = vunpack.c.l.bf16 %v1637
        %v1654 = vunpack.c.l.bf16 %v1638
        %v1655 = vunpack.c.l.bf16 %v1639
        %v1656 = vunpack.c.l.bf16 %v1640
        %v1657 = vunpack.c.l.bf16 %v1641
        %v1658 = vunpack.c.l.bf16 %v1642
        %v1659 = vunpack.c.l.bf16 %v1643
        %v1660 = vunpack.c.l.bf16 %v1644
        %v1661 = vunpack.c.l.bf16 %v1645
        %v1662 = vunpack.c.l.bf16 %v1646
        %v1663 = vunpack.c.l.bf16 %v1647
        %v1664 = vmul.f32 %v1292, %v1648
        %v1665 = vmul.f32 %v1293, %v1649
        %v1666 = vmul.f32 %v1294, %v1650
        %v1667 = vmul.f32 %v1295, %v1651
        %v1668 = vmul.f32 %v1296, %v1652
        %v1669 = vmul.f32 %v1297, %v1653
        %v1670 = vmul.f32 %v1298, %v1654
        %v1671 = vmul.f32 %v1299, %v1655
        %v1672 = vmul.f32 %v1300, %v1656
        %v1673 = vmul.f32 %v1301, %v1657
        %v1674 = vmul.f32 %v1302, %v1658
        %v1675 = vmul.f32 %v1303, %v1659
        %v1676 = vmul.f32 %v1304, %v1660
        %v1677 = vmul.f32 %v1305, %v1661
        %v1678 = vmul.f32 %v1306, %v1662
        %v1679 = vmul.f32 %v1307, %v1663
        %1680 = vadd.xlane.f32.xlu0 %v1664
        %v1681 = vpop.xlane.xlu0 %1680
        %1682 = vadd.xlane.f32.xlu0 %v1665
        %v1683 = vpop.xlane.xlu0 %1682
        %1684 = vadd.xlane.f32.xlu0 %v1666
        %v1685 = vpop.xlane.xlu0 %1684
        %1686 = vadd.xlane.f32.xlu0 %v1667
        %v1687 = vpop.xlane.xlu0 %1686
        %1688 = vadd.xlane.f32.xlu0 %v1668
        %v1689 = vpop.xlane.xlu0 %1688
        %1690 = vadd.xlane.f32.xlu0 %v1669
        %v1691 = vpop.xlane.xlu0 %1690
        %1692 = vadd.xlane.f32.xlu0 %v1670
        %v1693 = vpop.xlane.xlu0 %1692
        %1694 = vadd.xlane.f32.xlu0 %v1671
        %v1695 = vpop.xlane.xlu0 %1694
        %1696 = vadd.xlane.f32.xlu0 %v1672
        %v1697 = vpop.xlane.xlu0 %1696
        %1698 = vadd.xlane.f32.xlu0 %v1673
        %v1699 = vpop.xlane.xlu0 %1698
        %1700 = vadd.xlane.f32.xlu0 %v1674
        %v1701 = vpop.xlane.xlu0 %1700
        %1702 = vadd.xlane.f32.xlu0 %v1675
        %v1703 = vpop.xlane.xlu0 %1702
        %1704 = vadd.xlane.f32.xlu0 %v1676
        %v1705 = vpop.xlane.xlu0 %1704
        %1706 = vadd.xlane.f32.xlu0 %v1677
        %v1707 = vpop.xlane.xlu0 %1706
        %1708 = vadd.xlane.f32.xlu0 %v1678
        %v1709 = vpop.xlane.xlu0 %1708
        %1710 = vadd.xlane.f32.xlu0 %v1679
        %v1711 = vpop.xlane.xlu0 %1710
        %s1712 = scalar_lea.vmem %s571, 320 [#allocation7]
        %v1713 = vld [vmem:[%s1712] sm:$0xf]
        %v1714 = vld [vmem:[%s1712 + $0x4] sm:$0xf]
        %v1715 = vld [vmem:[%s1712 + $0x8] sm:$0xf]
        %v1716 = vld [vmem:[%s1712 + $0xc] sm:$0xf]
        %v1717 = vld [vmem:[%s1712 + $0x10] sm:$0xf]
        %v1718 = vld [vmem:[%s1712 + $0x14] sm:$0xf]
        %v1719 = vld [vmem:[%s1712 + $0x18] sm:$0xf]
        %v1720 = vld [vmem:[%s1712 + $0x1c] sm:$0xf]
        %v1721 = vld [vmem:[%s1712 + $0x20] sm:$0xf]
        %v1722 = vld [vmem:[%s1712 + $0x24] sm:$0xf]
        %v1723 = vld [vmem:[%s1712 + $0x28] sm:$0xf]
        %v1724 = vld [vmem:[%s1712 + $0x2c] sm:$0xf]
        %v1725 = vld [vmem:[%s1712 + $0x30] sm:$0xf]
        %v1726 = vld [vmem:[%s1712 + $0x34] sm:$0xf]
        %v1727 = vld [vmem:[%s1712 + $0x38] sm:$0xf]
        %v1728 = vld [vmem:[%s1712 + $0x3c] sm:$0xf]
        %v1729 = vunpack.c.l.bf16 %v1713
        %v1730 = vunpack.c.l.bf16 %v1714
        %v1731 = vunpack.c.l.bf16 %v1715
        %v1732 = vunpack.c.l.bf16 %v1716
        %v1733 = vunpack.c.l.bf16 %v1717
        %v1734 = vunpack.c.l.bf16 %v1718
        %v1735 = vunpack.c.l.bf16 %v1719
        %v1736 = vunpack.c.l.bf16 %v1720
        %v1737 = vunpack.c.l.bf16 %v1721
        %v1738 = vunpack.c.l.bf16 %v1722
        %v1739 = vunpack.c.l.bf16 %v1723
        %v1740 = vunpack.c.l.bf16 %v1724
        %v1741 = vunpack.c.l.bf16 %v1725
        %v1742 = vunpack.c.l.bf16 %v1726
        %v1743 = vunpack.c.l.bf16 %v1727
        %v1744 = vunpack.c.l.bf16 %v1728
        %v1745 = vmul.f32 %v1292, %v1729
        %v1746 = vmul.f32 %v1293, %v1730
        %v1747 = vmul.f32 %v1294, %v1731
        %v1748 = vmul.f32 %v1295, %v1732
        %v1749 = vmul.f32 %v1296, %v1733
        %v1750 = vmul.f32 %v1297, %v1734
        %v1751 = vmul.f32 %v1298, %v1735
        %v1752 = vmul.f32 %v1299, %v1736
        %v1753 = vmul.f32 %v1300, %v1737
        %v1754 = vmul.f32 %v1301, %v1738
        %v1755 = vmul.f32 %v1302, %v1739
        %v1756 = vmul.f32 %v1303, %v1740
        %v1757 = vmul.f32 %v1304, %v1741
        %v1758 = vmul.f32 %v1305, %v1742
        %v1759 = vmul.f32 %v1306, %v1743
        %v1760 = vmul.f32 %v1307, %v1744
        %1761 = vadd.xlane.f32.xlu0 %v1745
        %v1762 = vpop.xlane.xlu0 %1761
        %1763 = vadd.xlane.f32.xlu0 %v1746
        %v1764 = vpop.xlane.xlu0 %1763
        %1765 = vadd.xlane.f32.xlu0 %v1747
        %v1766 = vpop.xlane.xlu0 %1765
        %1767 = vadd.xlane.f32.xlu0 %v1748
        %v1768 = vpop.xlane.xlu0 %1767
        %1769 = vadd.xlane.f32.xlu0 %v1749
        %v1770 = vpop.xlane.xlu0 %1769
        %1771 = vadd.xlane.f32.xlu0 %v1750
        %v1772 = vpop.xlane.xlu0 %1771
        %1773 = vadd.xlane.f32.xlu0 %v1751
        %v1774 = vpop.xlane.xlu0 %1773
        %1775 = vadd.xlane.f32.xlu0 %v1752
        %v1776 = vpop.xlane.xlu0 %1775
        %1777 = vadd.xlane.f32.xlu0 %v1753
        %v1778 = vpop.xlane.xlu0 %1777
        %1779 = vadd.xlane.f32.xlu0 %v1754
        %v1780 = vpop.xlane.xlu0 %1779
        %1781 = vadd.xlane.f32.xlu0 %v1755
        %v1782 = vpop.xlane.xlu0 %1781
        %1783 = vadd.xlane.f32.xlu0 %v1756
        %v1784 = vpop.xlane.xlu0 %1783
        %1785 = vadd.xlane.f32.xlu0 %v1757
        %v1786 = vpop.xlane.xlu0 %1785
        %1787 = vadd.xlane.f32.xlu0 %v1758
        %v1788 = vpop.xlane.xlu0 %1787
        %1789 = vadd.xlane.f32.xlu0 %v1759
        %v1790 = vpop.xlane.xlu0 %1789
        %1791 = vadd.xlane.f32.xlu0 %v1760
        %v1792 = vpop.xlane.xlu0 %1791
        %s1793 = scalar_lea.vmem %s571, 384 [#allocation7]
        %v1794 = vld [vmem:[%s1793] sm:$0xf]
        %v1795 = vld [vmem:[%s1793 + $0x4] sm:$0xf]
        %v1796 = vld [vmem:[%s1793 + $0x8] sm:$0xf]
        %v1797 = vld [vmem:[%s1793 + $0xc] sm:$0xf]
        %v1798 = vld [vmem:[%s1793 + $0x10] sm:$0xf]
        %v1799 = vld [vmem:[%s1793 + $0x14] sm:$0xf]
        %v1800 = vld [vmem:[%s1793 + $0x18] sm:$0xf]
        %v1801 = vld [vmem:[%s1793 + $0x1c] sm:$0xf]
        %v1802 = vld [vmem:[%s1793 + $0x20] sm:$0xf]
        %v1803 = vld [vmem:[%s1793 + $0x24] sm:$0xf]
        %v1804 = vld [vmem:[%s1793 + $0x28] sm:$0xf]
        %v1805 = vld [vmem:[%s1793 + $0x2c] sm:$0xf]
        %v1806 = vld [vmem:[%s1793 + $0x30] sm:$0xf]
        %v1807 = vld [vmem:[%s1793 + $0x34] sm:$0xf]
        %v1808 = vld [vmem:[%s1793 + $0x38] sm:$0xf]
        %v1809 = vld [vmem:[%s1793 + $0x3c] sm:$0xf]
        %v1810 = vunpack.c.l.bf16 %v1794
        %v1811 = vunpack.c.l.bf16 %v1795
        %v1812 = vunpack.c.l.bf16 %v1796
        %v1813 = vunpack.c.l.bf16 %v1797
        %v1814 = vunpack.c.l.bf16 %v1798
        %v1815 = vunpack.c.l.bf16 %v1799
        %v1816 = vunpack.c.l.bf16 %v1800
        %v1817 = vunpack.c.l.bf16 %v1801
        %v1818 = vunpack.c.l.bf16 %v1802
        %v1819 = vunpack.c.l.bf16 %v1803
        %v1820 = vunpack.c.l.bf16 %v1804
        %v1821 = vunpack.c.l.bf16 %v1805
        %v1822 = vunpack.c.l.bf16 %v1806
        %v1823 = vunpack.c.l.bf16 %v1807
        %v1824 = vunpack.c.l.bf16 %v1808
        %v1825 = vunpack.c.l.bf16 %v1809
        %v1826 = vmul.f32 %v1292, %v1810
        %v1827 = vmul.f32 %v1293, %v1811
        %v1828 = vmul.f32 %v1294, %v1812
        %v1829 = vmul.f32 %v1295, %v1813
        %v1830 = vmul.f32 %v1296, %v1814
        %v1831 = vmul.f32 %v1297, %v1815
        %v1832 = vmul.f32 %v1298, %v1816
        %v1833 = vmul.f32 %v1299, %v1817
        %v1834 = vmul.f32 %v1300, %v1818
        %v1835 = vmul.f32 %v1301, %v1819
        %v1836 = vmul.f32 %v1302, %v1820
        %v1837 = vmul.f32 %v1303, %v1821
        %v1838 = vmul.f32 %v1304, %v1822
        %v1839 = vmul.f32 %v1305, %v1823
        %v1840 = vmul.f32 %v1306, %v1824
        %v1841 = vmul.f32 %v1307, %v1825
        %1842 = vadd.xlane.f32.xlu0 %v1826
        %v1843 = vpop.xlane.xlu0 %1842
        %1844 = vadd.xlane.f32.xlu0 %v1827
        %v1845 = vpop.xlane.xlu0 %1844
        %1846 = vadd.xlane.f32.xlu0 %v1828
        %v1847 = vpop.xlane.xlu0 %1846
        %1848 = vadd.xlane.f32.xlu0 %v1829
        %v1849 = vpop.xlane.xlu0 %1848
        %1850 = vadd.xlane.f32.xlu0 %v1830
        %v1851 = vpop.xlane.xlu0 %1850
        %1852 = vadd.xlane.f32.xlu0 %v1831
        %v1853 = vpop.xlane.xlu0 %1852
        %1854 = vadd.xlane.f32.xlu0 %v1832
        %v1855 = vpop.xlane.xlu0 %1854
        %1856 = vadd.xlane.f32.xlu0 %v1833
        %v1857 = vpop.xlane.xlu0 %1856
        %1858 = vadd.xlane.f32.xlu0 %v1834
        %v1859 = vpop.xlane.xlu0 %1858
        %1860 = vadd.xlane.f32.xlu0 %v1835
        %v1861 = vpop.xlane.xlu0 %1860
        %1862 = vadd.xlane.f32.xlu0 %v1836
        %v1863 = vpop.xlane.xlu0 %1862
        %1864 = vadd.xlane.f32.xlu0 %v1837
        %v1865 = vpop.xlane.xlu0 %1864
        %1866 = vadd.xlane.f32.xlu0 %v1838
        %v1867 = vpop.xlane.xlu0 %1866
        %1868 = vadd.xlane.f32.xlu0 %v1839
        %v1869 = vpop.xlane.xlu0 %1868
        %1870 = vadd.xlane.f32.xlu0 %v1840
        %v1871 = vpop.xlane.xlu0 %1870
        %1872 = vadd.xlane.f32.xlu0 %v1841
        %v1873 = vpop.xlane.xlu0 %1872
        %s1874 = scalar_lea.vmem %s571, 448 [#allocation7]
        %v1875 = vld [vmem:[%s1874] sm:$0xf]
        %v1876 = vld [vmem:[%s1874 + $0x4] sm:$0xf]
        %v1877 = vld [vmem:[%s1874 + $0x8] sm:$0xf]
        %v1878 = vld [vmem:[%s1874 + $0xc] sm:$0xf]
        %v1879 = vld [vmem:[%s1874 + $0x10] sm:$0xf]
        %v1880 = vld [vmem:[%s1874 + $0x14] sm:$0xf]
        %v1881 = vld [vmem:[%s1874 + $0x18] sm:$0xf]
        %v1882 = vld [vmem:[%s1874 + $0x1c] sm:$0xf]
        %v1883 = vld [vmem:[%s1874 + $0x20] sm:$0xf]
        %v1884 = vld [vmem:[%s1874 + $0x24] sm:$0xf]
        %v1885 = vld [vmem:[%s1874 + $0x28] sm:$0xf]
        %v1886 = vld [vmem:[%s1874 + $0x2c] sm:$0xf]
        %v1887 = vld [vmem:[%s1874 + $0x30] sm:$0xf]
        %v1888 = vld [vmem:[%s1874 + $0x34] sm:$0xf]
        %v1889 = vld [vmem:[%s1874 + $0x38] sm:$0xf]
        %v1890 = vld [vmem:[%s1874 + $0x3c] sm:$0xf]
        %v1891 = vunpack.c.l.bf16 %v1875
        %v1892 = vunpack.c.l.bf16 %v1876
        %v1893 = vunpack.c.l.bf16 %v1877
        %v1894 = vunpack.c.l.bf16 %v1878
        %v1895 = vunpack.c.l.bf16 %v1879
        %v1896 = vunpack.c.l.bf16 %v1880
        %v1897 = vunpack.c.l.bf16 %v1881
        %v1898 = vunpack.c.l.bf16 %v1882
        %v1899 = vunpack.c.l.bf16 %v1883
        %v1900 = vunpack.c.l.bf16 %v1884
        %v1901 = vunpack.c.l.bf16 %v1885
        %v1902 = vunpack.c.l.bf16 %v1886
        %v1903 = vunpack.c.l.bf16 %v1887
        %v1904 = vunpack.c.l.bf16 %v1888
        %v1905 = vunpack.c.l.bf16 %v1889
        %v1906 = vunpack.c.l.bf16 %v1890
        %v1907 = vmul.f32 %v1292, %v1891
        %v1908 = vmul.f32 %v1293, %v1892
        %v1909 = vmul.f32 %v1294, %v1893
        %v1910 = vmul.f32 %v1295, %v1894
        %v1911 = vmul.f32 %v1296, %v1895
        %v1912 = vmul.f32 %v1297, %v1896
        %v1913 = vmul.f32 %v1298, %v1897
        %v1914 = vmul.f32 %v1299, %v1898
        %v1915 = vmul.f32 %v1300, %v1899
        %v1916 = vmul.f32 %v1301, %v1900
        %v1917 = vmul.f32 %v1302, %v1901
        %v1918 = vmul.f32 %v1303, %v1902
        %v1919 = vmul.f32 %v1304, %v1903
        %v1920 = vmul.f32 %v1305, %v1904
        %v1921 = vmul.f32 %v1306, %v1905
        %v1922 = vmul.f32 %v1307, %v1906
        %1923 = vadd.xlane.f32.xlu0 %v1907
        %v1924 = vpop.xlane.xlu0 %1923
        %1925 = vadd.xlane.f32.xlu0 %v1908
        %v1926 = vpop.xlane.xlu0 %1925
        %1927 = vadd.xlane.f32.xlu0 %v1909
        %v1928 = vpop.xlane.xlu0 %1927
        %1929 = vadd.xlane.f32.xlu0 %v1910
        %v1930 = vpop.xlane.xlu0 %1929
        %1931 = vadd.xlane.f32.xlu0 %v1911
        %v1932 = vpop.xlane.xlu0 %1931
        %1933 = vadd.xlane.f32.xlu0 %v1912
        %v1934 = vpop.xlane.xlu0 %1933
        %1935 = vadd.xlane.f32.xlu0 %v1913
        %v1936 = vpop.xlane.xlu0 %1935
        %1937 = vadd.xlane.f32.xlu0 %v1914
        %v1938 = vpop.xlane.xlu0 %1937
        %1939 = vadd.xlane.f32.xlu0 %v1915
        %v1940 = vpop.xlane.xlu0 %1939
        %1941 = vadd.xlane.f32.xlu0 %v1916
        %v1942 = vpop.xlane.xlu0 %1941
        %1943 = vadd.xlane.f32.xlu0 %v1917
        %v1944 = vpop.xlane.xlu0 %1943
        %1945 = vadd.xlane.f32.xlu0 %v1918
        %v1946 = vpop.xlane.xlu0 %1945
        %1947 = vadd.xlane.f32.xlu0 %v1919
        %v1948 = vpop.xlane.xlu0 %1947
        %1949 = vadd.xlane.f32.xlu0 %v1920
        %v1950 = vpop.xlane.xlu0 %1949
        %1951 = vadd.xlane.f32.xlu0 %v1921
        %v1952 = vpop.xlane.xlu0 %1951
        %1953 = vadd.xlane.f32.xlu0 %v1922
        %v1954 = vpop.xlane.xlu0 %1953
        %v1955 = vld [vmem:[%s598] sm:$0xf]
        %v1956 = vld [vmem:[%s598 + $0x4] sm:$0xf]
        %v1957 = vld [vmem:[%s598 + $0x8] sm:$0xf]
        %v1958 = vld [vmem:[%s598 + $0xc] sm:$0xf]
        %v1959 = vld [vmem:[%s598 + $0x10] sm:$0xf]
        %v1960 = vpack.c.bf16 %v1293, %v1292
        %v1961 = vpack.c.bf16 %v1295, %v1294
        %v1962 = vpack.c.bf16 %v1297, %v1296
        %v1963 = vpack.c.bf16 %v1299, %v1298
        %v1964 = vpack.c.bf16 %v1301, %v1300
        %v1965 = vpack.c.bf16 %v1303, %v1302
        %v1966 = vpack.c.bf16 %v1305, %v1304
        %v1967 = vpack.c.bf16 %v1307, %v1306
        %v1973 = vunpack.c.l.b16 %v1955
        %v1974 = vunpack.c.l.b16 %v1956
        %v1975 = vunpack.c.l.b16 %v1957
        %v1976 = vunpack.c.l.b16 %v1958
        %v1977 = vunpack.c.l.b16 %v1959
        %v1978 = vpack.c.b16 %v1974, %v1973
        %v1979 = vpack.c.b16 %v1976, %v1975
        %v1980 = vpack.c.b16 %v1977, %v1977
        %1984 = vmatprep.subr.bf16.mxu0 0
        %1985 = vmatpush1.bf16.xpose.msra.mxu0 %v1967
        %1986 = vmatprep.subr.bf16.mxu0 0
        %1987 = vmatpush1.bf16.xpose.msra.mxu0 %v1966
        %1988 = vmatprep.subr.bf16.mxu0 0
        %1989 = vmatpush1.bf16.xpose.msra.mxu0 %v1965
        %1990 = vmatprep.subr.bf16.mxu0 0
        %1991 = vmatpush1.bf16.xpose.msra.mxu0 %v1964
        %1992 = vmatprep.subr.bf16.mxu0 0
        %1993 = vmatpush1.bf16.xpose.msra.mxu0 %v1963
        %1994 = vmatprep.subr.bf16.mxu0 0
        %1995 = vmatpush1.bf16.xpose.msra.mxu0 %v1962
        %1996 = vmatprep.subr.bf16.mxu0 0
        %1997 = vmatpush1.bf16.xpose.msra.mxu0 %v1961
        %1998 = vmatprep.subr.bf16.mxu0 0
        %1999 = vmatpush1.bf16.xpose.msra.mxu0 %v1960
        %2000 = vmatprep.subr.bf16.mxu0 0
        %2001 = vmatpush2.bf16.xpose.msra.mxu0 0
        %2002 = vmatprep.subr.bf16.mxu0 0
        %2003 = vmatpush2.bf16.xpose.msra.mxu0 0
        %2004 = vmatprep.subr.bf16.mxu0 0
        %2005 = vmatpush2.bf16.xpose.msra.mxu0 0
        %2006 = vmatprep.subr.bf16.mxu0 0
        %2007 = vmatpush2.bf16.xpose.msra.mxu0 0
        %2008 = vmatprep.subr.bf16.mxu0 0
        %2009 = vmatpush2.bf16.xpose.msra.mxu0 0
        %2010 = vmatprep.subr.bf16.mxu0 0
        %2011 = vmatpush2.bf16.xpose.msra.mxu0 0
        %2012 = vmatprep.subr.bf16.mxu0 0
        %2013 = vmatpush2.bf16.xpose.msra.mxu0 0
        %2014 = vmatprep.subr.bf16.mxu0 0
        %2015 = vmatpush2.bf16.xpose.msra.mxu0 0
        %2016 = vmatprep.mubr.bf16.mxu0 0
        %2017 = vmatmul.mubr.bf16.gmra.mxu0 %v1978
        %v2018 = vpop.f32.mrf.mxu0
        %v2019 = vadd.f32 0.0, %v2018
        %v2020 = vpop.f32.mrf.mxu0
        %v2021 = vpop.f32.mrf.mxu0
        %v2022 = vadd.f32 0.0, %v2021
        %v2023 = vpop.f32.mrf.mxu0
        %2024 = vmatprep.mubr.bf16.mxu0 0
        %2025 = vmatmul.mubr.bf16.gmra.mxu0 %v1979
        %v2026 = vpop.f32.mrf.mxu0
        %v2027 = vadd.f32 0.0, %v2026
        %v2028 = vpop.f32.mrf.mxu0
        %v2029 = vpop.f32.mrf.mxu0
        %v2030 = vadd.f32 0.0, %v2029
        %v2031 = vpop.f32.mrf.mxu0
        %2032 = vmatprep.mubr.bf16.mxu0 0
        %2033 = vmatmul.mubr.bf16.gmra.mxu0 %v1980
        %v2034 = vpop.f32.mrf.mxu0
        %v2035 = vadd.f32 0.0, %v2034
        %v2036 = vpop.f32.mrf.mxu0
        %v2037 = vpop.f32.mrf.mxu0
        %v2038 = vpop.f32.mrf.mxu0
        %2039 = vdwg.mxu0
        %v2040 = vsub.f32 %v2027, %v920
        %v2041 = vmul.f32 %v915, %v2040
        %v2042 = vsub.f32 %v2030, %v945
        %v2043 = vmul.f32 %v940, %v2042
        %v2044 = vadd.f32 %v2041, %v2043
        %v2045 = vsub.f32 %v2035, %v970
        %v2046 = vmul.f32 %v965, %v2045
        %v2047 = vadd.f32 %v2044, %v2046
        %v2048 = vmul.f32 %v925, %v2040
        %v2049 = vmul.f32 %v950, %v2042
        %v2050 = vadd.f32 %v2048, %v2049
        %v2051 = vmul.f32 %v975, %v2045
        %v2052 = vadd.f32 %v2050, %v2051
        %v2053 = vmul.f32 %v934, %v2040
        %v2054 = vmul.f32 %v959, %v2042
        %v2055 = vadd.f32 %v2053, %v2054
        %v2056 = vmul.f32 %v984, %v2045
        %v2057 = vadd.f32 %v2055, %v2056
        %v2058 = vld [vmem:[#allocation3] sm:$0x1]
        %v2059 = vmul.f32 %v2047, %v2047
        %v2060 = vmul.f32 %v2052, %v2052
        %v2061 = vmul.f32 %v2057, %v2057
        %v2062 = vadd.f32 %v2059, %v2060
        %v2063 = vadd.f32 %v2062, %v2061
        %v2064 = vrot.slane %v2063, 4
        %v2065 = vadd.f32 %v2063, %v2064
        %v2066 = vrot.slane %v2065, 2
        %v2067 = vadd.f32 %v2065, %v2066
        %v2068 = vrot.slane %v2067, 1
        %v2069 = vadd.f32 %v2067, %v2068
        %v2070 = vadd.f32 %v2058, %v2069
        %2071 = vst [vmem:[#allocation3] sm:$0x1] %v2070
        %v2072 = vmul.f32 %v915, %v874
        %v2073 = vadd.f32 %v920, %v2072
        %v2074 = vmul.f32 %v925, %v874
        %v2076 = vrot.slane %v2074, 4
        %v2078 = vadd.f32 %v2073, %v2076
        %v2079 = vmul.f32 %v934, %v877
        %v2080 = vadd.f32 %v2078, %v2079
        %v2081 = vmul.f32 %v940, %v874
        %v2082 = vadd.f32 %v945, %v2081
        %v2083 = vmul.f32 %v950, %v874
        %v2085 = vrot.slane %v2083, 4
        %v2087 = vadd.f32 %v2082, %v2085
        %v2088 = vmul.f32 %v959, %v877
        %v2089 = vadd.f32 %v2087, %v2088
        %v2090 = vmul.f32 %v965, %v874
        %v2091 = vadd.f32 %v970, %v2090
        %v2092 = vmul.f32 %v975, %v874
        %v2094 = vrot.slane %v2092, 4
        %v2096 = vadd.f32 %v2091, %v2094
        %v2097 = vmul.f32 %v984, %v877
        %v2098 = vadd.f32 %v2096, %v2097
        %v2100 = vrot.slane %v2089, 4
        %v2102 = vsel %vm990, %v2080, %v2100
        %v2103 = vsel %vm990, %v2098, 0.0
        %s2104 = scalar_lea.vmem %s589, 16 [#allocation10]
        %v2105 = vld [vmem:[%s2104] sm:$0xf]
        %v2106 = vld [vmem:[%s2104 + $0x4] sm:$0xf]
        %v2107 = vld [vmem:[%s2104 + $0x8] sm:$0xf]
        %v2108 = vld [vmem:[%s2104 + $0xc] sm:$0xf]
        %v2109 = vpack.c.bf16 %v869, %v866
        %v2110 = vpack.c.bf16 %v2103, %v2102
        %s2111 = scalar_lea.vmem %s580, 128 [#allocation9]
        %v2112 = vld [vmem:[%s2111] sm:$0xff]
        %v2113 = vld [vmem:[%s2111 + $0x8] sm:$0xff]
        %v2114 = vld [vmem:[%s2111 + $0x10] sm:$0xff]
        %v2115 = vld [vmem:[%s2111 + $0x18] sm:$0xff]
        %v2116 = vld [vmem:[%s2111 + $0x20] sm:$0xff]
        %v2117 = vld [vmem:[%s2111 + $0x28] sm:$0xff]
        %v2118 = vld [vmem:[%s2111 + $0x30] sm:$0xff]
        %v2119 = vld [vmem:[%s2111 + $0x38] sm:$0xff]
        %v2120 = vld [vmem:[%s2111 + $0x40] sm:$0xff]
        %v2121 = vld [vmem:[%s2111 + $0x48] sm:$0xff]
        %v2122 = vld [vmem:[%s2111 + $0x50] sm:$0xff]
        %v2123 = vld [vmem:[%s2111 + $0x58] sm:$0xff]
        %v2124 = vld [vmem:[%s2111 + $0x60] sm:$0xff]
        %v2125 = vld [vmem:[%s2111 + $0x68] sm:$0xff]
        %v2126 = vld [vmem:[%s2111 + $0x70] sm:$0xff]
        %v2127 = vld [vmem:[%s2111 + $0x78] sm:$0xff]
        %2128 = vxpose.xlu0.c.b16.start [1/8] %v2109, 128
        %2129 = vxpose.xlu0.c.b16.cont [2/8] %v2110, 128
        %2130 = vxpose.xlu0.c.b16.cont [3/8] 0, 128
        %2131 = vxpose.xlu0.c.b16.cont [4/8] 0, 128
        %2132 = vxpose.xlu0.c.b16.cont [5/8] 0, 128
        %2133 = vxpose.xlu0.c.b16.cont [6/8] 0, 128
        %2134 = vxpose.xlu0.c.b16.cont [7/8] 0, 128
        %2135 = vxpose.xlu0.c.b16.end [8/8] 0, 128
        %v2136 = vpop.trf.xlu0
        %v2137 = vpop.trf.xlu0
        %v2138 = vpop.trf.xlu0
        %v2139 = vpop.trf.xlu0
        %v2140 = vpop.trf.xlu0
        %v2141 = vpop.trf.xlu0
        %v2142 = vpop.trf.xlu0
        %v2143 = vpop.trf.xlu0
        %v2148 = vunpack.c.l.b16 %v2105
        %v2149 = vunpack.c.l.b16 %v2106
        %v2150 = vunpack.c.l.b16 %v2107
        %v2151 = vunpack.c.l.b16 %v2108
        %v2152 = vpack.c.b16 %v2149, %v2148
        %v2153 = vpack.c.b16 %v2151, %v2150
        %v2157 = vsel %vm790, %v2136, 0
        %v2160 = vsel %vm790, %v2137, 0
        %v2163 = vsel %vm790, %v2138, 0
        %v2166 = vsel %vm790, %v2139, 0
        %v2169 = vsel %vm790, %v2140, 0
        %v2172 = vsel %vm790, %v2141, 0
        %v2175 = vsel %vm790, %v2142, 0
        %v2178 = vsel %vm790, %v2143, 0
        %2180 = vmatprep.subr.bf16.mxu0 0
        %2181 = vmatpush1.bf16.msra.mxu0 0
        %2182 = vmatprep.subr.bf16.mxu0 0
        %2183 = vmatpush1.bf16.msra.mxu0 0
        %2184 = vmatprep.subr.bf16.mxu0 0
        %2185 = vmatpush1.bf16.msra.mxu0 0
        %2186 = vmatprep.subr.bf16.mxu0 0
        %2187 = vmatpush1.bf16.msra.mxu0 0
        %2188 = vmatprep.subr.bf16.mxu0 0
        %2189 = vmatpush1.bf16.msra.mxu0 0
        %2190 = vmatprep.subr.bf16.mxu0 0
        %2191 = vmatpush1.bf16.msra.mxu0 0
        %2192 = vmatprep.subr.bf16.mxu0 0
        %2193 = vmatpush1.bf16.msra.mxu0 %v2153
        %2194 = vmatprep.subr.bf16.mxu0 0
        %2195 = vmatpush1.bf16.msra.mxu0 %v2152
        %2196 = vmatprep.subr.bf16.mxu0 0
        %2197 = vmatpush2.bf16.msra.mxu0 0
        %2198 = vmatprep.subr.bf16.mxu0 0
        %2199 = vmatpush2.bf16.msra.mxu0 0
        %2200 = vmatprep.subr.bf16.mxu0 0
        %2201 = vmatpush2.bf16.msra.mxu0 0
        %2202 = vmatprep.subr.bf16.mxu0 0
        %2203 = vmatpush2.bf16.msra.mxu0 0
        %2204 = vmatprep.subr.bf16.mxu0 0
        %2205 = vmatpush2.bf16.msra.mxu0 0
        %2206 = vmatprep.subr.bf16.mxu0 0
        %2207 = vmatpush2.bf16.msra.mxu0 0
        %2208 = vmatprep.subr.bf16.mxu0 0
        %2209 = vmatpush2.bf16.msra.mxu0 0
        %2210 = vmatprep.subr.bf16.mxu0 0
        %2211 = vmatpush2.bf16.msra.mxu0 0
        %2212 = vmatprep.mubr.bf16.mxu0 0
        %2213 = vmatmul.mubr.bf16.gmra.mxu0 %v2157
        %v2214 = vpop.f32.mrf.mxu0
        %v2215 = vadd.f32 %v2112, %v2214
        %v2216 = vpop.f32.mrf.mxu0
        %v2217 = vpop.f32.mrf.mxu0
        %v2218 = vadd.f32 %v2113, %v2217
        %v2219 = vpop.f32.mrf.mxu0
        %2220 = vmatprep.mubr.bf16.mxu0 0
        %2221 = vmatmul.mubr.bf16.gmra.mxu0 %v2160
        %v2222 = vpop.f32.mrf.mxu0
        %v2223 = vadd.f32 %v2114, %v2222
        %v2224 = vpop.f32.mrf.mxu0
        %v2225 = vpop.f32.mrf.mxu0
        %v2226 = vadd.f32 %v2115, %v2225
        %v2227 = vpop.f32.mrf.mxu0
        %2228 = vmatprep.mubr.bf16.mxu0 0
        %2229 = vmatmul.mubr.bf16.gmra.mxu0 %v2163
        %v2230 = vpop.f32.mrf.mxu0
        %v2231 = vadd.f32 %v2116, %v2230
        %v2232 = vpop.f32.mrf.mxu0
        %v2233 = vpop.f32.mrf.mxu0
        %v2234 = vadd.f32 %v2117, %v2233
        %v2235 = vpop.f32.mrf.mxu0
        %2236 = vmatprep.mubr.bf16.mxu0 0
        %2237 = vmatmul.mubr.bf16.gmra.mxu0 %v2166
        %v2238 = vpop.f32.mrf.mxu0
        %v2239 = vadd.f32 %v2118, %v2238
        %v2240 = vpop.f32.mrf.mxu0
        %v2241 = vpop.f32.mrf.mxu0
        %v2242 = vadd.f32 %v2119, %v2241
        %v2243 = vpop.f32.mrf.mxu0
        %2244 = vmatprep.mubr.bf16.mxu0 0
        %2245 = vmatmul.mubr.bf16.gmra.mxu0 %v2169
        %v2246 = vpop.f32.mrf.mxu0
        %v2247 = vadd.f32 %v2120, %v2246
        %v2248 = vpop.f32.mrf.mxu0
        %v2249 = vpop.f32.mrf.mxu0
        %v2250 = vadd.f32 %v2121, %v2249
        %v2251 = vpop.f32.mrf.mxu0
        %2252 = vmatprep.mubr.bf16.mxu0 0
        %2253 = vmatmul.mubr.bf16.gmra.mxu0 %v2172
        %v2254 = vpop.f32.mrf.mxu0
        %v2255 = vadd.f32 %v2122, %v2254
        %v2256 = vpop.f32.mrf.mxu0
        %v2257 = vpop.f32.mrf.mxu0
        %v2258 = vadd.f32 %v2123, %v2257
        %v2259 = vpop.f32.mrf.mxu0
        %2260 = vmatprep.mubr.bf16.mxu0 0
        %2261 = vmatmul.mubr.bf16.gmra.mxu0 %v2175
        %v2262 = vpop.f32.mrf.mxu0
        %v2263 = vadd.f32 %v2124, %v2262
        %v2264 = vpop.f32.mrf.mxu0
        %v2265 = vpop.f32.mrf.mxu0
        %v2266 = vadd.f32 %v2125, %v2265
        %v2267 = vpop.f32.mrf.mxu0
        %2268 = vmatprep.mubr.bf16.mxu0 0
        %2269 = vmatmul.mubr.bf16.gmra.mxu0 %v2178
        %v2270 = vpop.f32.mrf.mxu0
        %v2271 = vadd.f32 %v2126, %v2270
        %v2272 = vpop.f32.mrf.mxu0
        %v2273 = vpop.f32.mrf.mxu0
        %v2274 = vadd.f32 %v2127, %v2273
        %v2275 = vpop.f32.mrf.mxu0
        %2276 = vdwg.mxu0
        %2277 = vmax.xlane.f32.xlu0 %v2215
        %v2278 = vpop.xlane.xlu0 %2277
        %2279 = vmax.xlane.f32.xlu0 %v2218
        %v2280 = vpop.xlane.xlu0 %2279
        %2281 = vmax.xlane.f32.xlu0 %v2223
        %v2282 = vpop.xlane.xlu0 %2281
        %2283 = vmax.xlane.f32.xlu0 %v2226
        %v2284 = vpop.xlane.xlu0 %2283
        %2285 = vmax.xlane.f32.xlu0 %v2231
        %v2286 = vpop.xlane.xlu0 %2285
        %2287 = vmax.xlane.f32.xlu0 %v2234
        %v2288 = vpop.xlane.xlu0 %2287
        %2289 = vmax.xlane.f32.xlu0 %v2239
        %v2290 = vpop.xlane.xlu0 %2289
        %2291 = vmax.xlane.f32.xlu0 %v2242
        %v2292 = vpop.xlane.xlu0 %2291
        %2293 = vmax.xlane.f32.xlu0 %v2247
        %v2294 = vpop.xlane.xlu0 %2293
        %2295 = vmax.xlane.f32.xlu0 %v2250
        %v2296 = vpop.xlane.xlu0 %2295
        %2297 = vmax.xlane.f32.xlu0 %v2255
        %v2298 = vpop.xlane.xlu0 %2297
        %2299 = vmax.xlane.f32.xlu0 %v2258
        %v2300 = vpop.xlane.xlu0 %2299
        %2301 = vmax.xlane.f32.xlu0 %v2263
        %v2302 = vpop.xlane.xlu0 %2301
        %2303 = vmax.xlane.f32.xlu0 %v2266
        %v2304 = vpop.xlane.xlu0 %2303
        %2305 = vmax.xlane.f32.xlu0 %v2271
        %v2306 = vpop.xlane.xlu0 %2305
        %2307 = vmax.xlane.f32.xlu0 %v2274
        %v2308 = vpop.xlane.xlu0 %2307
        %v2309 = vsub.f32 %v2215, %v2278
        %v2310 = vsub.f32 %v2218, %v2280
        %v2311 = vsub.f32 %v2223, %v2282
        %v2312 = vsub.f32 %v2226, %v2284
        %v2313 = vsub.f32 %v2231, %v2286
        %v2314 = vsub.f32 %v2234, %v2288
        %v2315 = vsub.f32 %v2239, %v2290
        %v2316 = vsub.f32 %v2242, %v2292
        %v2317 = vsub.f32 %v2247, %v2294
        %v2318 = vsub.f32 %v2250, %v2296
        %v2319 = vsub.f32 %v2255, %v2298
        %v2320 = vsub.f32 %v2258, %v2300
        %v2321 = vsub.f32 %v2263, %v2302
        %v2322 = vsub.f32 %v2266, %v2304
        %v2323 = vsub.f32 %v2271, %v2306
        %v2324 = vsub.f32 %v2274, %v2308
        %v2325 = vmul.f32 %v2309, 1.442695
        %v2326 = vpow.pop %v2325
        %v2327 = vmul.f32 %v2310, 1.442695
        %v2328 = vpow.pop %v2327
        %v2329 = vmul.f32 %v2311, 1.442695
        %v2330 = vpow.pop %v2329
        %v2331 = vmul.f32 %v2312, 1.442695
        %v2332 = vpow.pop %v2331
        %v2333 = vmul.f32 %v2313, 1.442695
        %v2334 = vpow.pop %v2333
        %v2335 = vmul.f32 %v2314, 1.442695
        %v2336 = vpow.pop %v2335
        %v2337 = vmul.f32 %v2315, 1.442695
        %v2338 = vpow.pop %v2337
        %v2339 = vmul.f32 %v2316, 1.442695
        %v2340 = vpow.pop %v2339
        %v2341 = vmul.f32 %v2317, 1.442695
        %v2342 = vpow.pop %v2341
        %v2343 = vmul.f32 %v2318, 1.442695
        %v2344 = vpow.pop %v2343
        %v2345 = vmul.f32 %v2319, 1.442695
        %v2346 = vpow.pop %v2345
        %v2347 = vmul.f32 %v2320, 1.442695
        %v2348 = vpow.pop %v2347
        %v2349 = vmul.f32 %v2321, 1.442695
        %v2350 = vpow.pop %v2349
        %v2351 = vmul.f32 %v2322, 1.442695
        %v2352 = vpow.pop %v2351
        %v2353 = vmul.f32 %v2323, 1.442695
        %v2354 = vpow.pop %v2353
        %v2355 = vmul.f32 %v2324, 1.442695
        %v2356 = vpow.pop %v2355
        %2357 = vadd.xlane.f32.xlu0 %v2326
        %v2358 = vpop.xlane.xlu0 %2357
        %2359 = vadd.xlane.f32.xlu0 %v2328
        %v2360 = vpop.xlane.xlu0 %2359
        %2361 = vadd.xlane.f32.xlu0 %v2330
        %v2362 = vpop.xlane.xlu0 %2361
        %2363 = vadd.xlane.f32.xlu0 %v2332
        %v2364 = vpop.xlane.xlu0 %2363
        %2365 = vadd.xlane.f32.xlu0 %v2334
        %v2366 = vpop.xlane.xlu0 %2365
        %2367 = vadd.xlane.f32.xlu0 %v2336
        %v2368 = vpop.xlane.xlu0 %2367
        %2369 = vadd.xlane.f32.xlu0 %v2338
        %v2370 = vpop.xlane.xlu0 %2369
        %2371 = vadd.xlane.f32.xlu0 %v2340
        %v2372 = vpop.xlane.xlu0 %2371
        %2373 = vadd.xlane.f32.xlu0 %v2342
        %v2374 = vpop.xlane.xlu0 %2373
        %2375 = vadd.xlane.f32.xlu0 %v2344
        %v2376 = vpop.xlane.xlu0 %2375
        %2377 = vadd.xlane.f32.xlu0 %v2346
        %v2378 = vpop.xlane.xlu0 %2377
        %2379 = vadd.xlane.f32.xlu0 %v2348
        %v2380 = vpop.xlane.xlu0 %2379
        %2381 = vadd.xlane.f32.xlu0 %v2350
        %v2382 = vpop.xlane.xlu0 %2381
        %2383 = vadd.xlane.f32.xlu0 %v2352
        %v2384 = vpop.xlane.xlu0 %2383
        %2385 = vadd.xlane.f32.xlu0 %v2354
        %v2386 = vpop.xlane.xlu0 %2385
        %2387 = vadd.xlane.f32.xlu0 %v2356
        %v2388 = vpop.xlane.xlu0 %2387
        %v2389 = vrcp.pop %v2358
        %v2390 = vrcp.pop %v2360
        %v2391 = vrcp.pop %v2362
        %v2392 = vrcp.pop %v2364
        %v2393 = vrcp.pop %v2366
        %v2394 = vrcp.pop %v2368
        %v2395 = vrcp.pop %v2370
        %v2396 = vrcp.pop %v2372
        %v2397 = vrcp.pop %v2374
        %v2398 = vrcp.pop %v2376
        %v2399 = vrcp.pop %v2378
        %v2400 = vrcp.pop %v2380
        %v2401 = vrcp.pop %v2382
        %v2402 = vrcp.pop %v2384
        %v2403 = vrcp.pop %v2386
        %v2404 = vrcp.pop %v2388
        %v2405 = vmul.f32 %v2326, %v2389
        %v2406 = vmul.f32 %v2328, %v2390
        %v2407 = vmul.f32 %v2330, %v2391
        %v2408 = vmul.f32 %v2332, %v2392
        %v2409 = vmul.f32 %v2334, %v2393
        %v2410 = vmul.f32 %v2336, %v2394
        %v2411 = vmul.f32 %v2338, %v2395
        %v2412 = vmul.f32 %v2340, %v2396
        %v2413 = vmul.f32 %v2342, %v2397
        %v2414 = vmul.f32 %v2344, %v2398
        %v2415 = vmul.f32 %v2346, %v2399
        %v2416 = vmul.f32 %v2348, %v2400
        %v2417 = vmul.f32 %v2350, %v2401
        %v2418 = vmul.f32 %v2352, %v2402
        %v2419 = vmul.f32 %v2354, %v2403
        %v2420 = vmul.f32 %v2356, %v2404
        %v2421 = vld [vmem:[%s571] sm:$0xf]
        %v2422 = vld [vmem:[%s571 + $0x4] sm:$0xf]
        %v2423 = vld [vmem:[%s571 + $0x8] sm:$0xf]
        %v2424 = vld [vmem:[%s571 + $0xc] sm:$0xf]
        %v2425 = vld [vmem:[%s571 + $0x10] sm:$0xf]
        %v2426 = vld [vmem:[%s571 + $0x14] sm:$0xf]
        %v2427 = vld [vmem:[%s571 + $0x18] sm:$0xf]
        %v2428 = vld [vmem:[%s571 + $0x1c] sm:$0xf]
        %v2429 = vld [vmem:[%s571 + $0x20] sm:$0xf]
        %v2430 = vld [vmem:[%s571 + $0x24] sm:$0xf]
        %v2431 = vld [vmem:[%s571 + $0x28] sm:$0xf]
        %v2432 = vld [vmem:[%s571 + $0x2c] sm:$0xf]
        %v2433 = vld [vmem:[%s571 + $0x30] sm:$0xf]
        %v2434 = vld [vmem:[%s571 + $0x34] sm:$0xf]
        %v2435 = vld [vmem:[%s571 + $0x38] sm:$0xf]
        %v2436 = vld [vmem:[%s571 + $0x3c] sm:$0xf]
        %v2437 = vunpack.c.l.bf16 %v2421
        %v2438 = vunpack.c.l.bf16 %v2422
        %v2439 = vunpack.c.l.bf16 %v2423
        %v2440 = vunpack.c.l.bf16 %v2424
        %v2441 = vunpack.c.l.bf16 %v2425
        %v2442 = vunpack.c.l.bf16 %v2426
        %v2443 = vunpack.c.l.bf16 %v2427
        %v2444 = vunpack.c.l.bf16 %v2428
        %v2445 = vunpack.c.l.bf16 %v2429
        %v2446 = vunpack.c.l.bf16 %v2430
        %v2447 = vunpack.c.l.bf16 %v2431
        %v2448 = vunpack.c.l.bf16 %v2432
        %v2449 = vunpack.c.l.bf16 %v2433
        %v2450 = vunpack.c.l.bf16 %v2434
        %v2451 = vunpack.c.l.bf16 %v2435
        %v2452 = vunpack.c.l.bf16 %v2436
        %v2453 = vmul.f32 %v2405, %v2437
        %v2454 = vmul.f32 %v2406, %v2438
        %v2455 = vmul.f32 %v2407, %v2439
        %v2456 = vmul.f32 %v2408, %v2440
        %v2457 = vmul.f32 %v2409, %v2441
        %v2458 = vmul.f32 %v2410, %v2442
        %v2459 = vmul.f32 %v2411, %v2443
        %v2460 = vmul.f32 %v2412, %v2444
        %v2461 = vmul.f32 %v2413, %v2445
        %v2462 = vmul.f32 %v2414, %v2446
        %v2463 = vmul.f32 %v2415, %v2447
        %v2464 = vmul.f32 %v2416, %v2448
        %v2465 = vmul.f32 %v2417, %v2449
        %v2466 = vmul.f32 %v2418, %v2450
        %v2467 = vmul.f32 %v2419, %v2451
        %v2468 = vmul.f32 %v2420, %v2452
        %2469 = vadd.xlane.f32.xlu0 %v2453
        %v2470 = vpop.xlane.xlu0 %2469
        %2471 = vadd.xlane.f32.xlu0 %v2454
        %v2472 = vpop.xlane.xlu0 %2471
        %2473 = vadd.xlane.f32.xlu0 %v2455
        %v2474 = vpop.xlane.xlu0 %2473
        %2475 = vadd.xlane.f32.xlu0 %v2456
        %v2476 = vpop.xlane.xlu0 %2475
        %2477 = vadd.xlane.f32.xlu0 %v2457
        %v2478 = vpop.xlane.xlu0 %2477
        %2479 = vadd.xlane.f32.xlu0 %v2458
        %v2480 = vpop.xlane.xlu0 %2479
        %2481 = vadd.xlane.f32.xlu0 %v2459
        %v2482 = vpop.xlane.xlu0 %2481
        %2483 = vadd.xlane.f32.xlu0 %v2460
        %v2484 = vpop.xlane.xlu0 %2483
        %2485 = vadd.xlane.f32.xlu0 %v2461
        %v2486 = vpop.xlane.xlu0 %2485
        %2487 = vadd.xlane.f32.xlu0 %v2462
        %v2488 = vpop.xlane.xlu0 %2487
        %2489 = vadd.xlane.f32.xlu0 %v2463
        %v2490 = vpop.xlane.xlu0 %2489
        %2491 = vadd.xlane.f32.xlu0 %v2464
        %v2492 = vpop.xlane.xlu0 %2491
        %2493 = vadd.xlane.f32.xlu0 %v2465
        %v2494 = vpop.xlane.xlu0 %2493
        %2495 = vadd.xlane.f32.xlu0 %v2466
        %v2496 = vpop.xlane.xlu0 %2495
        %2497 = vadd.xlane.f32.xlu0 %v2467
        %v2498 = vpop.xlane.xlu0 %2497
        %2499 = vadd.xlane.f32.xlu0 %v2468
        %v2500 = vpop.xlane.xlu0 %2499
        %v2501 = vld [vmem:[%s1388] sm:$0xf]
        %v2502 = vld [vmem:[%s1388 + $0x4] sm:$0xf]
        %v2503 = vld [vmem:[%s1388 + $0x8] sm:$0xf]
        %v2504 = vld [vmem:[%s1388 + $0xc] sm:$0xf]
        %v2505 = vld [vmem:[%s1388 + $0x10] sm:$0xf]
        %v2506 = vld [vmem:[%s1388 + $0x14] sm:$0xf]
        %v2507 = vld [vmem:[%s1388 + $0x18] sm:$0xf]
        %v2508 = vld [vmem:[%s1388 + $0x1c] sm:$0xf]
        %v2509 = vld [vmem:[%s1388 + $0x20] sm:$0xf]
        %v2510 = vld [vmem:[%s1388 + $0x24] sm:$0xf]
        %v2511 = vld [vmem:[%s1388 + $0x28] sm:$0xf]
        %v2512 = vld [vmem:[%s1388 + $0x2c] sm:$0xf]
        %v2513 = vld [vmem:[%s1388 + $0x30] sm:$0xf]
        %v2514 = vld [vmem:[%s1388 + $0x34] sm:$0xf]
        %v2515 = vld [vmem:[%s1388 + $0x38] sm:$0xf]
        %v2516 = vld [vmem:[%s1388 + $0x3c] sm:$0xf]
        %v2517 = vunpack.c.l.bf16 %v2501
        %v2518 = vunpack.c.l.bf16 %v2502
        %v2519 = vunpack.c.l.bf16 %v2503
        %v2520 = vunpack.c.l.bf16 %v2504
        %v2521 = vunpack.c.l.bf16 %v2505
        %v2522 = vunpack.c.l.bf16 %v2506
        %v2523 = vunpack.c.l.bf16 %v2507
        %v2524 = vunpack.c.l.bf16 %v2508
        %v2525 = vunpack.c.l.bf16 %v2509
        %v2526 = vunpack.c.l.bf16 %v2510
        %v2527 = vunpack.c.l.bf16 %v2511
        %v2528 = vunpack.c.l.bf16 %v2512
        %v2529 = vunpack.c.l.bf16 %v2513
        %v2530 = vunpack.c.l.bf16 %v2514
        %v2531 = vunpack.c.l.bf16 %v2515
        %v2532 = vunpack.c.l.bf16 %v2516
        %v2533 = vmul.f32 %v2405, %v2517
        %v2534 = vmul.f32 %v2406, %v2518
        %v2535 = vmul.f32 %v2407, %v2519
        %v2536 = vmul.f32 %v2408, %v2520
        %v2537 = vmul.f32 %v2409, %v2521
        %v2538 = vmul.f32 %v2410, %v2522
        %v2539 = vmul.f32 %v2411, %v2523
        %v2540 = vmul.f32 %v2412, %v2524
        %v2541 = vmul.f32 %v2413, %v2525
        %v2542 = vmul.f32 %v2414, %v2526
        %v2543 = vmul.f32 %v2415, %v2527
        %v2544 = vmul.f32 %v2416, %v2528
        %v2545 = vmul.f32 %v2417, %v2529
        %v2546 = vmul.f32 %v2418, %v2530
        %v2547 = vmul.f32 %v2419, %v2531
        %v2548 = vmul.f32 %v2420, %v2532
        %2549 = vadd.xlane.f32.xlu0 %v2533
        %v2550 = vpop.xlane.xlu0 %2549
        %2551 = vadd.xlane.f32.xlu0 %v2534
        %v2552 = vpop.xlane.xlu0 %2551
        %2553 = vadd.xlane.f32.xlu0 %v2535
        %v2554 = vpop.xlane.xlu0 %2553
        %2555 = vadd.xlane.f32.xlu0 %v2536
        %v2556 = vpop.xlane.xlu0 %2555
        %2557 = vadd.xlane.f32.xlu0 %v2537
        %v2558 = vpop.xlane.xlu0 %2557
        %2559 = vadd.xlane.f32.xlu0 %v2538
        %v2560 = vpop.xlane.xlu0 %2559
        %2561 = vadd.xlane.f32.xlu0 %v2539
        %v2562 = vpop.xlane.xlu0 %2561
        %2563 = vadd.xlane.f32.xlu0 %v2540
        %v2564 = vpop.xlane.xlu0 %2563
        %2565 = vadd.xlane.f32.xlu0 %v2541
        %v2566 = vpop.xlane.xlu0 %2565
        %2567 = vadd.xlane.f32.xlu0 %v2542
        %v2568 = vpop.xlane.xlu0 %2567
        %2569 = vadd.xlane.f32.xlu0 %v2543
        %v2570 = vpop.xlane.xlu0 %2569
        %2571 = vadd.xlane.f32.xlu0 %v2544
        %v2572 = vpop.xlane.xlu0 %2571
        %2573 = vadd.xlane.f32.xlu0 %v2545
        %v2574 = vpop.xlane.xlu0 %2573
        %2575 = vadd.xlane.f32.xlu0 %v2546
        %v2576 = vpop.xlane.xlu0 %2575
        %2577 = vadd.xlane.f32.xlu0 %v2547
        %v2578 = vpop.xlane.xlu0 %2577
        %2579 = vadd.xlane.f32.xlu0 %v2548
        %v2580 = vpop.xlane.xlu0 %2579
        %v2581 = vld [vmem:[%s1469] sm:$0xf]
        %v2582 = vld [vmem:[%s1469 + $0x4] sm:$0xf]
        %v2583 = vld [vmem:[%s1469 + $0x8] sm:$0xf]
        %v2584 = vld [vmem:[%s1469 + $0xc] sm:$0xf]
        %v2585 = vld [vmem:[%s1469 + $0x10] sm:$0xf]
        %v2586 = vld [vmem:[%s1469 + $0x14] sm:$0xf]
        %v2587 = vld [vmem:[%s1469 + $0x18] sm:$0xf]
        %v2588 = vld [vmem:[%s1469 + $0x1c] sm:$0xf]
        %v2589 = vld [vmem:[%s1469 + $0x20] sm:$0xf]
        %v2590 = vld [vmem:[%s1469 + $0x24] sm:$0xf]
        %v2591 = vld [vmem:[%s1469 + $0x28] sm:$0xf]
        %v2592 = vld [vmem:[%s1469 + $0x2c] sm:$0xf]
        %v2593 = vld [vmem:[%s1469 + $0x30] sm:$0xf]
        %v2594 = vld [vmem:[%s1469 + $0x34] sm:$0xf]
        %v2595 = vld [vmem:[%s1469 + $0x38] sm:$0xf]
        %v2596 = vld [vmem:[%s1469 + $0x3c] sm:$0xf]
        %v2597 = vunpack.c.l.bf16 %v2581
        %v2598 = vunpack.c.l.bf16 %v2582
        %v2599 = vunpack.c.l.bf16 %v2583
        %v2600 = vunpack.c.l.bf16 %v2584
        %v2601 = vunpack.c.l.bf16 %v2585
        %v2602 = vunpack.c.l.bf16 %v2586
        %v2603 = vunpack.c.l.bf16 %v2587
        %v2604 = vunpack.c.l.bf16 %v2588
        %v2605 = vunpack.c.l.bf16 %v2589
        %v2606 = vunpack.c.l.bf16 %v2590
        %v2607 = vunpack.c.l.bf16 %v2591
        %v2608 = vunpack.c.l.bf16 %v2592
        %v2609 = vunpack.c.l.bf16 %v2593
        %v2610 = vunpack.c.l.bf16 %v2594
        %v2611 = vunpack.c.l.bf16 %v2595
        %v2612 = vunpack.c.l.bf16 %v2596
        %v2613 = vmul.f32 %v2405, %v2597
        %v2614 = vmul.f32 %v2406, %v2598
        %v2615 = vmul.f32 %v2407, %v2599
        %v2616 = vmul.f32 %v2408, %v2600
        %v2617 = vmul.f32 %v2409, %v2601
        %v2618 = vmul.f32 %v2410, %v2602
        %v2619 = vmul.f32 %v2411, %v2603
        %v2620 = vmul.f32 %v2412, %v2604
        %v2621 = vmul.f32 %v2413, %v2605
        %v2622 = vmul.f32 %v2414, %v2606
        %v2623 = vmul.f32 %v2415, %v2607
        %v2624 = vmul.f32 %v2416, %v2608
        %v2625 = vmul.f32 %v2417, %v2609
        %v2626 = vmul.f32 %v2418, %v2610
        %v2627 = vmul.f32 %v2419, %v2611
        %v2628 = vmul.f32 %v2420, %v2612
        %2629 = vadd.xlane.f32.xlu0 %v2613
        %v2630 = vpop.xlane.xlu0 %2629
        %2631 = vadd.xlane.f32.xlu0 %v2614
        %v2632 = vpop.xlane.xlu0 %2631
        %2633 = vadd.xlane.f32.xlu0 %v2615
        %v2634 = vpop.xlane.xlu0 %2633
        %2635 = vadd.xlane.f32.xlu0 %v2616
        %v2636 = vpop.xlane.xlu0 %2635
        %2637 = vadd.xlane.f32.xlu0 %v2617
        %v2638 = vpop.xlane.xlu0 %2637
        %2639 = vadd.xlane.f32.xlu0 %v2618
        %v2640 = vpop.xlane.xlu0 %2639
        %2641 = vadd.xlane.f32.xlu0 %v2619
        %v2642 = vpop.xlane.xlu0 %2641
        %2643 = vadd.xlane.f32.xlu0 %v2620
        %v2644 = vpop.xlane.xlu0 %2643
        %2645 = vadd.xlane.f32.xlu0 %v2621
        %v2646 = vpop.xlane.xlu0 %2645
        %2647 = vadd.xlane.f32.xlu0 %v2622
        %v2648 = vpop.xlane.xlu0 %2647
        %2649 = vadd.xlane.f32.xlu0 %v2623
        %v2650 = vpop.xlane.xlu0 %2649
        %2651 = vadd.xlane.f32.xlu0 %v2624
        %v2652 = vpop.xlane.xlu0 %2651
        %2653 = vadd.xlane.f32.xlu0 %v2625
        %v2654 = vpop.xlane.xlu0 %2653
        %2655 = vadd.xlane.f32.xlu0 %v2626
        %v2656 = vpop.xlane.xlu0 %2655
        %2657 = vadd.xlane.f32.xlu0 %v2627
        %v2658 = vpop.xlane.xlu0 %2657
        %2659 = vadd.xlane.f32.xlu0 %v2628
        %v2660 = vpop.xlane.xlu0 %2659
        %v2661 = vld [vmem:[%s1550] sm:$0xf]
        %v2662 = vld [vmem:[%s1550 + $0x4] sm:$0xf]
        %v2663 = vld [vmem:[%s1550 + $0x8] sm:$0xf]
        %v2664 = vld [vmem:[%s1550 + $0xc] sm:$0xf]
        %v2665 = vld [vmem:[%s1550 + $0x10] sm:$0xf]
        %v2666 = vld [vmem:[%s1550 + $0x14] sm:$0xf]
        %v2667 = vld [vmem:[%s1550 + $0x18] sm:$0xf]
        %v2668 = vld [vmem:[%s1550 + $0x1c] sm:$0xf]
        %v2669 = vld [vmem:[%s1550 + $0x20] sm:$0xf]
        %v2670 = vld [vmem:[%s1550 + $0x24] sm:$0xf]
        %v2671 = vld [vmem:[%s1550 + $0x28] sm:$0xf]
        %v2672 = vld [vmem:[%s1550 + $0x2c] sm:$0xf]
        %v2673 = vld [vmem:[%s1550 + $0x30] sm:$0xf]
        %v2674 = vld [vmem:[%s1550 + $0x34] sm:$0xf]
        %v2675 = vld [vmem:[%s1550 + $0x38] sm:$0xf]
        %v2676 = vld [vmem:[%s1550 + $0x3c] sm:$0xf]
        %v2677 = vunpack.c.l.bf16 %v2661
        %v2678 = vunpack.c.l.bf16 %v2662
        %v2679 = vunpack.c.l.bf16 %v2663
        %v2680 = vunpack.c.l.bf16 %v2664
        %v2681 = vunpack.c.l.bf16 %v2665
        %v2682 = vunpack.c.l.bf16 %v2666
        %v2683 = vunpack.c.l.bf16 %v2667
        %v2684 = vunpack.c.l.bf16 %v2668
        %v2685 = vunpack.c.l.bf16 %v2669
        %v2686 = vunpack.c.l.bf16 %v2670
        %v2687 = vunpack.c.l.bf16 %v2671
        %v2688 = vunpack.c.l.bf16 %v2672
        %v2689 = vunpack.c.l.bf16 %v2673
        %v2690 = vunpack.c.l.bf16 %v2674
        %v2691 = vunpack.c.l.bf16 %v2675
        %v2692 = vunpack.c.l.bf16 %v2676
        %v2693 = vmul.f32 %v2405, %v2677
        %v2694 = vmul.f32 %v2406, %v2678
        %v2695 = vmul.f32 %v2407, %v2679
        %v2696 = vmul.f32 %v2408, %v2680
        %v2697 = vmul.f32 %v2409, %v2681
        %v2698 = vmul.f32 %v2410, %v2682
        %v2699 = vmul.f32 %v2411, %v2683
        %v2700 = vmul.f32 %v2412, %v2684
        %v2701 = vmul.f32 %v2413, %v2685
        %v2702 = vmul.f32 %v2414, %v2686
        %v2703 = vmul.f32 %v2415, %v2687
        %v2704 = vmul.f32 %v2416, %v2688
        %v2705 = vmul.f32 %v2417, %v2689
        %v2706 = vmul.f32 %v2418, %v2690
        %v2707 = vmul.f32 %v2419, %v2691
        %v2708 = vmul.f32 %v2420, %v2692
        %2709 = vadd.xlane.f32.xlu0 %v2693
        %v2710 = vpop.xlane.xlu0 %2709
        %2711 = vadd.xlane.f32.xlu0 %v2694
        %v2712 = vpop.xlane.xlu0 %2711
        %2713 = vadd.xlane.f32.xlu0 %v2695
        %v2714 = vpop.xlane.xlu0 %2713
        %2715 = vadd.xlane.f32.xlu0 %v2696
        %v2716 = vpop.xlane.xlu0 %2715
        %2717 = vadd.xlane.f32.xlu0 %v2697
        %v2718 = vpop.xlane.xlu0 %2717
        %2719 = vadd.xlane.f32.xlu0 %v2698
        %v2720 = vpop.xlane.xlu0 %2719
        %2721 = vadd.xlane.f32.xlu0 %v2699
        %v2722 = vpop.xlane.xlu0 %2721
        %2723 = vadd.xlane.f32.xlu0 %v2700
        %v2724 = vpop.xlane.xlu0 %2723
        %2725 = vadd.xlane.f32.xlu0 %v2701
        %v2726 = vpop.xlane.xlu0 %2725
        %2727 = vadd.xlane.f32.xlu0 %v2702
        %v2728 = vpop.xlane.xlu0 %2727
        %2729 = vadd.xlane.f32.xlu0 %v2703
        %v2730 = vpop.xlane.xlu0 %2729
        %2731 = vadd.xlane.f32.xlu0 %v2704
        %v2732 = vpop.xlane.xlu0 %2731
        %2733 = vadd.xlane.f32.xlu0 %v2705
        %v2734 = vpop.xlane.xlu0 %2733
        %2735 = vadd.xlane.f32.xlu0 %v2706
        %v2736 = vpop.xlane.xlu0 %2735
        %2737 = vadd.xlane.f32.xlu0 %v2707
        %v2738 = vpop.xlane.xlu0 %2737
        %2739 = vadd.xlane.f32.xlu0 %v2708
        %v2740 = vpop.xlane.xlu0 %2739
        %v2741 = vld [vmem:[%s1631] sm:$0xf]
        %v2742 = vld [vmem:[%s1631 + $0x4] sm:$0xf]
        %v2743 = vld [vmem:[%s1631 + $0x8] sm:$0xf]
        %v2744 = vld [vmem:[%s1631 + $0xc] sm:$0xf]
        %v2745 = vld [vmem:[%s1631 + $0x10] sm:$0xf]
        %v2746 = vld [vmem:[%s1631 + $0x14] sm:$0xf]
        %v2747 = vld [vmem:[%s1631 + $0x18] sm:$0xf]
        %v2748 = vld [vmem:[%s1631 + $0x1c] sm:$0xf]
        %v2749 = vld [vmem:[%s1631 + $0x20] sm:$0xf]
        %v2750 = vld [vmem:[%s1631 + $0x24] sm:$0xf]
        %v2751 = vld [vmem:[%s1631 + $0x28] sm:$0xf]
        %v2752 = vld [vmem:[%s1631 + $0x2c] sm:$0xf]
        %v2753 = vld [vmem:[%s1631 + $0x30] sm:$0xf]
        %v2754 = vld [vmem:[%s1631 + $0x34] sm:$0xf]
        %v2755 = vld [vmem:[%s1631 + $0x38] sm:$0xf]
        %v2756 = vld [vmem:[%s1631 + $0x3c] sm:$0xf]
        %v2757 = vunpack.c.l.bf16 %v2741
        %v2758 = vunpack.c.l.bf16 %v2742
        %v2759 = vunpack.c.l.bf16 %v2743
        %v2760 = vunpack.c.l.bf16 %v2744
        %v2761 = vunpack.c.l.bf16 %v2745
        %v2762 = vunpack.c.l.bf16 %v2746
        %v2763 = vunpack.c.l.bf16 %v2747
        %v2764 = vunpack.c.l.bf16 %v2748
        %v2765 = vunpack.c.l.bf16 %v2749
        %v2766 = vunpack.c.l.bf16 %v2750
        %v2767 = vunpack.c.l.bf16 %v2751
        %v2768 = vunpack.c.l.bf16 %v2752
        %v2769 = vunpack.c.l.bf16 %v2753
        %v2770 = vunpack.c.l.bf16 %v2754
        %v2771 = vunpack.c.l.bf16 %v2755
        %v2772 = vunpack.c.l.bf16 %v2756
        %v2773 = vmul.f32 %v2405, %v2757
        %v2774 = vmul.f32 %v2406, %v2758
        %v2775 = vmul.f32 %v2407, %v2759
        %v2776 = vmul.f32 %v2408, %v2760
        %v2777 = vmul.f32 %v2409, %v2761
        %v2778 = vmul.f32 %v2410, %v2762
        %v2779 = vmul.f32 %v2411, %v2763
        %v2780 = vmul.f32 %v2412, %v2764
        %v2781 = vmul.f32 %v2413, %v2765
        %v2782 = vmul.f32 %v2414, %v2766
        %v2783 = vmul.f32 %v2415, %v2767
        %v2784 = vmul.f32 %v2416, %v2768
        %v2785 = vmul.f32 %v2417, %v2769
        %v2786 = vmul.f32 %v2418, %v2770
        %v2787 = vmul.f32 %v2419, %v2771
        %v2788 = vmul.f32 %v2420, %v2772
        %2789 = vadd.xlane.f32.xlu0 %v2773
        %v2790 = vpop.xlane.xlu0 %2789
        %2791 = vadd.xlane.f32.xlu0 %v2774
        %v2792 = vpop.xlane.xlu0 %2791
        %2793 = vadd.xlane.f32.xlu0 %v2775
        %v2794 = vpop.xlane.xlu0 %2793
        %2795 = vadd.xlane.f32.xlu0 %v2776
        %v2796 = vpop.xlane.xlu0 %2795
        %2797 = vadd.xlane.f32.xlu0 %v2777
        %v2798 = vpop.xlane.xlu0 %2797
        %2799 = vadd.xlane.f32.xlu0 %v2778
        %v2800 = vpop.xlane.xlu0 %2799
        %2801 = vadd.xlane.f32.xlu0 %v2779
        %v2802 = vpop.xlane.xlu0 %2801
        %2803 = vadd.xlane.f32.xlu0 %v2780
        %v2804 = vpop.xlane.xlu0 %2803
        %2805 = vadd.xlane.f32.xlu0 %v2781
        %v2806 = vpop.xlane.xlu0 %2805
        %2807 = vadd.xlane.f32.xlu0 %v2782
        %v2808 = vpop.xlane.xlu0 %2807
        %2809 = vadd.xlane.f32.xlu0 %v2783
        %v2810 = vpop.xlane.xlu0 %2809
        %2811 = vadd.xlane.f32.xlu0 %v2784
        %v2812 = vpop.xlane.xlu0 %2811
        %2813 = vadd.xlane.f32.xlu0 %v2785
        %v2814 = vpop.xlane.xlu0 %2813
        %2815 = vadd.xlane.f32.xlu0 %v2786
        %v2816 = vpop.xlane.xlu0 %2815
        %2817 = vadd.xlane.f32.xlu0 %v2787
        %v2818 = vpop.xlane.xlu0 %2817
        %2819 = vadd.xlane.f32.xlu0 %v2788
        %v2820 = vpop.xlane.xlu0 %2819
        %v2821 = vld [vmem:[%s1712] sm:$0xf]
        %v2822 = vld [vmem:[%s1712 + $0x4] sm:$0xf]
        %v2823 = vld [vmem:[%s1712 + $0x8] sm:$0xf]
        %v2824 = vld [vmem:[%s1712 + $0xc] sm:$0xf]
        %v2825 = vld [vmem:[%s1712 + $0x10] sm:$0xf]
        %v2826 = vld [vmem:[%s1712 + $0x14] sm:$0xf]
        %v2827 = vld [vmem:[%s1712 + $0x18] sm:$0xf]
        %v2828 = vld [vmem:[%s1712 + $0x1c] sm:$0xf]
        %v2829 = vld [vmem:[%s1712 + $0x20] sm:$0xf]
        %v2830 = vld [vmem:[%s1712 + $0x24] sm:$0xf]
        %v2831 = vld [vmem:[%s1712 + $0x28] sm:$0xf]
        %v2832 = vld [vmem:[%s1712 + $0x2c] sm:$0xf]
        %v2833 = vld [vmem:[%s1712 + $0x30] sm:$0xf]
        %v2834 = vld [vmem:[%s1712 + $0x34] sm:$0xf]
        %v2835 = vld [vmem:[%s1712 + $0x38] sm:$0xf]
        %v2836 = vld [vmem:[%s1712 + $0x3c] sm:$0xf]
        %v2837 = vunpack.c.l.bf16 %v2821
        %v2838 = vunpack.c.l.bf16 %v2822
        %v2839 = vunpack.c.l.bf16 %v2823
        %v2840 = vunpack.c.l.bf16 %v2824
        %v2841 = vunpack.c.l.bf16 %v2825
        %v2842 = vunpack.c.l.bf16 %v2826
        %v2843 = vunpack.c.l.bf16 %v2827
        %v2844 = vunpack.c.l.bf16 %v2828
        %v2845 = vunpack.c.l.bf16 %v2829
        %v2846 = vunpack.c.l.bf16 %v2830
        %v2847 = vunpack.c.l.bf16 %v2831
        %v2848 = vunpack.c.l.bf16 %v2832
        %v2849 = vunpack.c.l.bf16 %v2833
        %v2850 = vunpack.c.l.bf16 %v2834
        %v2851 = vunpack.c.l.bf16 %v2835
        %v2852 = vunpack.c.l.bf16 %v2836
        %v2853 = vmul.f32 %v2405, %v2837
        %v2854 = vmul.f32 %v2406, %v2838
        %v2855 = vmul.f32 %v2407, %v2839
        %v2856 = vmul.f32 %v2408, %v2840
        %v2857 = vmul.f32 %v2409, %v2841
        %v2858 = vmul.f32 %v2410, %v2842
        %v2859 = vmul.f32 %v2411, %v2843
        %v2860 = vmul.f32 %v2412, %v2844
        %v2861 = vmul.f32 %v2413, %v2845
        %v2862 = vmul.f32 %v2414, %v2846
        %v2863 = vmul.f32 %v2415, %v2847
        %v2864 = vmul.f32 %v2416, %v2848
        %v2865 = vmul.f32 %v2417, %v2849
        %v2866 = vmul.f32 %v2418, %v2850
        %v2867 = vmul.f32 %v2419, %v2851
        %v2868 = vmul.f32 %v2420, %v2852
        %2869 = vadd.xlane.f32.xlu0 %v2853
        %v2870 = vpop.xlane.xlu0 %2869
        %2871 = vadd.xlane.f32.xlu0 %v2854
        %v2872 = vpop.xlane.xlu0 %2871
        %2873 = vadd.xlane.f32.xlu0 %v2855
        %v2874 = vpop.xlane.xlu0 %2873
        %2875 = vadd.xlane.f32.xlu0 %v2856
        %v2876 = vpop.xlane.xlu0 %2875
        %2877 = vadd.xlane.f32.xlu0 %v2857
        %v2878 = vpop.xlane.xlu0 %2877
        %2879 = vadd.xlane.f32.xlu0 %v2858
        %v2880 = vpop.xlane.xlu0 %2879
        %2881 = vadd.xlane.f32.xlu0 %v2859
        %v2882 = vpop.xlane.xlu0 %2881
        %2883 = vadd.xlane.f32.xlu0 %v2860
        %v2884 = vpop.xlane.xlu0 %2883
        %2885 = vadd.xlane.f32.xlu0 %v2861
        %v2886 = vpop.xlane.xlu0 %2885
        %2887 = vadd.xlane.f32.xlu0 %v2862
        %v2888 = vpop.xlane.xlu0 %2887
        %2889 = vadd.xlane.f32.xlu0 %v2863
        %v2890 = vpop.xlane.xlu0 %2889
        %2891 = vadd.xlane.f32.xlu0 %v2864
        %v2892 = vpop.xlane.xlu0 %2891
        %2893 = vadd.xlane.f32.xlu0 %v2865
        %v2894 = vpop.xlane.xlu0 %2893
        %2895 = vadd.xlane.f32.xlu0 %v2866
        %v2896 = vpop.xlane.xlu0 %2895
        %2897 = vadd.xlane.f32.xlu0 %v2867
        %v2898 = vpop.xlane.xlu0 %2897
        %2899 = vadd.xlane.f32.xlu0 %v2868
        %v2900 = vpop.xlane.xlu0 %2899
        %v2901 = vld [vmem:[%s1793] sm:$0xf]
        %v2902 = vld [vmem:[%s1793 + $0x4] sm:$0xf]
        %v2903 = vld [vmem:[%s1793 + $0x8] sm:$0xf]
        %v2904 = vld [vmem:[%s1793 + $0xc] sm:$0xf]
        %v2905 = vld [vmem:[%s1793 + $0x10] sm:$0xf]
        %v2906 = vld [vmem:[%s1793 + $0x14] sm:$0xf]
        %v2907 = vld [vmem:[%s1793 + $0x18] sm:$0xf]
        %v2908 = vld [vmem:[%s1793 + $0x1c] sm:$0xf]
        %v2909 = vld [vmem:[%s1793 + $0x20] sm:$0xf]
        %v2910 = vld [vmem:[%s1793 + $0x24] sm:$0xf]
        %v2911 = vld [vmem:[%s1793 + $0x28] sm:$0xf]
        %v2912 = vld [vmem:[%s1793 + $0x2c] sm:$0xf]
        %v2913 = vld [vmem:[%s1793 + $0x30] sm:$0xf]
        %v2914 = vld [vmem:[%s1793 + $0x34] sm:$0xf]
        %v2915 = vld [vmem:[%s1793 + $0x38] sm:$0xf]
        %v2916 = vld [vmem:[%s1793 + $0x3c] sm:$0xf]
        %v2917 = vunpack.c.l.bf16 %v2901
        %v2918 = vunpack.c.l.bf16 %v2902
        %v2919 = vunpack.c.l.bf16 %v2903
        %v2920 = vunpack.c.l.bf16 %v2904
        %v2921 = vunpack.c.l.bf16 %v2905
        %v2922 = vunpack.c.l.bf16 %v2906
        %v2923 = vunpack.c.l.bf16 %v2907
        %v2924 = vunpack.c.l.bf16 %v2908
        %v2925 = vunpack.c.l.bf16 %v2909
        %v2926 = vunpack.c.l.bf16 %v2910
        %v2927 = vunpack.c.l.bf16 %v2911
        %v2928 = vunpack.c.l.bf16 %v2912
        %v2929 = vunpack.c.l.bf16 %v2913
        %v2930 = vunpack.c.l.bf16 %v2914
        %v2931 = vunpack.c.l.bf16 %v2915
        %v2932 = vunpack.c.l.bf16 %v2916
        %v2933 = vmul.f32 %v2405, %v2917
        %v2934 = vmul.f32 %v2406, %v2918
        %v2935 = vmul.f32 %v2407, %v2919
        %v2936 = vmul.f32 %v2408, %v2920
        %v2937 = vmul.f32 %v2409, %v2921
        %v2938 = vmul.f32 %v2410, %v2922
        %v2939 = vmul.f32 %v2411, %v2923
        %v2940 = vmul.f32 %v2412, %v2924
        %v2941 = vmul.f32 %v2413, %v2925
        %v2942 = vmul.f32 %v2414, %v2926
        %v2943 = vmul.f32 %v2415, %v2927
        %v2944 = vmul.f32 %v2416, %v2928
        %v2945 = vmul.f32 %v2417, %v2929
        %v2946 = vmul.f32 %v2418, %v2930
        %v2947 = vmul.f32 %v2419, %v2931
        %v2948 = vmul.f32 %v2420, %v2932
        %2949 = vadd.xlane.f32.xlu0 %v2933
        %v2950 = vpop.xlane.xlu0 %2949
        %2951 = vadd.xlane.f32.xlu0 %v2934
        %v2952 = vpop.xlane.xlu0 %2951
        %2953 = vadd.xlane.f32.xlu0 %v2935
        %v2954 = vpop.xlane.xlu0 %2953
        %2955 = vadd.xlane.f32.xlu0 %v2936
        %v2956 = vpop.xlane.xlu0 %2955
        %2957 = vadd.xlane.f32.xlu0 %v2937
        %v2958 = vpop.xlane.xlu0 %2957
        %2959 = vadd.xlane.f32.xlu0 %v2938
        %v2960 = vpop.xlane.xlu0 %2959
        %2961 = vadd.xlane.f32.xlu0 %v2939
        %v2962 = vpop.xlane.xlu0 %2961
        %2963 = vadd.xlane.f32.xlu0 %v2940
        %v2964 = vpop.xlane.xlu0 %2963
        %2965 = vadd.xlane.f32.xlu0 %v2941
        %v2966 = vpop.xlane.xlu0 %2965
        %2967 = vadd.xlane.f32.xlu0 %v2942
        %v2968 = vpop.xlane.xlu0 %2967
        %2969 = vadd.xlane.f32.xlu0 %v2943
        %v2970 = vpop.xlane.xlu0 %2969
        %2971 = vadd.xlane.f32.xlu0 %v2944
        %v2972 = vpop.xlane.xlu0 %2971
        %2973 = vadd.xlane.f32.xlu0 %v2945
        %v2974 = vpop.xlane.xlu0 %2973
        %2975 = vadd.xlane.f32.xlu0 %v2946
        %v2976 = vpop.xlane.xlu0 %2975
        %2977 = vadd.xlane.f32.xlu0 %v2947
        %v2978 = vpop.xlane.xlu0 %2977
        %2979 = vadd.xlane.f32.xlu0 %v2948
        %v2980 = vpop.xlane.xlu0 %2979
        %v2981 = vld [vmem:[%s1874] sm:$0xf]
        %v2982 = vld [vmem:[%s1874 + $0x4] sm:$0xf]
        %v2983 = vld [vmem:[%s1874 + $0x8] sm:$0xf]
        %v2984 = vld [vmem:[%s1874 + $0xc] sm:$0xf]
        %v2985 = vld [vmem:[%s1874 + $0x10] sm:$0xf]
        %v2986 = vld [vmem:[%s1874 + $0x14] sm:$0xf]
        %v2987 = vld [vmem:[%s1874 + $0x18] sm:$0xf]
        %v2988 = vld [vmem:[%s1874 + $0x1c] sm:$0xf]
        %v2989 = vld [vmem:[%s1874 + $0x20] sm:$0xf]
        %v2990 = vld [vmem:[%s1874 + $0x24] sm:$0xf]
        %v2991 = vld [vmem:[%s1874 + $0x28] sm:$0xf]
        %v2992 = vld [vmem:[%s1874 + $0x2c] sm:$0xf]
        %v2993 = vld [vmem:[%s1874 + $0x30] sm:$0xf]
        %v2994 = vld [vmem:[%s1874 + $0x34] sm:$0xf]
        %v2995 = vld [vmem:[%s1874 + $0x38] sm:$0xf]
        %v2996 = vld [vmem:[%s1874 + $0x3c] sm:$0xf]
        %v2997 = vunpack.c.l.bf16 %v2981
        %v2998 = vunpack.c.l.bf16 %v2982
        %v2999 = vunpack.c.l.bf16 %v2983
        %v3000 = vunpack.c.l.bf16 %v2984
        %v3001 = vunpack.c.l.bf16 %v2985
        %v3002 = vunpack.c.l.bf16 %v2986
        %v3003 = vunpack.c.l.bf16 %v2987
        %v3004 = vunpack.c.l.bf16 %v2988
        %v3005 = vunpack.c.l.bf16 %v2989
        %v3006 = vunpack.c.l.bf16 %v2990
        %v3007 = vunpack.c.l.bf16 %v2991
        %v3008 = vunpack.c.l.bf16 %v2992
        %v3009 = vunpack.c.l.bf16 %v2993
        %v3010 = vunpack.c.l.bf16 %v2994
        %v3011 = vunpack.c.l.bf16 %v2995
        %v3012 = vunpack.c.l.bf16 %v2996
        %v3013 = vmul.f32 %v2405, %v2997
        %v3014 = vmul.f32 %v2406, %v2998
        %v3015 = vmul.f32 %v2407, %v2999
        %v3016 = vmul.f32 %v2408, %v3000
        %v3017 = vmul.f32 %v2409, %v3001
        %v3018 = vmul.f32 %v2410, %v3002
        %v3019 = vmul.f32 %v2411, %v3003
        %v3020 = vmul.f32 %v2412, %v3004
        %v3021 = vmul.f32 %v2413, %v3005
        %v3022 = vmul.f32 %v2414, %v3006
        %v3023 = vmul.f32 %v2415, %v3007
        %v3024 = vmul.f32 %v2416, %v3008
        %v3025 = vmul.f32 %v2417, %v3009
        %v3026 = vmul.f32 %v2418, %v3010
        %v3027 = vmul.f32 %v2419, %v3011
        %v3028 = vmul.f32 %v2420, %v3012
        %3029 = vadd.xlane.f32.xlu0 %v3013
        %v3030 = vpop.xlane.xlu0 %3029
        %3031 = vadd.xlane.f32.xlu0 %v3014
        %v3032 = vpop.xlane.xlu0 %3031
        %3033 = vadd.xlane.f32.xlu0 %v3015
        %v3034 = vpop.xlane.xlu0 %3033
        %3035 = vadd.xlane.f32.xlu0 %v3016
        %v3036 = vpop.xlane.xlu0 %3035
        %3037 = vadd.xlane.f32.xlu0 %v3017
        %v3038 = vpop.xlane.xlu0 %3037
        %3039 = vadd.xlane.f32.xlu0 %v3018
        %v3040 = vpop.xlane.xlu0 %3039
        %3041 = vadd.xlane.f32.xlu0 %v3019
        %v3042 = vpop.xlane.xlu0 %3041
        %3043 = vadd.xlane.f32.xlu0 %v3020
        %v3044 = vpop.xlane.xlu0 %3043
        %3045 = vadd.xlane.f32.xlu0 %v3021
        %v3046 = vpop.xlane.xlu0 %3045
        %3047 = vadd.xlane.f32.xlu0 %v3022
        %v3048 = vpop.xlane.xlu0 %3047
        %3049 = vadd.xlane.f32.xlu0 %v3023
        %v3050 = vpop.xlane.xlu0 %3049
        %3051 = vadd.xlane.f32.xlu0 %v3024
        %v3052 = vpop.xlane.xlu0 %3051
        %3053 = vadd.xlane.f32.xlu0 %v3025
        %v3054 = vpop.xlane.xlu0 %3053
        %3055 = vadd.xlane.f32.xlu0 %v3026
        %v3056 = vpop.xlane.xlu0 %3055
        %3057 = vadd.xlane.f32.xlu0 %v3027
        %v3058 = vpop.xlane.xlu0 %3057
        %3059 = vadd.xlane.f32.xlu0 %v3028
        %v3060 = vpop.xlane.xlu0 %3059
        %s3061 = scalar_lea.vmem %s598, 20 [#allocation12]
        %v3062 = vld [vmem:[%s3061] sm:$0xf]
        %v3063 = vld [vmem:[%s3061 + $0x4] sm:$0xf]
        %v3064 = vld [vmem:[%s3061 + $0x8] sm:$0xf]
        %v3065 = vld [vmem:[%s3061 + $0xc] sm:$0xf]
        %v3066 = vld [vmem:[%s3061 + $0x10] sm:$0xf]
        %v3067 = vpack.c.bf16 %v2406, %v2405
        %v3068 = vpack.c.bf16 %v2408, %v2407
        %v3069 = vpack.c.bf16 %v2410, %v2409
        %v3070 = vpack.c.bf16 %v2412, %v2411
        %v3071 = vpack.c.bf16 %v2414, %v2413
        %v3072 = vpack.c.bf16 %v2416, %v2415
        %v3073 = vpack.c.bf16 %v2418, %v2417
        %v3074 = vpack.c.bf16 %v2420, %v2419
        %v3080 = vunpack.c.l.b16 %v3062
        %v3081 = vunpack.c.l.b16 %v3063
        %v3082 = vunpack.c.l.b16 %v3064
        %v3083 = vunpack.c.l.b16 %v3065
        %v3084 = vunpack.c.l.b16 %v3066
        %v3085 = vpack.c.b16 %v3081, %v3080
        %v3086 = vpack.c.b16 %v3083, %v3082
        %v3087 = vpack.c.b16 %v3084, %v3084
        %3091 = vmatprep.subr.bf16.mxu0 0
        %3092 = vmatpush1.bf16.xpose.msra.mxu0 %v3074
        %3093 = vmatprep.subr.bf16.mxu0 0
        %3094 = vmatpush1.bf16.xpose.msra.mxu0 %v3073
        %3095 = vmatprep.subr.bf16.mxu0 0
        %3096 = vmatpush1.bf16.xpose.msra.mxu0 %v3072
        %3097 = vmatprep.subr.bf16.mxu0 0
        %3098 = vmatpush1.bf16.xpose.msra.mxu0 %v3071
        %3099 = vmatprep.subr.bf16.mxu0 0
        %3100 = vmatpush1.bf16.xpose.msra.mxu0 %v3070
        %3101 = vmatprep.subr.bf16.mxu0 0
        %3102 = vmatpush1.bf16.xpose.msra.mxu0 %v3069
        %3103 = vmatprep.subr.bf16.mxu0 0
        %3104 = vmatpush1.bf16.xpose.msra.mxu0 %v3068
        %3105 = vmatprep.subr.bf16.mxu0 0
        %3106 = vmatpush1.bf16.xpose.msra.mxu0 %v3067
        %3107 = vmatprep.subr.bf16.mxu0 0
        %3108 = vmatpush2.bf16.xpose.msra.mxu0 0
        %3109 = vmatprep.subr.bf16.mxu0 0
        %3110 = vmatpush2.bf16.xpose.msra.mxu0 0
        %3111 = vmatprep.subr.bf16.mxu0 0
        %3112 = vmatpush2.bf16.xpose.msra.mxu0 0
        %3113 = vmatprep.subr.bf16.mxu0 0
        %3114 = vmatpush2.bf16.xpose.msra.mxu0 0
        %3115 = vmatprep.subr.bf16.mxu0 0
        %3116 = vmatpush2.bf16.xpose.msra.mxu0 0
        %3117 = vmatprep.subr.bf16.mxu0 0
        %3118 = vmatpush2.bf16.xpose.msra.mxu0 0
        %3119 = vmatprep.subr.bf16.mxu0 0
        %3120 = vmatpush2.bf16.xpose.msra.mxu0 0
        %3121 = vmatprep.subr.bf16.mxu0 0
        %3122 = vmatpush2.bf16.xpose.msra.mxu0 0
        %3123 = vmatprep.mubr.bf16.mxu0 0
        %3124 = vmatmul.mubr.bf16.gmra.mxu0 %v3085
        %v3125 = vpop.f32.mrf.mxu0
        %v3126 = vadd.f32 0.0, %v3125
        %v3127 = vpop.f32.mrf.mxu0
        %v3128 = vpop.f32.mrf.mxu0
        %v3129 = vadd.f32 0.0, %v3128
        %v3130 = vpop.f32.mrf.mxu0
        %3131 = vmatprep.mubr.bf16.mxu0 0
        %3132 = vmatmul.mubr.bf16.gmra.mxu0 %v3086
        %v3133 = vpop.f32.mrf.mxu0
        %v3134 = vadd.f32 0.0, %v3133
        %v3135 = vpop.f32.mrf.mxu0
        %v3136 = vpop.f32.mrf.mxu0
        %v3137 = vadd.f32 0.0, %v3136
        %v3138 = vpop.f32.mrf.mxu0
        %3139 = vmatprep.mubr.bf16.mxu0 0
        %3140 = vmatmul.mubr.bf16.gmra.mxu0 %v3087
        %v3141 = vpop.f32.mrf.mxu0
        %v3142 = vadd.f32 0.0, %v3141
        %v3143 = vpop.f32.mrf.mxu0
        %v3144 = vpop.f32.mrf.mxu0
        %v3145 = vpop.f32.mrf.mxu0
        %3146 = vdwg.mxu0
        %v3147 = vsub.f32 %v3134, %v920
        %v3148 = vmul.f32 %v915, %v3147
        %v3149 = vsub.f32 %v3137, %v945
        %v3150 = vmul.f32 %v940, %v3149
        %v3151 = vadd.f32 %v3148, %v3150
        %v3152 = vsub.f32 %v3142, %v970
        %v3153 = vmul.f32 %v965, %v3152
        %v3154 = vadd.f32 %v3151, %v3153
        %v3155 = vmul.f32 %v925, %v3147
        %v3156 = vmul.f32 %v950, %v3149
        %v3157 = vadd.f32 %v3155, %v3156
        %v3158 = vmul.f32 %v975, %v3152
        %v3159 = vadd.f32 %v3157, %v3158
        %v3160 = vmul.f32 %v934, %v3147
        %v3161 = vmul.f32 %v959, %v3149
        %v3162 = vadd.f32 %v3160, %v3161
        %v3163 = vmul.f32 %v984, %v3152
        %v3164 = vadd.f32 %v3162, %v3163
        %v3165 = vld [vmem:[#allocation3] sm:$0x1]
        %v3166 = vmul.f32 %v3154, %v3154
        %v3167 = vmul.f32 %v3159, %v3159
        %v3168 = vmul.f32 %v3164, %v3164
        %v3169 = vadd.f32 %v3166, %v3167
        %v3170 = vadd.f32 %v3169, %v3168
        %v3171 = vrot.slane %v3170, 4
        %v3172 = vadd.f32 %v3170, %v3171
        %v3173 = vrot.slane %v3172, 2
        %v3174 = vadd.f32 %v3172, %v3173
        %v3175 = vrot.slane %v3174, 1
        %v3176 = vadd.f32 %v3174, %v3175
        %v3177 = vadd.f32 %v3165, %v3176
        %3178 = vst [vmem:[#allocation3] sm:$0x1] %v3177
        %v3179 = vmul.f32 %v915, %v890
        %v3180 = vadd.f32 %v920, %v3179
        %v3181 = vmul.f32 %v925, %v890
        %v3183 = vrot.slane %v3181, 4
        %v3185 = vadd.f32 %v3180, %v3183
        %v3186 = vmul.f32 %v934, %v893
        %v3187 = vadd.f32 %v3185, %v3186
        %v3188 = vmul.f32 %v940, %v890
        %v3189 = vadd.f32 %v945, %v3188
        %v3190 = vmul.f32 %v950, %v890
        %v3192 = vrot.slane %v3190, 4
        %v3194 = vadd.f32 %v3189, %v3192
        %v3195 = vmul.f32 %v959, %v893
        %v3196 = vadd.f32 %v3194, %v3195
        %v3197 = vmul.f32 %v965, %v890
        %v3198 = vadd.f32 %v970, %v3197
        %v3199 = vmul.f32 %v975, %v890
        %v3201 = vrot.slane %v3199, 4
        %v3203 = vadd.f32 %v3198, %v3201
        %v3204 = vmul.f32 %v984, %v893
        %v3205 = vadd.f32 %v3203, %v3204
        %v3207 = vrot.slane %v3196, 4
        %v3209 = vsel %vm990, %v3187, %v3207
        %v3210 = vsel %vm990, %v3205, 0.0
        %s3211 = scalar_lea.vmem %s589, 32 [#allocation10]
        %v3212 = vld [vmem:[%s3211] sm:$0xf]
        %v3213 = vld [vmem:[%s3211 + $0x4] sm:$0xf]
        %v3214 = vld [vmem:[%s3211 + $0x8] sm:$0xf]
        %v3215 = vld [vmem:[%s3211 + $0xc] sm:$0xf]
        %v3216 = vpack.c.bf16 %v885, %v882
        %v3217 = vpack.c.bf16 %v3210, %v3209
        %s3218 = scalar_lea.vmem %s580, 256 [#allocation9]
        %v3219 = vld [vmem:[%s3218] sm:$0xff]
        %v3220 = vld [vmem:[%s3218 + $0x8] sm:$0xff]
        %v3221 = vld [vmem:[%s3218 + $0x10] sm:$0xff]
        %v3222 = vld [vmem:[%s3218 + $0x18] sm:$0xff]
        %v3223 = vld [vmem:[%s3218 + $0x20] sm:$0xff]
        %v3224 = vld [vmem:[%s3218 + $0x28] sm:$0xff]
        %v3225 = vld [vmem:[%s3218 + $0x30] sm:$0xff]
        %v3226 = vld [vmem:[%s3218 + $0x38] sm:$0xff]
        %v3227 = vld [vmem:[%s3218 + $0x40] sm:$0xff]
        %v3228 = vld [vmem:[%s3218 + $0x48] sm:$0xff]
        %v3229 = vld [vmem:[%s3218 + $0x50] sm:$0xff]
        %v3230 = vld [vmem:[%s3218 + $0x58] sm:$0xff]
        %v3231 = vld [vmem:[%s3218 + $0x60] sm:$0xff]
        %v3232 = vld [vmem:[%s3218 + $0x68] sm:$0xff]
        %v3233 = vld [vmem:[%s3218 + $0x70] sm:$0xff]
        %v3234 = vld [vmem:[%s3218 + $0x78] sm:$0xff]
        %3235 = vxpose.xlu0.c.b16.start [1/8] %v3216, 128
        %3236 = vxpose.xlu0.c.b16.cont [2/8] %v3217, 128
        %3237 = vxpose.xlu0.c.b16.cont [3/8] 0, 128
        %3238 = vxpose.xlu0.c.b16.cont [4/8] 0, 128
        %3239 = vxpose.xlu0.c.b16.cont [5/8] 0, 128
        %3240 = vxpose.xlu0.c.b16.cont [6/8] 0, 128
        %3241 = vxpose.xlu0.c.b16.cont [7/8] 0, 128
        %3242 = vxpose.xlu0.c.b16.end [8/8] 0, 128
        %v3243 = vpop.trf.xlu0
        %v3244 = vpop.trf.xlu0
        %v3245 = vpop.trf.xlu0
        %v3246 = vpop.trf.xlu0
        %v3247 = vpop.trf.xlu0
        %v3248 = vpop.trf.xlu0
        %v3249 = vpop.trf.xlu0
        %v3250 = vpop.trf.xlu0
        %v3255 = vunpack.c.l.b16 %v3212
        %v3256 = vunpack.c.l.b16 %v3213
        %v3257 = vunpack.c.l.b16 %v3214
        %v3258 = vunpack.c.l.b16 %v3215
        %v3259 = vpack.c.b16 %v3256, %v3255
        %v3260 = vpack.c.b16 %v3258, %v3257
        %v3264 = vsel %vm790, %v3243, 0
        %v3267 = vsel %vm790, %v3244, 0
        %v3270 = vsel %vm790, %v3245, 0
        %v3273 = vsel %vm790, %v3246, 0
        %v3276 = vsel %vm790, %v3247, 0
        %v3279 = vsel %vm790, %v3248, 0
        %v3282 = vsel %vm790, %v3249, 0
        %v3285 = vsel %vm790, %v3250, 0
        %3287 = vmatprep.subr.bf16.mxu0 0
        %3288 = vmatpush1.bf16.msra.mxu0 0
        %3289 = vmatprep.subr.bf16.mxu0 0
        %3290 = vmatpush1.bf16.msra.mxu0 0
        %3291 = vmatprep.subr.bf16.mxu0 0
        %3292 = vmatpush1.bf16.msra.mxu0 0
        %3293 = vmatprep.subr.bf16.mxu0 0
        %3294 = vmatpush1.bf16.msra.mxu0 0
        %3295 = vmatprep.subr.bf16.mxu0 0
        %3296 = vmatpush1.bf16.msra.mxu0 0
        %3297 = vmatprep.subr.bf16.mxu0 0
        %3298 = vmatpush1.bf16.msra.mxu0 0
        %3299 = vmatprep.subr.bf16.mxu0 0
        %3300 = vmatpush1.bf16.msra.mxu0 %v3260
        %3301 = vmatprep.subr.bf16.mxu0 0
        %3302 = vmatpush1.bf16.msra.mxu0 %v3259
        %3303 = vmatprep.subr.bf16.mxu0 0
        %3304 = vmatpush2.bf16.msra.mxu0 0
        %3305 = vmatprep.subr.bf16.mxu0 0
        %3306 = vmatpush2.bf16.msra.mxu0 0
        %3307 = vmatprep.subr.bf16.mxu0 0
        %3308 = vmatpush2.bf16.msra.mxu0 0
        %3309 = vmatprep.subr.bf16.mxu0 0
        %3310 = vmatpush2.bf16.msra.mxu0 0
        %3311 = vmatprep.subr.bf16.mxu0 0
        %3312 = vmatpush2.bf16.msra.mxu0 0
        %3313 = vmatprep.subr.bf16.mxu0 0
        %3314 = vmatpush2.bf16.msra.mxu0 0
        %3315 = vmatprep.subr.bf16.mxu0 0
        %3316 = vmatpush2.bf16.msra.mxu0 0
        %3317 = vmatprep.subr.bf16.mxu0 0
        %3318 = vmatpush2.bf16.msra.mxu0 0
        %3319 = vmatprep.mubr.bf16.mxu0 0
        %3320 = vmatmul.mubr.bf16.gmra.mxu0 %v3264
        %v3321 = vpop.f32.mrf.mxu0
        %v3322 = vadd.f32 %v3219, %v3321
        %v3323 = vpop.f32.mrf.mxu0
        %v3324 = vpop.f32.mrf.mxu0
        %v3325 = vadd.f32 %v3220, %v3324
        %v3326 = vpop.f32.mrf.mxu0
        %3327 = vmatprep.mubr.bf16.mxu0 0
        %3328 = vmatmul.mubr.bf16.gmra.mxu0 %v3267
        %v3329 = vpop.f32.mrf.mxu0
        %v3330 = vadd.f32 %v3221, %v3329
        %v3331 = vpop.f32.mrf.mxu0
        %v3332 = vpop.f32.mrf.mxu0
        %v3333 = vadd.f32 %v3222, %v3332
        %v3334 = vpop.f32.mrf.mxu0
        %3335 = vmatprep.mubr.bf16.mxu0 0
        %3336 = vmatmul.mubr.bf16.gmra.mxu0 %v3270
        %v3337 = vpop.f32.mrf.mxu0
        %v3338 = vadd.f32 %v3223, %v3337
        %v3339 = vpop.f32.mrf.mxu0
        %v3340 = vpop.f32.mrf.mxu0
        %v3341 = vadd.f32 %v3224, %v3340
        %v3342 = vpop.f32.mrf.mxu0
        %3343 = vmatprep.mubr.bf16.mxu0 0
        %3344 = vmatmul.mubr.bf16.gmra.mxu0 %v3273
        %v3345 = vpop.f32.mrf.mxu0
        %v3346 = vadd.f32 %v3225, %v3345
        %v3347 = vpop.f32.mrf.mxu0
        %v3348 = vpop.f32.mrf.mxu0
        %v3349 = vadd.f32 %v3226, %v3348
        %v3350 = vpop.f32.mrf.mxu0
        %3351 = vmatprep.mubr.bf16.mxu0 0
        %3352 = vmatmul.mubr.bf16.gmra.mxu0 %v3276
        %v3353 = vpop.f32.mrf.mxu0
        %v3354 = vadd.f32 %v3227, %v3353
        %v3355 = vpop.f32.mrf.mxu0
        %v3356 = vpop.f32.mrf.mxu0
        %v3357 = vadd.f32 %v3228, %v3356
        %v3358 = vpop.f32.mrf.mxu0
        %3359 = vmatprep.mubr.bf16.mxu0 0
        %3360 = vmatmul.mubr.bf16.gmra.mxu0 %v3279
        %v3361 = vpop.f32.mrf.mxu0
        %v3362 = vadd.f32 %v3229, %v3361
        %v3363 = vpop.f32.mrf.mxu0
        %v3364 = vpop.f32.mrf.mxu0
        %v3365 = vadd.f32 %v3230, %v3364
        %v3366 = vpop.f32.mrf.mxu0
        %3367 = vmatprep.mubr.bf16.mxu0 0
        %3368 = vmatmul.mubr.bf16.gmra.mxu0 %v3282
        %v3369 = vpop.f32.mrf.mxu0
        %v3370 = vadd.f32 %v3231, %v3369
        %v3371 = vpop.f32.mrf.mxu0
        %v3372 = vpop.f32.mrf.mxu0
        %v3373 = vadd.f32 %v3232, %v3372
        %v3374 = vpop.f32.mrf.mxu0
        %3375 = vmatprep.mubr.bf16.mxu0 0
        %3376 = vmatmul.mubr.bf16.gmra.mxu0 %v3285
        %v3377 = vpop.f32.mrf.mxu0
        %v3378 = vadd.f32 %v3233, %v3377
        %v3379 = vpop.f32.mrf.mxu0
        %v3380 = vpop.f32.mrf.mxu0
        %v3381 = vadd.f32 %v3234, %v3380
        %v3382 = vpop.f32.mrf.mxu0
        %3383 = vdwg.mxu0
        %3384 = vmax.xlane.f32.xlu0 %v3322
        %v3385 = vpop.xlane.xlu0 %3384
        %3386 = vmax.xlane.f32.xlu0 %v3325
        %v3387 = vpop.xlane.xlu0 %3386
        %3388 = vmax.xlane.f32.xlu0 %v3330
        %v3389 = vpop.xlane.xlu0 %3388
        %3390 = vmax.xlane.f32.xlu0 %v3333
        %v3391 = vpop.xlane.xlu0 %3390
        %3392 = vmax.xlane.f32.xlu0 %v3338
        %v3393 = vpop.xlane.xlu0 %3392
        %3394 = vmax.xlane.f32.xlu0 %v3341
        %v3395 = vpop.xlane.xlu0 %3394
        %3396 = vmax.xlane.f32.xlu0 %v3346
        %v3397 = vpop.xlane.xlu0 %3396
        %3398 = vmax.xlane.f32.xlu0 %v3349
        %v3399 = vpop.xlane.xlu0 %3398
        %3400 = vmax.xlane.f32.xlu0 %v3354
        %v3401 = vpop.xlane.xlu0 %3400
        %3402 = vmax.xlane.f32.xlu0 %v3357
        %v3403 = vpop.xlane.xlu0 %3402
        %3404 = vmax.xlane.f32.xlu0 %v3362
        %v3405 = vpop.xlane.xlu0 %3404
        %3406 = vmax.xlane.f32.xlu0 %v3365
        %v3407 = vpop.xlane.xlu0 %3406
        %3408 = vmax.xlane.f32.xlu0 %v3370
        %v3409 = vpop.xlane.xlu0 %3408
        %3410 = vmax.xlane.f32.xlu0 %v3373
        %v3411 = vpop.xlane.xlu0 %3410
        %3412 = vmax.xlane.f32.xlu0 %v3378
        %v3413 = vpop.xlane.xlu0 %3412
        %3414 = vmax.xlane.f32.xlu0 %v3381
        %v3415 = vpop.xlane.xlu0 %3414
        %v3416 = vsub.f32 %v3322, %v3385
        %v3417 = vsub.f32 %v3325, %v3387
        %v3418 = vsub.f32 %v3330, %v3389
        %v3419 = vsub.f32 %v3333, %v3391
        %v3420 = vsub.f32 %v3338, %v3393
        %v3421 = vsub.f32 %v3341, %v3395
        %v3422 = vsub.f32 %v3346, %v3397
        %v3423 = vsub.f32 %v3349, %v3399
        %v3424 = vsub.f32 %v3354, %v3401
        %v3425 = vsub.f32 %v3357, %v3403
        %v3426 = vsub.f32 %v3362, %v3405
        %v3427 = vsub.f32 %v3365, %v3407
        %v3428 = vsub.f32 %v3370, %v3409
        %v3429 = vsub.f32 %v3373, %v3411
        %v3430 = vsub.f32 %v3378, %v3413
        %v3431 = vsub.f32 %v3381, %v3415
        %v3432 = vmul.f32 %v3416, 1.442695
        %v3433 = vpow.pop %v3432
        %v3434 = vmul.f32 %v3417, 1.442695
        %v3435 = vpow.pop %v3434
        %v3436 = vmul.f32 %v3418, 1.442695
        %v3437 = vpow.pop %v3436
        %v3438 = vmul.f32 %v3419, 1.442695
        %v3439 = vpow.pop %v3438
        %v3440 = vmul.f32 %v3420, 1.442695
        %v3441 = vpow.pop %v3440
        %v3442 = vmul.f32 %v3421, 1.442695
        %v3443 = vpow.pop %v3442
        %v3444 = vmul.f32 %v3422, 1.442695
        %v3445 = vpow.pop %v3444
        %v3446 = vmul.f32 %v3423, 1.442695
        %v3447 = vpow.pop %v3446
        %v3448 = vmul.f32 %v3424, 1.442695
        %v3449 = vpow.pop %v3448
        %v3450 = vmul.f32 %v3425, 1.442695
        %v3451 = vpow.pop %v3450
        %v3452 = vmul.f32 %v3426, 1.442695
        %v3453 = vpow.pop %v3452
        %v3454 = vmul.f32 %v3427, 1.442695
        %v3455 = vpow.pop %v3454
        %v3456 = vmul.f32 %v3428, 1.442695
        %v3457 = vpow.pop %v3456
        %v3458 = vmul.f32 %v3429, 1.442695
        %v3459 = vpow.pop %v3458
        %v3460 = vmul.f32 %v3430, 1.442695
        %v3461 = vpow.pop %v3460
        %v3462 = vmul.f32 %v3431, 1.442695
        %v3463 = vpow.pop %v3462
        %3464 = vadd.xlane.f32.xlu0 %v3433
        %v3465 = vpop.xlane.xlu0 %3464
        %3466 = vadd.xlane.f32.xlu0 %v3435
        %v3467 = vpop.xlane.xlu0 %3466
        %3468 = vadd.xlane.f32.xlu0 %v3437
        %v3469 = vpop.xlane.xlu0 %3468
        %3470 = vadd.xlane.f32.xlu0 %v3439
        %v3471 = vpop.xlane.xlu0 %3470
        %3472 = vadd.xlane.f32.xlu0 %v3441
        %v3473 = vpop.xlane.xlu0 %3472
        %3474 = vadd.xlane.f32.xlu0 %v3443
        %v3475 = vpop.xlane.xlu0 %3474
        %3476 = vadd.xlane.f32.xlu0 %v3445
        %v3477 = vpop.xlane.xlu0 %3476
        %3478 = vadd.xlane.f32.xlu0 %v3447
        %v3479 = vpop.xlane.xlu0 %3478
        %3480 = vadd.xlane.f32.xlu0 %v3449
        %v3481 = vpop.xlane.xlu0 %3480
        %3482 = vadd.xlane.f32.xlu0 %v3451
        %v3483 = vpop.xlane.xlu0 %3482
        %3484 = vadd.xlane.f32.xlu0 %v3453
        %v3485 = vpop.xlane.xlu0 %3484
        %3486 = vadd.xlane.f32.xlu0 %v3455
        %v3487 = vpop.xlane.xlu0 %3486
        %3488 = vadd.xlane.f32.xlu0 %v3457
        %v3489 = vpop.xlane.xlu0 %3488
        %3490 = vadd.xlane.f32.xlu0 %v3459
        %v3491 = vpop.xlane.xlu0 %3490
        %3492 = vadd.xlane.f32.xlu0 %v3461
        %v3493 = vpop.xlane.xlu0 %3492
        %3494 = vadd.xlane.f32.xlu0 %v3463
        %v3495 = vpop.xlane.xlu0 %3494
        %v3496 = vrcp.pop %v3465
        %v3497 = vrcp.pop %v3467
        %v3498 = vrcp.pop %v3469
        %v3499 = vrcp.pop %v3471
        %v3500 = vrcp.pop %v3473
        %v3501 = vrcp.pop %v3475
        %v3502 = vrcp.pop %v3477
        %v3503 = vrcp.pop %v3479
        %v3504 = vrcp.pop %v3481
        %v3505 = vrcp.pop %v3483
        %v3506 = vrcp.pop %v3485
        %v3507 = vrcp.pop %v3487
        %v3508 = vrcp.pop %v3489
        %v3509 = vrcp.pop %v3491
        %v3510 = vrcp.pop %v3493
        %v3511 = vrcp.pop %v3495
        %v3512 = vmul.f32 %v3433, %v3496
        %v3513 = vmul.f32 %v3435, %v3497
        %v3514 = vmul.f32 %v3437, %v3498
        %v3515 = vmul.f32 %v3439, %v3499
        %v3516 = vmul.f32 %v3441, %v3500
        %v3517 = vmul.f32 %v3443, %v3501
        %v3518 = vmul.f32 %v3445, %v3502
        %v3519 = vmul.f32 %v3447, %v3503
        %v3520 = vmul.f32 %v3449, %v3504
        %v3521 = vmul.f32 %v3451, %v3505
        %v3522 = vmul.f32 %v3453, %v3506
        %v3523 = vmul.f32 %v3455, %v3507
        %v3524 = vmul.f32 %v3457, %v3508
        %v3525 = vmul.f32 %v3459, %v3509
        %v3526 = vmul.f32 %v3461, %v3510
        %v3527 = vmul.f32 %v3463, %v3511
        %v3528 = vld [vmem:[%s571] sm:$0xf]
        %v3529 = vld [vmem:[%s571 + $0x4] sm:$0xf]
        %v3530 = vld [vmem:[%s571 + $0x8] sm:$0xf]
        %v3531 = vld [vmem:[%s571 + $0xc] sm:$0xf]
        %v3532 = vld [vmem:[%s571 + $0x10] sm:$0xf]
        %v3533 = vld [vmem:[%s571 + $0x14] sm:$0xf]
        %v3534 = vld [vmem:[%s571 + $0x18] sm:$0xf]
        %v3535 = vld [vmem:[%s571 + $0x1c] sm:$0xf]
        %v3536 = vld [vmem:[%s571 + $0x20] sm:$0xf]
        %v3537 = vld [vmem:[%s571 + $0x24] sm:$0xf]
        %v3538 = vld [vmem:[%s571 + $0x28] sm:$0xf]
        %v3539 = vld [vmem:[%s571 + $0x2c] sm:$0xf]
        %v3540 = vld [vmem:[%s571 + $0x30] sm:$0xf]
        %v3541 = vld [vmem:[%s571 + $0x34] sm:$0xf]
        %v3542 = vld [vmem:[%s571 + $0x38] sm:$0xf]
        %v3543 = vld [vmem:[%s571 + $0x3c] sm:$0xf]
        %v3544 = vunpack.c.l.bf16 %v3528
        %v3545 = vunpack.c.l.bf16 %v3529
        %v3546 = vunpack.c.l.bf16 %v3530
        %v3547 = vunpack.c.l.bf16 %v3531
        %v3548 = vunpack.c.l.bf16 %v3532
        %v3549 = vunpack.c.l.bf16 %v3533
        %v3550 = vunpack.c.l.bf16 %v3534
        %v3551 = vunpack.c.l.bf16 %v3535
        %v3552 = vunpack.c.l.bf16 %v3536
        %v3553 = vunpack.c.l.bf16 %v3537
        %v3554 = vunpack.c.l.bf16 %v3538
        %v3555 = vunpack.c.l.bf16 %v3539
        %v3556 = vunpack.c.l.bf16 %v3540
        %v3557 = vunpack.c.l.bf16 %v3541
        %v3558 = vunpack.c.l.bf16 %v3542
        %v3559 = vunpack.c.l.bf16 %v3543
        %v3560 = vmul.f32 %v3512, %v3544
        %v3561 = vmul.f32 %v3513, %v3545
        %v3562 = vmul.f32 %v3514, %v3546
        %v3563 = vmul.f32 %v3515, %v3547
        %v3564 = vmul.f32 %v3516, %v3548
        %v3565 = vmul.f32 %v3517, %v3549
        %v3566 = vmul.f32 %v3518, %v3550
        %v3567 = vmul.f32 %v3519, %v3551
        %v3568 = vmul.f32 %v3520, %v3552
        %v3569 = vmul.f32 %v3521, %v3553
        %v3570 = vmul.f32 %v3522, %v3554
        %v3571 = vmul.f32 %v3523, %v3555
        %v3572 = vmul.f32 %v3524, %v3556
        %v3573 = vmul.f32 %v3525, %v3557
        %v3574 = vmul.f32 %v3526, %v3558
        %v3575 = vmul.f32 %v3527, %v3559
        %3576 = vadd.xlane.f32.xlu0 %v3560
        %v3577 = vpop.xlane.xlu0 %3576
        %3578 = vadd.xlane.f32.xlu0 %v3561
        %v3579 = vpop.xlane.xlu0 %3578
        %3580 = vadd.xlane.f32.xlu0 %v3562
        %v3581 = vpop.xlane.xlu0 %3580
        %3582 = vadd.xlane.f32.xlu0 %v3563
        %v3583 = vpop.xlane.xlu0 %3582
        %3584 = vadd.xlane.f32.xlu0 %v3564
        %v3585 = vpop.xlane.xlu0 %3584
        %3586 = vadd.xlane.f32.xlu0 %v3565
        %v3587 = vpop.xlane.xlu0 %3586
        %3588 = vadd.xlane.f32.xlu0 %v3566
        %v3589 = vpop.xlane.xlu0 %3588
        %3590 = vadd.xlane.f32.xlu0 %v3567
        %v3591 = vpop.xlane.xlu0 %3590
        %3592 = vadd.xlane.f32.xlu0 %v3568
        %v3593 = vpop.xlane.xlu0 %3592
        %3594 = vadd.xlane.f32.xlu0 %v3569
        %v3595 = vpop.xlane.xlu0 %3594
        %3596 = vadd.xlane.f32.xlu0 %v3570
        %v3597 = vpop.xlane.xlu0 %3596
        %3598 = vadd.xlane.f32.xlu0 %v3571
        %v3599 = vpop.xlane.xlu0 %3598
        %3600 = vadd.xlane.f32.xlu0 %v3572
        %v3601 = vpop.xlane.xlu0 %3600
        %3602 = vadd.xlane.f32.xlu0 %v3573
        %v3603 = vpop.xlane.xlu0 %3602
        %3604 = vadd.xlane.f32.xlu0 %v3574
        %v3605 = vpop.xlane.xlu0 %3604
        %3606 = vadd.xlane.f32.xlu0 %v3575
        %v3607 = vpop.xlane.xlu0 %3606
        %v3608 = vld [vmem:[%s1388] sm:$0xf]
        %v3609 = vld [vmem:[%s1388 + $0x4] sm:$0xf]
        %v3610 = vld [vmem:[%s1388 + $0x8] sm:$0xf]
        %v3611 = vld [vmem:[%s1388 + $0xc] sm:$0xf]
        %v3612 = vld [vmem:[%s1388 + $0x10] sm:$0xf]
        %v3613 = vld [vmem:[%s1388 + $0x14] sm:$0xf]
        %v3614 = vld [vmem:[%s1388 + $0x18] sm:$0xf]
        %v3615 = vld [vmem:[%s1388 + $0x1c] sm:$0xf]
        %v3616 = vld [vmem:[%s1388 + $0x20] sm:$0xf]
        %v3617 = vld [vmem:[%s1388 + $0x24] sm:$0xf]
        %v3618 = vld [vmem:[%s1388 + $0x28] sm:$0xf]
        %v3619 = vld [vmem:[%s1388 + $0x2c] sm:$0xf]
        %v3620 = vld [vmem:[%s1388 + $0x30] sm:$0xf]
        %v3621 = vld [vmem:[%s1388 + $0x34] sm:$0xf]
        %v3622 = vld [vmem:[%s1388 + $0x38] sm:$0xf]
        %v3623 = vld [vmem:[%s1388 + $0x3c] sm:$0xf]
        %v3624 = vunpack.c.l.bf16 %v3608
        %v3625 = vunpack.c.l.bf16 %v3609
        %v3626 = vunpack.c.l.bf16 %v3610
        %v3627 = vunpack.c.l.bf16 %v3611
        %v3628 = vunpack.c.l.bf16 %v3612
        %v3629 = vunpack.c.l.bf16 %v3613
        %v3630 = vunpack.c.l.bf16 %v3614
        %v3631 = vunpack.c.l.bf16 %v3615
        %v3632 = vunpack.c.l.bf16 %v3616
        %v3633 = vunpack.c.l.bf16 %v3617
        %v3634 = vunpack.c.l.bf16 %v3618
        %v3635 = vunpack.c.l.bf16 %v3619
        %v3636 = vunpack.c.l.bf16 %v3620
        %v3637 = vunpack.c.l.bf16 %v3621
        %v3638 = vunpack.c.l.bf16 %v3622
        %v3639 = vunpack.c.l.bf16 %v3623
        %v3640 = vmul.f32 %v3512, %v3624
        %v3641 = vmul.f32 %v3513, %v3625
        %v3642 = vmul.f32 %v3514, %v3626
        %v3643 = vmul.f32 %v3515, %v3627
        %v3644 = vmul.f32 %v3516, %v3628
        %v3645 = vmul.f32 %v3517, %v3629
        %v3646 = vmul.f32 %v3518, %v3630
        %v3647 = vmul.f32 %v3519, %v3631
        %v3648 = vmul.f32 %v3520, %v3632
        %v3649 = vmul.f32 %v3521, %v3633
        %v3650 = vmul.f32 %v3522, %v3634
        %v3651 = vmul.f32 %v3523, %v3635
        %v3652 = vmul.f32 %v3524, %v3636
        %v3653 = vmul.f32 %v3525, %v3637
        %v3654 = vmul.f32 %v3526, %v3638
        %v3655 = vmul.f32 %v3527, %v3639
        %3656 = vadd.xlane.f32.xlu0 %v3640
        %v3657 = vpop.xlane.xlu0 %3656
        %3658 = vadd.xlane.f32.xlu0 %v3641
        %v3659 = vpop.xlane.xlu0 %3658
        %3660 = vadd.xlane.f32.xlu0 %v3642
        %v3661 = vpop.xlane.xlu0 %3660
        %3662 = vadd.xlane.f32.xlu0 %v3643
        %v3663 = vpop.xlane.xlu0 %3662
        %3664 = vadd.xlane.f32.xlu0 %v3644
        %v3665 = vpop.xlane.xlu0 %3664
        %3666 = vadd.xlane.f32.xlu0 %v3645
        %v3667 = vpop.xlane.xlu0 %3666
        %3668 = vadd.xlane.f32.xlu0 %v3646
        %v3669 = vpop.xlane.xlu0 %3668
        %3670 = vadd.xlane.f32.xlu0 %v3647
        %v3671 = vpop.xlane.xlu0 %3670
        %3672 = vadd.xlane.f32.xlu0 %v3648
        %v3673 = vpop.xlane.xlu0 %3672
        %3674 = vadd.xlane.f32.xlu0 %v3649
        %v3675 = vpop.xlane.xlu0 %3674
        %3676 = vadd.xlane.f32.xlu0 %v3650
        %v3677 = vpop.xlane.xlu0 %3676
        %3678 = vadd.xlane.f32.xlu0 %v3651
        %v3679 = vpop.xlane.xlu0 %3678
        %3680 = vadd.xlane.f32.xlu0 %v3652
        %v3681 = vpop.xlane.xlu0 %3680
        %3682 = vadd.xlane.f32.xlu0 %v3653
        %v3683 = vpop.xlane.xlu0 %3682
        %3684 = vadd.xlane.f32.xlu0 %v3654
        %v3685 = vpop.xlane.xlu0 %3684
        %3686 = vadd.xlane.f32.xlu0 %v3655
        %v3687 = vpop.xlane.xlu0 %3686
        %v3688 = vld [vmem:[%s1469] sm:$0xf]
        %v3689 = vld [vmem:[%s1469 + $0x4] sm:$0xf]
        %v3690 = vld [vmem:[%s1469 + $0x8] sm:$0xf]
        %v3691 = vld [vmem:[%s1469 + $0xc] sm:$0xf]
        %v3692 = vld [vmem:[%s1469 + $0x10] sm:$0xf]
        %v3693 = vld [vmem:[%s1469 + $0x14] sm:$0xf]
        %v3694 = vld [vmem:[%s1469 + $0x18] sm:$0xf]
        %v3695 = vld [vmem:[%s1469 + $0x1c] sm:$0xf]
        %v3696 = vld [vmem:[%s1469 + $0x20] sm:$0xf]
        %v3697 = vld [vmem:[%s1469 + $0x24] sm:$0xf]
        %v3698 = vld [vmem:[%s1469 + $0x28] sm:$0xf]
        %v3699 = vld [vmem:[%s1469 + $0x2c] sm:$0xf]
        %v3700 = vld [vmem:[%s1469 + $0x30] sm:$0xf]
        %v3701 = vld [vmem:[%s1469 + $0x34] sm:$0xf]
        %v3702 = vld [vmem:[%s1469 + $0x38] sm:$0xf]
        %v3703 = vld [vmem:[%s1469 + $0x3c] sm:$0xf]
        %v3704 = vunpack.c.l.bf16 %v3688
        %v3705 = vunpack.c.l.bf16 %v3689
        %v3706 = vunpack.c.l.bf16 %v3690
        %v3707 = vunpack.c.l.bf16 %v3691
        %v3708 = vunpack.c.l.bf16 %v3692
        %v3709 = vunpack.c.l.bf16 %v3693
        %v3710 = vunpack.c.l.bf16 %v3694
        %v3711 = vunpack.c.l.bf16 %v3695
        %v3712 = vunpack.c.l.bf16 %v3696
        %v3713 = vunpack.c.l.bf16 %v3697
        %v3714 = vunpack.c.l.bf16 %v3698
        %v3715 = vunpack.c.l.bf16 %v3699
        %v3716 = vunpack.c.l.bf16 %v3700
        %v3717 = vunpack.c.l.bf16 %v3701
        %v3718 = vunpack.c.l.bf16 %v3702
        %v3719 = vunpack.c.l.bf16 %v3703
        %v3720 = vmul.f32 %v3512, %v3704
        %v3721 = vmul.f32 %v3513, %v3705
        %v3722 = vmul.f32 %v3514, %v3706
        %v3723 = vmul.f32 %v3515, %v3707
        %v3724 = vmul.f32 %v3516, %v3708
        %v3725 = vmul.f32 %v3517, %v3709
        %v3726 = vmul.f32 %v3518, %v3710
        %v3727 = vmul.f32 %v3519, %v3711
        %v3728 = vmul.f32 %v3520, %v3712
        %v3729 = vmul.f32 %v3521, %v3713
        %v3730 = vmul.f32 %v3522, %v3714
        %v3731 = vmul.f32 %v3523, %v3715
        %v3732 = vmul.f32 %v3524, %v3716
        %v3733 = vmul.f32 %v3525, %v3717
        %v3734 = vmul.f32 %v3526, %v3718
        %v3735 = vmul.f32 %v3527, %v3719
        %3736 = vadd.xlane.f32.xlu0 %v3720
        %v3737 = vpop.xlane.xlu0 %3736
        %3738 = vadd.xlane.f32.xlu0 %v3721
        %v3739 = vpop.xlane.xlu0 %3738
        %3740 = vadd.xlane.f32.xlu0 %v3722
        %v3741 = vpop.xlane.xlu0 %3740
        %3742 = vadd.xlane.f32.xlu0 %v3723
        %v3743 = vpop.xlane.xlu0 %3742
        %3744 = vadd.xlane.f32.xlu0 %v3724
        %v3745 = vpop.xlane.xlu0 %3744
        %3746 = vadd.xlane.f32.xlu0 %v3725
        %v3747 = vpop.xlane.xlu0 %3746
        %3748 = vadd.xlane.f32.xlu0 %v3726
        %v3749 = vpop.xlane.xlu0 %3748
        %3750 = vadd.xlane.f32.xlu0 %v3727
        %v3751 = vpop.xlane.xlu0 %3750
        %3752 = vadd.xlane.f32.xlu0 %v3728
        %v3753 = vpop.xlane.xlu0 %3752
        %3754 = vadd.xlane.f32.xlu0 %v3729
        %v3755 = vpop.xlane.xlu0 %3754
        %3756 = vadd.xlane.f32.xlu0 %v3730
        %v3757 = vpop.xlane.xlu0 %3756
        %3758 = vadd.xlane.f32.xlu0 %v3731
        %v3759 = vpop.xlane.xlu0 %3758
        %3760 = vadd.xlane.f32.xlu0 %v3732
        %v3761 = vpop.xlane.xlu0 %3760
        %3762 = vadd.xlane.f32.xlu0 %v3733
        %v3763 = vpop.xlane.xlu0 %3762
        %3764 = vadd.xlane.f32.xlu0 %v3734
        %v3765 = vpop.xlane.xlu0 %3764
        %3766 = vadd.xlane.f32.xlu0 %v3735
        %v3767 = vpop.xlane.xlu0 %3766
        %v3768 = vld [vmem:[%s1550] sm:$0xf]
        %v3769 = vld [vmem:[%s1550 + $0x4] sm:$0xf]
        %v3770 = vld [vmem:[%s1550 + $0x8] sm:$0xf]
        %v3771 = vld [vmem:[%s1550 + $0xc] sm:$0xf]
        %v3772 = vld [vmem:[%s1550 + $0x10] sm:$0xf]
        %v3773 = vld [vmem:[%s1550 + $0x14] sm:$0xf]
        %v3774 = vld [vmem:[%s1550 + $0x18] sm:$0xf]
        %v3775 = vld [vmem:[%s1550 + $0x1c] sm:$0xf]
        %v3776 = vld [vmem:[%s1550 + $0x20] sm:$0xf]
        %v3777 = vld [vmem:[%s1550 + $0x24] sm:$0xf]
        %v3778 = vld [vmem:[%s1550 + $0x28] sm:$0xf]
        %v3779 = vld [vmem:[%s1550 + $0x2c] sm:$0xf]
        %v3780 = vld [vmem:[%s1550 + $0x30] sm:$0xf]
        %v3781 = vld [vmem:[%s1550 + $0x34] sm:$0xf]
        %v3782 = vld [vmem:[%s1550 + $0x38] sm:$0xf]
        %v3783 = vld [vmem:[%s1550 + $0x3c] sm:$0xf]
        %v3784 = vunpack.c.l.bf16 %v3768
        %v3785 = vunpack.c.l.bf16 %v3769
        %v3786 = vunpack.c.l.bf16 %v3770
        %v3787 = vunpack.c.l.bf16 %v3771
        %v3788 = vunpack.c.l.bf16 %v3772
        %v3789 = vunpack.c.l.bf16 %v3773
        %v3790 = vunpack.c.l.bf16 %v3774
        %v3791 = vunpack.c.l.bf16 %v3775
        %v3792 = vunpack.c.l.bf16 %v3776
        %v3793 = vunpack.c.l.bf16 %v3777
        %v3794 = vunpack.c.l.bf16 %v3778
        %v3795 = vunpack.c.l.bf16 %v3779
        %v3796 = vunpack.c.l.bf16 %v3780
        %v3797 = vunpack.c.l.bf16 %v3781
        %v3798 = vunpack.c.l.bf16 %v3782
        %v3799 = vunpack.c.l.bf16 %v3783
        %v3800 = vmul.f32 %v3512, %v3784
        %v3801 = vmul.f32 %v3513, %v3785
        %v3802 = vmul.f32 %v3514, %v3786
        %v3803 = vmul.f32 %v3515, %v3787
        %v3804 = vmul.f32 %v3516, %v3788
        %v3805 = vmul.f32 %v3517, %v3789
        %v3806 = vmul.f32 %v3518, %v3790
        %v3807 = vmul.f32 %v3519, %v3791
        %v3808 = vmul.f32 %v3520, %v3792
        %v3809 = vmul.f32 %v3521, %v3793
        %v3810 = vmul.f32 %v3522, %v3794
        %v3811 = vmul.f32 %v3523, %v3795
        %v3812 = vmul.f32 %v3524, %v3796
        %v3813 = vmul.f32 %v3525, %v3797
        %v3814 = vmul.f32 %v3526, %v3798
        %v3815 = vmul.f32 %v3527, %v3799
        %3816 = vadd.xlane.f32.xlu0 %v3800
        %v3817 = vpop.xlane.xlu0 %3816
        %3818 = vadd.xlane.f32.xlu0 %v3801
        %v3819 = vpop.xlane.xlu0 %3818
        %3820 = vadd.xlane.f32.xlu0 %v3802
        %v3821 = vpop.xlane.xlu0 %3820
        %3822 = vadd.xlane.f32.xlu0 %v3803
        %v3823 = vpop.xlane.xlu0 %3822
        %3824 = vadd.xlane.f32.xlu0 %v3804
        %v3825 = vpop.xlane.xlu0 %3824
        %3826 = vadd.xlane.f32.xlu0 %v3805
        %v3827 = vpop.xlane.xlu0 %3826
        %3828 = vadd.xlane.f32.xlu0 %v3806
        %v3829 = vpop.xlane.xlu0 %3828
        %3830 = vadd.xlane.f32.xlu0 %v3807
        %v3831 = vpop.xlane.xlu0 %3830
        %3832 = vadd.xlane.f32.xlu0 %v3808
        %v3833 = vpop.xlane.xlu0 %3832
        %3834 = vadd.xlane.f32.xlu0 %v3809
        %v3835 = vpop.xlane.xlu0 %3834
        %3836 = vadd.xlane.f32.xlu0 %v3810
        %v3837 = vpop.xlane.xlu0 %3836
        %3838 = vadd.xlane.f32.xlu0 %v3811
        %v3839 = vpop.xlane.xlu0 %3838
        %3840 = vadd.xlane.f32.xlu0 %v3812
        %v3841 = vpop.xlane.xlu0 %3840
        %3842 = vadd.xlane.f32.xlu0 %v3813
        %v3843 = vpop.xlane.xlu0 %3842
        %3844 = vadd.xlane.f32.xlu0 %v3814
        %v3845 = vpop.xlane.xlu0 %3844
        %3846 = vadd.xlane.f32.xlu0 %v3815
        %v3847 = vpop.xlane.xlu0 %3846
        %v3848 = vld [vmem:[%s1631] sm:$0xf]
        %v3849 = vld [vmem:[%s1631 + $0x4] sm:$0xf]
        %v3850 = vld [vmem:[%s1631 + $0x8] sm:$0xf]
        %v3851 = vld [vmem:[%s1631 + $0xc] sm:$0xf]
        %v3852 = vld [vmem:[%s1631 + $0x10] sm:$0xf]
        %v3853 = vld [vmem:[%s1631 + $0x14] sm:$0xf]
        %v3854 = vld [vmem:[%s1631 + $0x18] sm:$0xf]
        %v3855 = vld [vmem:[%s1631 + $0x1c] sm:$0xf]
        %v3856 = vld [vmem:[%s1631 + $0x20] sm:$0xf]
        %v3857 = vld [vmem:[%s1631 + $0x24] sm:$0xf]
        %v3858 = vld [vmem:[%s1631 + $0x28] sm:$0xf]
        %v3859 = vld [vmem:[%s1631 + $0x2c] sm:$0xf]
        %v3860 = vld [vmem:[%s1631 + $0x30] sm:$0xf]
        %v3861 = vld [vmem:[%s1631 + $0x34] sm:$0xf]
        %v3862 = vld [vmem:[%s1631 + $0x38] sm:$0xf]
        %v3863 = vld [vmem:[%s1631 + $0x3c] sm:$0xf]
        %v3864 = vunpack.c.l.bf16 %v3848
        %v3865 = vunpack.c.l.bf16 %v3849
        %v3866 = vunpack.c.l.bf16 %v3850
        %v3867 = vunpack.c.l.bf16 %v3851
        %v3868 = vunpack.c.l.bf16 %v3852
        %v3869 = vunpack.c.l.bf16 %v3853
        %v3870 = vunpack.c.l.bf16 %v3854
        %v3871 = vunpack.c.l.bf16 %v3855
        %v3872 = vunpack.c.l.bf16 %v3856
        %v3873 = vunpack.c.l.bf16 %v3857
        %v3874 = vunpack.c.l.bf16 %v3858
        %v3875 = vunpack.c.l.bf16 %v3859
        %v3876 = vunpack.c.l.bf16 %v3860
        %v3877 = vunpack.c.l.bf16 %v3861
        %v3878 = vunpack.c.l.bf16 %v3862
        %v3879 = vunpack.c.l.bf16 %v3863
        %v3880 = vmul.f32 %v3512, %v3864
        %v3881 = vmul.f32 %v3513, %v3865
        %v3882 = vmul.f32 %v3514, %v3866
        %v3883 = vmul.f32 %v3515, %v3867
        %v3884 = vmul.f32 %v3516, %v3868
        %v3885 = vmul.f32 %v3517, %v3869
        %v3886 = vmul.f32 %v3518, %v3870
        %v3887 = vmul.f32 %v3519, %v3871
        %v3888 = vmul.f32 %v3520, %v3872
        %v3889 = vmul.f32 %v3521, %v3873
        %v3890 = vmul.f32 %v3522, %v3874
        %v3891 = vmul.f32 %v3523, %v3875
        %v3892 = vmul.f32 %v3524, %v3876
        %v3893 = vmul.f32 %v3525, %v3877
        %v3894 = vmul.f32 %v3526, %v3878
        %v3895 = vmul.f32 %v3527, %v3879
        %3896 = vadd.xlane.f32.xlu0 %v3880
        %v3897 = vpop.xlane.xlu0 %3896
        %3898 = vadd.xlane.f32.xlu0 %v3881
        %v3899 = vpop.xlane.xlu0 %3898
        %3900 = vadd.xlane.f32.xlu0 %v3882
        %v3901 = vpop.xlane.xlu0 %3900
        %3902 = vadd.xlane.f32.xlu0 %v3883
        %v3903 = vpop.xlane.xlu0 %3902
        %3904 = vadd.xlane.f32.xlu0 %v3884
        %v3905 = vpop.xlane.xlu0 %3904
        %3906 = vadd.xlane.f32.xlu0 %v3885
        %v3907 = vpop.xlane.xlu0 %3906
        %3908 = vadd.xlane.f32.xlu0 %v3886
        %v3909 = vpop.xlane.xlu0 %3908
        %3910 = vadd.xlane.f32.xlu0 %v3887
        %v3911 = vpop.xlane.xlu0 %3910
        %3912 = vadd.xlane.f32.xlu0 %v3888
        %v3913 = vpop.xlane.xlu0 %3912
        %3914 = vadd.xlane.f32.xlu0 %v3889
        %v3915 = vpop.xlane.xlu0 %3914
        %3916 = vadd.xlane.f32.xlu0 %v3890
        %v3917 = vpop.xlane.xlu0 %3916
        %3918 = vadd.xlane.f32.xlu0 %v3891
        %v3919 = vpop.xlane.xlu0 %3918
        %3920 = vadd.xlane.f32.xlu0 %v3892
        %v3921 = vpop.xlane.xlu0 %3920
        %3922 = vadd.xlane.f32.xlu0 %v3893
        %v3923 = vpop.xlane.xlu0 %3922
        %3924 = vadd.xlane.f32.xlu0 %v3894
        %v3925 = vpop.xlane.xlu0 %3924
        %3926 = vadd.xlane.f32.xlu0 %v3895
        %v3927 = vpop.xlane.xlu0 %3926
        %v3928 = vld [vmem:[%s1712] sm:$0xf]
        %v3929 = vld [vmem:[%s1712 + $0x4] sm:$0xf]
        %v3930 = vld [vmem:[%s1712 + $0x8] sm:$0xf]
        %v3931 = vld [vmem:[%s1712 + $0xc] sm:$0xf]
        %v3932 = vld [vmem:[%s1712 + $0x10] sm:$0xf]
        %v3933 = vld [vmem:[%s1712 + $0x14] sm:$0xf]
        %v3934 = vld [vmem:[%s1712 + $0x18] sm:$0xf]
        %v3935 = vld [vmem:[%s1712 + $0x1c] sm:$0xf]
        %v3936 = vld [vmem:[%s1712 + $0x20] sm:$0xf]
        %v3937 = vld [vmem:[%s1712 + $0x24] sm:$0xf]
        %v3938 = vld [vmem:[%s1712 + $0x28] sm:$0xf]
        %v3939 = vld [vmem:[%s1712 + $0x2c] sm:$0xf]
        %v3940 = vld [vmem:[%s1712 + $0x30] sm:$0xf]
        %v3941 = vld [vmem:[%s1712 + $0x34] sm:$0xf]
        %v3942 = vld [vmem:[%s1712 + $0x38] sm:$0xf]
        %v3943 = vld [vmem:[%s1712 + $0x3c] sm:$0xf]
        %v3944 = vunpack.c.l.bf16 %v3928
        %v3945 = vunpack.c.l.bf16 %v3929
        %v3946 = vunpack.c.l.bf16 %v3930
        %v3947 = vunpack.c.l.bf16 %v3931
        %v3948 = vunpack.c.l.bf16 %v3932
        %v3949 = vunpack.c.l.bf16 %v3933
        %v3950 = vunpack.c.l.bf16 %v3934
        %v3951 = vunpack.c.l.bf16 %v3935
        %v3952 = vunpack.c.l.bf16 %v3936
        %v3953 = vunpack.c.l.bf16 %v3937
        %v3954 = vunpack.c.l.bf16 %v3938
        %v3955 = vunpack.c.l.bf16 %v3939
        %v3956 = vunpack.c.l.bf16 %v3940
        %v3957 = vunpack.c.l.bf16 %v3941
        %v3958 = vunpack.c.l.bf16 %v3942
        %v3959 = vunpack.c.l.bf16 %v3943
        %v3960 = vmul.f32 %v3512, %v3944
        %v3961 = vmul.f32 %v3513, %v3945
        %v3962 = vmul.f32 %v3514, %v3946
        %v3963 = vmul.f32 %v3515, %v3947
        %v3964 = vmul.f32 %v3516, %v3948
        %v3965 = vmul.f32 %v3517, %v3949
        %v3966 = vmul.f32 %v3518, %v3950
        %v3967 = vmul.f32 %v3519, %v3951
        %v3968 = vmul.f32 %v3520, %v3952
        %v3969 = vmul.f32 %v3521, %v3953
        %v3970 = vmul.f32 %v3522, %v3954
        %v3971 = vmul.f32 %v3523, %v3955
        %v3972 = vmul.f32 %v3524, %v3956
        %v3973 = vmul.f32 %v3525, %v3957
        %v3974 = vmul.f32 %v3526, %v3958
        %v3975 = vmul.f32 %v3527, %v3959
        %3976 = vadd.xlane.f32.xlu0 %v3960
        %v3977 = vpop.xlane.xlu0 %3976
        %3978 = vadd.xlane.f32.xlu0 %v3961
        %v3979 = vpop.xlane.xlu0 %3978
        %3980 = vadd.xlane.f32.xlu0 %v3962
        %v3981 = vpop.xlane.xlu0 %3980
        %3982 = vadd.xlane.f32.xlu0 %v3963
        %v3983 = vpop.xlane.xlu0 %3982
        %3984 = vadd.xlane.f32.xlu0 %v3964
        %v3985 = vpop.xlane.xlu0 %3984
        %3986 = vadd.xlane.f32.xlu0 %v3965
        %v3987 = vpop.xlane.xlu0 %3986
        %3988 = vadd.xlane.f32.xlu0 %v3966
        %v3989 = vpop.xlane.xlu0 %3988
        %3990 = vadd.xlane.f32.xlu0 %v3967
        %v3991 = vpop.xlane.xlu0 %3990
        %3992 = vadd.xlane.f32.xlu0 %v3968
        %v3993 = vpop.xlane.xlu0 %3992
        %3994 = vadd.xlane.f32.xlu0 %v3969
        %v3995 = vpop.xlane.xlu0 %3994
        %3996 = vadd.xlane.f32.xlu0 %v3970
        %v3997 = vpop.xlane.xlu0 %3996
        %3998 = vadd.xlane.f32.xlu0 %v3971
        %v3999 = vpop.xlane.xlu0 %3998
        %4000 = vadd.xlane.f32.xlu0 %v3972
        %v4001 = vpop.xlane.xlu0 %4000
        %4002 = vadd.xlane.f32.xlu0 %v3973
        %v4003 = vpop.xlane.xlu0 %4002
        %4004 = vadd.xlane.f32.xlu0 %v3974
        %v4005 = vpop.xlane.xlu0 %4004
        %4006 = vadd.xlane.f32.xlu0 %v3975
        %v4007 = vpop.xlane.xlu0 %4006
        %v4008 = vld [vmem:[%s1793] sm:$0xf]
        %v4009 = vld [vmem:[%s1793 + $0x4] sm:$0xf]
        %v4010 = vld [vmem:[%s1793 + $0x8] sm:$0xf]
        %v4011 = vld [vmem:[%s1793 + $0xc] sm:$0xf]
        %v4012 = vld [vmem:[%s1793 + $0x10] sm:$0xf]
        %v4013 = vld [vmem:[%s1793 + $0x14] sm:$0xf]
        %v4014 = vld [vmem:[%s1793 + $0x18] sm:$0xf]
        %v4015 = vld [vmem:[%s1793 + $0x1c] sm:$0xf]
        %v4016 = vld [vmem:[%s1793 + $0x20] sm:$0xf]
        %v4017 = vld [vmem:[%s1793 + $0x24] sm:$0xf]
        %v4018 = vld [vmem:[%s1793 + $0x28] sm:$0xf]
        %v4019 = vld [vmem:[%s1793 + $0x2c] sm:$0xf]
        %v4020 = vld [vmem:[%s1793 + $0x30] sm:$0xf]
        %v4021 = vld [vmem:[%s1793 + $0x34] sm:$0xf]
        %v4022 = vld [vmem:[%s1793 + $0x38] sm:$0xf]
        %v4023 = vld [vmem:[%s1793 + $0x3c] sm:$0xf]
        %v4024 = vunpack.c.l.bf16 %v4008
        %v4025 = vunpack.c.l.bf16 %v4009
        %v4026 = vunpack.c.l.bf16 %v4010
        %v4027 = vunpack.c.l.bf16 %v4011
        %v4028 = vunpack.c.l.bf16 %v4012
        %v4029 = vunpack.c.l.bf16 %v4013
        %v4030 = vunpack.c.l.bf16 %v4014
        %v4031 = vunpack.c.l.bf16 %v4015
        %v4032 = vunpack.c.l.bf16 %v4016
        %v4033 = vunpack.c.l.bf16 %v4017
        %v4034 = vunpack.c.l.bf16 %v4018
        %v4035 = vunpack.c.l.bf16 %v4019
        %v4036 = vunpack.c.l.bf16 %v4020
        %v4037 = vunpack.c.l.bf16 %v4021
        %v4038 = vunpack.c.l.bf16 %v4022
        %v4039 = vunpack.c.l.bf16 %v4023
        %v4040 = vmul.f32 %v3512, %v4024
        %v4041 = vmul.f32 %v3513, %v4025
        %v4042 = vmul.f32 %v3514, %v4026
        %v4043 = vmul.f32 %v3515, %v4027
        %v4044 = vmul.f32 %v3516, %v4028
        %v4045 = vmul.f32 %v3517, %v4029
        %v4046 = vmul.f32 %v3518, %v4030
        %v4047 = vmul.f32 %v3519, %v4031
        %v4048 = vmul.f32 %v3520, %v4032
        %v4049 = vmul.f32 %v3521, %v4033
        %v4050 = vmul.f32 %v3522, %v4034
        %v4051 = vmul.f32 %v3523, %v4035
        %v4052 = vmul.f32 %v3524, %v4036
        %v4053 = vmul.f32 %v3525, %v4037
        %v4054 = vmul.f32 %v3526, %v4038
        %v4055 = vmul.f32 %v3527, %v4039
        %4056 = vadd.xlane.f32.xlu0 %v4040
        %v4057 = vpop.xlane.xlu0 %4056
        %4058 = vadd.xlane.f32.xlu0 %v4041
        %v4059 = vpop.xlane.xlu0 %4058
        %4060 = vadd.xlane.f32.xlu0 %v4042
        %v4061 = vpop.xlane.xlu0 %4060
        %4062 = vadd.xlane.f32.xlu0 %v4043
        %v4063 = vpop.xlane.xlu0 %4062
        %4064 = vadd.xlane.f32.xlu0 %v4044
        %v4065 = vpop.xlane.xlu0 %4064
        %4066 = vadd.xlane.f32.xlu0 %v4045
        %v4067 = vpop.xlane.xlu0 %4066
        %4068 = vadd.xlane.f32.xlu0 %v4046
        %v4069 = vpop.xlane.xlu0 %4068
        %4070 = vadd.xlane.f32.xlu0 %v4047
        %v4071 = vpop.xlane.xlu0 %4070
        %4072 = vadd.xlane.f32.xlu0 %v4048
        %v4073 = vpop.xlane.xlu0 %4072
        %4074 = vadd.xlane.f32.xlu0 %v4049
        %v4075 = vpop.xlane.xlu0 %4074
        %4076 = vadd.xlane.f32.xlu0 %v4050
        %v4077 = vpop.xlane.xlu0 %4076
        %4078 = vadd.xlane.f32.xlu0 %v4051
        %v4079 = vpop.xlane.xlu0 %4078
        %4080 = vadd.xlane.f32.xlu0 %v4052
        %v4081 = vpop.xlane.xlu0 %4080
        %4082 = vadd.xlane.f32.xlu0 %v4053
        %v4083 = vpop.xlane.xlu0 %4082
        %4084 = vadd.xlane.f32.xlu0 %v4054
        %v4085 = vpop.xlane.xlu0 %4084
        %4086 = vadd.xlane.f32.xlu0 %v4055
        %v4087 = vpop.xlane.xlu0 %4086
        %v4088 = vld [vmem:[%s1874] sm:$0xf]
        %v4089 = vld [vmem:[%s1874 + $0x4] sm:$0xf]
        %v4090 = vld [vmem:[%s1874 + $0x8] sm:$0xf]
        %v4091 = vld [vmem:[%s1874 + $0xc] sm:$0xf]
        %v4092 = vld [vmem:[%s1874 + $0x10] sm:$0xf]
        %v4093 = vld [vmem:[%s1874 + $0x14] sm:$0xf]
        %v4094 = vld [vmem:[%s1874 + $0x18] sm:$0xf]
        %v4095 = vld [vmem:[%s1874 + $0x1c] sm:$0xf]
        %v4096 = vld [vmem:[%s1874 + $0x20] sm:$0xf]
        %v4097 = vld [vmem:[%s1874 + $0x24] sm:$0xf]
        %v4098 = vld [vmem:[%s1874 + $0x28] sm:$0xf]
        %v4099 = vld [vmem:[%s1874 + $0x2c] sm:$0xf]
        %v4100 = vld [vmem:[%s1874 + $0x30] sm:$0xf]
        %v4101 = vld [vmem:[%s1874 + $0x34] sm:$0xf]
        %v4102 = vld [vmem:[%s1874 + $0x38] sm:$0xf]
        %v4103 = vld [vmem:[%s1874 + $0x3c] sm:$0xf]
        %v4104 = vunpack.c.l.bf16 %v4088
        %v4105 = vunpack.c.l.bf16 %v4089
        %v4106 = vunpack.c.l.bf16 %v4090
        %v4107 = vunpack.c.l.bf16 %v4091
        %v4108 = vunpack.c.l.bf16 %v4092
        %v4109 = vunpack.c.l.bf16 %v4093
        %v4110 = vunpack.c.l.bf16 %v4094
        %v4111 = vunpack.c.l.bf16 %v4095
        %v4112 = vunpack.c.l.bf16 %v4096
        %v4113 = vunpack.c.l.bf16 %v4097
        %v4114 = vunpack.c.l.bf16 %v4098
        %v4115 = vunpack.c.l.bf16 %v4099
        %v4116 = vunpack.c.l.bf16 %v4100
        %v4117 = vunpack.c.l.bf16 %v4101
        %v4118 = vunpack.c.l.bf16 %v4102
        %v4119 = vunpack.c.l.bf16 %v4103
        %v4120 = vmul.f32 %v3512, %v4104
        %v4121 = vmul.f32 %v3513, %v4105
        %v4122 = vmul.f32 %v3514, %v4106
        %v4123 = vmul.f32 %v3515, %v4107
        %v4124 = vmul.f32 %v3516, %v4108
        %v4125 = vmul.f32 %v3517, %v4109
        %v4126 = vmul.f32 %v3518, %v4110
        %v4127 = vmul.f32 %v3519, %v4111
        %v4128 = vmul.f32 %v3520, %v4112
        %v4129 = vmul.f32 %v3521, %v4113
        %v4130 = vmul.f32 %v3522, %v4114
        %v4131 = vmul.f32 %v3523, %v4115
        %v4132 = vmul.f32 %v3524, %v4116
        %v4133 = vmul.f32 %v3525, %v4117
        %v4134 = vmul.f32 %v3526, %v4118
        %v4135 = vmul.f32 %v3527, %v4119
        %4136 = vadd.xlane.f32.xlu0 %v4120
        %v4137 = vpop.xlane.xlu0 %4136
        %4138 = vadd.xlane.f32.xlu0 %v4121
        %v4139 = vpop.xlane.xlu0 %4138
        %4140 = vadd.xlane.f32.xlu0 %v4122
        %v4141 = vpop.xlane.xlu0 %4140
        %4142 = vadd.xlane.f32.xlu0 %v4123
        %v4143 = vpop.xlane.xlu0 %4142
        %4144 = vadd.xlane.f32.xlu0 %v4124
        %v4145 = vpop.xlane.xlu0 %4144
        %4146 = vadd.xlane.f32.xlu0 %v4125
        %v4147 = vpop.xlane.xlu0 %4146
        %4148 = vadd.xlane.f32.xlu0 %v4126
        %v4149 = vpop.xlane.xlu0 %4148
        %4150 = vadd.xlane.f32.xlu0 %v4127
        %v4151 = vpop.xlane.xlu0 %4150
        %4152 = vadd.xlane.f32.xlu0 %v4128
        %v4153 = vpop.xlane.xlu0 %4152
        %4154 = vadd.xlane.f32.xlu0 %v4129
        %v4155 = vpop.xlane.xlu0 %4154
        %4156 = vadd.xlane.f32.xlu0 %v4130
        %v4157 = vpop.xlane.xlu0 %4156
        %4158 = vadd.xlane.f32.xlu0 %v4131
        %v4159 = vpop.xlane.xlu0 %4158
        %4160 = vadd.xlane.f32.xlu0 %v4132
        %v4161 = vpop.xlane.xlu0 %4160
        %4162 = vadd.xlane.f32.xlu0 %v4133
        %v4163 = vpop.xlane.xlu0 %4162
        %4164 = vadd.xlane.f32.xlu0 %v4134
        %v4165 = vpop.xlane.xlu0 %4164
        %4166 = vadd.xlane.f32.xlu0 %v4135
        %v4167 = vpop.xlane.xlu0 %4166
        %s4168 = scalar_lea.vmem %s598, 40 [#allocation12]
        %v4169 = vld [vmem:[%s4168] sm:$0xf]
        %v4170 = vld [vmem:[%s4168 + $0x4] sm:$0xf]
        %v4171 = vld [vmem:[%s4168 + $0x8] sm:$0xf]
        %v4172 = vld [vmem:[%s4168 + $0xc] sm:$0xf]
        %v4173 = vld [vmem:[%s4168 + $0x10] sm:$0xf]
        %v4174 = vpack.c.bf16 %v3513, %v3512
        %v4175 = vpack.c.bf16 %v3515, %v3514
        %v4176 = vpack.c.bf16 %v3517, %v3516
        %v4177 = vpack.c.bf16 %v3519, %v3518
        %v4178 = vpack.c.bf16 %v3521, %v3520
        %v4179 = vpack.c.bf16 %v3523, %v3522
        %v4180 = vpack.c.bf16 %v3525, %v3524
        %v4181 = vpack.c.bf16 %v3527, %v3526
        %v4187 = vunpack.c.l.b16 %v4169
        %v4188 = vunpack.c.l.b16 %v4170
        %v4189 = vunpack.c.l.b16 %v4171
        %v4190 = vunpack.c.l.b16 %v4172
        %v4191 = vunpack.c.l.b16 %v4173
        %v4192 = vpack.c.b16 %v4188, %v4187
        %v4193 = vpack.c.b16 %v4190, %v4189
        %v4194 = vpack.c.b16 %v4191, %v4191
        %4198 = vmatprep.subr.bf16.mxu0 0
        %4199 = vmatpush1.bf16.xpose.msra.mxu0 %v4181
        %4200 = vmatprep.subr.bf16.mxu0 0
        %4201 = vmatpush1.bf16.xpose.msra.mxu0 %v4180
        %4202 = vmatprep.subr.bf16.mxu0 0
        %4203 = vmatpush1.bf16.xpose.msra.mxu0 %v4179
        %4204 = vmatprep.subr.bf16.mxu0 0
        %4205 = vmatpush1.bf16.xpose.msra.mxu0 %v4178
        %4206 = vmatprep.subr.bf16.mxu0 0
        %4207 = vmatpush1.bf16.xpose.msra.mxu0 %v4177
        %4208 = vmatprep.subr.bf16.mxu0 0
        %4209 = vmatpush1.bf16.xpose.msra.mxu0 %v4176
        %4210 = vmatprep.subr.bf16.mxu0 0
        %4211 = vmatpush1.bf16.xpose.msra.mxu0 %v4175
        %4212 = vmatprep.subr.bf16.mxu0 0
        %4213 = vmatpush1.bf16.xpose.msra.mxu0 %v4174
        %4214 = vmatprep.subr.bf16.mxu0 0
        %4215 = vmatpush2.bf16.xpose.msra.mxu0 0
        %4216 = vmatprep.subr.bf16.mxu0 0
        %4217 = vmatpush2.bf16.xpose.msra.mxu0 0
        %4218 = vmatprep.subr.bf16.mxu0 0
        %4219 = vmatpush2.bf16.xpose.msra.mxu0 0
        %4220 = vmatprep.subr.bf16.mxu0 0
        %4221 = vmatpush2.bf16.xpose.msra.mxu0 0
        %4222 = vmatprep.subr.bf16.mxu0 0
        %4223 = vmatpush2.bf16.xpose.msra.mxu0 0
        %4224 = vmatprep.subr.bf16.mxu0 0
        %4225 = vmatpush2.bf16.xpose.msra.mxu0 0
        %4226 = vmatprep.subr.bf16.mxu0 0
        %4227 = vmatpush2.bf16.xpose.msra.mxu0 0
        %4228 = vmatprep.subr.bf16.mxu0 0
        %4229 = vmatpush2.bf16.xpose.msra.mxu0 0
        %4230 = vmatprep.mubr.bf16.mxu0 0
        %4231 = vmatmul.mubr.bf16.gmra.mxu0 %v4192
        %v4232 = vpop.f32.mrf.mxu0
        %v4233 = vadd.f32 0.0, %v4232
        %v4234 = vpop.f32.mrf.mxu0
        %v4235 = vpop.f32.mrf.mxu0
        %v4236 = vadd.f32 0.0, %v4235
        %v4237 = vpop.f32.mrf.mxu0
        %4238 = vmatprep.mubr.bf16.mxu0 0
        %4239 = vmatmul.mubr.bf16.gmra.mxu0 %v4193
        %v4240 = vpop.f32.mrf.mxu0
        %v4241 = vadd.f32 0.0, %v4240
        %v4242 = vpop.f32.mrf.mxu0
        %v4243 = vpop.f32.mrf.mxu0
        %v4244 = vadd.f32 0.0, %v4243
        %v4245 = vpop.f32.mrf.mxu0
        %4246 = vmatprep.mubr.bf16.mxu0 0
        %4247 = vmatmul.mubr.bf16.gmra.mxu0 %v4194
        %v4248 = vpop.f32.mrf.mxu0
        %v4249 = vadd.f32 0.0, %v4248
        %v4250 = vpop.f32.mrf.mxu0
        %v4251 = vpop.f32.mrf.mxu0
        %v4252 = vpop.f32.mrf.mxu0
        %4253 = vdwg.mxu0
        %v4254 = vsub.f32 %v4241, %v920
        %v4255 = vmul.f32 %v915, %v4254
        %v4256 = vsub.f32 %v4244, %v945
        %v4257 = vmul.f32 %v940, %v4256
        %v4258 = vadd.f32 %v4255, %v4257
        %v4259 = vsub.f32 %v4249, %v970
        %v4260 = vmul.f32 %v965, %v4259
        %v4261 = vadd.f32 %v4258, %v4260
        %v4262 = vmul.f32 %v925, %v4254
        %v4263 = vmul.f32 %v950, %v4256
        %v4264 = vadd.f32 %v4262, %v4263
        %v4265 = vmul.f32 %v975, %v4259
        %v4266 = vadd.f32 %v4264, %v4265
        %v4267 = vmul.f32 %v934, %v4254
        %v4268 = vmul.f32 %v959, %v4256
        %v4269 = vadd.f32 %v4267, %v4268
        %v4270 = vmul.f32 %v984, %v4259
        %v4271 = vadd.f32 %v4269, %v4270
        %v4272 = vld [vmem:[#allocation3] sm:$0x1]
        %v4273 = vmul.f32 %v4261, %v4261
        %v4274 = vmul.f32 %v4266, %v4266
        %v4275 = vmul.f32 %v4271, %v4271
        %v4276 = vadd.f32 %v4273, %v4274
        %v4277 = vadd.f32 %v4276, %v4275
        %v4278 = vrot.slane %v4277, 4
        %v4279 = vadd.f32 %v4277, %v4278
        %v4280 = vrot.slane %v4279, 2
        %v4281 = vadd.f32 %v4279, %v4280
        %v4282 = vrot.slane %v4281, 1
        %v4283 = vadd.f32 %v4281, %v4282
        %v4284 = vadd.f32 %v4272, %v4283
        %4285 = vst [vmem:[#allocation3] sm:$0x1] %v4284
        %v4286 = vmul.f32 %v915, %v906
        %v4287 = vadd.f32 %v920, %v4286
        %v4288 = vmul.f32 %v925, %v906
        %v4290 = vrot.slane %v4288, 4
        %v4292 = vadd.f32 %v4287, %v4290
        %v4293 = vmul.f32 %v934, %v909
        %v4294 = vadd.f32 %v4292, %v4293
        %v4295 = vmul.f32 %v940, %v906
        %v4296 = vadd.f32 %v945, %v4295
        %v4297 = vmul.f32 %v950, %v906
        %v4299 = vrot.slane %v4297, 4
        %v4301 = vadd.f32 %v4296, %v4299
        %v4302 = vmul.f32 %v959, %v909
        %v4303 = vadd.f32 %v4301, %v4302
        %v4304 = vmul.f32 %v965, %v906
        %v4305 = vadd.f32 %v970, %v4304
        %v4306 = vmul.f32 %v975, %v906
        %v4308 = vrot.slane %v4306, 4
        %v4310 = vadd.f32 %v4305, %v4308
        %v4311 = vmul.f32 %v984, %v909
        %v4312 = vadd.f32 %v4310, %v4311
        %v4314 = vrot.slane %v4303, 4
        %v4316 = vsel %vm990, %v4294, %v4314
        %v4317 = vsel %vm990, %v4312, 0.0
        %s4318 = scalar_lea.vmem %s589, 48 [#allocation10]
        %v4319 = vld [vmem:[%s4318] sm:$0xf]
        %v4320 = vld [vmem:[%s4318 + $0x4] sm:$0xf]
        %v4321 = vld [vmem:[%s4318 + $0x8] sm:$0xf]
        %v4322 = vld [vmem:[%s4318 + $0xc] sm:$0xf]
        %v4323 = vpack.c.bf16 %v901, %v898
        %v4324 = vpack.c.bf16 %v4317, %v4316
        %s4325 = scalar_lea.vmem %s580, 384 [#allocation9]
        %v4326 = vld [vmem:[%s4325] sm:$0xff]
        %v4327 = vld [vmem:[%s4325 + $0x8] sm:$0xff]
        %v4328 = vld [vmem:[%s4325 + $0x10] sm:$0xff]
        %v4329 = vld [vmem:[%s4325 + $0x18] sm:$0xff]
        %v4330 = vld [vmem:[%s4325 + $0x20] sm:$0xff]
        %v4331 = vld [vmem:[%s4325 + $0x28] sm:$0xff]
        %v4332 = vld [vmem:[%s4325 + $0x30] sm:$0xff]
        %v4333 = vld [vmem:[%s4325 + $0x38] sm:$0xff]
        %v4334 = vld [vmem:[%s4325 + $0x40] sm:$0xff]
        %v4335 = vld [vmem:[%s4325 + $0x48] sm:$0xff]
        %v4336 = vld [vmem:[%s4325 + $0x50] sm:$0xff]
        %v4337 = vld [vmem:[%s4325 + $0x58] sm:$0xff]
        %v4338 = vld [vmem:[%s4325 + $0x60] sm:$0xff]
        %v4339 = vld [vmem:[%s4325 + $0x68] sm:$0xff]
        %v4340 = vld [vmem:[%s4325 + $0x70] sm:$0xff]
        %v4341 = vld [vmem:[%s4325 + $0x78] sm:$0xff]
        %4342 = vxpose.xlu0.c.b16.start [1/8] %v4323, 128
        %4343 = vxpose.xlu0.c.b16.cont [2/8] %v4324, 128
        %4344 = vxpose.xlu0.c.b16.cont [3/8] 0, 128
        %4345 = vxpose.xlu0.c.b16.cont [4/8] 0, 128
        %4346 = vxpose.xlu0.c.b16.cont [5/8] 0, 128
        %4347 = vxpose.xlu0.c.b16.cont [6/8] 0, 128
        %4348 = vxpose.xlu0.c.b16.cont [7/8] 0, 128
        %4349 = vxpose.xlu0.c.b16.end [8/8] 0, 128
        %v4350 = vpop.trf.xlu0
        %v4351 = vpop.trf.xlu0
        %v4352 = vpop.trf.xlu0
        %v4353 = vpop.trf.xlu0
        %v4354 = vpop.trf.xlu0
        %v4355 = vpop.trf.xlu0
        %v4356 = vpop.trf.xlu0
        %v4357 = vpop.trf.xlu0
        %v4362 = vunpack.c.l.b16 %v4319
        %v4363 = vunpack.c.l.b16 %v4320
        %v4364 = vunpack.c.l.b16 %v4321
        %v4365 = vunpack.c.l.b16 %v4322
        %v4366 = vpack.c.b16 %v4363, %v4362
        %v4367 = vpack.c.b16 %v4365, %v4364
        %v4371 = vsel %vm790, %v4350, 0
        %v4374 = vsel %vm790, %v4351, 0
        %v4377 = vsel %vm790, %v4352, 0
        %v4380 = vsel %vm790, %v4353, 0
        %v4383 = vsel %vm790, %v4354, 0
        %v4386 = vsel %vm790, %v4355, 0
        %v4389 = vsel %vm790, %v4356, 0
        %v4392 = vsel %vm790, %v4357, 0
        %4394 = vmatprep.subr.bf16.mxu0 0
        %4395 = vmatpush1.bf16.msra.mxu0 0
        %4396 = vmatprep.subr.bf16.mxu0 0
        %4397 = vmatpush1.bf16.msra.mxu0 0
        %4398 = vmatprep.subr.bf16.mxu0 0
        %4399 = vmatpush1.bf16.msra.mxu0 0
        %4400 = vmatprep.subr.bf16.mxu0 0
        %4401 = vmatpush1.bf16.msra.mxu0 0
        %4402 = vmatprep.subr.bf16.mxu0 0
        %4403 = vmatpush1.bf16.msra.mxu0 0
        %4404 = vmatprep.subr.bf16.mxu0 0
        %4405 = vmatpush1.bf16.msra.mxu0 0
        %4406 = vmatprep.subr.bf16.mxu0 0
        %4407 = vmatpush1.bf16.msra.mxu0 %v4367
        %4408 = vmatprep.subr.bf16.mxu0 0
        %4409 = vmatpush1.bf16.msra.mxu0 %v4366
        %4410 = vmatprep.subr.bf16.mxu0 0
        %4411 = vmatpush2.bf16.msra.mxu0 0
        %4412 = vmatprep.subr.bf16.mxu0 0
        %4413 = vmatpush2.bf16.msra.mxu0 0
        %4414 = vmatprep.subr.bf16.mxu0 0
        %4415 = vmatpush2.bf16.msra.mxu0 0
        %4416 = vmatprep.subr.bf16.mxu0 0
        %4417 = vmatpush2.bf16.msra.mxu0 0
        %4418 = vmatprep.subr.bf16.mxu0 0
        %4419 = vmatpush2.bf16.msra.mxu0 0
        %4420 = vmatprep.subr.bf16.mxu0 0
        %4421 = vmatpush2.bf16.msra.mxu0 0
        %4422 = vmatprep.subr.bf16.mxu0 0
        %4423 = vmatpush2.bf16.msra.mxu0 0
        %4424 = vmatprep.subr.bf16.mxu0 0
        %4425 = vmatpush2.bf16.msra.mxu0 0
        %4426 = vmatprep.mubr.bf16.mxu0 0
        %4427 = vmatmul.mubr.bf16.gmra.mxu0 %v4371
        %v4428 = vpop.f32.mrf.mxu0
        %v4429 = vadd.f32 %v4326, %v4428
        %v4430 = vpop.f32.mrf.mxu0
        %v4431 = vpop.f32.mrf.mxu0
        %v4432 = vadd.f32 %v4327, %v4431
        %v4433 = vpop.f32.mrf.mxu0
        %4434 = vmatprep.mubr.bf16.mxu0 0
        %4435 = vmatmul.mubr.bf16.gmra.mxu0 %v4374
        %v4436 = vpop.f32.mrf.mxu0
        %v4437 = vadd.f32 %v4328, %v4436
        %v4438 = vpop.f32.mrf.mxu0
        %v4439 = vpop.f32.mrf.mxu0
        %v4440 = vadd.f32 %v4329, %v4439
        %v4441 = vpop.f32.mrf.mxu0
        %4442 = vmatprep.mubr.bf16.mxu0 0
        %4443 = vmatmul.mubr.bf16.gmra.mxu0 %v4377
        %v4444 = vpop.f32.mrf.mxu0
        %v4445 = vadd.f32 %v4330, %v4444
        %v4446 = vpop.f32.mrf.mxu0
        %v4447 = vpop.f32.mrf.mxu0
        %v4448 = vadd.f32 %v4331, %v4447
        %v4449 = vpop.f32.mrf.mxu0
        %4450 = vmatprep.mubr.bf16.mxu0 0
        %4451 = vmatmul.mubr.bf16.gmra.mxu0 %v4380
        %v4452 = vpop.f32.mrf.mxu0
        %v4453 = vadd.f32 %v4332, %v4452
        %v4454 = vpop.f32.mrf.mxu0
        %v4455 = vpop.f32.mrf.mxu0
        %v4456 = vadd.f32 %v4333, %v4455
        %v4457 = vpop.f32.mrf.mxu0
        %4458 = vmatprep.mubr.bf16.mxu0 0
        %4459 = vmatmul.mubr.bf16.gmra.mxu0 %v4383
        %v4460 = vpop.f32.mrf.mxu0
        %v4461 = vadd.f32 %v4334, %v4460
        %v4462 = vpop.f32.mrf.mxu0
        %v4463 = vpop.f32.mrf.mxu0
        %v4464 = vadd.f32 %v4335, %v4463
        %v4465 = vpop.f32.mrf.mxu0
        %4466 = vmatprep.mubr.bf16.mxu0 0
        %4467 = vmatmul.mubr.bf16.gmra.mxu0 %v4386
        %v4468 = vpop.f32.mrf.mxu0
        %v4469 = vadd.f32 %v4336, %v4468
        %v4470 = vpop.f32.mrf.mxu0
        %v4471 = vpop.f32.mrf.mxu0
        %v4472 = vadd.f32 %v4337, %v4471
        %v4473 = vpop.f32.mrf.mxu0
        %4474 = vmatprep.mubr.bf16.mxu0 0
        %4475 = vmatmul.mubr.bf16.gmra.mxu0 %v4389
        %v4476 = vpop.f32.mrf.mxu0
        %v4477 = vadd.f32 %v4338, %v4476
        %v4478 = vpop.f32.mrf.mxu0
        %v4479 = vpop.f32.mrf.mxu0
        %v4480 = vadd.f32 %v4339, %v4479
        %v4481 = vpop.f32.mrf.mxu0
        %4482 = vmatprep.mubr.bf16.mxu0 0
        %4483 = vmatmul.mubr.bf16.gmra.mxu0 %v4392
        %v4484 = vpop.f32.mrf.mxu0
        %v4485 = vadd.f32 %v4340, %v4484
        %v4486 = vpop.f32.mrf.mxu0
        %v4487 = vpop.f32.mrf.mxu0
        %v4488 = vadd.f32 %v4341, %v4487
        %v4489 = vpop.f32.mrf.mxu0
        %4490 = vdwg.mxu0
        %4491 = vmax.xlane.f32.xlu0 %v4429
        %v4492 = vpop.xlane.xlu0 %4491
        %4493 = vmax.xlane.f32.xlu0 %v4432
        %v4494 = vpop.xlane.xlu0 %4493
        %4495 = vmax.xlane.f32.xlu0 %v4437
        %v4496 = vpop.xlane.xlu0 %4495
        %4497 = vmax.xlane.f32.xlu0 %v4440
        %v4498 = vpop.xlane.xlu0 %4497
        %4499 = vmax.xlane.f32.xlu0 %v4445
        %v4500 = vpop.xlane.xlu0 %4499
        %4501 = vmax.xlane.f32.xlu0 %v4448
        %v4502 = vpop.xlane.xlu0 %4501
        %4503 = vmax.xlane.f32.xlu0 %v4453
        %v4504 = vpop.xlane.xlu0 %4503
        %4505 = vmax.xlane.f32.xlu0 %v4456
        %v4506 = vpop.xlane.xlu0 %4505
        %4507 = vmax.xlane.f32.xlu0 %v4461
        %v4508 = vpop.xlane.xlu0 %4507
        %4509 = vmax.xlane.f32.xlu0 %v4464
        %v4510 = vpop.xlane.xlu0 %4509
        %4511 = vmax.xlane.f32.xlu0 %v4469
        %v4512 = vpop.xlane.xlu0 %4511
        %4513 = vmax.xlane.f32.xlu0 %v4472
        %v4514 = vpop.xlane.xlu0 %4513
        %4515 = vmax.xlane.f32.xlu0 %v4477
        %v4516 = vpop.xlane.xlu0 %4515
        %4517 = vmax.xlane.f32.xlu0 %v4480
        %v4518 = vpop.xlane.xlu0 %4517
        %4519 = vmax.xlane.f32.xlu0 %v4485
        %v4520 = vpop.xlane.xlu0 %4519
        %4521 = vmax.xlane.f32.xlu0 %v4488
        %v4522 = vpop.xlane.xlu0 %4521
        %v4523 = vsub.f32 %v4429, %v4492
        %v4524 = vsub.f32 %v4432, %v4494
        %v4525 = vsub.f32 %v4437, %v4496
        %v4526 = vsub.f32 %v4440, %v4498
        %v4527 = vsub.f32 %v4445, %v4500
        %v4528 = vsub.f32 %v4448, %v4502
        %v4529 = vsub.f32 %v4453, %v4504
        %v4530 = vsub.f32 %v4456, %v4506
        %v4531 = vsub.f32 %v4461, %v4508
        %v4532 = vsub.f32 %v4464, %v4510
        %v4533 = vsub.f32 %v4469, %v4512
        %v4534 = vsub.f32 %v4472, %v4514
        %v4535 = vsub.f32 %v4477, %v4516
        %v4536 = vsub.f32 %v4480, %v4518
        %v4537 = vsub.f32 %v4485, %v4520
        %v4538 = vsub.f32 %v4488, %v4522
        %v4539 = vmul.f32 %v4523, 1.442695
        %v4540 = vpow.pop %v4539
        %v4541 = vmul.f32 %v4524, 1.442695
        %v4542 = vpow.pop %v4541
        %v4543 = vmul.f32 %v4525, 1.442695
        %v4544 = vpow.pop %v4543
        %v4545 = vmul.f32 %v4526, 1.442695
        %v4546 = vpow.pop %v4545
        %v4547 = vmul.f32 %v4527, 1.442695
        %v4548 = vpow.pop %v4547
        %v4549 = vmul.f32 %v4528, 1.442695
        %v4550 = vpow.pop %v4549
        %v4551 = vmul.f32 %v4529, 1.442695
        %v4552 = vpow.pop %v4551
        %v4553 = vmul.f32 %v4530, 1.442695
        %v4554 = vpow.pop %v4553
        %v4555 = vmul.f32 %v4531, 1.442695
        %v4556 = vpow.pop %v4555
        %v4557 = vmul.f32 %v4532, 1.442695
        %v4558 = vpow.pop %v4557
        %v4559 = vmul.f32 %v4533, 1.442695
        %v4560 = vpow.pop %v4559
        %v4561 = vmul.f32 %v4534, 1.442695
        %v4562 = vpow.pop %v4561
        %v4563 = vmul.f32 %v4535, 1.442695
        %v4564 = vpow.pop %v4563
        %v4565 = vmul.f32 %v4536, 1.442695
        %v4566 = vpow.pop %v4565
        %v4567 = vmul.f32 %v4537, 1.442695
        %v4568 = vpow.pop %v4567
        %v4569 = vmul.f32 %v4538, 1.442695
        %v4570 = vpow.pop %v4569
        %4571 = vadd.xlane.f32.xlu0 %v4540
        %v4572 = vpop.xlane.xlu0 %4571
        %4573 = vadd.xlane.f32.xlu0 %v4542
        %v4574 = vpop.xlane.xlu0 %4573
        %4575 = vadd.xlane.f32.xlu0 %v4544
        %v4576 = vpop.xlane.xlu0 %4575
        %4577 = vadd.xlane.f32.xlu0 %v4546
        %v4578 = vpop.xlane.xlu0 %4577
        %4579 = vadd.xlane.f32.xlu0 %v4548
        %v4580 = vpop.xlane.xlu0 %4579
        %4581 = vadd.xlane.f32.xlu0 %v4550
        %v4582 = vpop.xlane.xlu0 %4581
        %4583 = vadd.xlane.f32.xlu0 %v4552
        %v4584 = vpop.xlane.xlu0 %4583
        %4585 = vadd.xlane.f32.xlu0 %v4554
        %v4586 = vpop.xlane.xlu0 %4585
        %4587 = vadd.xlane.f32.xlu0 %v4556
        %v4588 = vpop.xlane.xlu0 %4587
        %4589 = vadd.xlane.f32.xlu0 %v4558
        %v4590 = vpop.xlane.xlu0 %4589
        %4591 = vadd.xlane.f32.xlu0 %v4560
        %v4592 = vpop.xlane.xlu0 %4591
        %4593 = vadd.xlane.f32.xlu0 %v4562
        %v4594 = vpop.xlane.xlu0 %4593
        %4595 = vadd.xlane.f32.xlu0 %v4564
        %v4596 = vpop.xlane.xlu0 %4595
        %4597 = vadd.xlane.f32.xlu0 %v4566
        %v4598 = vpop.xlane.xlu0 %4597
        %4599 = vadd.xlane.f32.xlu0 %v4568
        %v4600 = vpop.xlane.xlu0 %4599
        %4601 = vadd.xlane.f32.xlu0 %v4570
        %v4602 = vpop.xlane.xlu0 %4601
        %v4603 = vrcp.pop %v4572
        %v4604 = vrcp.pop %v4574
        %v4605 = vrcp.pop %v4576
        %v4606 = vrcp.pop %v4578
        %v4607 = vrcp.pop %v4580
        %v4608 = vrcp.pop %v4582
        %v4609 = vrcp.pop %v4584
        %v4610 = vrcp.pop %v4586
        %v4611 = vrcp.pop %v4588
        %v4612 = vrcp.pop %v4590
        %v4613 = vrcp.pop %v4592
        %v4614 = vrcp.pop %v4594
        %v4615 = vrcp.pop %v4596
        %v4616 = vrcp.pop %v4598
        %v4617 = vrcp.pop %v4600
        %v4618 = vrcp.pop %v4602
        %v4619 = vmul.f32 %v4540, %v4603
        %v4620 = vmul.f32 %v4542, %v4604
        %v4621 = vmul.f32 %v4544, %v4605
        %v4622 = vmul.f32 %v4546, %v4606
        %v4623 = vmul.f32 %v4548, %v4607
        %v4624 = vmul.f32 %v4550, %v4608
        %v4625 = vmul.f32 %v4552, %v4609
        %v4626 = vmul.f32 %v4554, %v4610
        %v4627 = vmul.f32 %v4556, %v4611
        %v4628 = vmul.f32 %v4558, %v4612
        %v4629 = vmul.f32 %v4560, %v4613
        %v4630 = vmul.f32 %v4562, %v4614
        %v4631 = vmul.f32 %v4564, %v4615
        %v4632 = vmul.f32 %v4566, %v4616
        %v4633 = vmul.f32 %v4568, %v4617
        %v4634 = vmul.f32 %v4570, %v4618
        %v4635 = vld [vmem:[%s571] sm:$0xf]
        %v4636 = vld [vmem:[%s571 + $0x4] sm:$0xf]
        %v4637 = vld [vmem:[%s571 + $0x8] sm:$0xf]
        %v4638 = vld [vmem:[%s571 + $0xc] sm:$0xf]
        %v4639 = vld [vmem:[%s571 + $0x10] sm:$0xf]
        %v4640 = vld [vmem:[%s571 + $0x14] sm:$0xf]
        %v4641 = vld [vmem:[%s571 + $0x18] sm:$0xf]
        %v4642 = vld [vmem:[%s571 + $0x1c] sm:$0xf]
        %v4643 = vld [vmem:[%s571 + $0x20] sm:$0xf]
        %v4644 = vld [vmem:[%s571 + $0x24] sm:$0xf]
        %v4645 = vld [vmem:[%s571 + $0x28] sm:$0xf]
        %v4646 = vld [vmem:[%s571 + $0x2c] sm:$0xf]
        %v4647 = vld [vmem:[%s571 + $0x30] sm:$0xf]
        %v4648 = vld [vmem:[%s571 + $0x34] sm:$0xf]
        %v4649 = vld [vmem:[%s571 + $0x38] sm:$0xf]
        %v4650 = vld [vmem:[%s571 + $0x3c] sm:$0xf]
        %v4651 = vunpack.c.l.bf16 %v4635
        %v4652 = vunpack.c.l.bf16 %v4636
        %v4653 = vunpack.c.l.bf16 %v4637
        %v4654 = vunpack.c.l.bf16 %v4638
        %v4655 = vunpack.c.l.bf16 %v4639
        %v4656 = vunpack.c.l.bf16 %v4640
        %v4657 = vunpack.c.l.bf16 %v4641
        %v4658 = vunpack.c.l.bf16 %v4642
        %v4659 = vunpack.c.l.bf16 %v4643
        %v4660 = vunpack.c.l.bf16 %v4644
        %v4661 = vunpack.c.l.bf16 %v4645
        %v4662 = vunpack.c.l.bf16 %v4646
        %v4663 = vunpack.c.l.bf16 %v4647
        %v4664 = vunpack.c.l.bf16 %v4648
        %v4665 = vunpack.c.l.bf16 %v4649
        %v4666 = vunpack.c.l.bf16 %v4650
        %v4667 = vmul.f32 %v4619, %v4651
        %v4668 = vmul.f32 %v4620, %v4652
        %v4669 = vmul.f32 %v4621, %v4653
        %v4670 = vmul.f32 %v4622, %v4654
        %v4671 = vmul.f32 %v4623, %v4655
        %v4672 = vmul.f32 %v4624, %v4656
        %v4673 = vmul.f32 %v4625, %v4657
        %v4674 = vmul.f32 %v4626, %v4658
        %v4675 = vmul.f32 %v4627, %v4659
        %v4676 = vmul.f32 %v4628, %v4660
        %v4677 = vmul.f32 %v4629, %v4661
        %v4678 = vmul.f32 %v4630, %v4662
        %v4679 = vmul.f32 %v4631, %v4663
        %v4680 = vmul.f32 %v4632, %v4664
        %v4681 = vmul.f32 %v4633, %v4665
        %v4682 = vmul.f32 %v4634, %v4666
        %4683 = vadd.xlane.f32.xlu0 %v4667
        %v4684 = vpop.xlane.xlu0 %4683
        %4685 = vadd.xlane.f32.xlu0 %v4668
        %v4686 = vpop.xlane.xlu0 %4685
        %4687 = vadd.xlane.f32.xlu0 %v4669
        %v4688 = vpop.xlane.xlu0 %4687
        %4689 = vadd.xlane.f32.xlu0 %v4670
        %v4690 = vpop.xlane.xlu0 %4689
        %4691 = vadd.xlane.f32.xlu0 %v4671
        %v4692 = vpop.xlane.xlu0 %4691
        %4693 = vadd.xlane.f32.xlu0 %v4672
        %v4694 = vpop.xlane.xlu0 %4693
        %4695 = vadd.xlane.f32.xlu0 %v4673
        %v4696 = vpop.xlane.xlu0 %4695
        %4697 = vadd.xlane.f32.xlu0 %v4674
        %v4698 = vpop.xlane.xlu0 %4697
        %4699 = vadd.xlane.f32.xlu0 %v4675
        %v4700 = vpop.xlane.xlu0 %4699
        %4701 = vadd.xlane.f32.xlu0 %v4676
        %v4702 = vpop.xlane.xlu0 %4701
        %4703 = vadd.xlane.f32.xlu0 %v4677
        %v4704 = vpop.xlane.xlu0 %4703
        %4705 = vadd.xlane.f32.xlu0 %v4678
        %v4706 = vpop.xlane.xlu0 %4705
        %4707 = vadd.xlane.f32.xlu0 %v4679
        %v4708 = vpop.xlane.xlu0 %4707
        %4709 = vadd.xlane.f32.xlu0 %v4680
        %v4710 = vpop.xlane.xlu0 %4709
        %4711 = vadd.xlane.f32.xlu0 %v4681
        %v4712 = vpop.xlane.xlu0 %4711
        %4713 = vadd.xlane.f32.xlu0 %v4682
        %v4714 = vpop.xlane.xlu0 %4713
        %v4715 = vld [vmem:[%s1388] sm:$0xf]
        %v4716 = vld [vmem:[%s1388 + $0x4] sm:$0xf]
        %v4717 = vld [vmem:[%s1388 + $0x8] sm:$0xf]
        %v4718 = vld [vmem:[%s1388 + $0xc] sm:$0xf]
        %v4719 = vld [vmem:[%s1388 + $0x10] sm:$0xf]
        %v4720 = vld [vmem:[%s1388 + $0x14] sm:$0xf]
        %v4721 = vld [vmem:[%s1388 + $0x18] sm:$0xf]
        %v4722 = vld [vmem:[%s1388 + $0x1c] sm:$0xf]
        %v4723 = vld [vmem:[%s1388 + $0x20] sm:$0xf]
        %v4724 = vld [vmem:[%s1388 + $0x24] sm:$0xf]
        %v4725 = vld [vmem:[%s1388 + $0x28] sm:$0xf]
        %v4726 = vld [vmem:[%s1388 + $0x2c] sm:$0xf]
        %v4727 = vld [vmem:[%s1388 + $0x30] sm:$0xf]
        %v4728 = vld [vmem:[%s1388 + $0x34] sm:$0xf]
        %v4729 = vld [vmem:[%s1388 + $0x38] sm:$0xf]
        %v4730 = vld [vmem:[%s1388 + $0x3c] sm:$0xf]
        %v4731 = vunpack.c.l.bf16 %v4715
        %v4732 = vunpack.c.l.bf16 %v4716
        %v4733 = vunpack.c.l.bf16 %v4717
        %v4734 = vunpack.c.l.bf16 %v4718
        %v4735 = vunpack.c.l.bf16 %v4719
        %v4736 = vunpack.c.l.bf16 %v4720
        %v4737 = vunpack.c.l.bf16 %v4721
        %v4738 = vunpack.c.l.bf16 %v4722
        %v4739 = vunpack.c.l.bf16 %v4723
        %v4740 = vunpack.c.l.bf16 %v4724
        %v4741 = vunpack.c.l.bf16 %v4725
        %v4742 = vunpack.c.l.bf16 %v4726
        %v4743 = vunpack.c.l.bf16 %v4727
        %v4744 = vunpack.c.l.bf16 %v4728
        %v4745 = vunpack.c.l.bf16 %v4729
        %v4746 = vunpack.c.l.bf16 %v4730
        %v4747 = vmul.f32 %v4619, %v4731
        %v4748 = vmul.f32 %v4620, %v4732
        %v4749 = vmul.f32 %v4621, %v4733
        %v4750 = vmul.f32 %v4622, %v4734
        %v4751 = vmul.f32 %v4623, %v4735
        %v4752 = vmul.f32 %v4624, %v4736
        %v4753 = vmul.f32 %v4625, %v4737
        %v4754 = vmul.f32 %v4626, %v4738
        %v4755 = vmul.f32 %v4627, %v4739
        %v4756 = vmul.f32 %v4628, %v4740
        %v4757 = vmul.f32 %v4629, %v4741
        %v4758 = vmul.f32 %v4630, %v4742
        %v4759 = vmul.f32 %v4631, %v4743
        %v4760 = vmul.f32 %v4632, %v4744
        %v4761 = vmul.f32 %v4633, %v4745
        %v4762 = vmul.f32 %v4634, %v4746
        %4763 = vadd.xlane.f32.xlu0 %v4747
        %v4764 = vpop.xlane.xlu0 %4763
        %4765 = vadd.xlane.f32.xlu0 %v4748
        %v4766 = vpop.xlane.xlu0 %4765
        %4767 = vadd.xlane.f32.xlu0 %v4749
        %v4768 = vpop.xlane.xlu0 %4767
        %4769 = vadd.xlane.f32.xlu0 %v4750
        %v4770 = vpop.xlane.xlu0 %4769
        %4771 = vadd.xlane.f32.xlu0 %v4751
        %v4772 = vpop.xlane.xlu0 %4771
        %4773 = vadd.xlane.f32.xlu0 %v4752
        %v4774 = vpop.xlane.xlu0 %4773
        %4775 = vadd.xlane.f32.xlu0 %v4753
        %v4776 = vpop.xlane.xlu0 %4775
        %4777 = vadd.xlane.f32.xlu0 %v4754
        %v4778 = vpop.xlane.xlu0 %4777
        %4779 = vadd.xlane.f32.xlu0 %v4755
        %v4780 = vpop.xlane.xlu0 %4779
        %4781 = vadd.xlane.f32.xlu0 %v4756
        %v4782 = vpop.xlane.xlu0 %4781
        %4783 = vadd.xlane.f32.xlu0 %v4757
        %v4784 = vpop.xlane.xlu0 %4783
        %4785 = vadd.xlane.f32.xlu0 %v4758
        %v4786 = vpop.xlane.xlu0 %4785
        %4787 = vadd.xlane.f32.xlu0 %v4759
        %v4788 = vpop.xlane.xlu0 %4787
        %4789 = vadd.xlane.f32.xlu0 %v4760
        %v4790 = vpop.xlane.xlu0 %4789
        %4791 = vadd.xlane.f32.xlu0 %v4761
        %v4792 = vpop.xlane.xlu0 %4791
        %4793 = vadd.xlane.f32.xlu0 %v4762
        %v4794 = vpop.xlane.xlu0 %4793
        %v4795 = vld [vmem:[%s1469] sm:$0xf]
        %v4796 = vld [vmem:[%s1469 + $0x4] sm:$0xf]
        %v4797 = vld [vmem:[%s1469 + $0x8] sm:$0xf]
        %v4798 = vld [vmem:[%s1469 + $0xc] sm:$0xf]
        %v4799 = vld [vmem:[%s1469 + $0x10] sm:$0xf]
        %v4800 = vld [vmem:[%s1469 + $0x14] sm:$0xf]
        %v4801 = vld [vmem:[%s1469 + $0x18] sm:$0xf]
        %v4802 = vld [vmem:[%s1469 + $0x1c] sm:$0xf]
        %v4803 = vld [vmem:[%s1469 + $0x20] sm:$0xf]
        %v4804 = vld [vmem:[%s1469 + $0x24] sm:$0xf]
        %v4805 = vld [vmem:[%s1469 + $0x28] sm:$0xf]
        %v4806 = vld [vmem:[%s1469 + $0x2c] sm:$0xf]
        %v4807 = vld [vmem:[%s1469 + $0x30] sm:$0xf]
        %v4808 = vld [vmem:[%s1469 + $0x34] sm:$0xf]
        %v4809 = vld [vmem:[%s1469 + $0x38] sm:$0xf]
        %v4810 = vld [vmem:[%s1469 + $0x3c] sm:$0xf]
        %v4811 = vunpack.c.l.bf16 %v4795
        %v4812 = vunpack.c.l.bf16 %v4796
        %v4813 = vunpack.c.l.bf16 %v4797
        %v4814 = vunpack.c.l.bf16 %v4798
        %v4815 = vunpack.c.l.bf16 %v4799
        %v4816 = vunpack.c.l.bf16 %v4800
        %v4817 = vunpack.c.l.bf16 %v4801
        %v4818 = vunpack.c.l.bf16 %v4802
        %v4819 = vunpack.c.l.bf16 %v4803
        %v4820 = vunpack.c.l.bf16 %v4804
        %v4821 = vunpack.c.l.bf16 %v4805
        %v4822 = vunpack.c.l.bf16 %v4806
        %v4823 = vunpack.c.l.bf16 %v4807
        %v4824 = vunpack.c.l.bf16 %v4808
        %v4825 = vunpack.c.l.bf16 %v4809
        %v4826 = vunpack.c.l.bf16 %v4810
        %v4827 = vmul.f32 %v4619, %v4811
        %v4828 = vmul.f32 %v4620, %v4812
        %v4829 = vmul.f32 %v4621, %v4813
        %v4830 = vmul.f32 %v4622, %v4814
        %v4831 = vmul.f32 %v4623, %v4815
        %v4832 = vmul.f32 %v4624, %v4816
        %v4833 = vmul.f32 %v4625, %v4817
        %v4834 = vmul.f32 %v4626, %v4818
        %v4835 = vmul.f32 %v4627, %v4819
        %v4836 = vmul.f32 %v4628, %v4820
        %v4837 = vmul.f32 %v4629, %v4821
        %v4838 = vmul.f32 %v4630, %v4822
        %v4839 = vmul.f32 %v4631, %v4823
        %v4840 = vmul.f32 %v4632, %v4824
        %v4841 = vmul.f32 %v4633, %v4825
        %v4842 = vmul.f32 %v4634, %v4826
        %4843 = vadd.xlane.f32.xlu0 %v4827
        %v4844 = vpop.xlane.xlu0 %4843
        %4845 = vadd.xlane.f32.xlu0 %v4828
        %v4846 = vpop.xlane.xlu0 %4845
        %4847 = vadd.xlane.f32.xlu0 %v4829
        %v4848 = vpop.xlane.xlu0 %4847
        %4849 = vadd.xlane.f32.xlu0 %v4830
        %v4850 = vpop.xlane.xlu0 %4849
        %4851 = vadd.xlane.f32.xlu0 %v4831
        %v4852 = vpop.xlane.xlu0 %4851
        %4853 = vadd.xlane.f32.xlu0 %v4832
        %v4854 = vpop.xlane.xlu0 %4853
        %4855 = vadd.xlane.f32.xlu0 %v4833
        %v4856 = vpop.xlane.xlu0 %4855
        %4857 = vadd.xlane.f32.xlu0 %v4834
        %v4858 = vpop.xlane.xlu0 %4857
        %4859 = vadd.xlane.f32.xlu0 %v4835
        %v4860 = vpop.xlane.xlu0 %4859
        %4861 = vadd.xlane.f32.xlu0 %v4836
        %v4862 = vpop.xlane.xlu0 %4861
        %4863 = vadd.xlane.f32.xlu0 %v4837
        %v4864 = vpop.xlane.xlu0 %4863
        %4865 = vadd.xlane.f32.xlu0 %v4838
        %v4866 = vpop.xlane.xlu0 %4865
        %4867 = vadd.xlane.f32.xlu0 %v4839
        %v4868 = vpop.xlane.xlu0 %4867
        %4869 = vadd.xlane.f32.xlu0 %v4840
        %v4870 = vpop.xlane.xlu0 %4869
        %4871 = vadd.xlane.f32.xlu0 %v4841
        %v4872 = vpop.xlane.xlu0 %4871
        %4873 = vadd.xlane.f32.xlu0 %v4842
        %v4874 = vpop.xlane.xlu0 %4873
        %v4875 = vld [vmem:[%s1550] sm:$0xf]
        %v4876 = vld [vmem:[%s1550 + $0x4] sm:$0xf]
        %v4877 = vld [vmem:[%s1550 + $0x8] sm:$0xf]
        %v4878 = vld [vmem:[%s1550 + $0xc] sm:$0xf]
        %v4879 = vld [vmem:[%s1550 + $0x10] sm:$0xf]
        %v4880 = vld [vmem:[%s1550 + $0x14] sm:$0xf]
        %v4881 = vld [vmem:[%s1550 + $0x18] sm:$0xf]
        %v4882 = vld [vmem:[%s1550 + $0x1c] sm:$0xf]
        %v4883 = vld [vmem:[%s1550 + $0x20] sm:$0xf]
        %v4884 = vld [vmem:[%s1550 + $0x24] sm:$0xf]
        %v4885 = vld [vmem:[%s1550 + $0x28] sm:$0xf]
        %v4886 = vld [vmem:[%s1550 + $0x2c] sm:$0xf]
        %v4887 = vld [vmem:[%s1550 + $0x30] sm:$0xf]
        %v4888 = vld [vmem:[%s1550 + $0x34] sm:$0xf]
        %v4889 = vld [vmem:[%s1550 + $0x38] sm:$0xf]
        %v4890 = vld [vmem:[%s1550 + $0x3c] sm:$0xf]
        %v4891 = vunpack.c.l.bf16 %v4875
        %v4892 = vunpack.c.l.bf16 %v4876
        %v4893 = vunpack.c.l.bf16 %v4877
        %v4894 = vunpack.c.l.bf16 %v4878
        %v4895 = vunpack.c.l.bf16 %v4879
        %v4896 = vunpack.c.l.bf16 %v4880
        %v4897 = vunpack.c.l.bf16 %v4881
        %v4898 = vunpack.c.l.bf16 %v4882
        %v4899 = vunpack.c.l.bf16 %v4883
        %v4900 = vunpack.c.l.bf16 %v4884
        %v4901 = vunpack.c.l.bf16 %v4885
        %v4902 = vunpack.c.l.bf16 %v4886
        %v4903 = vunpack.c.l.bf16 %v4887
        %v4904 = vunpack.c.l.bf16 %v4888
        %v4905 = vunpack.c.l.bf16 %v4889
        %v4906 = vunpack.c.l.bf16 %v4890
        %v4907 = vmul.f32 %v4619, %v4891
        %v4908 = vmul.f32 %v4620, %v4892
        %v4909 = vmul.f32 %v4621, %v4893
        %v4910 = vmul.f32 %v4622, %v4894
        %v4911 = vmul.f32 %v4623, %v4895
        %v4912 = vmul.f32 %v4624, %v4896
        %v4913 = vmul.f32 %v4625, %v4897
        %v4914 = vmul.f32 %v4626, %v4898
        %v4915 = vmul.f32 %v4627, %v4899
        %v4916 = vmul.f32 %v4628, %v4900
        %v4917 = vmul.f32 %v4629, %v4901
        %v4918 = vmul.f32 %v4630, %v4902
        %v4919 = vmul.f32 %v4631, %v4903
        %v4920 = vmul.f32 %v4632, %v4904
        %v4921 = vmul.f32 %v4633, %v4905
        %v4922 = vmul.f32 %v4634, %v4906
        %4923 = vadd.xlane.f32.xlu0 %v4907
        %v4924 = vpop.xlane.xlu0 %4923
        %4925 = vadd.xlane.f32.xlu0 %v4908
        %v4926 = vpop.xlane.xlu0 %4925
        %4927 = vadd.xlane.f32.xlu0 %v4909
        %v4928 = vpop.xlane.xlu0 %4927
        %4929 = vadd.xlane.f32.xlu0 %v4910
        %v4930 = vpop.xlane.xlu0 %4929
        %4931 = vadd.xlane.f32.xlu0 %v4911
        %v4932 = vpop.xlane.xlu0 %4931
        %4933 = vadd.xlane.f32.xlu0 %v4912
        %v4934 = vpop.xlane.xlu0 %4933
        %4935 = vadd.xlane.f32.xlu0 %v4913
        %v4936 = vpop.xlane.xlu0 %4935
        %4937 = vadd.xlane.f32.xlu0 %v4914
        %v4938 = vpop.xlane.xlu0 %4937
        %4939 = vadd.xlane.f32.xlu0 %v4915
        %v4940 = vpop.xlane.xlu0 %4939
        %4941 = vadd.xlane.f32.xlu0 %v4916
        %v4942 = vpop.xlane.xlu0 %4941
        %4943 = vadd.xlane.f32.xlu0 %v4917
        %v4944 = vpop.xlane.xlu0 %4943
        %4945 = vadd.xlane.f32.xlu0 %v4918
        %v4946 = vpop.xlane.xlu0 %4945
        %4947 = vadd.xlane.f32.xlu0 %v4919
        %v4948 = vpop.xlane.xlu0 %4947
        %4949 = vadd.xlane.f32.xlu0 %v4920
        %v4950 = vpop.xlane.xlu0 %4949
        %4951 = vadd.xlane.f32.xlu0 %v4921
        %v4952 = vpop.xlane.xlu0 %4951
        %4953 = vadd.xlane.f32.xlu0 %v4922
        %v4954 = vpop.xlane.xlu0 %4953
        %v4955 = vld [vmem:[%s1631] sm:$0xf]
        %v4956 = vld [vmem:[%s1631 + $0x4] sm:$0xf]
        %v4957 = vld [vmem:[%s1631 + $0x8] sm:$0xf]
        %v4958 = vld [vmem:[%s1631 + $0xc] sm:$0xf]
        %v4959 = vld [vmem:[%s1631 + $0x10] sm:$0xf]
        %v4960 = vld [vmem:[%s1631 + $0x14] sm:$0xf]
        %v4961 = vld [vmem:[%s1631 + $0x18] sm:$0xf]
        %v4962 = vld [vmem:[%s1631 + $0x1c] sm:$0xf]
        %v4963 = vld [vmem:[%s1631 + $0x20] sm:$0xf]
        %v4964 = vld [vmem:[%s1631 + $0x24] sm:$0xf]
        %v4965 = vld [vmem:[%s1631 + $0x28] sm:$0xf]
        %v4966 = vld [vmem:[%s1631 + $0x2c] sm:$0xf]
        %v4967 = vld [vmem:[%s1631 + $0x30] sm:$0xf]
        %v4968 = vld [vmem:[%s1631 + $0x34] sm:$0xf]
        %v4969 = vld [vmem:[%s1631 + $0x38] sm:$0xf]
        %v4970 = vld [vmem:[%s1631 + $0x3c] sm:$0xf]
        %v4971 = vunpack.c.l.bf16 %v4955
        %v4972 = vunpack.c.l.bf16 %v4956
        %v4973 = vunpack.c.l.bf16 %v4957
        %v4974 = vunpack.c.l.bf16 %v4958
        %v4975 = vunpack.c.l.bf16 %v4959
        %v4976 = vunpack.c.l.bf16 %v4960
        %v4977 = vunpack.c.l.bf16 %v4961
        %v4978 = vunpack.c.l.bf16 %v4962
        %v4979 = vunpack.c.l.bf16 %v4963
        %v4980 = vunpack.c.l.bf16 %v4964
        %v4981 = vunpack.c.l.bf16 %v4965
        %v4982 = vunpack.c.l.bf16 %v4966
        %v4983 = vunpack.c.l.bf16 %v4967
        %v4984 = vunpack.c.l.bf16 %v4968
        %v4985 = vunpack.c.l.bf16 %v4969
        %v4986 = vunpack.c.l.bf16 %v4970
        %v4987 = vmul.f32 %v4619, %v4971
        %v4988 = vmul.f32 %v4620, %v4972
        %v4989 = vmul.f32 %v4621, %v4973
        %v4990 = vmul.f32 %v4622, %v4974
        %v4991 = vmul.f32 %v4623, %v4975
        %v4992 = vmul.f32 %v4624, %v4976
        %v4993 = vmul.f32 %v4625, %v4977
        %v4994 = vmul.f32 %v4626, %v4978
        %v4995 = vmul.f32 %v4627, %v4979
        %v4996 = vmul.f32 %v4628, %v4980
        %v4997 = vmul.f32 %v4629, %v4981
        %v4998 = vmul.f32 %v4630, %v4982
        %v4999 = vmul.f32 %v4631, %v4983
        %v5000 = vmul.f32 %v4632, %v4984
        %v5001 = vmul.f32 %v4633, %v4985
        %v5002 = vmul.f32 %v4634, %v4986
        %5003 = vadd.xlane.f32.xlu0 %v4987
        %v5004 = vpop.xlane.xlu0 %5003
        %5005 = vadd.xlane.f32.xlu0 %v4988
        %v5006 = vpop.xlane.xlu0 %5005
        %5007 = vadd.xlane.f32.xlu0 %v4989
        %v5008 = vpop.xlane.xlu0 %5007
        %5009 = vadd.xlane.f32.xlu0 %v4990
        %v5010 = vpop.xlane.xlu0 %5009
        %5011 = vadd.xlane.f32.xlu0 %v4991
        %v5012 = vpop.xlane.xlu0 %5011
        %5013 = vadd.xlane.f32.xlu0 %v4992
        %v5014 = vpop.xlane.xlu0 %5013
        %5015 = vadd.xlane.f32.xlu0 %v4993
        %v5016 = vpop.xlane.xlu0 %5015
        %5017 = vadd.xlane.f32.xlu0 %v4994
        %v5018 = vpop.xlane.xlu0 %5017
        %5019 = vadd.xlane.f32.xlu0 %v4995
        %v5020 = vpop.xlane.xlu0 %5019
        %5021 = vadd.xlane.f32.xlu0 %v4996
        %v5022 = vpop.xlane.xlu0 %5021
        %5023 = vadd.xlane.f32.xlu0 %v4997
        %v5024 = vpop.xlane.xlu0 %5023
        %5025 = vadd.xlane.f32.xlu0 %v4998
        %v5026 = vpop.xlane.xlu0 %5025
        %5027 = vadd.xlane.f32.xlu0 %v4999
        %v5028 = vpop.xlane.xlu0 %5027
        %5029 = vadd.xlane.f32.xlu0 %v5000
        %v5030 = vpop.xlane.xlu0 %5029
        %5031 = vadd.xlane.f32.xlu0 %v5001
        %v5032 = vpop.xlane.xlu0 %5031
        %5033 = vadd.xlane.f32.xlu0 %v5002
        %v5034 = vpop.xlane.xlu0 %5033
        %v5035 = vld [vmem:[%s1712] sm:$0xf]
        %v5036 = vld [vmem:[%s1712 + $0x4] sm:$0xf]
        %v5037 = vld [vmem:[%s1712 + $0x8] sm:$0xf]
        %v5038 = vld [vmem:[%s1712 + $0xc] sm:$0xf]
        %v5039 = vld [vmem:[%s1712 + $0x10] sm:$0xf]
        %v5040 = vld [vmem:[%s1712 + $0x14] sm:$0xf]
        %v5041 = vld [vmem:[%s1712 + $0x18] sm:$0xf]
        %v5042 = vld [vmem:[%s1712 + $0x1c] sm:$0xf]
        %v5043 = vld [vmem:[%s1712 + $0x20] sm:$0xf]
        %v5044 = vld [vmem:[%s1712 + $0x24] sm:$0xf]
        %v5045 = vld [vmem:[%s1712 + $0x28] sm:$0xf]
        %v5046 = vld [vmem:[%s1712 + $0x2c] sm:$0xf]
        %v5047 = vld [vmem:[%s1712 + $0x30] sm:$0xf]
        %v5048 = vld [vmem:[%s1712 + $0x34] sm:$0xf]
        %v5049 = vld [vmem:[%s1712 + $0x38] sm:$0xf]
        %v5050 = vld [vmem:[%s1712 + $0x3c] sm:$0xf]
        %v5051 = vunpack.c.l.bf16 %v5035
        %v5052 = vunpack.c.l.bf16 %v5036
        %v5053 = vunpack.c.l.bf16 %v5037
        %v5054 = vunpack.c.l.bf16 %v5038
        %v5055 = vunpack.c.l.bf16 %v5039
        %v5056 = vunpack.c.l.bf16 %v5040
        %v5057 = vunpack.c.l.bf16 %v5041
        %v5058 = vunpack.c.l.bf16 %v5042
        %v5059 = vunpack.c.l.bf16 %v5043
        %v5060 = vunpack.c.l.bf16 %v5044
        %v5061 = vunpack.c.l.bf16 %v5045
        %v5062 = vunpack.c.l.bf16 %v5046
        %v5063 = vunpack.c.l.bf16 %v5047
        %v5064 = vunpack.c.l.bf16 %v5048
        %v5065 = vunpack.c.l.bf16 %v5049
        %v5066 = vunpack.c.l.bf16 %v5050
        %v5067 = vmul.f32 %v4619, %v5051
        %v5068 = vmul.f32 %v4620, %v5052
        %v5069 = vmul.f32 %v4621, %v5053
        %v5070 = vmul.f32 %v4622, %v5054
        %v5071 = vmul.f32 %v4623, %v5055
        %v5072 = vmul.f32 %v4624, %v5056
        %v5073 = vmul.f32 %v4625, %v5057
        %v5074 = vmul.f32 %v4626, %v5058
        %v5075 = vmul.f32 %v4627, %v5059
        %v5076 = vmul.f32 %v4628, %v5060
        %v5077 = vmul.f32 %v4629, %v5061
        %v5078 = vmul.f32 %v4630, %v5062
        %v5079 = vmul.f32 %v4631, %v5063
        %v5080 = vmul.f32 %v4632, %v5064
        %v5081 = vmul.f32 %v4633, %v5065
        %v5082 = vmul.f32 %v4634, %v5066
        %5083 = vadd.xlane.f32.xlu0 %v5067
        %v5084 = vpop.xlane.xlu0 %5083
        %5085 = vadd.xlane.f32.xlu0 %v5068
        %v5086 = vpop.xlane.xlu0 %5085
        %5087 = vadd.xlane.f32.xlu0 %v5069
        %v5088 = vpop.xlane.xlu0 %5087
        %5089 = vadd.xlane.f32.xlu0 %v5070
        %v5090 = vpop.xlane.xlu0 %5089
        %5091 = vadd.xlane.f32.xlu0 %v5071
        %v5092 = vpop.xlane.xlu0 %5091
        %5093 = vadd.xlane.f32.xlu0 %v5072
        %v5094 = vpop.xlane.xlu0 %5093
        %5095 = vadd.xlane.f32.xlu0 %v5073
        %v5096 = vpop.xlane.xlu0 %5095
        %5097 = vadd.xlane.f32.xlu0 %v5074
        %v5098 = vpop.xlane.xlu0 %5097
        %5099 = vadd.xlane.f32.xlu0 %v5075
        %v5100 = vpop.xlane.xlu0 %5099
        %5101 = vadd.xlane.f32.xlu0 %v5076
        %v5102 = vpop.xlane.xlu0 %5101
        %5103 = vadd.xlane.f32.xlu0 %v5077
        %v5104 = vpop.xlane.xlu0 %5103
        %5105 = vadd.xlane.f32.xlu0 %v5078
        %v5106 = vpop.xlane.xlu0 %5105
        %5107 = vadd.xlane.f32.xlu0 %v5079
        %v5108 = vpop.xlane.xlu0 %5107
        %5109 = vadd.xlane.f32.xlu0 %v5080
        %v5110 = vpop.xlane.xlu0 %5109
        %5111 = vadd.xlane.f32.xlu0 %v5081
        %v5112 = vpop.xlane.xlu0 %5111
        %5113 = vadd.xlane.f32.xlu0 %v5082
        %v5114 = vpop.xlane.xlu0 %5113
        %v5115 = vld [vmem:[%s1793] sm:$0xf]
        %v5116 = vld [vmem:[%s1793 + $0x4] sm:$0xf]
        %v5117 = vld [vmem:[%s1793 + $0x8] sm:$0xf]
        %v5118 = vld [vmem:[%s1793 + $0xc] sm:$0xf]
        %v5119 = vld [vmem:[%s1793 + $0x10] sm:$0xf]
        %v5120 = vld [vmem:[%s1793 + $0x14] sm:$0xf]
        %v5121 = vld [vmem:[%s1793 + $0x18] sm:$0xf]
        %v5122 = vld [vmem:[%s1793 + $0x1c] sm:$0xf]
        %v5123 = vld [vmem:[%s1793 + $0x20] sm:$0xf]
        %v5124 = vld [vmem:[%s1793 + $0x24] sm:$0xf]
        %v5125 = vld [vmem:[%s1793 + $0x28] sm:$0xf]
        %v5126 = vld [vmem:[%s1793 + $0x2c] sm:$0xf]
        %v5127 = vld [vmem:[%s1793 + $0x30] sm:$0xf]
        %v5128 = vld [vmem:[%s1793 + $0x34] sm:$0xf]
        %v5129 = vld [vmem:[%s1793 + $0x38] sm:$0xf]
        %v5130 = vld [vmem:[%s1793 + $0x3c] sm:$0xf]
        %v5131 = vunpack.c.l.bf16 %v5115
        %v5132 = vunpack.c.l.bf16 %v5116
        %v5133 = vunpack.c.l.bf16 %v5117
        %v5134 = vunpack.c.l.bf16 %v5118
        %v5135 = vunpack.c.l.bf16 %v5119
        %v5136 = vunpack.c.l.bf16 %v5120
        %v5137 = vunpack.c.l.bf16 %v5121
        %v5138 = vunpack.c.l.bf16 %v5122
        %v5139 = vunpack.c.l.bf16 %v5123
        %v5140 = vunpack.c.l.bf16 %v5124
        %v5141 = vunpack.c.l.bf16 %v5125
        %v5142 = vunpack.c.l.bf16 %v5126
        %v5143 = vunpack.c.l.bf16 %v5127
        %v5144 = vunpack.c.l.bf16 %v5128
        %v5145 = vunpack.c.l.bf16 %v5129
        %v5146 = vunpack.c.l.bf16 %v5130
        %v5147 = vmul.f32 %v4619, %v5131
        %v5148 = vmul.f32 %v4620, %v5132
        %v5149 = vmul.f32 %v4621, %v5133
        %v5150 = vmul.f32 %v4622, %v5134
        %v5151 = vmul.f32 %v4623, %v5135
        %v5152 = vmul.f32 %v4624, %v5136
        %v5153 = vmul.f32 %v4625, %v5137
        %v5154 = vmul.f32 %v4626, %v5138
        %v5155 = vmul.f32 %v4627, %v5139
        %v5156 = vmul.f32 %v4628, %v5140
        %v5157 = vmul.f32 %v4629, %v5141
        %v5158 = vmul.f32 %v4630, %v5142
        %v5159 = vmul.f32 %v4631, %v5143
        %v5160 = vmul.f32 %v4632, %v5144
        %v5161 = vmul.f32 %v4633, %v5145
        %v5162 = vmul.f32 %v4634, %v5146
        %5163 = vadd.xlane.f32.xlu0 %v5147
        %v5164 = vpop.xlane.xlu0 %5163
        %5165 = vadd.xlane.f32.xlu0 %v5148
        %v5166 = vpop.xlane.xlu0 %5165
        %5167 = vadd.xlane.f32.xlu0 %v5149
        %v5168 = vpop.xlane.xlu0 %5167
        %5169 = vadd.xlane.f32.xlu0 %v5150
        %v5170 = vpop.xlane.xlu0 %5169
        %5171 = vadd.xlane.f32.xlu0 %v5151
        %v5172 = vpop.xlane.xlu0 %5171
        %5173 = vadd.xlane.f32.xlu0 %v5152
        %v5174 = vpop.xlane.xlu0 %5173
        %5175 = vadd.xlane.f32.xlu0 %v5153
        %v5176 = vpop.xlane.xlu0 %5175
        %5177 = vadd.xlane.f32.xlu0 %v5154
        %v5178 = vpop.xlane.xlu0 %5177
        %5179 = vadd.xlane.f32.xlu0 %v5155
        %v5180 = vpop.xlane.xlu0 %5179
        %5181 = vadd.xlane.f32.xlu0 %v5156
        %v5182 = vpop.xlane.xlu0 %5181
        %5183 = vadd.xlane.f32.xlu0 %v5157
        %v5184 = vpop.xlane.xlu0 %5183
        %5185 = vadd.xlane.f32.xlu0 %v5158
        %v5186 = vpop.xlane.xlu0 %5185
        %5187 = vadd.xlane.f32.xlu0 %v5159
        %v5188 = vpop.xlane.xlu0 %5187
        %5189 = vadd.xlane.f32.xlu0 %v5160
        %v5190 = vpop.xlane.xlu0 %5189
        %5191 = vadd.xlane.f32.xlu0 %v5161
        %v5192 = vpop.xlane.xlu0 %5191
        %5193 = vadd.xlane.f32.xlu0 %v5162
        %v5194 = vpop.xlane.xlu0 %5193
        %v5195 = vld [vmem:[%s1874] sm:$0xf]
        %v5196 = vld [vmem:[%s1874 + $0x4] sm:$0xf]
        %v5197 = vld [vmem:[%s1874 + $0x8] sm:$0xf]
        %v5198 = vld [vmem:[%s1874 + $0xc] sm:$0xf]
        %v5199 = vld [vmem:[%s1874 + $0x10] sm:$0xf]
        %v5200 = vld [vmem:[%s1874 + $0x14] sm:$0xf]
        %v5201 = vld [vmem:[%s1874 + $0x18] sm:$0xf]
        %v5202 = vld [vmem:[%s1874 + $0x1c] sm:$0xf]
        %v5203 = vld [vmem:[%s1874 + $0x20] sm:$0xf]
        %v5204 = vld [vmem:[%s1874 + $0x24] sm:$0xf]
        %v5205 = vld [vmem:[%s1874 + $0x28] sm:$0xf]
        %v5206 = vld [vmem:[%s1874 + $0x2c] sm:$0xf]
        %v5207 = vld [vmem:[%s1874 + $0x30] sm:$0xf]
        %v5208 = vld [vmem:[%s1874 + $0x34] sm:$0xf]
        %v5209 = vld [vmem:[%s1874 + $0x38] sm:$0xf]
        %v5210 = vld [vmem:[%s1874 + $0x3c] sm:$0xf]
        %v5211 = vunpack.c.l.bf16 %v5195
        %v5212 = vunpack.c.l.bf16 %v5196
        %v5213 = vunpack.c.l.bf16 %v5197
        %v5214 = vunpack.c.l.bf16 %v5198
        %v5215 = vunpack.c.l.bf16 %v5199
        %v5216 = vunpack.c.l.bf16 %v5200
        %v5217 = vunpack.c.l.bf16 %v5201
        %v5218 = vunpack.c.l.bf16 %v5202
        %v5219 = vunpack.c.l.bf16 %v5203
        %v5220 = vunpack.c.l.bf16 %v5204
        %v5221 = vunpack.c.l.bf16 %v5205
        %v5222 = vunpack.c.l.bf16 %v5206
        %v5223 = vunpack.c.l.bf16 %v5207
        %v5224 = vunpack.c.l.bf16 %v5208
        %v5225 = vunpack.c.l.bf16 %v5209
        %v5226 = vunpack.c.l.bf16 %v5210
        %v5227 = vmul.f32 %v4619, %v5211
        %v5228 = vmul.f32 %v4620, %v5212
        %v5229 = vmul.f32 %v4621, %v5213
        %v5230 = vmul.f32 %v4622, %v5214
        %v5231 = vmul.f32 %v4623, %v5215
        %v5232 = vmul.f32 %v4624, %v5216
        %v5233 = vmul.f32 %v4625, %v5217
        %v5234 = vmul.f32 %v4626, %v5218
        %v5235 = vmul.f32 %v4627, %v5219
        %v5236 = vmul.f32 %v4628, %v5220
        %v5237 = vmul.f32 %v4629, %v5221
        %v5238 = vmul.f32 %v4630, %v5222
        %v5239 = vmul.f32 %v4631, %v5223
        %v5240 = vmul.f32 %v4632, %v5224
        %v5241 = vmul.f32 %v4633, %v5225
        %v5242 = vmul.f32 %v4634, %v5226
        %5243 = vadd.xlane.f32.xlu0 %v5227
        %v5244 = vpop.xlane.xlu0 %5243
        %5245 = vadd.xlane.f32.xlu0 %v5228
        %v5246 = vpop.xlane.xlu0 %5245
        %5247 = vadd.xlane.f32.xlu0 %v5229
        %v5248 = vpop.xlane.xlu0 %5247
        %5249 = vadd.xlane.f32.xlu0 %v5230
        %v5250 = vpop.xlane.xlu0 %5249
        %5251 = vadd.xlane.f32.xlu0 %v5231
        %v5252 = vpop.xlane.xlu0 %5251
        %5253 = vadd.xlane.f32.xlu0 %v5232
        %v5254 = vpop.xlane.xlu0 %5253
        %5255 = vadd.xlane.f32.xlu0 %v5233
        %v5256 = vpop.xlane.xlu0 %5255
        %5257 = vadd.xlane.f32.xlu0 %v5234
        %v5258 = vpop.xlane.xlu0 %5257
        %5259 = vadd.xlane.f32.xlu0 %v5235
        %v5260 = vpop.xlane.xlu0 %5259
        %5261 = vadd.xlane.f32.xlu0 %v5236
        %v5262 = vpop.xlane.xlu0 %5261
        %5263 = vadd.xlane.f32.xlu0 %v5237
        %v5264 = vpop.xlane.xlu0 %5263
        %5265 = vadd.xlane.f32.xlu0 %v5238
        %v5266 = vpop.xlane.xlu0 %5265
        %5267 = vadd.xlane.f32.xlu0 %v5239
        %v5268 = vpop.xlane.xlu0 %5267
        %5269 = vadd.xlane.f32.xlu0 %v5240
        %v5270 = vpop.xlane.xlu0 %5269
        %5271 = vadd.xlane.f32.xlu0 %v5241
        %v5272 = vpop.xlane.xlu0 %5271
        %5273 = vadd.xlane.f32.xlu0 %v5242
        %v5274 = vpop.xlane.xlu0 %5273
        %s5275 = scalar_lea.vmem %s598, 60 [#allocation12]
        %v5276 = vld [vmem:[%s5275] sm:$0xf]
        %v5277 = vld [vmem:[%s5275 + $0x4] sm:$0xf]
        %v5278 = vld [vmem:[%s5275 + $0x8] sm:$0xf]
        %v5279 = vld [vmem:[%s5275 + $0xc] sm:$0xf]
        %v5280 = vld [vmem:[%s5275 + $0x10] sm:$0xf]
        %v5281 = vpack.c.bf16 %v4620, %v4619
        %v5282 = vpack.c.bf16 %v4622, %v4621
        %v5283 = vpack.c.bf16 %v4624, %v4623
        %v5284 = vpack.c.bf16 %v4626, %v4625
        %v5285 = vpack.c.bf16 %v4628, %v4627
        %v5286 = vpack.c.bf16 %v4630, %v4629
        %v5287 = vpack.c.bf16 %v4632, %v4631
        %v5288 = vpack.c.bf16 %v4634, %v4633
        %v5294 = vunpack.c.l.b16 %v5276
        %v5295 = vunpack.c.l.b16 %v5277
        %v5296 = vunpack.c.l.b16 %v5278
        %v5297 = vunpack.c.l.b16 %v5279
        %v5298 = vunpack.c.l.b16 %v5280
        %v5299 = vpack.c.b16 %v5295, %v5294
        %v5300 = vpack.c.b16 %v5297, %v5296
        %v5301 = vpack.c.b16 %v5298, %v5298
        %5305 = vmatprep.subr.bf16.mxu0 0
        %5306 = vmatpush1.bf16.xpose.msra.mxu0 %v5288
        %5307 = vmatprep.subr.bf16.mxu0 0
        %5308 = vmatpush1.bf16.xpose.msra.mxu0 %v5287
        %5309 = vmatprep.subr.bf16.mxu0 0
        %5310 = vmatpush1.bf16.xpose.msra.mxu0 %v5286
        %5311 = vmatprep.subr.bf16.mxu0 0
        %5312 = vmatpush1.bf16.xpose.msra.mxu0 %v5285
        %5313 = vmatprep.subr.bf16.mxu0 0
        %5314 = vmatpush1.bf16.xpose.msra.mxu0 %v5284
        %5315 = vmatprep.subr.bf16.mxu0 0
        %5316 = vmatpush1.bf16.xpose.msra.mxu0 %v5283
        %5317 = vmatprep.subr.bf16.mxu0 0
        %5318 = vmatpush1.bf16.xpose.msra.mxu0 %v5282
        %5319 = vmatprep.subr.bf16.mxu0 0
        %5320 = vmatpush1.bf16.xpose.msra.mxu0 %v5281
        %5321 = vmatprep.subr.bf16.mxu0 0
        %5322 = vmatpush2.bf16.xpose.msra.mxu0 0
        %5323 = vmatprep.subr.bf16.mxu0 0
        %5324 = vmatpush2.bf16.xpose.msra.mxu0 0
        %5325 = vmatprep.subr.bf16.mxu0 0
        %5326 = vmatpush2.bf16.xpose.msra.mxu0 0
        %5327 = vmatprep.subr.bf16.mxu0 0
        %5328 = vmatpush2.bf16.xpose.msra.mxu0 0
        %5329 = vmatprep.subr.bf16.mxu0 0
        %5330 = vmatpush2.bf16.xpose.msra.mxu0 0
        %5331 = vmatprep.subr.bf16.mxu0 0
        %5332 = vmatpush2.bf16.xpose.msra.mxu0 0
        %5333 = vmatprep.subr.bf16.mxu0 0
        %5334 = vmatpush2.bf16.xpose.msra.mxu0 0
        %5335 = vmatprep.subr.bf16.mxu0 0
        %5336 = vmatpush2.bf16.xpose.msra.mxu0 0
        %5337 = vmatprep.mubr.bf16.mxu0 0
        %5338 = vmatmul.mubr.bf16.gmra.mxu0 %v5299
        %v5339 = vpop.f32.mrf.mxu0
        %v5340 = vadd.f32 0.0, %v5339
        %v5341 = vpop.f32.mrf.mxu0
        %v5342 = vpop.f32.mrf.mxu0
        %v5343 = vadd.f32 0.0, %v5342
        %v5344 = vpop.f32.mrf.mxu0
        %5345 = vmatprep.mubr.bf16.mxu0 0
        %5346 = vmatmul.mubr.bf16.gmra.mxu0 %v5300
        %v5347 = vpop.f32.mrf.mxu0
        %v5348 = vadd.f32 0.0, %v5347
        %v5349 = vpop.f32.mrf.mxu0
        %v5350 = vpop.f32.mrf.mxu0
        %v5351 = vadd.f32 0.0, %v5350
        %v5352 = vpop.f32.mrf.mxu0
        %5353 = vmatprep.mubr.bf16.mxu0 0
        %5354 = vmatmul.mubr.bf16.gmra.mxu0 %v5301
        %v5355 = vpop.f32.mrf.mxu0
        %v5356 = vadd.f32 0.0, %v5355
        %v5357 = vpop.f32.mrf.mxu0
        %v5358 = vpop.f32.mrf.mxu0
        %v5359 = vpop.f32.mrf.mxu0
        %5360 = vdwg.mxu0
        %v5361 = vsub.f32 %v5348, %v920
        %v5362 = vmul.f32 %v915, %v5361
        %v5363 = vsub.f32 %v5351, %v945
        %v5364 = vmul.f32 %v940, %v5363
        %v5365 = vadd.f32 %v5362, %v5364
        %v5366 = vsub.f32 %v5356, %v970
        %v5367 = vmul.f32 %v965, %v5366
        %v5368 = vadd.f32 %v5365, %v5367
        %v5369 = vmul.f32 %v925, %v5361
        %v5370 = vmul.f32 %v950, %v5363
        %v5371 = vadd.f32 %v5369, %v5370
        %v5372 = vmul.f32 %v975, %v5366
        %v5373 = vadd.f32 %v5371, %v5372
        %v5374 = vmul.f32 %v934, %v5361
        %v5375 = vmul.f32 %v959, %v5363
        %v5376 = vadd.f32 %v5374, %v5375
        %v5377 = vmul.f32 %v984, %v5366
        %v5378 = vadd.f32 %v5376, %v5377
        %v5379 = vld [vmem:[#allocation3] sm:$0x1]
        %v5380 = vmul.f32 %v5368, %v5368
        %v5381 = vmul.f32 %v5373, %v5373
        %v5382 = vmul.f32 %v5378, %v5378
        %v5383 = vadd.f32 %v5380, %v5381
        %v5384 = vadd.f32 %v5383, %v5382
        %v5385 = vrot.slane %v5384, 4
        %v5386 = vadd.f32 %v5384, %v5385
        %v5387 = vrot.slane %v5386, 2
        %v5388 = vadd.f32 %v5386, %v5387
        %v5389 = vrot.slane %v5388, 1
        %v5390 = vadd.f32 %v5388, %v5389
        %v5391 = vadd.f32 %v5379, %v5390
        %5392 = vst [vmem:[#allocation3] sm:$0x1] %v5391
        %v5409 = vlaneseq
        %v5410 = vand.u32 %v5409, 127
        %v5411 = vlaneseq
        %v5412 = vshrl.u32 %v5411, 7
        %v5413 = vsub.s32 %v5410, %v5412
        %v5414 = vrot.slane %v1357, %v5413
        %v5415 = vadd.s32 %v5410, 4294967288
        %v5416 = vlaneseq
        %v5417 = vshrl.u32 %v5416, 7
        %v5418 = vsub.s32 %v5415, %v5417
        %v5419 = vrot.slane %v1359, %v5418
        %vm5420 = vcmask 130112
        %v5421 = vsel %vm5420, %v5419, %v5414
        %v5422 = vadd.s32 %v5410, 4294967280
        %v5423 = vlaneseq
        %v5424 = vshrl.u32 %v5423, 7
        %v5425 = vsub.s32 %v5422, %v5424
        %v5426 = vrot.slane %v1361, %v5425
        %vm5427 = vcmask 195712
        %v5428 = vsel %vm5427, %v5426, %v5421
        %v5429 = vadd.s32 %v5410, 4294967272
        %v5430 = vlaneseq
        %v5431 = vshrl.u32 %v5430, 7
        %v5432 = vsub.s32 %v5429, %v5431
        %v5433 = vrot.slane %v1363, %v5432
        %vm5434 = vcmask 261312
        %v5435 = vsel %vm5434, %v5433, %v5428
        %v5436 = vadd.s32 %v5410, 4294967264
        %v5437 = vlaneseq
        %v5438 = vshrl.u32 %v5437, 7
        %v5439 = vsub.s32 %v5436, %v5438
        %v5440 = vrot.slane %v1365, %v5439
        %vm5441 = vcmask 326912
        %v5442 = vsel %vm5441, %v5440, %v5435
        %v5443 = vadd.s32 %v5410, 4294967256
        %v5444 = vlaneseq
        %v5445 = vshrl.u32 %v5444, 7
        %v5446 = vsub.s32 %v5443, %v5445
        %v5447 = vrot.slane %v1367, %v5446
        %vm5448 = vcmask 392512
        %v5449 = vsel %vm5448, %v5447, %v5442
        %v5450 = vadd.s32 %v5410, 4294967248
        %v5451 = vlaneseq
        %v5452 = vshrl.u32 %v5451, 7
        %v5453 = vsub.s32 %v5450, %v5452
        %v5454 = vrot.slane %v1369, %v5453
        %vm5455 = vcmask 458112
        %v5456 = vsel %vm5455, %v5454, %v5449
        %v5457 = vadd.s32 %v5410, 4294967240
        %v5458 = vlaneseq
        %v5459 = vshrl.u32 %v5458, 7
        %v5460 = vsub.s32 %v5457, %v5459
        %v5461 = vrot.slane %v1371, %v5460
        %vm5462 = vcmask 523712
        %v5463 = vsel %vm5462, %v5461, %v5456
        %v5464 = vadd.s32 %v5410, 4294967232
        %v5465 = vlaneseq
        %v5466 = vshrl.u32 %v5465, 7
        %v5467 = vsub.s32 %v5464, %v5466
        %v5468 = vrot.slane %v1373, %v5467
        %vm5469 = vcmask 589312
        %v5470 = vsel %vm5469, %v5468, %v5463
        %v5471 = vadd.s32 %v5410, 4294967224
        %v5472 = vlaneseq
        %v5473 = vshrl.u32 %v5472, 7
        %v5474 = vsub.s32 %v5471, %v5473
        %v5475 = vrot.slane %v1375, %v5474
        %vm5476 = vcmask 654912
        %v5477 = vsel %vm5476, %v5475, %v5470
        %v5478 = vadd.s32 %v5410, 4294967216
        %v5479 = vlaneseq
        %v5480 = vshrl.u32 %v5479, 7
        %v5481 = vsub.s32 %v5478, %v5480
        %v5482 = vrot.slane %v1377, %v5481
        %vm5483 = vcmask 720512
        %v5484 = vsel %vm5483, %v5482, %v5477
        %v5485 = vadd.s32 %v5410, 4294967208
        %v5486 = vlaneseq
        %v5487 = vshrl.u32 %v5486, 7
        %v5488 = vsub.s32 %v5485, %v5487
        %v5489 = vrot.slane %v1379, %v5488
        %vm5490 = vcmask 786112
        %v5491 = vsel %vm5490, %v5489, %v5484
        %v5492 = vadd.s32 %v5410, 4294967200
        %v5493 = vlaneseq
        %v5494 = vshrl.u32 %v5493, 7
        %v5495 = vsub.s32 %v5492, %v5494
        %v5496 = vrot.slane %v1381, %v5495
        %vm5497 = vcmask 851712
        %v5498 = vsel %vm5497, %v5496, %v5491
        %v5499 = vadd.s32 %v5410, 4294967192
        %v5500 = vlaneseq
        %v5501 = vshrl.u32 %v5500, 7
        %v5502 = vsub.s32 %v5499, %v5501
        %v5503 = vrot.slane %v1383, %v5502
        %vm5504 = vcmask 917312
        %v5505 = vsel %vm5504, %v5503, %v5498
        %v5506 = vadd.s32 %v5410, 4294967184
        %v5507 = vlaneseq
        %v5508 = vshrl.u32 %v5507, 7
        %v5509 = vsub.s32 %v5506, %v5508
        %v5510 = vrot.slane %v1385, %v5509
        %vm5511 = vcmask 982912
        %v5512 = vsel %vm5511, %v5510, %v5505
        %v5513 = vadd.s32 %v5410, 4294967176
        %v5514 = vlaneseq
        %v5515 = vshrl.u32 %v5514, 7
        %v5516 = vsub.s32 %v5513, %v5515
        %v5517 = vrot.slane %v1387, %v5516
        %vm5518 = vcmask 1048512
        %v5519 = vsel %vm5518, %v5517, %v5512
        %v5537 = vlaneseq
        %v5538 = vshrl.u32 %v5537, 7
        %v5539 = vsub.s32 %v5410, %v5538
        %v5540 = vrot.slane %v1438, %v5539
        %v5541 = vlaneseq
        %v5542 = vshrl.u32 %v5541, 7
        %v5543 = vsub.s32 %v5415, %v5542
        %v5544 = vrot.slane %v1440, %v5543
        %v5545 = vsel %vm5420, %v5544, %v5540
        %v5546 = vlaneseq
        %v5547 = vshrl.u32 %v5546, 7
        %v5548 = vsub.s32 %v5422, %v5547
        %v5549 = vrot.slane %v1442, %v5548
        %v5550 = vsel %vm5427, %v5549, %v5545
        %v5551 = vlaneseq
        %v5552 = vshrl.u32 %v5551, 7
        %v5553 = vsub.s32 %v5429, %v5552
        %v5554 = vrot.slane %v1444, %v5553
        %v5555 = vsel %vm5434, %v5554, %v5550
        %v5556 = vlaneseq
        %v5557 = vshrl.u32 %v5556, 7
        %v5558 = vsub.s32 %v5436, %v5557
        %v5559 = vrot.slane %v1446, %v5558
        %v5560 = vsel %vm5441, %v5559, %v5555
        %v5561 = vlaneseq
        %v5562 = vshrl.u32 %v5561, 7
        %v5563 = vsub.s32 %v5443, %v5562
        %v5564 = vrot.slane %v1448, %v5563
        %v5565 = vsel %vm5448, %v5564, %v5560
        %v5566 = vlaneseq
        %v5567 = vshrl.u32 %v5566, 7
        %v5568 = vsub.s32 %v5450, %v5567
        %v5569 = vrot.slane %v1450, %v5568
        %v5570 = vsel %vm5455, %v5569, %v5565
        %v5571 = vlaneseq
        %v5572 = vshrl.u32 %v5571, 7
        %v5573 = vsub.s32 %v5457, %v5572
        %v5574 = vrot.slane %v1452, %v5573
        %v5575 = vsel %vm5462, %v5574, %v5570
        %v5576 = vlaneseq
        %v5577 = vshrl.u32 %v5576, 7
        %v5578 = vsub.s32 %v5464, %v5577
        %v5579 = vrot.slane %v1454, %v5578
        %v5580 = vsel %vm5469, %v5579, %v5575
        %v5581 = vlaneseq
        %v5582 = vshrl.u32 %v5581, 7
        %v5583 = vsub.s32 %v5471, %v5582
        %v5584 = vrot.slane %v1456, %v5583
        %v5585 = vsel %vm5476, %v5584, %v5580
        %v5586 = vlaneseq
        %v5587 = vshrl.u32 %v5586, 7
        %v5588 = vsub.s32 %v5478, %v5587
        %v5589 = vrot.slane %v1458, %v5588
        %v5590 = vsel %vm5483, %v5589, %v5585
        %v5591 = vlaneseq
        %v5592 = vshrl.u32 %v5591, 7
        %v5593 = vsub.s32 %v5485, %v5592
        %v5594 = vrot.slane %v1460, %v5593
        %v5595 = vsel %vm5490, %v5594, %v5590
        %v5596 = vlaneseq
        %v5597 = vshrl.u32 %v5596, 7
        %v5598 = vsub.s32 %v5492, %v5597
        %v5599 = vrot.slane %v1462, %v5598
        %v5600 = vsel %vm5497, %v5599, %v5595
        %v5601 = vlaneseq
        %v5602 = vshrl.u32 %v5601, 7
        %v5603 = vsub.s32 %v5499, %v5602
        %v5604 = vrot.slane %v1464, %v5603
        %v5605 = vsel %vm5504, %v5604, %v5600
        %v5606 = vlaneseq
        %v5607 = vshrl.u32 %v5606, 7
        %v5608 = vsub.s32 %v5506, %v5607
        %v5609 = vrot.slane %v1466, %v5608
        %v5610 = vsel %vm5511, %v5609, %v5605
        %v5611 = vlaneseq
        %v5612 = vshrl.u32 %v5611, 7
        %v5613 = vsub.s32 %v5513, %v5612
        %v5614 = vrot.slane %v1468, %v5613
        %v5615 = vsel %vm5518, %v5614, %v5610
        %v5633 = vlaneseq
        %v5634 = vshrl.u32 %v5633, 7
        %v5635 = vsub.s32 %v5410, %v5634
        %v5636 = vrot.slane %v1519, %v5635
        %v5637 = vlaneseq
        %v5638 = vshrl.u32 %v5637, 7
        %v5639 = vsub.s32 %v5415, %v5638
        %v5640 = vrot.slane %v1521, %v5639
        %v5641 = vsel %vm5420, %v5640, %v5636
        %v5642 = vlaneseq
        %v5643 = vshrl.u32 %v5642, 7
        %v5644 = vsub.s32 %v5422, %v5643
        %v5645 = vrot.slane %v1523, %v5644
        %v5646 = vsel %vm5427, %v5645, %v5641
        %v5647 = vlaneseq
        %v5648 = vshrl.u32 %v5647, 7
        %v5649 = vsub.s32 %v5429, %v5648
        %v5650 = vrot.slane %v1525, %v5649
        %v5651 = vsel %vm5434, %v5650, %v5646
        %v5652 = vlaneseq
        %v5653 = vshrl.u32 %v5652, 7
        %v5654 = vsub.s32 %v5436, %v5653
        %v5655 = vrot.slane %v1527, %v5654
        %v5656 = vsel %vm5441, %v5655, %v5651
        %v5657 = vlaneseq
        %v5658 = vshrl.u32 %v5657, 7
        %v5659 = vsub.s32 %v5443, %v5658
        %v5660 = vrot.slane %v1529, %v5659
        %v5661 = vsel %vm5448, %v5660, %v5656
        %v5662 = vlaneseq
        %v5663 = vshrl.u32 %v5662, 7
        %v5664 = vsub.s32 %v5450, %v5663
        %v5665 = vrot.slane %v1531, %v5664
        %v5666 = vsel %vm5455, %v5665, %v5661
        %v5667 = vlaneseq
        %v5668 = vshrl.u32 %v5667, 7
        %v5669 = vsub.s32 %v5457, %v5668
        %v5670 = vrot.slane %v1533, %v5669
        %v5671 = vsel %vm5462, %v5670, %v5666
        %v5672 = vlaneseq
        %v5673 = vshrl.u32 %v5672, 7
        %v5674 = vsub.s32 %v5464, %v5673
        %v5675 = vrot.slane %v1535, %v5674
        %v5676 = vsel %vm5469, %v5675, %v5671
        %v5677 = vlaneseq
        %v5678 = vshrl.u32 %v5677, 7
        %v5679 = vsub.s32 %v5471, %v5678
        %v5680 = vrot.slane %v1537, %v5679
        %v5681 = vsel %vm5476, %v5680, %v5676
        %v5682 = vlaneseq
        %v5683 = vshrl.u32 %v5682, 7
        %v5684 = vsub.s32 %v5478, %v5683
        %v5685 = vrot.slane %v1539, %v5684
        %v5686 = vsel %vm5483, %v5685, %v5681
        %v5687 = vlaneseq
        %v5688 = vshrl.u32 %v5687, 7
        %v5689 = vsub.s32 %v5485, %v5688
        %v5690 = vrot.slane %v1541, %v5689
        %v5691 = vsel %vm5490, %v5690, %v5686
        %v5692 = vlaneseq
        %v5693 = vshrl.u32 %v5692, 7
        %v5694 = vsub.s32 %v5492, %v5693
        %v5695 = vrot.slane %v1543, %v5694
        %v5696 = vsel %vm5497, %v5695, %v5691
        %v5697 = vlaneseq
        %v5698 = vshrl.u32 %v5697, 7
        %v5699 = vsub.s32 %v5499, %v5698
        %v5700 = vrot.slane %v1545, %v5699
        %v5701 = vsel %vm5504, %v5700, %v5696
        %v5702 = vlaneseq
        %v5703 = vshrl.u32 %v5702, 7
        %v5704 = vsub.s32 %v5506, %v5703
        %v5705 = vrot.slane %v1547, %v5704
        %v5706 = vsel %vm5511, %v5705, %v5701
        %v5707 = vlaneseq
        %v5708 = vshrl.u32 %v5707, 7
        %v5709 = vsub.s32 %v5513, %v5708
        %v5710 = vrot.slane %v1549, %v5709
        %v5711 = vsel %vm5518, %v5710, %v5706
        %v5729 = vlaneseq
        %v5730 = vshrl.u32 %v5729, 7
        %v5731 = vsub.s32 %v5410, %v5730
        %v5732 = vrot.slane %v1600, %v5731
        %v5733 = vlaneseq
        %v5734 = vshrl.u32 %v5733, 7
        %v5735 = vsub.s32 %v5415, %v5734
        %v5736 = vrot.slane %v1602, %v5735
        %v5737 = vsel %vm5420, %v5736, %v5732
        %v5738 = vlaneseq
        %v5739 = vshrl.u32 %v5738, 7
        %v5740 = vsub.s32 %v5422, %v5739
        %v5741 = vrot.slane %v1604, %v5740
        %v5742 = vsel %vm5427, %v5741, %v5737
        %v5743 = vlaneseq
        %v5744 = vshrl.u32 %v5743, 7
        %v5745 = vsub.s32 %v5429, %v5744
        %v5746 = vrot.slane %v1606, %v5745
        %v5747 = vsel %vm5434, %v5746, %v5742
        %v5748 = vlaneseq
        %v5749 = vshrl.u32 %v5748, 7
        %v5750 = vsub.s32 %v5436, %v5749
        %v5751 = vrot.slane %v1608, %v5750
        %v5752 = vsel %vm5441, %v5751, %v5747
        %v5753 = vlaneseq
        %v5754 = vshrl.u32 %v5753, 7
        %v5755 = vsub.s32 %v5443, %v5754
        %v5756 = vrot.slane %v1610, %v5755
        %v5757 = vsel %vm5448, %v5756, %v5752
        %v5758 = vlaneseq
        %v5759 = vshrl.u32 %v5758, 7
        %v5760 = vsub.s32 %v5450, %v5759
        %v5761 = vrot.slane %v1612, %v5760
        %v5762 = vsel %vm5455, %v5761, %v5757
        %v5763 = vlaneseq
        %v5764 = vshrl.u32 %v5763, 7
        %v5765 = vsub.s32 %v5457, %v5764
        %v5766 = vrot.slane %v1614, %v5765
        %v5767 = vsel %vm5462, %v5766, %v5762
        %v5768 = vlaneseq
        %v5769 = vshrl.u32 %v5768, 7
        %v5770 = vsub.s32 %v5464, %v5769
        %v5771 = vrot.slane %v1616, %v5770
        %v5772 = vsel %vm5469, %v5771, %v5767
        %v5773 = vlaneseq
        %v5774 = vshrl.u32 %v5773, 7
        %v5775 = vsub.s32 %v5471, %v5774
        %v5776 = vrot.slane %v1618, %v5775
        %v5777 = vsel %vm5476, %v5776, %v5772
        %v5778 = vlaneseq
        %v5779 = vshrl.u32 %v5778, 7
        %v5780 = vsub.s32 %v5478, %v5779
        %v5781 = vrot.slane %v1620, %v5780
        %v5782 = vsel %vm5483, %v5781, %v5777
        %v5783 = vlaneseq
        %v5784 = vshrl.u32 %v5783, 7
        %v5785 = vsub.s32 %v5485, %v5784
        %v5786 = vrot.slane %v1622, %v5785
        %v5787 = vsel %vm5490, %v5786, %v5782
        %v5788 = vlaneseq
        %v5789 = vshrl.u32 %v5788, 7
        %v5790 = vsub.s32 %v5492, %v5789
        %v5791 = vrot.slane %v1624, %v5790
        %v5792 = vsel %vm5497, %v5791, %v5787
        %v5793 = vlaneseq
        %v5794 = vshrl.u32 %v5793, 7
        %v5795 = vsub.s32 %v5499, %v5794
        %v5796 = vrot.slane %v1626, %v5795
        %v5797 = vsel %vm5504, %v5796, %v5792
        %v5798 = vlaneseq
        %v5799 = vshrl.u32 %v5798, 7
        %v5800 = vsub.s32 %v5506, %v5799
        %v5801 = vrot.slane %v1628, %v5800
        %v5802 = vsel %vm5511, %v5801, %v5797
        %v5803 = vlaneseq
        %v5804 = vshrl.u32 %v5803, 7
        %v5805 = vsub.s32 %v5513, %v5804
        %v5806 = vrot.slane %v1630, %v5805
        %v5807 = vsel %vm5518, %v5806, %v5802
        %v5825 = vlaneseq
        %v5826 = vshrl.u32 %v5825, 7
        %v5827 = vsub.s32 %v5410, %v5826
        %v5828 = vrot.slane %v1681, %v5827
        %v5829 = vlaneseq
        %v5830 = vshrl.u32 %v5829, 7
        %v5831 = vsub.s32 %v5415, %v5830
        %v5832 = vrot.slane %v1683, %v5831
        %v5833 = vsel %vm5420, %v5832, %v5828
        %v5834 = vlaneseq
        %v5835 = vshrl.u32 %v5834, 7
        %v5836 = vsub.s32 %v5422, %v5835
        %v5837 = vrot.slane %v1685, %v5836
        %v5838 = vsel %vm5427, %v5837, %v5833
        %v5839 = vlaneseq
        %v5840 = vshrl.u32 %v5839, 7
        %v5841 = vsub.s32 %v5429, %v5840
        %v5842 = vrot.slane %v1687, %v5841
        %v5843 = vsel %vm5434, %v5842, %v5838
        %v5844 = vlaneseq
        %v5845 = vshrl.u32 %v5844, 7
        %v5846 = vsub.s32 %v5436, %v5845
        %v5847 = vrot.slane %v1689, %v5846
        %v5848 = vsel %vm5441, %v5847, %v5843
        %v5849 = vlaneseq
        %v5850 = vshrl.u32 %v5849, 7
        %v5851 = vsub.s32 %v5443, %v5850
        %v5852 = vrot.slane %v1691, %v5851
        %v5853 = vsel %vm5448, %v5852, %v5848
        %v5854 = vlaneseq
        %v5855 = vshrl.u32 %v5854, 7
        %v5856 = vsub.s32 %v5450, %v5855
        %v5857 = vrot.slane %v1693, %v5856
        %v5858 = vsel %vm5455, %v5857, %v5853
        %v5859 = vlaneseq
        %v5860 = vshrl.u32 %v5859, 7
        %v5861 = vsub.s32 %v5457, %v5860
        %v5862 = vrot.slane %v1695, %v5861
        %v5863 = vsel %vm5462, %v5862, %v5858
        %v5864 = vlaneseq
        %v5865 = vshrl.u32 %v5864, 7
        %v5866 = vsub.s32 %v5464, %v5865
        %v5867 = vrot.slane %v1697, %v5866
        %v5868 = vsel %vm5469, %v5867, %v5863
        %v5869 = vlaneseq
        %v5870 = vshrl.u32 %v5869, 7
        %v5871 = vsub.s32 %v5471, %v5870
        %v5872 = vrot.slane %v1699, %v5871
        %v5873 = vsel %vm5476, %v5872, %v5868
        %v5874 = vlaneseq
        %v5875 = vshrl.u32 %v5874, 7
        %v5876 = vsub.s32 %v5478, %v5875
        %v5877 = vrot.slane %v1701, %v5876
        %v5878 = vsel %vm5483, %v5877, %v5873
        %v5879 = vlaneseq
        %v5880 = vshrl.u32 %v5879, 7
        %v5881 = vsub.s32 %v5485, %v5880
        %v5882 = vrot.slane %v1703, %v5881
        %v5883 = vsel %vm5490, %v5882, %v5878
        %v5884 = vlaneseq
        %v5885 = vshrl.u32 %v5884, 7
        %v5886 = vsub.s32 %v5492, %v5885
        %v5887 = vrot.slane %v1705, %v5886
        %v5888 = vsel %vm5497, %v5887, %v5883
        %v5889 = vlaneseq
        %v5890 = vshrl.u32 %v5889, 7
        %v5891 = vsub.s32 %v5499, %v5890
        %v5892 = vrot.slane %v1707, %v5891
        %v5893 = vsel %vm5504, %v5892, %v5888
        %v5894 = vlaneseq
        %v5895 = vshrl.u32 %v5894, 7
        %v5896 = vsub.s32 %v5506, %v5895
        %v5897 = vrot.slane %v1709, %v5896
        %v5898 = vsel %vm5511, %v5897, %v5893
        %v5899 = vlaneseq
        %v5900 = vshrl.u32 %v5899, 7
        %v5901 = vsub.s32 %v5513, %v5900
        %v5902 = vrot.slane %v1711, %v5901
        %v5903 = vsel %vm5518, %v5902, %v5898
        %v5921 = vlaneseq
        %v5922 = vshrl.u32 %v5921, 7
        %v5923 = vsub.s32 %v5410, %v5922
        %v5924 = vrot.slane %v1762, %v5923
        %v5925 = vlaneseq
        %v5926 = vshrl.u32 %v5925, 7
        %v5927 = vsub.s32 %v5415, %v5926
        %v5928 = vrot.slane %v1764, %v5927
        %v5929 = vsel %vm5420, %v5928, %v5924
        %v5930 = vlaneseq
        %v5931 = vshrl.u32 %v5930, 7
        %v5932 = vsub.s32 %v5422, %v5931
        %v5933 = vrot.slane %v1766, %v5932
        %v5934 = vsel %vm5427, %v5933, %v5929
        %v5935 = vlaneseq
        %v5936 = vshrl.u32 %v5935, 7
        %v5937 = vsub.s32 %v5429, %v5936
        %v5938 = vrot.slane %v1768, %v5937
        %v5939 = vsel %vm5434, %v5938, %v5934
        %v5940 = vlaneseq
        %v5941 = vshrl.u32 %v5940, 7
        %v5942 = vsub.s32 %v5436, %v5941
        %v5943 = vrot.slane %v1770, %v5942
        %v5944 = vsel %vm5441, %v5943, %v5939
        %v5945 = vlaneseq
        %v5946 = vshrl.u32 %v5945, 7
        %v5947 = vsub.s32 %v5443, %v5946
        %v5948 = vrot.slane %v1772, %v5947
        %v5949 = vsel %vm5448, %v5948, %v5944
        %v5950 = vlaneseq
        %v5951 = vshrl.u32 %v5950, 7
        %v5952 = vsub.s32 %v5450, %v5951
        %v5953 = vrot.slane %v1774, %v5952
        %v5954 = vsel %vm5455, %v5953, %v5949
        %v5955 = vlaneseq
        %v5956 = vshrl.u32 %v5955, 7
        %v5957 = vsub.s32 %v5457, %v5956
        %v5958 = vrot.slane %v1776, %v5957
        %v5959 = vsel %vm5462, %v5958, %v5954
        %v5960 = vlaneseq
        %v5961 = vshrl.u32 %v5960, 7
        %v5962 = vsub.s32 %v5464, %v5961
        %v5963 = vrot.slane %v1778, %v5962
        %v5964 = vsel %vm5469, %v5963, %v5959
        %v5965 = vlaneseq
        %v5966 = vshrl.u32 %v5965, 7
        %v5967 = vsub.s32 %v5471, %v5966
        %v5968 = vrot.slane %v1780, %v5967
        %v5969 = vsel %vm5476, %v5968, %v5964
        %v5970 = vlaneseq
        %v5971 = vshrl.u32 %v5970, 7
        %v5972 = vsub.s32 %v5478, %v5971
        %v5973 = vrot.slane %v1782, %v5972
        %v5974 = vsel %vm5483, %v5973, %v5969
        %v5975 = vlaneseq
        %v5976 = vshrl.u32 %v5975, 7
        %v5977 = vsub.s32 %v5485, %v5976
        %v5978 = vrot.slane %v1784, %v5977
        %v5979 = vsel %vm5490, %v5978, %v5974
        %v5980 = vlaneseq
        %v5981 = vshrl.u32 %v5980, 7
        %v5982 = vsub.s32 %v5492, %v5981
        %v5983 = vrot.slane %v1786, %v5982
        %v5984 = vsel %vm5497, %v5983, %v5979
        %v5985 = vlaneseq
        %v5986 = vshrl.u32 %v5985, 7
        %v5987 = vsub.s32 %v5499, %v5986
        %v5988 = vrot.slane %v1788, %v5987
        %v5989 = vsel %vm5504, %v5988, %v5984
        %v5990 = vlaneseq
        %v5991 = vshrl.u32 %v5990, 7
        %v5992 = vsub.s32 %v5506, %v5991
        %v5993 = vrot.slane %v1790, %v5992
        %v5994 = vsel %vm5511, %v5993, %v5989
        %v5995 = vlaneseq
        %v5996 = vshrl.u32 %v5995, 7
        %v5997 = vsub.s32 %v5513, %v5996
        %v5998 = vrot.slane %v1792, %v5997
        %v5999 = vsel %vm5518, %v5998, %v5994
        %v6017 = vlaneseq
        %v6018 = vshrl.u32 %v6017, 7
        %v6019 = vsub.s32 %v5410, %v6018
        %v6020 = vrot.slane %v1843, %v6019
        %v6021 = vlaneseq
        %v6022 = vshrl.u32 %v6021, 7
        %v6023 = vsub.s32 %v5415, %v6022
        %v6024 = vrot.slane %v1845, %v6023
        %v6025 = vsel %vm5420, %v6024, %v6020
        %v6026 = vlaneseq
        %v6027 = vshrl.u32 %v6026, 7
        %v6028 = vsub.s32 %v5422, %v6027
        %v6029 = vrot.slane %v1847, %v6028
        %v6030 = vsel %vm5427, %v6029, %v6025
        %v6031 = vlaneseq
        %v6032 = vshrl.u32 %v6031, 7
        %v6033 = vsub.s32 %v5429, %v6032
        %v6034 = vrot.slane %v1849, %v6033
        %v6035 = vsel %vm5434, %v6034, %v6030
        %v6036 = vlaneseq
        %v6037 = vshrl.u32 %v6036, 7
        %v6038 = vsub.s32 %v5436, %v6037
        %v6039 = vrot.slane %v1851, %v6038
        %v6040 = vsel %vm5441, %v6039, %v6035
        %v6041 = vlaneseq
        %v6042 = vshrl.u32 %v6041, 7
        %v6043 = vsub.s32 %v5443, %v6042
        %v6044 = vrot.slane %v1853, %v6043
        %v6045 = vsel %vm5448, %v6044, %v6040
        %v6046 = vlaneseq
        %v6047 = vshrl.u32 %v6046, 7
        %v6048 = vsub.s32 %v5450, %v6047
        %v6049 = vrot.slane %v1855, %v6048
        %v6050 = vsel %vm5455, %v6049, %v6045
        %v6051 = vlaneseq
        %v6052 = vshrl.u32 %v6051, 7
        %v6053 = vsub.s32 %v5457, %v6052
        %v6054 = vrot.slane %v1857, %v6053
        %v6055 = vsel %vm5462, %v6054, %v6050
        %v6056 = vlaneseq
        %v6057 = vshrl.u32 %v6056, 7
        %v6058 = vsub.s32 %v5464, %v6057
        %v6059 = vrot.slane %v1859, %v6058
        %v6060 = vsel %vm5469, %v6059, %v6055
        %v6061 = vlaneseq
        %v6062 = vshrl.u32 %v6061, 7
        %v6063 = vsub.s32 %v5471, %v6062
        %v6064 = vrot.slane %v1861, %v6063
        %v6065 = vsel %vm5476, %v6064, %v6060
        %v6066 = vlaneseq
        %v6067 = vshrl.u32 %v6066, 7
        %v6068 = vsub.s32 %v5478, %v6067
        %v6069 = vrot.slane %v1863, %v6068
        %v6070 = vsel %vm5483, %v6069, %v6065
        %v6071 = vlaneseq
        %v6072 = vshrl.u32 %v6071, 7
        %v6073 = vsub.s32 %v5485, %v6072
        %v6074 = vrot.slane %v1865, %v6073
        %v6075 = vsel %vm5490, %v6074, %v6070
        %v6076 = vlaneseq
        %v6077 = vshrl.u32 %v6076, 7
        %v6078 = vsub.s32 %v5492, %v6077
        %v6079 = vrot.slane %v1867, %v6078
        %v6080 = vsel %vm5497, %v6079, %v6075
        %v6081 = vlaneseq
        %v6082 = vshrl.u32 %v6081, 7
        %v6083 = vsub.s32 %v5499, %v6082
        %v6084 = vrot.slane %v1869, %v6083
        %v6085 = vsel %vm5504, %v6084, %v6080
        %v6086 = vlaneseq
        %v6087 = vshrl.u32 %v6086, 7
        %v6088 = vsub.s32 %v5506, %v6087
        %v6089 = vrot.slane %v1871, %v6088
        %v6090 = vsel %vm5511, %v6089, %v6085
        %v6091 = vlaneseq
        %v6092 = vshrl.u32 %v6091, 7
        %v6093 = vsub.s32 %v5513, %v6092
        %v6094 = vrot.slane %v1873, %v6093
        %v6095 = vsel %vm5518, %v6094, %v6090
        %v6113 = vlaneseq
        %v6114 = vshrl.u32 %v6113, 7
        %v6115 = vsub.s32 %v5410, %v6114
        %v6116 = vrot.slane %v1924, %v6115
        %v6117 = vlaneseq
        %v6118 = vshrl.u32 %v6117, 7
        %v6119 = vsub.s32 %v5415, %v6118
        %v6120 = vrot.slane %v1926, %v6119
        %v6121 = vsel %vm5420, %v6120, %v6116
        %v6122 = vlaneseq
        %v6123 = vshrl.u32 %v6122, 7
        %v6124 = vsub.s32 %v5422, %v6123
        %v6125 = vrot.slane %v1928, %v6124
        %v6126 = vsel %vm5427, %v6125, %v6121
        %v6127 = vlaneseq
        %v6128 = vshrl.u32 %v6127, 7
        %v6129 = vsub.s32 %v5429, %v6128
        %v6130 = vrot.slane %v1930, %v6129
        %v6131 = vsel %vm5434, %v6130, %v6126
        %v6132 = vlaneseq
        %v6133 = vshrl.u32 %v6132, 7
        %v6134 = vsub.s32 %v5436, %v6133
        %v6135 = vrot.slane %v1932, %v6134
        %v6136 = vsel %vm5441, %v6135, %v6131
        %v6137 = vlaneseq
        %v6138 = vshrl.u32 %v6137, 7
        %v6139 = vsub.s32 %v5443, %v6138
        %v6140 = vrot.slane %v1934, %v6139
        %v6141 = vsel %vm5448, %v6140, %v6136
        %v6142 = vlaneseq
        %v6143 = vshrl.u32 %v6142, 7
        %v6144 = vsub.s32 %v5450, %v6143
        %v6145 = vrot.slane %v1936, %v6144
        %v6146 = vsel %vm5455, %v6145, %v6141
        %v6147 = vlaneseq
        %v6148 = vshrl.u32 %v6147, 7
        %v6149 = vsub.s32 %v5457, %v6148
        %v6150 = vrot.slane %v1938, %v6149
        %v6151 = vsel %vm5462, %v6150, %v6146
        %v6152 = vlaneseq
        %v6153 = vshrl.u32 %v6152, 7
        %v6154 = vsub.s32 %v5464, %v6153
        %v6155 = vrot.slane %v1940, %v6154
        %v6156 = vsel %vm5469, %v6155, %v6151
        %v6157 = vlaneseq
        %v6158 = vshrl.u32 %v6157, 7
        %v6159 = vsub.s32 %v5471, %v6158
        %v6160 = vrot.slane %v1942, %v6159
        %v6161 = vsel %vm5476, %v6160, %v6156
        %v6162 = vlaneseq
        %v6163 = vshrl.u32 %v6162, 7
        %v6164 = vsub.s32 %v5478, %v6163
        %v6165 = vrot.slane %v1944, %v6164
        %v6166 = vsel %vm5483, %v6165, %v6161
        %v6167 = vlaneseq
        %v6168 = vshrl.u32 %v6167, 7
        %v6169 = vsub.s32 %v5485, %v6168
        %v6170 = vrot.slane %v1946, %v6169
        %v6171 = vsel %vm5490, %v6170, %v6166
        %v6172 = vlaneseq
        %v6173 = vshrl.u32 %v6172, 7
        %v6174 = vsub.s32 %v5492, %v6173
        %v6175 = vrot.slane %v1948, %v6174
        %v6176 = vsel %vm5497, %v6175, %v6171
        %v6177 = vlaneseq
        %v6178 = vshrl.u32 %v6177, 7
        %v6179 = vsub.s32 %v5499, %v6178
        %v6180 = vrot.slane %v1950, %v6179
        %v6181 = vsel %vm5504, %v6180, %v6176
        %v6182 = vlaneseq
        %v6183 = vshrl.u32 %v6182, 7
        %v6184 = vsub.s32 %v5506, %v6183
        %v6185 = vrot.slane %v1952, %v6184
        %v6186 = vsel %vm5511, %v6185, %v6181
        %v6187 = vlaneseq
        %v6188 = vshrl.u32 %v6187, 7
        %v6189 = vsub.s32 %v5513, %v6188
        %v6190 = vrot.slane %v1954, %v6189
        %v6191 = vsel %vm5518, %v6190, %v6186
        %v6209 = vlaneseq
        %v6210 = vshrl.u32 %v6209, 7
        %v6211 = vsub.s32 %v5410, %v6210
        %v6212 = vrot.slane %v2470, %v6211
        %v6213 = vlaneseq
        %v6214 = vshrl.u32 %v6213, 7
        %v6215 = vsub.s32 %v5415, %v6214
        %v6216 = vrot.slane %v2472, %v6215
        %v6217 = vsel %vm5420, %v6216, %v6212
        %v6218 = vlaneseq
        %v6219 = vshrl.u32 %v6218, 7
        %v6220 = vsub.s32 %v5422, %v6219
        %v6221 = vrot.slane %v2474, %v6220
        %v6222 = vsel %vm5427, %v6221, %v6217
        %v6223 = vlaneseq
        %v6224 = vshrl.u32 %v6223, 7
        %v6225 = vsub.s32 %v5429, %v6224
        %v6226 = vrot.slane %v2476, %v6225
        %v6227 = vsel %vm5434, %v6226, %v6222
        %v6228 = vlaneseq
        %v6229 = vshrl.u32 %v6228, 7
        %v6230 = vsub.s32 %v5436, %v6229
        %v6231 = vrot.slane %v2478, %v6230
        %v6232 = vsel %vm5441, %v6231, %v6227
        %v6233 = vlaneseq
        %v6234 = vshrl.u32 %v6233, 7
        %v6235 = vsub.s32 %v5443, %v6234
        %v6236 = vrot.slane %v2480, %v6235
        %v6237 = vsel %vm5448, %v6236, %v6232
        %v6238 = vlaneseq
        %v6239 = vshrl.u32 %v6238, 7
        %v6240 = vsub.s32 %v5450, %v6239
        %v6241 = vrot.slane %v2482, %v6240
        %v6242 = vsel %vm5455, %v6241, %v6237
        %v6243 = vlaneseq
        %v6244 = vshrl.u32 %v6243, 7
        %v6245 = vsub.s32 %v5457, %v6244
        %v6246 = vrot.slane %v2484, %v6245
        %v6247 = vsel %vm5462, %v6246, %v6242
        %v6248 = vlaneseq
        %v6249 = vshrl.u32 %v6248, 7
        %v6250 = vsub.s32 %v5464, %v6249
        %v6251 = vrot.slane %v2486, %v6250
        %v6252 = vsel %vm5469, %v6251, %v6247
        %v6253 = vlaneseq
        %v6254 = vshrl.u32 %v6253, 7
        %v6255 = vsub.s32 %v5471, %v6254
        %v6256 = vrot.slane %v2488, %v6255
        %v6257 = vsel %vm5476, %v6256, %v6252
        %v6258 = vlaneseq
        %v6259 = vshrl.u32 %v6258, 7
        %v6260 = vsub.s32 %v5478, %v6259
        %v6261 = vrot.slane %v2490, %v6260
        %v6262 = vsel %vm5483, %v6261, %v6257
        %v6263 = vlaneseq
        %v6264 = vshrl.u32 %v6263, 7
        %v6265 = vsub.s32 %v5485, %v6264
        %v6266 = vrot.slane %v2492, %v6265
        %v6267 = vsel %vm5490, %v6266, %v6262
        %v6268 = vlaneseq
        %v6269 = vshrl.u32 %v6268, 7
        %v6270 = vsub.s32 %v5492, %v6269
        %v6271 = vrot.slane %v2494, %v6270
        %v6272 = vsel %vm5497, %v6271, %v6267
        %v6273 = vlaneseq
        %v6274 = vshrl.u32 %v6273, 7
        %v6275 = vsub.s32 %v5499, %v6274
        %v6276 = vrot.slane %v2496, %v6275
        %v6277 = vsel %vm5504, %v6276, %v6272
        %v6278 = vlaneseq
        %v6279 = vshrl.u32 %v6278, 7
        %v6280 = vsub.s32 %v5506, %v6279
        %v6281 = vrot.slane %v2498, %v6280
        %v6282 = vsel %vm5511, %v6281, %v6277
        %v6283 = vlaneseq
        %v6284 = vshrl.u32 %v6283, 7
        %v6285 = vsub.s32 %v5513, %v6284
        %v6286 = vrot.slane %v2500, %v6285
        %v6287 = vsel %vm5518, %v6286, %v6282
        %v6305 = vlaneseq
        %v6306 = vshrl.u32 %v6305, 7
        %v6307 = vsub.s32 %v5410, %v6306
        %v6308 = vrot.slane %v2550, %v6307
        %v6309 = vlaneseq
        %v6310 = vshrl.u32 %v6309, 7
        %v6311 = vsub.s32 %v5415, %v6310
        %v6312 = vrot.slane %v2552, %v6311
        %v6313 = vsel %vm5420, %v6312, %v6308
        %v6314 = vlaneseq
        %v6315 = vshrl.u32 %v6314, 7
        %v6316 = vsub.s32 %v5422, %v6315
        %v6317 = vrot.slane %v2554, %v6316
        %v6318 = vsel %vm5427, %v6317, %v6313
        %v6319 = vlaneseq
        %v6320 = vshrl.u32 %v6319, 7
        %v6321 = vsub.s32 %v5429, %v6320
        %v6322 = vrot.slane %v2556, %v6321
        %v6323 = vsel %vm5434, %v6322, %v6318
        %v6324 = vlaneseq
        %v6325 = vshrl.u32 %v6324, 7
        %v6326 = vsub.s32 %v5436, %v6325
        %v6327 = vrot.slane %v2558, %v6326
        %v6328 = vsel %vm5441, %v6327, %v6323
        %v6329 = vlaneseq
        %v6330 = vshrl.u32 %v6329, 7
        %v6331 = vsub.s32 %v5443, %v6330
        %v6332 = vrot.slane %v2560, %v6331
        %v6333 = vsel %vm5448, %v6332, %v6328
        %v6334 = vlaneseq
        %v6335 = vshrl.u32 %v6334, 7
        %v6336 = vsub.s32 %v5450, %v6335
        %v6337 = vrot.slane %v2562, %v6336
        %v6338 = vsel %vm5455, %v6337, %v6333
        %v6339 = vlaneseq
        %v6340 = vshrl.u32 %v6339, 7
        %v6341 = vsub.s32 %v5457, %v6340
        %v6342 = vrot.slane %v2564, %v6341
        %v6343 = vsel %vm5462, %v6342, %v6338
        %v6344 = vlaneseq
        %v6345 = vshrl.u32 %v6344, 7
        %v6346 = vsub.s32 %v5464, %v6345
        %v6347 = vrot.slane %v2566, %v6346
        %v6348 = vsel %vm5469, %v6347, %v6343
        %v6349 = vlaneseq
        %v6350 = vshrl.u32 %v6349, 7
        %v6351 = vsub.s32 %v5471, %v6350
        %v6352 = vrot.slane %v2568, %v6351
        %v6353 = vsel %vm5476, %v6352, %v6348
        %v6354 = vlaneseq
        %v6355 = vshrl.u32 %v6354, 7
        %v6356 = vsub.s32 %v5478, %v6355
        %v6357 = vrot.slane %v2570, %v6356
        %v6358 = vsel %vm5483, %v6357, %v6353
        %v6359 = vlaneseq
        %v6360 = vshrl.u32 %v6359, 7
        %v6361 = vsub.s32 %v5485, %v6360
        %v6362 = vrot.slane %v2572, %v6361
        %v6363 = vsel %vm5490, %v6362, %v6358
        %v6364 = vlaneseq
        %v6365 = vshrl.u32 %v6364, 7
        %v6366 = vsub.s32 %v5492, %v6365
        %v6367 = vrot.slane %v2574, %v6366
        %v6368 = vsel %vm5497, %v6367, %v6363
        %v6369 = vlaneseq
        %v6370 = vshrl.u32 %v6369, 7
        %v6371 = vsub.s32 %v5499, %v6370
        %v6372 = vrot.slane %v2576, %v6371
        %v6373 = vsel %vm5504, %v6372, %v6368
        %v6374 = vlaneseq
        %v6375 = vshrl.u32 %v6374, 7
        %v6376 = vsub.s32 %v5506, %v6375
        %v6377 = vrot.slane %v2578, %v6376
        %v6378 = vsel %vm5511, %v6377, %v6373
        %v6379 = vlaneseq
        %v6380 = vshrl.u32 %v6379, 7
        %v6381 = vsub.s32 %v5513, %v6380
        %v6382 = vrot.slane %v2580, %v6381
        %v6383 = vsel %vm5518, %v6382, %v6378
        %v6401 = vlaneseq
        %v6402 = vshrl.u32 %v6401, 7
        %v6403 = vsub.s32 %v5410, %v6402
        %v6404 = vrot.slane %v2630, %v6403
        %v6405 = vlaneseq
        %v6406 = vshrl.u32 %v6405, 7
        %v6407 = vsub.s32 %v5415, %v6406
        %v6408 = vrot.slane %v2632, %v6407
        %v6409 = vsel %vm5420, %v6408, %v6404
        %v6410 = vlaneseq
        %v6411 = vshrl.u32 %v6410, 7
        %v6412 = vsub.s32 %v5422, %v6411
        %v6413 = vrot.slane %v2634, %v6412
        %v6414 = vsel %vm5427, %v6413, %v6409
        %v6415 = vlaneseq
        %v6416 = vshrl.u32 %v6415, 7
        %v6417 = vsub.s32 %v5429, %v6416
        %v6418 = vrot.slane %v2636, %v6417
        %v6419 = vsel %vm5434, %v6418, %v6414
        %v6420 = vlaneseq
        %v6421 = vshrl.u32 %v6420, 7
        %v6422 = vsub.s32 %v5436, %v6421
        %v6423 = vrot.slane %v2638, %v6422
        %v6424 = vsel %vm5441, %v6423, %v6419
        %v6425 = vlaneseq
        %v6426 = vshrl.u32 %v6425, 7
        %v6427 = vsub.s32 %v5443, %v6426
        %v6428 = vrot.slane %v2640, %v6427
        %v6429 = vsel %vm5448, %v6428, %v6424
        %v6430 = vlaneseq
        %v6431 = vshrl.u32 %v6430, 7
        %v6432 = vsub.s32 %v5450, %v6431
        %v6433 = vrot.slane %v2642, %v6432
        %v6434 = vsel %vm5455, %v6433, %v6429
        %v6435 = vlaneseq
        %v6436 = vshrl.u32 %v6435, 7
        %v6437 = vsub.s32 %v5457, %v6436
        %v6438 = vrot.slane %v2644, %v6437
        %v6439 = vsel %vm5462, %v6438, %v6434
        %v6440 = vlaneseq
        %v6441 = vshrl.u32 %v6440, 7
        %v6442 = vsub.s32 %v5464, %v6441
        %v6443 = vrot.slane %v2646, %v6442
        %v6444 = vsel %vm5469, %v6443, %v6439
        %v6445 = vlaneseq
        %v6446 = vshrl.u32 %v6445, 7
        %v6447 = vsub.s32 %v5471, %v6446
        %v6448 = vrot.slane %v2648, %v6447
        %v6449 = vsel %vm5476, %v6448, %v6444
        %v6450 = vlaneseq
        %v6451 = vshrl.u32 %v6450, 7
        %v6452 = vsub.s32 %v5478, %v6451
        %v6453 = vrot.slane %v2650, %v6452
        %v6454 = vsel %vm5483, %v6453, %v6449
        %v6455 = vlaneseq
        %v6456 = vshrl.u32 %v6455, 7
        %v6457 = vsub.s32 %v5485, %v6456
        %v6458 = vrot.slane %v2652, %v6457
        %v6459 = vsel %vm5490, %v6458, %v6454
        %v6460 = vlaneseq
        %v6461 = vshrl.u32 %v6460, 7
        %v6462 = vsub.s32 %v5492, %v6461
        %v6463 = vrot.slane %v2654, %v6462
        %v6464 = vsel %vm5497, %v6463, %v6459
        %v6465 = vlaneseq
        %v6466 = vshrl.u32 %v6465, 7
        %v6467 = vsub.s32 %v5499, %v6466
        %v6468 = vrot.slane %v2656, %v6467
        %v6469 = vsel %vm5504, %v6468, %v6464
        %v6470 = vlaneseq
        %v6471 = vshrl.u32 %v6470, 7
        %v6472 = vsub.s32 %v5506, %v6471
        %v6473 = vrot.slane %v2658, %v6472
        %v6474 = vsel %vm5511, %v6473, %v6469
        %v6475 = vlaneseq
        %v6476 = vshrl.u32 %v6475, 7
        %v6477 = vsub.s32 %v5513, %v6476
        %v6478 = vrot.slane %v2660, %v6477
        %v6479 = vsel %vm5518, %v6478, %v6474
        %v6497 = vlaneseq
        %v6498 = vshrl.u32 %v6497, 7
        %v6499 = vsub.s32 %v5410, %v6498
        %v6500 = vrot.slane %v2710, %v6499
        %v6501 = vlaneseq
        %v6502 = vshrl.u32 %v6501, 7
        %v6503 = vsub.s32 %v5415, %v6502
        %v6504 = vrot.slane %v2712, %v6503
        %v6505 = vsel %vm5420, %v6504, %v6500
        %v6506 = vlaneseq
        %v6507 = vshrl.u32 %v6506, 7
        %v6508 = vsub.s32 %v5422, %v6507
        %v6509 = vrot.slane %v2714, %v6508
        %v6510 = vsel %vm5427, %v6509, %v6505
        %v6511 = vlaneseq
        %v6512 = vshrl.u32 %v6511, 7
        %v6513 = vsub.s32 %v5429, %v6512
        %v6514 = vrot.slane %v2716, %v6513
        %v6515 = vsel %vm5434, %v6514, %v6510
        %v6516 = vlaneseq
        %v6517 = vshrl.u32 %v6516, 7
        %v6518 = vsub.s32 %v5436, %v6517
        %v6519 = vrot.slane %v2718, %v6518
        %v6520 = vsel %vm5441, %v6519, %v6515
        %v6521 = vlaneseq
        %v6522 = vshrl.u32 %v6521, 7
        %v6523 = vsub.s32 %v5443, %v6522
        %v6524 = vrot.slane %v2720, %v6523
        %v6525 = vsel %vm5448, %v6524, %v6520
        %v6526 = vlaneseq
        %v6527 = vshrl.u32 %v6526, 7
        %v6528 = vsub.s32 %v5450, %v6527
        %v6529 = vrot.slane %v2722, %v6528
        %v6530 = vsel %vm5455, %v6529, %v6525
        %v6531 = vlaneseq
        %v6532 = vshrl.u32 %v6531, 7
        %v6533 = vsub.s32 %v5457, %v6532
        %v6534 = vrot.slane %v2724, %v6533
        %v6535 = vsel %vm5462, %v6534, %v6530
        %v6536 = vlaneseq
        %v6537 = vshrl.u32 %v6536, 7
        %v6538 = vsub.s32 %v5464, %v6537
        %v6539 = vrot.slane %v2726, %v6538
        %v6540 = vsel %vm5469, %v6539, %v6535
        %v6541 = vlaneseq
        %v6542 = vshrl.u32 %v6541, 7
        %v6543 = vsub.s32 %v5471, %v6542
        %v6544 = vrot.slane %v2728, %v6543
        %v6545 = vsel %vm5476, %v6544, %v6540
        %v6546 = vlaneseq
        %v6547 = vshrl.u32 %v6546, 7
        %v6548 = vsub.s32 %v5478, %v6547
        %v6549 = vrot.slane %v2730, %v6548
        %v6550 = vsel %vm5483, %v6549, %v6545
        %v6551 = vlaneseq
        %v6552 = vshrl.u32 %v6551, 7
        %v6553 = vsub.s32 %v5485, %v6552
        %v6554 = vrot.slane %v2732, %v6553
        %v6555 = vsel %vm5490, %v6554, %v6550
        %v6556 = vlaneseq
        %v6557 = vshrl.u32 %v6556, 7
        %v6558 = vsub.s32 %v5492, %v6557
        %v6559 = vrot.slane %v2734, %v6558
        %v6560 = vsel %vm5497, %v6559, %v6555
        %v6561 = vlaneseq
        %v6562 = vshrl.u32 %v6561, 7
        %v6563 = vsub.s32 %v5499, %v6562
        %v6564 = vrot.slane %v2736, %v6563
        %v6565 = vsel %vm5504, %v6564, %v6560
        %v6566 = vlaneseq
        %v6567 = vshrl.u32 %v6566, 7
        %v6568 = vsub.s32 %v5506, %v6567
        %v6569 = vrot.slane %v2738, %v6568
        %v6570 = vsel %vm5511, %v6569, %v6565
        %v6571 = vlaneseq
        %v6572 = vshrl.u32 %v6571, 7
        %v6573 = vsub.s32 %v5513, %v6572
        %v6574 = vrot.slane %v2740, %v6573
        %v6575 = vsel %vm5518, %v6574, %v6570
        %v6593 = vlaneseq
        %v6594 = vshrl.u32 %v6593, 7
        %v6595 = vsub.s32 %v5410, %v6594
        %v6596 = vrot.slane %v2790, %v6595
        %v6597 = vlaneseq
        %v6598 = vshrl.u32 %v6597, 7
        %v6599 = vsub.s32 %v5415, %v6598
        %v6600 = vrot.slane %v2792, %v6599
        %v6601 = vsel %vm5420, %v6600, %v6596
        %v6602 = vlaneseq
        %v6603 = vshrl.u32 %v6602, 7
        %v6604 = vsub.s32 %v5422, %v6603
        %v6605 = vrot.slane %v2794, %v6604
        %v6606 = vsel %vm5427, %v6605, %v6601
        %v6607 = vlaneseq
        %v6608 = vshrl.u32 %v6607, 7
        %v6609 = vsub.s32 %v5429, %v6608
        %v6610 = vrot.slane %v2796, %v6609
        %v6611 = vsel %vm5434, %v6610, %v6606
        %v6612 = vlaneseq
        %v6613 = vshrl.u32 %v6612, 7
        %v6614 = vsub.s32 %v5436, %v6613
        %v6615 = vrot.slane %v2798, %v6614
        %v6616 = vsel %vm5441, %v6615, %v6611
        %v6617 = vlaneseq
        %v6618 = vshrl.u32 %v6617, 7
        %v6619 = vsub.s32 %v5443, %v6618
        %v6620 = vrot.slane %v2800, %v6619
        %v6621 = vsel %vm5448, %v6620, %v6616
        %v6622 = vlaneseq
        %v6623 = vshrl.u32 %v6622, 7
        %v6624 = vsub.s32 %v5450, %v6623
        %v6625 = vrot.slane %v2802, %v6624
        %v6626 = vsel %vm5455, %v6625, %v6621
        %v6627 = vlaneseq
        %v6628 = vshrl.u32 %v6627, 7
        %v6629 = vsub.s32 %v5457, %v6628
        %v6630 = vrot.slane %v2804, %v6629
        %v6631 = vsel %vm5462, %v6630, %v6626
        %v6632 = vlaneseq
        %v6633 = vshrl.u32 %v6632, 7
        %v6634 = vsub.s32 %v5464, %v6633
        %v6635 = vrot.slane %v2806, %v6634
        %v6636 = vsel %vm5469, %v6635, %v6631
        %v6637 = vlaneseq
        %v6638 = vshrl.u32 %v6637, 7
        %v6639 = vsub.s32 %v5471, %v6638
        %v6640 = vrot.slane %v2808, %v6639
        %v6641 = vsel %vm5476, %v6640, %v6636
        %v6642 = vlaneseq
        %v6643 = vshrl.u32 %v6642, 7
        %v6644 = vsub.s32 %v5478, %v6643
        %v6645 = vrot.slane %v2810, %v6644
        %v6646 = vsel %vm5483, %v6645, %v6641
        %v6647 = vlaneseq
        %v6648 = vshrl.u32 %v6647, 7
        %v6649 = vsub.s32 %v5485, %v6648
        %v6650 = vrot.slane %v2812, %v6649
        %v6651 = vsel %vm5490, %v6650, %v6646
        %v6652 = vlaneseq
        %v6653 = vshrl.u32 %v6652, 7
        %v6654 = vsub.s32 %v5492, %v6653
        %v6655 = vrot.slane %v2814, %v6654
        %v6656 = vsel %vm5497, %v6655, %v6651
        %v6657 = vlaneseq
        %v6658 = vshrl.u32 %v6657, 7
        %v6659 = vsub.s32 %v5499, %v6658
        %v6660 = vrot.slane %v2816, %v6659
        %v6661 = vsel %vm5504, %v6660, %v6656
        %v6662 = vlaneseq
        %v6663 = vshrl.u32 %v6662, 7
        %v6664 = vsub.s32 %v5506, %v6663
        %v6665 = vrot.slane %v2818, %v6664
        %v6666 = vsel %vm5511, %v6665, %v6661
        %v6667 = vlaneseq
        %v6668 = vshrl.u32 %v6667, 7
        %v6669 = vsub.s32 %v5513, %v6668
        %v6670 = vrot.slane %v2820, %v6669
        %v6671 = vsel %vm5518, %v6670, %v6666
        %v6689 = vlaneseq
        %v6690 = vshrl.u32 %v6689, 7
        %v6691 = vsub.s32 %v5410, %v6690
        %v6692 = vrot.slane %v2870, %v6691
        %v6693 = vlaneseq
        %v6694 = vshrl.u32 %v6693, 7
        %v6695 = vsub.s32 %v5415, %v6694
        %v6696 = vrot.slane %v2872, %v6695
        %v6697 = vsel %vm5420, %v6696, %v6692
        %v6698 = vlaneseq
        %v6699 = vshrl.u32 %v6698, 7
        %v6700 = vsub.s32 %v5422, %v6699
        %v6701 = vrot.slane %v2874, %v6700
        %v6702 = vsel %vm5427, %v6701, %v6697
        %v6703 = vlaneseq
        %v6704 = vshrl.u32 %v6703, 7
        %v6705 = vsub.s32 %v5429, %v6704
        %v6706 = vrot.slane %v2876, %v6705
        %v6707 = vsel %vm5434, %v6706, %v6702
        %v6708 = vlaneseq
        %v6709 = vshrl.u32 %v6708, 7
        %v6710 = vsub.s32 %v5436, %v6709
        %v6711 = vrot.slane %v2878, %v6710
        %v6712 = vsel %vm5441, %v6711, %v6707
        %v6713 = vlaneseq
        %v6714 = vshrl.u32 %v6713, 7
        %v6715 = vsub.s32 %v5443, %v6714
        %v6716 = vrot.slane %v2880, %v6715
        %v6717 = vsel %vm5448, %v6716, %v6712
        %v6718 = vlaneseq
        %v6719 = vshrl.u32 %v6718, 7
        %v6720 = vsub.s32 %v5450, %v6719
        %v6721 = vrot.slane %v2882, %v6720
        %v6722 = vsel %vm5455, %v6721, %v6717
        %v6723 = vlaneseq
        %v6724 = vshrl.u32 %v6723, 7
        %v6725 = vsub.s32 %v5457, %v6724
        %v6726 = vrot.slane %v2884, %v6725
        %v6727 = vsel %vm5462, %v6726, %v6722
        %v6728 = vlaneseq
        %v6729 = vshrl.u32 %v6728, 7
        %v6730 = vsub.s32 %v5464, %v6729
        %v6731 = vrot.slane %v2886, %v6730
        %v6732 = vsel %vm5469, %v6731, %v6727
        %v6733 = vlaneseq
        %v6734 = vshrl.u32 %v6733, 7
        %v6735 = vsub.s32 %v5471, %v6734
        %v6736 = vrot.slane %v2888, %v6735
        %v6737 = vsel %vm5476, %v6736, %v6732
        %v6738 = vlaneseq
        %v6739 = vshrl.u32 %v6738, 7
        %v6740 = vsub.s32 %v5478, %v6739
        %v6741 = vrot.slane %v2890, %v6740
        %v6742 = vsel %vm5483, %v6741, %v6737
        %v6743 = vlaneseq
        %v6744 = vshrl.u32 %v6743, 7
        %v6745 = vsub.s32 %v5485, %v6744
        %v6746 = vrot.slane %v2892, %v6745
        %v6747 = vsel %vm5490, %v6746, %v6742
        %v6748 = vlaneseq
        %v6749 = vshrl.u32 %v6748, 7
        %v6750 = vsub.s32 %v5492, %v6749
        %v6751 = vrot.slane %v2894, %v6750
        %v6752 = vsel %vm5497, %v6751, %v6747
        %v6753 = vlaneseq
        %v6754 = vshrl.u32 %v6753, 7
        %v6755 = vsub.s32 %v5499, %v6754
        %v6756 = vrot.slane %v2896, %v6755
        %v6757 = vsel %vm5504, %v6756, %v6752
        %v6758 = vlaneseq
        %v6759 = vshrl.u32 %v6758, 7
        %v6760 = vsub.s32 %v5506, %v6759
        %v6761 = vrot.slane %v2898, %v6760
        %v6762 = vsel %vm5511, %v6761, %v6757
        %v6763 = vlaneseq
        %v6764 = vshrl.u32 %v6763, 7
        %v6765 = vsub.s32 %v5513, %v6764
        %v6766 = vrot.slane %v2900, %v6765
        %v6767 = vsel %vm5518, %v6766, %v6762
        %vm6769 = vcmask 1040384
        %v6770 = vsel %vm6769, %v5519, %v5615
        %vm6771 = vcmask 1041408
        %v6772 = vsel %vm6771, %v6770, %v5711
        %vm6773 = vcmask 1042432
        %v6774 = vsel %vm6773, %v6772, %v5807
        %v6775 = vsel %vm990, %v6774, %v5903
        %vm6776 = vcmask 1044480
        %v6777 = vsel %vm6776, %v6775, %v5999
        %vm6778 = vcmask 1045504
        %v6779 = vsel %vm6778, %v6777, %v6095
        %vm6780 = vcmask 1046528
        %v6781 = vsel %vm6780, %v6779, %v6191
        %v6782 = vsel %vm6769, %v6287, %v6383
        %v6783 = vsel %vm6771, %v6782, %v6479
        %v6784 = vsel %vm6773, %v6783, %v6575
        %v6785 = vsel %vm990, %v6784, %v6671
        %v6786 = vsel %vm6776, %v6785, %v6767
        %v6803 = vlaneseq
        %v6804 = vshrl.u32 %v6803, 7
        %v6805 = vsub.s32 %v5410, %v6804
        %v6806 = vrot.slane %v2950, %v6805
        %v6807 = vlaneseq
        %v6808 = vshrl.u32 %v6807, 7
        %v6809 = vsub.s32 %v5415, %v6808
        %v6810 = vrot.slane %v2952, %v6809
        %v6811 = vsel %vm5420, %v6810, %v6806
        %v6812 = vlaneseq
        %v6813 = vshrl.u32 %v6812, 7
        %v6814 = vsub.s32 %v5422, %v6813
        %v6815 = vrot.slane %v2954, %v6814
        %v6816 = vsel %vm5427, %v6815, %v6811
        %v6817 = vlaneseq
        %v6818 = vshrl.u32 %v6817, 7
        %v6819 = vsub.s32 %v5429, %v6818
        %v6820 = vrot.slane %v2956, %v6819
        %v6821 = vsel %vm5434, %v6820, %v6816
        %v6822 = vlaneseq
        %v6823 = vshrl.u32 %v6822, 7
        %v6824 = vsub.s32 %v5436, %v6823
        %v6825 = vrot.slane %v2958, %v6824
        %v6826 = vsel %vm5441, %v6825, %v6821
        %v6827 = vlaneseq
        %v6828 = vshrl.u32 %v6827, 7
        %v6829 = vsub.s32 %v5443, %v6828
        %v6830 = vrot.slane %v2960, %v6829
        %v6831 = vsel %vm5448, %v6830, %v6826
        %v6832 = vlaneseq
        %v6833 = vshrl.u32 %v6832, 7
        %v6834 = vsub.s32 %v5450, %v6833
        %v6835 = vrot.slane %v2962, %v6834
        %v6836 = vsel %vm5455, %v6835, %v6831
        %v6837 = vlaneseq
        %v6838 = vshrl.u32 %v6837, 7
        %v6839 = vsub.s32 %v5457, %v6838
        %v6840 = vrot.slane %v2964, %v6839
        %v6841 = vsel %vm5462, %v6840, %v6836
        %v6842 = vlaneseq
        %v6843 = vshrl.u32 %v6842, 7
        %v6844 = vsub.s32 %v5464, %v6843
        %v6845 = vrot.slane %v2966, %v6844
        %v6846 = vsel %vm5469, %v6845, %v6841
        %v6847 = vlaneseq
        %v6848 = vshrl.u32 %v6847, 7
        %v6849 = vsub.s32 %v5471, %v6848
        %v6850 = vrot.slane %v2968, %v6849
        %v6851 = vsel %vm5476, %v6850, %v6846
        %v6852 = vlaneseq
        %v6853 = vshrl.u32 %v6852, 7
        %v6854 = vsub.s32 %v5478, %v6853
        %v6855 = vrot.slane %v2970, %v6854
        %v6856 = vsel %vm5483, %v6855, %v6851
        %v6857 = vlaneseq
        %v6858 = vshrl.u32 %v6857, 7
        %v6859 = vsub.s32 %v5485, %v6858
        %v6860 = vrot.slane %v2972, %v6859
        %v6861 = vsel %vm5490, %v6860, %v6856
        %v6862 = vlaneseq
        %v6863 = vshrl.u32 %v6862, 7
        %v6864 = vsub.s32 %v5492, %v6863
        %v6865 = vrot.slane %v2974, %v6864
        %v6866 = vsel %vm5497, %v6865, %v6861
        %v6867 = vlaneseq
        %v6868 = vshrl.u32 %v6867, 7
        %v6869 = vsub.s32 %v5499, %v6868
        %v6870 = vrot.slane %v2976, %v6869
        %v6871 = vsel %vm5504, %v6870, %v6866
        %v6872 = vlaneseq
        %v6873 = vshrl.u32 %v6872, 7
        %v6874 = vsub.s32 %v5506, %v6873
        %v6875 = vrot.slane %v2978, %v6874
        %v6876 = vsel %vm5511, %v6875, %v6871
        %v6877 = vlaneseq
        %v6878 = vshrl.u32 %v6877, 7
        %v6879 = vsub.s32 %v5513, %v6878
        %v6880 = vrot.slane %v2980, %v6879
        %v6881 = vsel %vm5518, %v6880, %v6876
        %v6899 = vlaneseq
        %v6900 = vshrl.u32 %v6899, 7
        %v6901 = vsub.s32 %v5410, %v6900
        %v6902 = vrot.slane %v3030, %v6901
        %v6903 = vlaneseq
        %v6904 = vshrl.u32 %v6903, 7
        %v6905 = vsub.s32 %v5415, %v6904
        %v6906 = vrot.slane %v3032, %v6905
        %v6907 = vsel %vm5420, %v6906, %v6902
        %v6908 = vlaneseq
        %v6909 = vshrl.u32 %v6908, 7
        %v6910 = vsub.s32 %v5422, %v6909
        %v6911 = vrot.slane %v3034, %v6910
        %v6912 = vsel %vm5427, %v6911, %v6907
        %v6913 = vlaneseq
        %v6914 = vshrl.u32 %v6913, 7
        %v6915 = vsub.s32 %v5429, %v6914
        %v6916 = vrot.slane %v3036, %v6915
        %v6917 = vsel %vm5434, %v6916, %v6912
        %v6918 = vlaneseq
        %v6919 = vshrl.u32 %v6918, 7
        %v6920 = vsub.s32 %v5436, %v6919
        %v6921 = vrot.slane %v3038, %v6920
        %v6922 = vsel %vm5441, %v6921, %v6917
        %v6923 = vlaneseq
        %v6924 = vshrl.u32 %v6923, 7
        %v6925 = vsub.s32 %v5443, %v6924
        %v6926 = vrot.slane %v3040, %v6925
        %v6927 = vsel %vm5448, %v6926, %v6922
        %v6928 = vlaneseq
        %v6929 = vshrl.u32 %v6928, 7
        %v6930 = vsub.s32 %v5450, %v6929
        %v6931 = vrot.slane %v3042, %v6930
        %v6932 = vsel %vm5455, %v6931, %v6927
        %v6933 = vlaneseq
        %v6934 = vshrl.u32 %v6933, 7
        %v6935 = vsub.s32 %v5457, %v6934
        %v6936 = vrot.slane %v3044, %v6935
        %v6937 = vsel %vm5462, %v6936, %v6932
        %v6938 = vlaneseq
        %v6939 = vshrl.u32 %v6938, 7
        %v6940 = vsub.s32 %v5464, %v6939
        %v6941 = vrot.slane %v3046, %v6940
        %v6942 = vsel %vm5469, %v6941, %v6937
        %v6943 = vlaneseq
        %v6944 = vshrl.u32 %v6943, 7
        %v6945 = vsub.s32 %v5471, %v6944
        %v6946 = vrot.slane %v3048, %v6945
        %v6947 = vsel %vm5476, %v6946, %v6942
        %v6948 = vlaneseq
        %v6949 = vshrl.u32 %v6948, 7
        %v6950 = vsub.s32 %v5478, %v6949
        %v6951 = vrot.slane %v3050, %v6950
        %v6952 = vsel %vm5483, %v6951, %v6947
        %v6953 = vlaneseq
        %v6954 = vshrl.u32 %v6953, 7
        %v6955 = vsub.s32 %v5485, %v6954
        %v6956 = vrot.slane %v3052, %v6955
        %v6957 = vsel %vm5490, %v6956, %v6952
        %v6958 = vlaneseq
        %v6959 = vshrl.u32 %v6958, 7
        %v6960 = vsub.s32 %v5492, %v6959
        %v6961 = vrot.slane %v3054, %v6960
        %v6962 = vsel %vm5497, %v6961, %v6957
        %v6963 = vlaneseq
        %v6964 = vshrl.u32 %v6963, 7
        %v6965 = vsub.s32 %v5499, %v6964
        %v6966 = vrot.slane %v3056, %v6965
        %v6967 = vsel %vm5504, %v6966, %v6962
        %v6968 = vlaneseq
        %v6969 = vshrl.u32 %v6968, 7
        %v6970 = vsub.s32 %v5506, %v6969
        %v6971 = vrot.slane %v3058, %v6970
        %v6972 = vsel %vm5511, %v6971, %v6967
        %v6973 = vlaneseq
        %v6974 = vshrl.u32 %v6973, 7
        %v6975 = vsub.s32 %v5513, %v6974
        %v6976 = vrot.slane %v3060, %v6975
        %v6977 = vsel %vm5518, %v6976, %v6972
        %v6981 = vrot.slane %v3126, 6
        %v6982 = vrot.slane %v3129, 6
        %v6983 = vsel %vm6771, %v6981, %v6982
        %v6989 = vrot.slane %v3154, 6
        %v6990 = vrot.slane %v3159, 6
        %v6991 = vsel %vm6771, %v6989, %v6990
        %v6992 = vrot.slane %v3164, 6
        %v6993 = vsel %vm6771, %v6990, %v6992
        %v7012 = vlaneseq
        %v7013 = vshrl.u32 %v7012, 7
        %v7014 = vsub.s32 %v5410, %v7013
        %v7015 = vrot.slane %v3577, %v7014
        %v7016 = vlaneseq
        %v7017 = vshrl.u32 %v7016, 7
        %v7018 = vsub.s32 %v5415, %v7017
        %v7019 = vrot.slane %v3579, %v7018
        %v7020 = vsel %vm5420, %v7019, %v7015
        %v7021 = vlaneseq
        %v7022 = vshrl.u32 %v7021, 7
        %v7023 = vsub.s32 %v5422, %v7022
        %v7024 = vrot.slane %v3581, %v7023
        %v7025 = vsel %vm5427, %v7024, %v7020
        %v7026 = vlaneseq
        %v7027 = vshrl.u32 %v7026, 7
        %v7028 = vsub.s32 %v5429, %v7027
        %v7029 = vrot.slane %v3583, %v7028
        %v7030 = vsel %vm5434, %v7029, %v7025
        %v7031 = vlaneseq
        %v7032 = vshrl.u32 %v7031, 7
        %v7033 = vsub.s32 %v5436, %v7032
        %v7034 = vrot.slane %v3585, %v7033
        %v7035 = vsel %vm5441, %v7034, %v7030
        %v7036 = vlaneseq
        %v7037 = vshrl.u32 %v7036, 7
        %v7038 = vsub.s32 %v5443, %v7037
        %v7039 = vrot.slane %v3587, %v7038
        %v7040 = vsel %vm5448, %v7039, %v7035
        %v7041 = vlaneseq
        %v7042 = vshrl.u32 %v7041, 7
        %v7043 = vsub.s32 %v5450, %v7042
        %v7044 = vrot.slane %v3589, %v7043
        %v7045 = vsel %vm5455, %v7044, %v7040
        %v7046 = vlaneseq
        %v7047 = vshrl.u32 %v7046, 7
        %v7048 = vsub.s32 %v5457, %v7047
        %v7049 = vrot.slane %v3591, %v7048
        %v7050 = vsel %vm5462, %v7049, %v7045
        %v7051 = vlaneseq
        %v7052 = vshrl.u32 %v7051, 7
        %v7053 = vsub.s32 %v5464, %v7052
        %v7054 = vrot.slane %v3593, %v7053
        %v7055 = vsel %vm5469, %v7054, %v7050
        %v7056 = vlaneseq
        %v7057 = vshrl.u32 %v7056, 7
        %v7058 = vsub.s32 %v5471, %v7057
        %v7059 = vrot.slane %v3595, %v7058
        %v7060 = vsel %vm5476, %v7059, %v7055
        %v7061 = vlaneseq
        %v7062 = vshrl.u32 %v7061, 7
        %v7063 = vsub.s32 %v5478, %v7062
        %v7064 = vrot.slane %v3597, %v7063
        %v7065 = vsel %vm5483, %v7064, %v7060
        %v7066 = vlaneseq
        %v7067 = vshrl.u32 %v7066, 7
        %v7068 = vsub.s32 %v5485, %v7067
        %v7069 = vrot.slane %v3599, %v7068
        %v7070 = vsel %vm5490, %v7069, %v7065
        %v7071 = vlaneseq
        %v7072 = vshrl.u32 %v7071, 7
        %v7073 = vsub.s32 %v5492, %v7072
        %v7074 = vrot.slane %v3601, %v7073
        %v7075 = vsel %vm5497, %v7074, %v7070
        %v7076 = vlaneseq
        %v7077 = vshrl.u32 %v7076, 7
        %v7078 = vsub.s32 %v5499, %v7077
        %v7079 = vrot.slane %v3603, %v7078
        %v7080 = vsel %vm5504, %v7079, %v7075
        %v7081 = vlaneseq
        %v7082 = vshrl.u32 %v7081, 7
        %v7083 = vsub.s32 %v5506, %v7082
        %v7084 = vrot.slane %v3605, %v7083
        %v7085 = vsel %vm5511, %v7084, %v7080
        %v7086 = vlaneseq
        %v7087 = vshrl.u32 %v7086, 7
        %v7088 = vsub.s32 %v5513, %v7087
        %v7089 = vrot.slane %v3607, %v7088
        %v7090 = vsel %vm5518, %v7089, %v7085
        %v7108 = vlaneseq
        %v7109 = vshrl.u32 %v7108, 7
        %v7110 = vsub.s32 %v5410, %v7109
        %v7111 = vrot.slane %v3657, %v7110
        %v7112 = vlaneseq
        %v7113 = vshrl.u32 %v7112, 7
        %v7114 = vsub.s32 %v5415, %v7113
        %v7115 = vrot.slane %v3659, %v7114
        %v7116 = vsel %vm5420, %v7115, %v7111
        %v7117 = vlaneseq
        %v7118 = vshrl.u32 %v7117, 7
        %v7119 = vsub.s32 %v5422, %v7118
        %v7120 = vrot.slane %v3661, %v7119
        %v7121 = vsel %vm5427, %v7120, %v7116
        %v7122 = vlaneseq
        %v7123 = vshrl.u32 %v7122, 7
        %v7124 = vsub.s32 %v5429, %v7123
        %v7125 = vrot.slane %v3663, %v7124
        %v7126 = vsel %vm5434, %v7125, %v7121
        %v7127 = vlaneseq
        %v7128 = vshrl.u32 %v7127, 7
        %v7129 = vsub.s32 %v5436, %v7128
        %v7130 = vrot.slane %v3665, %v7129
        %v7131 = vsel %vm5441, %v7130, %v7126
        %v7132 = vlaneseq
        %v7133 = vshrl.u32 %v7132, 7
        %v7134 = vsub.s32 %v5443, %v7133
        %v7135 = vrot.slane %v3667, %v7134
        %v7136 = vsel %vm5448, %v7135, %v7131
        %v7137 = vlaneseq
        %v7138 = vshrl.u32 %v7137, 7
        %v7139 = vsub.s32 %v5450, %v7138
        %v7140 = vrot.slane %v3669, %v7139
        %v7141 = vsel %vm5455, %v7140, %v7136
        %v7142 = vlaneseq
        %v7143 = vshrl.u32 %v7142, 7
        %v7144 = vsub.s32 %v5457, %v7143
        %v7145 = vrot.slane %v3671, %v7144
        %v7146 = vsel %vm5462, %v7145, %v7141
        %v7147 = vlaneseq
        %v7148 = vshrl.u32 %v7147, 7
        %v7149 = vsub.s32 %v5464, %v7148
        %v7150 = vrot.slane %v3673, %v7149
        %v7151 = vsel %vm5469, %v7150, %v7146
        %v7152 = vlaneseq
        %v7153 = vshrl.u32 %v7152, 7
        %v7154 = vsub.s32 %v5471, %v7153
        %v7155 = vrot.slane %v3675, %v7154
        %v7156 = vsel %vm5476, %v7155, %v7151
        %v7157 = vlaneseq
        %v7158 = vshrl.u32 %v7157, 7
        %v7159 = vsub.s32 %v5478, %v7158
        %v7160 = vrot.slane %v3677, %v7159
        %v7161 = vsel %vm5483, %v7160, %v7156
        %v7162 = vlaneseq
        %v7163 = vshrl.u32 %v7162, 7
        %v7164 = vsub.s32 %v5485, %v7163
        %v7165 = vrot.slane %v3679, %v7164
        %v7166 = vsel %vm5490, %v7165, %v7161
        %v7167 = vlaneseq
        %v7168 = vshrl.u32 %v7167, 7
        %v7169 = vsub.s32 %v5492, %v7168
        %v7170 = vrot.slane %v3681, %v7169
        %v7171 = vsel %vm5497, %v7170, %v7166
        %v7172 = vlaneseq
        %v7173 = vshrl.u32 %v7172, 7
        %v7174 = vsub.s32 %v5499, %v7173
        %v7175 = vrot.slane %v3683, %v7174
        %v7176 = vsel %vm5504, %v7175, %v7171
        %v7177 = vlaneseq
        %v7178 = vshrl.u32 %v7177, 7
        %v7179 = vsub.s32 %v5506, %v7178
        %v7180 = vrot.slane %v3685, %v7179
        %v7181 = vsel %vm5511, %v7180, %v7176
        %v7182 = vlaneseq
        %v7183 = vshrl.u32 %v7182, 7
        %v7184 = vsub.s32 %v5513, %v7183
        %v7185 = vrot.slane %v3687, %v7184
        %v7186 = vsel %vm5518, %v7185, %v7181
        %v7204 = vlaneseq
        %v7205 = vshrl.u32 %v7204, 7
        %v7206 = vsub.s32 %v5410, %v7205
        %v7207 = vrot.slane %v3737, %v7206
        %v7208 = vlaneseq
        %v7209 = vshrl.u32 %v7208, 7
        %v7210 = vsub.s32 %v5415, %v7209
        %v7211 = vrot.slane %v3739, %v7210
        %v7212 = vsel %vm5420, %v7211, %v7207
        %v7213 = vlaneseq
        %v7214 = vshrl.u32 %v7213, 7
        %v7215 = vsub.s32 %v5422, %v7214
        %v7216 = vrot.slane %v3741, %v7215
        %v7217 = vsel %vm5427, %v7216, %v7212
        %v7218 = vlaneseq
        %v7219 = vshrl.u32 %v7218, 7
        %v7220 = vsub.s32 %v5429, %v7219
        %v7221 = vrot.slane %v3743, %v7220
        %v7222 = vsel %vm5434, %v7221, %v7217
        %v7223 = vlaneseq
        %v7224 = vshrl.u32 %v7223, 7
        %v7225 = vsub.s32 %v5436, %v7224
        %v7226 = vrot.slane %v3745, %v7225
        %v7227 = vsel %vm5441, %v7226, %v7222
        %v7228 = vlaneseq
        %v7229 = vshrl.u32 %v7228, 7
        %v7230 = vsub.s32 %v5443, %v7229
        %v7231 = vrot.slane %v3747, %v7230
        %v7232 = vsel %vm5448, %v7231, %v7227
        %v7233 = vlaneseq
        %v7234 = vshrl.u32 %v7233, 7
        %v7235 = vsub.s32 %v5450, %v7234
        %v7236 = vrot.slane %v3749, %v7235
        %v7237 = vsel %vm5455, %v7236, %v7232
        %v7238 = vlaneseq
        %v7239 = vshrl.u32 %v7238, 7
        %v7240 = vsub.s32 %v5457, %v7239
        %v7241 = vrot.slane %v3751, %v7240
        %v7242 = vsel %vm5462, %v7241, %v7237
        %v7243 = vlaneseq
        %v7244 = vshrl.u32 %v7243, 7
        %v7245 = vsub.s32 %v5464, %v7244
        %v7246 = vrot.slane %v3753, %v7245
        %v7247 = vsel %vm5469, %v7246, %v7242
        %v7248 = vlaneseq
        %v7249 = vshrl.u32 %v7248, 7
        %v7250 = vsub.s32 %v5471, %v7249
        %v7251 = vrot.slane %v3755, %v7250
        %v7252 = vsel %vm5476, %v7251, %v7247
        %v7253 = vlaneseq
        %v7254 = vshrl.u32 %v7253, 7
        %v7255 = vsub.s32 %v5478, %v7254
        %v7256 = vrot.slane %v3757, %v7255
        %v7257 = vsel %vm5483, %v7256, %v7252
        %v7258 = vlaneseq
        %v7259 = vshrl.u32 %v7258, 7
        %v7260 = vsub.s32 %v5485, %v7259
        %v7261 = vrot.slane %v3759, %v7260
        %v7262 = vsel %vm5490, %v7261, %v7257
        %v7263 = vlaneseq
        %v7264 = vshrl.u32 %v7263, 7
        %v7265 = vsub.s32 %v5492, %v7264
        %v7266 = vrot.slane %v3761, %v7265
        %v7267 = vsel %vm5497, %v7266, %v7262
        %v7268 = vlaneseq
        %v7269 = vshrl.u32 %v7268, 7
        %v7270 = vsub.s32 %v5499, %v7269
        %v7271 = vrot.slane %v3763, %v7270
        %v7272 = vsel %vm5504, %v7271, %v7267
        %v7273 = vlaneseq
        %v7274 = vshrl.u32 %v7273, 7
        %v7275 = vsub.s32 %v5506, %v7274
        %v7276 = vrot.slane %v3765, %v7275
        %v7277 = vsel %vm5511, %v7276, %v7272
        %v7278 = vlaneseq
        %v7279 = vshrl.u32 %v7278, 7
        %v7280 = vsub.s32 %v5513, %v7279
        %v7281 = vrot.slane %v3767, %v7280
        %v7282 = vsel %vm5518, %v7281, %v7277
        %v7300 = vlaneseq
        %v7301 = vshrl.u32 %v7300, 7
        %v7302 = vsub.s32 %v5410, %v7301
        %v7303 = vrot.slane %v3817, %v7302
        %v7304 = vlaneseq
        %v7305 = vshrl.u32 %v7304, 7
        %v7306 = vsub.s32 %v5415, %v7305
        %v7307 = vrot.slane %v3819, %v7306
        %v7308 = vsel %vm5420, %v7307, %v7303
        %v7309 = vlaneseq
        %v7310 = vshrl.u32 %v7309, 7
        %v7311 = vsub.s32 %v5422, %v7310
        %v7312 = vrot.slane %v3821, %v7311
        %v7313 = vsel %vm5427, %v7312, %v7308
        %v7314 = vlaneseq
        %v7315 = vshrl.u32 %v7314, 7
        %v7316 = vsub.s32 %v5429, %v7315
        %v7317 = vrot.slane %v3823, %v7316
        %v7318 = vsel %vm5434, %v7317, %v7313
        %v7319 = vlaneseq
        %v7320 = vshrl.u32 %v7319, 7
        %v7321 = vsub.s32 %v5436, %v7320
        %v7322 = vrot.slane %v3825, %v7321
        %v7323 = vsel %vm5441, %v7322, %v7318
        %v7324 = vlaneseq
        %v7325 = vshrl.u32 %v7324, 7
        %v7326 = vsub.s32 %v5443, %v7325
        %v7327 = vrot.slane %v3827, %v7326
        %v7328 = vsel %vm5448, %v7327, %v7323
        %v7329 = vlaneseq
        %v7330 = vshrl.u32 %v7329, 7
        %v7331 = vsub.s32 %v5450, %v7330
        %v7332 = vrot.slane %v3829, %v7331
        %v7333 = vsel %vm5455, %v7332, %v7328
        %v7334 = vlaneseq
        %v7335 = vshrl.u32 %v7334, 7
        %v7336 = vsub.s32 %v5457, %v7335
        %v7337 = vrot.slane %v3831, %v7336
        %v7338 = vsel %vm5462, %v7337, %v7333
        %v7339 = vlaneseq
        %v7340 = vshrl.u32 %v7339, 7
        %v7341 = vsub.s32 %v5464, %v7340
        %v7342 = vrot.slane %v3833, %v7341
        %v7343 = vsel %vm5469, %v7342, %v7338
        %v7344 = vlaneseq
        %v7345 = vshrl.u32 %v7344, 7
        %v7346 = vsub.s32 %v5471, %v7345
        %v7347 = vrot.slane %v3835, %v7346
        %v7348 = vsel %vm5476, %v7347, %v7343
        %v7349 = vlaneseq
        %v7350 = vshrl.u32 %v7349, 7
        %v7351 = vsub.s32 %v5478, %v7350
        %v7352 = vrot.slane %v3837, %v7351
        %v7353 = vsel %vm5483, %v7352, %v7348
        %v7354 = vlaneseq
        %v7355 = vshrl.u32 %v7354, 7
        %v7356 = vsub.s32 %v5485, %v7355
        %v7357 = vrot.slane %v3839, %v7356
        %v7358 = vsel %vm5490, %v7357, %v7353
        %v7359 = vlaneseq
        %v7360 = vshrl.u32 %v7359, 7
        %v7361 = vsub.s32 %v5492, %v7360
        %v7362 = vrot.slane %v3841, %v7361
        %v7363 = vsel %vm5497, %v7362, %v7358
        %v7364 = vlaneseq
        %v7365 = vshrl.u32 %v7364, 7
        %v7366 = vsub.s32 %v5499, %v7365
        %v7367 = vrot.slane %v3843, %v7366
        %v7368 = vsel %vm5504, %v7367, %v7363
        %v7369 = vlaneseq
        %v7370 = vshrl.u32 %v7369, 7
        %v7371 = vsub.s32 %v5506, %v7370
        %v7372 = vrot.slane %v3845, %v7371
        %v7373 = vsel %vm5511, %v7372, %v7368
        %v7374 = vlaneseq
        %v7375 = vshrl.u32 %v7374, 7
        %v7376 = vsub.s32 %v5513, %v7375
        %v7377 = vrot.slane %v3847, %v7376
        %v7378 = vsel %vm5518, %v7377, %v7373
        %v7396 = vlaneseq
        %v7397 = vshrl.u32 %v7396, 7
        %v7398 = vsub.s32 %v5410, %v7397
        %v7399 = vrot.slane %v3897, %v7398
        %v7400 = vlaneseq
        %v7401 = vshrl.u32 %v7400, 7
        %v7402 = vsub.s32 %v5415, %v7401
        %v7403 = vrot.slane %v3899, %v7402
        %v7404 = vsel %vm5420, %v7403, %v7399
        %v7405 = vlaneseq
        %v7406 = vshrl.u32 %v7405, 7
        %v7407 = vsub.s32 %v5422, %v7406
        %v7408 = vrot.slane %v3901, %v7407
        %v7409 = vsel %vm5427, %v7408, %v7404
        %v7410 = vlaneseq
        %v7411 = vshrl.u32 %v7410, 7
        %v7412 = vsub.s32 %v5429, %v7411
        %v7413 = vrot.slane %v3903, %v7412
        %v7414 = vsel %vm5434, %v7413, %v7409
        %v7415 = vlaneseq
        %v7416 = vshrl.u32 %v7415, 7
        %v7417 = vsub.s32 %v5436, %v7416
        %v7418 = vrot.slane %v3905, %v7417
        %v7419 = vsel %vm5441, %v7418, %v7414
        %v7420 = vlaneseq
        %v7421 = vshrl.u32 %v7420, 7
        %v7422 = vsub.s32 %v5443, %v7421
        %v7423 = vrot.slane %v3907, %v7422
        %v7424 = vsel %vm5448, %v7423, %v7419
        %v7425 = vlaneseq
        %v7426 = vshrl.u32 %v7425, 7
        %v7427 = vsub.s32 %v5450, %v7426
        %v7428 = vrot.slane %v3909, %v7427
        %v7429 = vsel %vm5455, %v7428, %v7424
        %v7430 = vlaneseq
        %v7431 = vshrl.u32 %v7430, 7
        %v7432 = vsub.s32 %v5457, %v7431
        %v7433 = vrot.slane %v3911, %v7432
        %v7434 = vsel %vm5462, %v7433, %v7429
        %v7435 = vlaneseq
        %v7436 = vshrl.u32 %v7435, 7
        %v7437 = vsub.s32 %v5464, %v7436
        %v7438 = vrot.slane %v3913, %v7437
        %v7439 = vsel %vm5469, %v7438, %v7434
        %v7440 = vlaneseq
        %v7441 = vshrl.u32 %v7440, 7
        %v7442 = vsub.s32 %v5471, %v7441
        %v7443 = vrot.slane %v3915, %v7442
        %v7444 = vsel %vm5476, %v7443, %v7439
        %v7445 = vlaneseq
        %v7446 = vshrl.u32 %v7445, 7
        %v7447 = vsub.s32 %v5478, %v7446
        %v7448 = vrot.slane %v3917, %v7447
        %v7449 = vsel %vm5483, %v7448, %v7444
        %v7450 = vlaneseq
        %v7451 = vshrl.u32 %v7450, 7
        %v7452 = vsub.s32 %v5485, %v7451
        %v7453 = vrot.slane %v3919, %v7452
        %v7454 = vsel %vm5490, %v7453, %v7449
        %v7455 = vlaneseq
        %v7456 = vshrl.u32 %v7455, 7
        %v7457 = vsub.s32 %v5492, %v7456
        %v7458 = vrot.slane %v3921, %v7457
        %v7459 = vsel %vm5497, %v7458, %v7454
        %v7460 = vlaneseq
        %v7461 = vshrl.u32 %v7460, 7
        %v7462 = vsub.s32 %v5499, %v7461
        %v7463 = vrot.slane %v3923, %v7462
        %v7464 = vsel %vm5504, %v7463, %v7459
        %v7465 = vlaneseq
        %v7466 = vshrl.u32 %v7465, 7
        %v7467 = vsub.s32 %v5506, %v7466
        %v7468 = vrot.slane %v3925, %v7467
        %v7469 = vsel %vm5511, %v7468, %v7464
        %v7470 = vlaneseq
        %v7471 = vshrl.u32 %v7470, 7
        %v7472 = vsub.s32 %v5513, %v7471
        %v7473 = vrot.slane %v3927, %v7472
        %v7474 = vsel %vm5518, %v7473, %v7469
        %v7492 = vlaneseq
        %v7493 = vshrl.u32 %v7492, 7
        %v7494 = vsub.s32 %v5410, %v7493
        %v7495 = vrot.slane %v3977, %v7494
        %v7496 = vlaneseq
        %v7497 = vshrl.u32 %v7496, 7
        %v7498 = vsub.s32 %v5415, %v7497
        %v7499 = vrot.slane %v3979, %v7498
        %v7500 = vsel %vm5420, %v7499, %v7495
        %v7501 = vlaneseq
        %v7502 = vshrl.u32 %v7501, 7
        %v7503 = vsub.s32 %v5422, %v7502
        %v7504 = vrot.slane %v3981, %v7503
        %v7505 = vsel %vm5427, %v7504, %v7500
        %v7506 = vlaneseq
        %v7507 = vshrl.u32 %v7506, 7
        %v7508 = vsub.s32 %v5429, %v7507
        %v7509 = vrot.slane %v3983, %v7508
        %v7510 = vsel %vm5434, %v7509, %v7505
        %v7511 = vlaneseq
        %v7512 = vshrl.u32 %v7511, 7
        %v7513 = vsub.s32 %v5436, %v7512
        %v7514 = vrot.slane %v3985, %v7513
        %v7515 = vsel %vm5441, %v7514, %v7510
        %v7516 = vlaneseq
        %v7517 = vshrl.u32 %v7516, 7
        %v7518 = vsub.s32 %v5443, %v7517
        %v7519 = vrot.slane %v3987, %v7518
        %v7520 = vsel %vm5448, %v7519, %v7515
        %v7521 = vlaneseq
        %v7522 = vshrl.u32 %v7521, 7
        %v7523 = vsub.s32 %v5450, %v7522
        %v7524 = vrot.slane %v3989, %v7523
        %v7525 = vsel %vm5455, %v7524, %v7520
        %v7526 = vlaneseq
        %v7527 = vshrl.u32 %v7526, 7
        %v7528 = vsub.s32 %v5457, %v7527
        %v7529 = vrot.slane %v3991, %v7528
        %v7530 = vsel %vm5462, %v7529, %v7525
        %v7531 = vlaneseq
        %v7532 = vshrl.u32 %v7531, 7
        %v7533 = vsub.s32 %v5464, %v7532
        %v7534 = vrot.slane %v3993, %v7533
        %v7535 = vsel %vm5469, %v7534, %v7530
        %v7536 = vlaneseq
        %v7537 = vshrl.u32 %v7536, 7
        %v7538 = vsub.s32 %v5471, %v7537
        %v7539 = vrot.slane %v3995, %v7538
        %v7540 = vsel %vm5476, %v7539, %v7535
        %v7541 = vlaneseq
        %v7542 = vshrl.u32 %v7541, 7
        %v7543 = vsub.s32 %v5478, %v7542
        %v7544 = vrot.slane %v3997, %v7543
        %v7545 = vsel %vm5483, %v7544, %v7540
        %v7546 = vlaneseq
        %v7547 = vshrl.u32 %v7546, 7
        %v7548 = vsub.s32 %v5485, %v7547
        %v7549 = vrot.slane %v3999, %v7548
        %v7550 = vsel %vm5490, %v7549, %v7545
        %v7551 = vlaneseq
        %v7552 = vshrl.u32 %v7551, 7
        %v7553 = vsub.s32 %v5492, %v7552
        %v7554 = vrot.slane %v4001, %v7553
        %v7555 = vsel %vm5497, %v7554, %v7550
        %v7556 = vlaneseq
        %v7557 = vshrl.u32 %v7556, 7
        %v7558 = vsub.s32 %v5499, %v7557
        %v7559 = vrot.slane %v4003, %v7558
        %v7560 = vsel %vm5504, %v7559, %v7555
        %v7561 = vlaneseq
        %v7562 = vshrl.u32 %v7561, 7
        %v7563 = vsub.s32 %v5506, %v7562
        %v7564 = vrot.slane %v4005, %v7563
        %v7565 = vsel %vm5511, %v7564, %v7560
        %v7566 = vlaneseq
        %v7567 = vshrl.u32 %v7566, 7
        %v7568 = vsub.s32 %v5513, %v7567
        %v7569 = vrot.slane %v4007, %v7568
        %v7570 = vsel %vm5518, %v7569, %v7565
        %v7588 = vlaneseq
        %v7589 = vshrl.u32 %v7588, 7
        %v7590 = vsub.s32 %v5410, %v7589
        %v7591 = vrot.slane %v4057, %v7590
        %v7592 = vlaneseq
        %v7593 = vshrl.u32 %v7592, 7
        %v7594 = vsub.s32 %v5415, %v7593
        %v7595 = vrot.slane %v4059, %v7594
        %v7596 = vsel %vm5420, %v7595, %v7591
        %v7597 = vlaneseq
        %v7598 = vshrl.u32 %v7597, 7
        %v7599 = vsub.s32 %v5422, %v7598
        %v7600 = vrot.slane %v4061, %v7599
        %v7601 = vsel %vm5427, %v7600, %v7596
        %v7602 = vlaneseq
        %v7603 = vshrl.u32 %v7602, 7
        %v7604 = vsub.s32 %v5429, %v7603
        %v7605 = vrot.slane %v4063, %v7604
        %v7606 = vsel %vm5434, %v7605, %v7601
        %v7607 = vlaneseq
        %v7608 = vshrl.u32 %v7607, 7
        %v7609 = vsub.s32 %v5436, %v7608
        %v7610 = vrot.slane %v4065, %v7609
        %v7611 = vsel %vm5441, %v7610, %v7606
        %v7612 = vlaneseq
        %v7613 = vshrl.u32 %v7612, 7
        %v7614 = vsub.s32 %v5443, %v7613
        %v7615 = vrot.slane %v4067, %v7614
        %v7616 = vsel %vm5448, %v7615, %v7611
        %v7617 = vlaneseq
        %v7618 = vshrl.u32 %v7617, 7
        %v7619 = vsub.s32 %v5450, %v7618
        %v7620 = vrot.slane %v4069, %v7619
        %v7621 = vsel %vm5455, %v7620, %v7616
        %v7622 = vlaneseq
        %v7623 = vshrl.u32 %v7622, 7
        %v7624 = vsub.s32 %v5457, %v7623
        %v7625 = vrot.slane %v4071, %v7624
        %v7626 = vsel %vm5462, %v7625, %v7621
        %v7627 = vlaneseq
        %v7628 = vshrl.u32 %v7627, 7
        %v7629 = vsub.s32 %v5464, %v7628
        %v7630 = vrot.slane %v4073, %v7629
        %v7631 = vsel %vm5469, %v7630, %v7626
        %v7632 = vlaneseq
        %v7633 = vshrl.u32 %v7632, 7
        %v7634 = vsub.s32 %v5471, %v7633
        %v7635 = vrot.slane %v4075, %v7634
        %v7636 = vsel %vm5476, %v7635, %v7631
        %v7637 = vlaneseq
        %v7638 = vshrl.u32 %v7637, 7
        %v7639 = vsub.s32 %v5478, %v7638
        %v7640 = vrot.slane %v4077, %v7639
        %v7641 = vsel %vm5483, %v7640, %v7636
        %v7642 = vlaneseq
        %v7643 = vshrl.u32 %v7642, 7
        %v7644 = vsub.s32 %v5485, %v7643
        %v7645 = vrot.slane %v4079, %v7644
        %v7646 = vsel %vm5490, %v7645, %v7641
        %v7647 = vlaneseq
        %v7648 = vshrl.u32 %v7647, 7
        %v7649 = vsub.s32 %v5492, %v7648
        %v7650 = vrot.slane %v4081, %v7649
        %v7651 = vsel %vm5497, %v7650, %v7646
        %v7652 = vlaneseq
        %v7653 = vshrl.u32 %v7652, 7
        %v7654 = vsub.s32 %v5499, %v7653
        %v7655 = vrot.slane %v4083, %v7654
        %v7656 = vsel %vm5504, %v7655, %v7651
        %v7657 = vlaneseq
        %v7658 = vshrl.u32 %v7657, 7
        %v7659 = vsub.s32 %v5506, %v7658
        %v7660 = vrot.slane %v4085, %v7659
        %v7661 = vsel %vm5511, %v7660, %v7656
        %v7662 = vlaneseq
        %v7663 = vshrl.u32 %v7662, 7
        %v7664 = vsub.s32 %v5513, %v7663
        %v7665 = vrot.slane %v4087, %v7664
        %v7666 = vsel %vm5518, %v7665, %v7661
        %v7684 = vlaneseq
        %v7685 = vshrl.u32 %v7684, 7
        %v7686 = vsub.s32 %v5410, %v7685
        %v7687 = vrot.slane %v4137, %v7686
        %v7688 = vlaneseq
        %v7689 = vshrl.u32 %v7688, 7
        %v7690 = vsub.s32 %v5415, %v7689
        %v7691 = vrot.slane %v4139, %v7690
        %v7692 = vsel %vm5420, %v7691, %v7687
        %v7693 = vlaneseq
        %v7694 = vshrl.u32 %v7693, 7
        %v7695 = vsub.s32 %v5422, %v7694
        %v7696 = vrot.slane %v4141, %v7695
        %v7697 = vsel %vm5427, %v7696, %v7692
        %v7698 = vlaneseq
        %v7699 = vshrl.u32 %v7698, 7
        %v7700 = vsub.s32 %v5429, %v7699
        %v7701 = vrot.slane %v4143, %v7700
        %v7702 = vsel %vm5434, %v7701, %v7697
        %v7703 = vlaneseq
        %v7704 = vshrl.u32 %v7703, 7
        %v7705 = vsub.s32 %v5436, %v7704
        %v7706 = vrot.slane %v4145, %v7705
        %v7707 = vsel %vm5441, %v7706, %v7702
        %v7708 = vlaneseq
        %v7709 = vshrl.u32 %v7708, 7
        %v7710 = vsub.s32 %v5443, %v7709
        %v7711 = vrot.slane %v4147, %v7710
        %v7712 = vsel %vm5448, %v7711, %v7707
        %v7713 = vlaneseq
        %v7714 = vshrl.u32 %v7713, 7
        %v7715 = vsub.s32 %v5450, %v7714
        %v7716 = vrot.slane %v4149, %v7715
        %v7717 = vsel %vm5455, %v7716, %v7712
        %v7718 = vlaneseq
        %v7719 = vshrl.u32 %v7718, 7
        %v7720 = vsub.s32 %v5457, %v7719
        %v7721 = vrot.slane %v4151, %v7720
        %v7722 = vsel %vm5462, %v7721, %v7717
        %v7723 = vlaneseq
        %v7724 = vshrl.u32 %v7723, 7
        %v7725 = vsub.s32 %v5464, %v7724
        %v7726 = vrot.slane %v4153, %v7725
        %v7727 = vsel %vm5469, %v7726, %v7722
        %v7728 = vlaneseq
        %v7729 = vshrl.u32 %v7728, 7
        %v7730 = vsub.s32 %v5471, %v7729
        %v7731 = vrot.slane %v4155, %v7730
        %v7732 = vsel %vm5476, %v7731, %v7727
        %v7733 = vlaneseq
        %v7734 = vshrl.u32 %v7733, 7
        %v7735 = vsub.s32 %v5478, %v7734
        %v7736 = vrot.slane %v4157, %v7735
        %v7737 = vsel %vm5483, %v7736, %v7732
        %v7738 = vlaneseq
        %v7739 = vshrl.u32 %v7738, 7
        %v7740 = vsub.s32 %v5485, %v7739
        %v7741 = vrot.slane %v4159, %v7740
        %v7742 = vsel %vm5490, %v7741, %v7737
        %v7743 = vlaneseq
        %v7744 = vshrl.u32 %v7743, 7
        %v7745 = vsub.s32 %v5492, %v7744
        %v7746 = vrot.slane %v4161, %v7745
        %v7747 = vsel %vm5497, %v7746, %v7742
        %v7748 = vlaneseq
        %v7749 = vshrl.u32 %v7748, 7
        %v7750 = vsub.s32 %v5499, %v7749
        %v7751 = vrot.slane %v4163, %v7750
        %v7752 = vsel %vm5504, %v7751, %v7747
        %v7753 = vlaneseq
        %v7754 = vshrl.u32 %v7753, 7
        %v7755 = vsub.s32 %v5506, %v7754
        %v7756 = vrot.slane %v4165, %v7755
        %v7757 = vsel %vm5511, %v7756, %v7752
        %v7758 = vlaneseq
        %v7759 = vshrl.u32 %v7758, 7
        %v7760 = vsub.s32 %v5513, %v7759
        %v7761 = vrot.slane %v4167, %v7760
        %v7762 = vsel %vm5518, %v7761, %v7757
        %v7766 = vrot.slane %v4233, 6
        %v7767 = vrot.slane %v4236, 6
        %v7768 = vsel %vm6771, %v7766, %v7767
        %v7774 = vrot.slane %v4261, 6
        %v7775 = vrot.slane %v4266, 6
        %v7776 = vsel %vm6771, %v7774, %v7775
        %v7777 = vrot.slane %v4271, 6
        %v7778 = vsel %vm6771, %v7775, %v7777
        %v7797 = vlaneseq
        %v7798 = vshrl.u32 %v7797, 7
        %v7799 = vsub.s32 %v5410, %v7798
        %v7800 = vrot.slane %v4684, %v7799
        %v7801 = vlaneseq
        %v7802 = vshrl.u32 %v7801, 7
        %v7803 = vsub.s32 %v5415, %v7802
        %v7804 = vrot.slane %v4686, %v7803
        %v7805 = vsel %vm5420, %v7804, %v7800
        %v7806 = vlaneseq
        %v7807 = vshrl.u32 %v7806, 7
        %v7808 = vsub.s32 %v5422, %v7807
        %v7809 = vrot.slane %v4688, %v7808
        %v7810 = vsel %vm5427, %v7809, %v7805
        %v7811 = vlaneseq
        %v7812 = vshrl.u32 %v7811, 7
        %v7813 = vsub.s32 %v5429, %v7812
        %v7814 = vrot.slane %v4690, %v7813
        %v7815 = vsel %vm5434, %v7814, %v7810
        %v7816 = vlaneseq
        %v7817 = vshrl.u32 %v7816, 7
        %v7818 = vsub.s32 %v5436, %v7817
        %v7819 = vrot.slane %v4692, %v7818
        %v7820 = vsel %vm5441, %v7819, %v7815
        %v7821 = vlaneseq
        %v7822 = vshrl.u32 %v7821, 7
        %v7823 = vsub.s32 %v5443, %v7822
        %v7824 = vrot.slane %v4694, %v7823
        %v7825 = vsel %vm5448, %v7824, %v7820
        %v7826 = vlaneseq
        %v7827 = vshrl.u32 %v7826, 7
        %v7828 = vsub.s32 %v5450, %v7827
        %v7829 = vrot.slane %v4696, %v7828
        %v7830 = vsel %vm5455, %v7829, %v7825
        %v7831 = vlaneseq
        %v7832 = vshrl.u32 %v7831, 7
        %v7833 = vsub.s32 %v5457, %v7832
        %v7834 = vrot.slane %v4698, %v7833
        %v7835 = vsel %vm5462, %v7834, %v7830
        %v7836 = vlaneseq
        %v7837 = vshrl.u32 %v7836, 7
        %v7838 = vsub.s32 %v5464, %v7837
        %v7839 = vrot.slane %v4700, %v7838
        %v7840 = vsel %vm5469, %v7839, %v7835
        %v7841 = vlaneseq
        %v7842 = vshrl.u32 %v7841, 7
        %v7843 = vsub.s32 %v5471, %v7842
        %v7844 = vrot.slane %v4702, %v7843
        %v7845 = vsel %vm5476, %v7844, %v7840
        %v7846 = vlaneseq
        %v7847 = vshrl.u32 %v7846, 7
        %v7848 = vsub.s32 %v5478, %v7847
        %v7849 = vrot.slane %v4704, %v7848
        %v7850 = vsel %vm5483, %v7849, %v7845
        %v7851 = vlaneseq
        %v7852 = vshrl.u32 %v7851, 7
        %v7853 = vsub.s32 %v5485, %v7852
        %v7854 = vrot.slane %v4706, %v7853
        %v7855 = vsel %vm5490, %v7854, %v7850
        %v7856 = vlaneseq
        %v7857 = vshrl.u32 %v7856, 7
        %v7858 = vsub.s32 %v5492, %v7857
        %v7859 = vrot.slane %v4708, %v7858
        %v7860 = vsel %vm5497, %v7859, %v7855
        %v7861 = vlaneseq
        %v7862 = vshrl.u32 %v7861, 7
        %v7863 = vsub.s32 %v5499, %v7862
        %v7864 = vrot.slane %v4710, %v7863
        %v7865 = vsel %vm5504, %v7864, %v7860
        %v7866 = vlaneseq
        %v7867 = vshrl.u32 %v7866, 7
        %v7868 = vsub.s32 %v5506, %v7867
        %v7869 = vrot.slane %v4712, %v7868
        %v7870 = vsel %vm5511, %v7869, %v7865
        %v7871 = vlaneseq
        %v7872 = vshrl.u32 %v7871, 7
        %v7873 = vsub.s32 %v5513, %v7872
        %v7874 = vrot.slane %v4714, %v7873
        %v7875 = vsel %vm5518, %v7874, %v7870
        %v7893 = vlaneseq
        %v7894 = vshrl.u32 %v7893, 7
        %v7895 = vsub.s32 %v5410, %v7894
        %v7896 = vrot.slane %v4764, %v7895
        %v7897 = vlaneseq
        %v7898 = vshrl.u32 %v7897, 7
        %v7899 = vsub.s32 %v5415, %v7898
        %v7900 = vrot.slane %v4766, %v7899
        %v7901 = vsel %vm5420, %v7900, %v7896
        %v7902 = vlaneseq
        %v7903 = vshrl.u32 %v7902, 7
        %v7904 = vsub.s32 %v5422, %v7903
        %v7905 = vrot.slane %v4768, %v7904
        %v7906 = vsel %vm5427, %v7905, %v7901
        %v7907 = vlaneseq
        %v7908 = vshrl.u32 %v7907, 7
        %v7909 = vsub.s32 %v5429, %v7908
        %v7910 = vrot.slane %v4770, %v7909
        %v7911 = vsel %vm5434, %v7910, %v7906
        %v7912 = vlaneseq
        %v7913 = vshrl.u32 %v7912, 7
        %v7914 = vsub.s32 %v5436, %v7913
        %v7915 = vrot.slane %v4772, %v7914
        %v7916 = vsel %vm5441, %v7915, %v7911
        %v7917 = vlaneseq
        %v7918 = vshrl.u32 %v7917, 7
        %v7919 = vsub.s32 %v5443, %v7918
        %v7920 = vrot.slane %v4774, %v7919
        %v7921 = vsel %vm5448, %v7920, %v7916
        %v7922 = vlaneseq
        %v7923 = vshrl.u32 %v7922, 7
        %v7924 = vsub.s32 %v5450, %v7923
        %v7925 = vrot.slane %v4776, %v7924
        %v7926 = vsel %vm5455, %v7925, %v7921
        %v7927 = vlaneseq
        %v7928 = vshrl.u32 %v7927, 7
        %v7929 = vsub.s32 %v5457, %v7928
        %v7930 = vrot.slane %v4778, %v7929
        %v7931 = vsel %vm5462, %v7930, %v7926
        %v7932 = vlaneseq
        %v7933 = vshrl.u32 %v7932, 7
        %v7934 = vsub.s32 %v5464, %v7933
        %v7935 = vrot.slane %v4780, %v7934
        %v7936 = vsel %vm5469, %v7935, %v7931
        %v7937 = vlaneseq
        %v7938 = vshrl.u32 %v7937, 7
        %v7939 = vsub.s32 %v5471, %v7938
        %v7940 = vrot.slane %v4782, %v7939
        %v7941 = vsel %vm5476, %v7940, %v7936
        %v7942 = vlaneseq
        %v7943 = vshrl.u32 %v7942, 7
        %v7944 = vsub.s32 %v5478, %v7943
        %v7945 = vrot.slane %v4784, %v7944
        %v7946 = vsel %vm5483, %v7945, %v7941
        %v7947 = vlaneseq
        %v7948 = vshrl.u32 %v7947, 7
        %v7949 = vsub.s32 %v5485, %v7948
        %v7950 = vrot.slane %v4786, %v7949
        %v7951 = vsel %vm5490, %v7950, %v7946
        %v7952 = vlaneseq
        %v7953 = vshrl.u32 %v7952, 7
        %v7954 = vsub.s32 %v5492, %v7953
        %v7955 = vrot.slane %v4788, %v7954
        %v7956 = vsel %vm5497, %v7955, %v7951
        %v7957 = vlaneseq
        %v7958 = vshrl.u32 %v7957, 7
        %v7959 = vsub.s32 %v5499, %v7958
        %v7960 = vrot.slane %v4790, %v7959
        %v7961 = vsel %vm5504, %v7960, %v7956
        %v7962 = vlaneseq
        %v7963 = vshrl.u32 %v7962, 7
        %v7964 = vsub.s32 %v5506, %v7963
        %v7965 = vrot.slane %v4792, %v7964
        %v7966 = vsel %vm5511, %v7965, %v7961
        %v7967 = vlaneseq
        %v7968 = vshrl.u32 %v7967, 7
        %v7969 = vsub.s32 %v5513, %v7968
        %v7970 = vrot.slane %v4794, %v7969
        %v7971 = vsel %vm5518, %v7970, %v7966
        %v7973 = vsel %vm6769, %v6881, %v6977
        %v7974 = vsel %vm6771, %v7973, %v6981
        %v7975 = vsel %vm6771, %v6982, %v6989
        %v7976 = vsel %vm6771, %v6992, %v7090
        %v7977 = vsel %vm6773, %v7976, %v7186
        %v7978 = vsel %vm990, %v7977, %v7282
        %v7979 = vsel %vm6776, %v7978, %v7378
        %v7980 = vsel %vm6778, %v7979, %v7474
        %v7981 = vsel %vm6780, %v7980, %v7570
        %v7982 = vsel %vm6769, %v7666, %v7762
        %v7983 = vsel %vm6771, %v7982, %v7766
        %v7984 = vsel %vm6771, %v7767, %v7774
        %v7985 = vsel %vm6771, %v7777, %v7875
        %v7986 = vsel %vm6773, %v7985, %v7971
        %v8003 = vlaneseq
        %v8004 = vshrl.u32 %v8003, 7
        %v8005 = vsub.s32 %v5410, %v8004
        %v8006 = vrot.slane %v4844, %v8005
        %v8007 = vlaneseq
        %v8008 = vshrl.u32 %v8007, 7
        %v8009 = vsub.s32 %v5415, %v8008
        %v8010 = vrot.slane %v4846, %v8009
        %v8011 = vsel %vm5420, %v8010, %v8006
        %v8012 = vlaneseq
        %v8013 = vshrl.u32 %v8012, 7
        %v8014 = vsub.s32 %v5422, %v8013
        %v8015 = vrot.slane %v4848, %v8014
        %v8016 = vsel %vm5427, %v8015, %v8011
        %v8017 = vlaneseq
        %v8018 = vshrl.u32 %v8017, 7
        %v8019 = vsub.s32 %v5429, %v8018
        %v8020 = vrot.slane %v4850, %v8019
        %v8021 = vsel %vm5434, %v8020, %v8016
        %v8022 = vlaneseq
        %v8023 = vshrl.u32 %v8022, 7
        %v8024 = vsub.s32 %v5436, %v8023
        %v8025 = vrot.slane %v4852, %v8024
        %v8026 = vsel %vm5441, %v8025, %v8021
        %v8027 = vlaneseq
        %v8028 = vshrl.u32 %v8027, 7
        %v8029 = vsub.s32 %v5443, %v8028
        %v8030 = vrot.slane %v4854, %v8029
        %v8031 = vsel %vm5448, %v8030, %v8026
        %v8032 = vlaneseq
        %v8033 = vshrl.u32 %v8032, 7
        %v8034 = vsub.s32 %v5450, %v8033
        %v8035 = vrot.slane %v4856, %v8034
        %v8036 = vsel %vm5455, %v8035, %v8031
        %v8037 = vlaneseq
        %v8038 = vshrl.u32 %v8037, 7
        %v8039 = vsub.s32 %v5457, %v8038
        %v8040 = vrot.slane %v4858, %v8039
        %v8041 = vsel %vm5462, %v8040, %v8036
        %v8042 = vlaneseq
        %v8043 = vshrl.u32 %v8042, 7
        %v8044 = vsub.s32 %v5464, %v8043
        %v8045 = vrot.slane %v4860, %v8044
        %v8046 = vsel %vm5469, %v8045, %v8041
        %v8047 = vlaneseq
        %v8048 = vshrl.u32 %v8047, 7
        %v8049 = vsub.s32 %v5471, %v8048
        %v8050 = vrot.slane %v4862, %v8049
        %v8051 = vsel %vm5476, %v8050, %v8046
        %v8052 = vlaneseq
        %v8053 = vshrl.u32 %v8052, 7
        %v8054 = vsub.s32 %v5478, %v8053
        %v8055 = vrot.slane %v4864, %v8054
        %v8056 = vsel %vm5483, %v8055, %v8051
        %v8057 = vlaneseq
        %v8058 = vshrl.u32 %v8057, 7
        %v8059 = vsub.s32 %v5485, %v8058
        %v8060 = vrot.slane %v4866, %v8059
        %v8061 = vsel %vm5490, %v8060, %v8056
        %v8062 = vlaneseq
        %v8063 = vshrl.u32 %v8062, 7
        %v8064 = vsub.s32 %v5492, %v8063
        %v8065 = vrot.slane %v4868, %v8064
        %v8066 = vsel %vm5497, %v8065, %v8061
        %v8067 = vlaneseq
        %v8068 = vshrl.u32 %v8067, 7
        %v8069 = vsub.s32 %v5499, %v8068
        %v8070 = vrot.slane %v4870, %v8069
        %v8071 = vsel %vm5504, %v8070, %v8066
        %v8072 = vlaneseq
        %v8073 = vshrl.u32 %v8072, 7
        %v8074 = vsub.s32 %v5506, %v8073
        %v8075 = vrot.slane %v4872, %v8074
        %v8076 = vsel %vm5511, %v8075, %v8071
        %v8077 = vlaneseq
        %v8078 = vshrl.u32 %v8077, 7
        %v8079 = vsub.s32 %v5513, %v8078
        %v8080 = vrot.slane %v4874, %v8079
        %v8081 = vsel %vm5518, %v8080, %v8076
        %v8099 = vlaneseq
        %v8100 = vshrl.u32 %v8099, 7
        %v8101 = vsub.s32 %v5410, %v8100
        %v8102 = vrot.slane %v4924, %v8101
        %v8103 = vlaneseq
        %v8104 = vshrl.u32 %v8103, 7
        %v8105 = vsub.s32 %v5415, %v8104
        %v8106 = vrot.slane %v4926, %v8105
        %v8107 = vsel %vm5420, %v8106, %v8102
        %v8108 = vlaneseq
        %v8109 = vshrl.u32 %v8108, 7
        %v8110 = vsub.s32 %v5422, %v8109
        %v8111 = vrot.slane %v4928, %v8110
        %v8112 = vsel %vm5427, %v8111, %v8107
        %v8113 = vlaneseq
        %v8114 = vshrl.u32 %v8113, 7
        %v8115 = vsub.s32 %v5429, %v8114
        %v8116 = vrot.slane %v4930, %v8115
        %v8117 = vsel %vm5434, %v8116, %v8112
        %v8118 = vlaneseq
        %v8119 = vshrl.u32 %v8118, 7
        %v8120 = vsub.s32 %v5436, %v8119
        %v8121 = vrot.slane %v4932, %v8120
        %v8122 = vsel %vm5441, %v8121, %v8117
        %v8123 = vlaneseq
        %v8124 = vshrl.u32 %v8123, 7
        %v8125 = vsub.s32 %v5443, %v8124
        %v8126 = vrot.slane %v4934, %v8125
        %v8127 = vsel %vm5448, %v8126, %v8122
        %v8128 = vlaneseq
        %v8129 = vshrl.u32 %v8128, 7
        %v8130 = vsub.s32 %v5450, %v8129
        %v8131 = vrot.slane %v4936, %v8130
        %v8132 = vsel %vm5455, %v8131, %v8127
        %v8133 = vlaneseq
        %v8134 = vshrl.u32 %v8133, 7
        %v8135 = vsub.s32 %v5457, %v8134
        %v8136 = vrot.slane %v4938, %v8135
        %v8137 = vsel %vm5462, %v8136, %v8132
        %v8138 = vlaneseq
        %v8139 = vshrl.u32 %v8138, 7
        %v8140 = vsub.s32 %v5464, %v8139
        %v8141 = vrot.slane %v4940, %v8140
        %v8142 = vsel %vm5469, %v8141, %v8137
        %v8143 = vlaneseq
        %v8144 = vshrl.u32 %v8143, 7
        %v8145 = vsub.s32 %v5471, %v8144
        %v8146 = vrot.slane %v4942, %v8145
        %v8147 = vsel %vm5476, %v8146, %v8142
        %v8148 = vlaneseq
        %v8149 = vshrl.u32 %v8148, 7
        %v8150 = vsub.s32 %v5478, %v8149
        %v8151 = vrot.slane %v4944, %v8150
        %v8152 = vsel %vm5483, %v8151, %v8147
        %v8153 = vlaneseq
        %v8154 = vshrl.u32 %v8153, 7
        %v8155 = vsub.s32 %v5485, %v8154
        %v8156 = vrot.slane %v4946, %v8155
        %v8157 = vsel %vm5490, %v8156, %v8152
        %v8158 = vlaneseq
        %v8159 = vshrl.u32 %v8158, 7
        %v8160 = vsub.s32 %v5492, %v8159
        %v8161 = vrot.slane %v4948, %v8160
        %v8162 = vsel %vm5497, %v8161, %v8157
        %v8163 = vlaneseq
        %v8164 = vshrl.u32 %v8163, 7
        %v8165 = vsub.s32 %v5499, %v8164
        %v8166 = vrot.slane %v4950, %v8165
        %v8167 = vsel %vm5504, %v8166, %v8162
        %v8168 = vlaneseq
        %v8169 = vshrl.u32 %v8168, 7
        %v8170 = vsub.s32 %v5506, %v8169
        %v8171 = vrot.slane %v4952, %v8170
        %v8172 = vsel %vm5511, %v8171, %v8167
        %v8173 = vlaneseq
        %v8174 = vshrl.u32 %v8173, 7
        %v8175 = vsub.s32 %v5513, %v8174
        %v8176 = vrot.slane %v4954, %v8175
        %v8177 = vsel %vm5518, %v8176, %v8172
        %v8195 = vlaneseq
        %v8196 = vshrl.u32 %v8195, 7
        %v8197 = vsub.s32 %v5410, %v8196
        %v8198 = vrot.slane %v5004, %v8197
        %v8199 = vlaneseq
        %v8200 = vshrl.u32 %v8199, 7
        %v8201 = vsub.s32 %v5415, %v8200
        %v8202 = vrot.slane %v5006, %v8201
        %v8203 = vsel %vm5420, %v8202, %v8198
        %v8204 = vlaneseq
        %v8205 = vshrl.u32 %v8204, 7
        %v8206 = vsub.s32 %v5422, %v8205
        %v8207 = vrot.slane %v5008, %v8206
        %v8208 = vsel %vm5427, %v8207, %v8203
        %v8209 = vlaneseq
        %v8210 = vshrl.u32 %v8209, 7
        %v8211 = vsub.s32 %v5429, %v8210
        %v8212 = vrot.slane %v5010, %v8211
        %v8213 = vsel %vm5434, %v8212, %v8208
        %v8214 = vlaneseq
        %v8215 = vshrl.u32 %v8214, 7
        %v8216 = vsub.s32 %v5436, %v8215
        %v8217 = vrot.slane %v5012, %v8216
        %v8218 = vsel %vm5441, %v8217, %v8213
        %v8219 = vlaneseq
        %v8220 = vshrl.u32 %v8219, 7
        %v8221 = vsub.s32 %v5443, %v8220
        %v8222 = vrot.slane %v5014, %v8221
        %v8223 = vsel %vm5448, %v8222, %v8218
        %v8224 = vlaneseq
        %v8225 = vshrl.u32 %v8224, 7
        %v8226 = vsub.s32 %v5450, %v8225
        %v8227 = vrot.slane %v5016, %v8226
        %v8228 = vsel %vm5455, %v8227, %v8223
        %v8229 = vlaneseq
        %v8230 = vshrl.u32 %v8229, 7
        %v8231 = vsub.s32 %v5457, %v8230
        %v8232 = vrot.slane %v5018, %v8231
        %v8233 = vsel %vm5462, %v8232, %v8228
        %v8234 = vlaneseq
        %v8235 = vshrl.u32 %v8234, 7
        %v8236 = vsub.s32 %v5464, %v8235
        %v8237 = vrot.slane %v5020, %v8236
        %v8238 = vsel %vm5469, %v8237, %v8233
        %v8239 = vlaneseq
        %v8240 = vshrl.u32 %v8239, 7
        %v8241 = vsub.s32 %v5471, %v8240
        %v8242 = vrot.slane %v5022, %v8241
        %v8243 = vsel %vm5476, %v8242, %v8238
        %v8244 = vlaneseq
        %v8245 = vshrl.u32 %v8244, 7
        %v8246 = vsub.s32 %v5478, %v8245
        %v8247 = vrot.slane %v5024, %v8246
        %v8248 = vsel %vm5483, %v8247, %v8243
        %v8249 = vlaneseq
        %v8250 = vshrl.u32 %v8249, 7
        %v8251 = vsub.s32 %v5485, %v8250
        %v8252 = vrot.slane %v5026, %v8251
        %v8253 = vsel %vm5490, %v8252, %v8248
        %v8254 = vlaneseq
        %v8255 = vshrl.u32 %v8254, 7
        %v8256 = vsub.s32 %v5492, %v8255
        %v8257 = vrot.slane %v5028, %v8256
        %v8258 = vsel %vm5497, %v8257, %v8253
        %v8259 = vlaneseq
        %v8260 = vshrl.u32 %v8259, 7
        %v8261 = vsub.s32 %v5499, %v8260
        %v8262 = vrot.slane %v5030, %v8261
        %v8263 = vsel %vm5504, %v8262, %v8258
        %v8264 = vlaneseq
        %v8265 = vshrl.u32 %v8264, 7
        %v8266 = vsub.s32 %v5506, %v8265
        %v8267 = vrot.slane %v5032, %v8266
        %v8268 = vsel %vm5511, %v8267, %v8263
        %v8269 = vlaneseq
        %v8270 = vshrl.u32 %v8269, 7
        %v8271 = vsub.s32 %v5513, %v8270
        %v8272 = vrot.slane %v5034, %v8271
        %v8273 = vsel %vm5518, %v8272, %v8268
        %v8291 = vlaneseq
        %v8292 = vshrl.u32 %v8291, 7
        %v8293 = vsub.s32 %v5410, %v8292
        %v8294 = vrot.slane %v5084, %v8293
        %v8295 = vlaneseq
        %v8296 = vshrl.u32 %v8295, 7
        %v8297 = vsub.s32 %v5415, %v8296
        %v8298 = vrot.slane %v5086, %v8297
        %v8299 = vsel %vm5420, %v8298, %v8294
        %v8300 = vlaneseq
        %v8301 = vshrl.u32 %v8300, 7
        %v8302 = vsub.s32 %v5422, %v8301
        %v8303 = vrot.slane %v5088, %v8302
        %v8304 = vsel %vm5427, %v8303, %v8299
        %v8305 = vlaneseq
        %v8306 = vshrl.u32 %v8305, 7
        %v8307 = vsub.s32 %v5429, %v8306
        %v8308 = vrot.slane %v5090, %v8307
        %v8309 = vsel %vm5434, %v8308, %v8304
        %v8310 = vlaneseq
        %v8311 = vshrl.u32 %v8310, 7
        %v8312 = vsub.s32 %v5436, %v8311
        %v8313 = vrot.slane %v5092, %v8312
        %v8314 = vsel %vm5441, %v8313, %v8309
        %v8315 = vlaneseq
        %v8316 = vshrl.u32 %v8315, 7
        %v8317 = vsub.s32 %v5443, %v8316
        %v8318 = vrot.slane %v5094, %v8317
        %v8319 = vsel %vm5448, %v8318, %v8314
        %v8320 = vlaneseq
        %v8321 = vshrl.u32 %v8320, 7
        %v8322 = vsub.s32 %v5450, %v8321
        %v8323 = vrot.slane %v5096, %v8322
        %v8324 = vsel %vm5455, %v8323, %v8319
        %v8325 = vlaneseq
        %v8326 = vshrl.u32 %v8325, 7
        %v8327 = vsub.s32 %v5457, %v8326
        %v8328 = vrot.slane %v5098, %v8327
        %v8329 = vsel %vm5462, %v8328, %v8324
        %v8330 = vlaneseq
        %v8331 = vshrl.u32 %v8330, 7
        %v8332 = vsub.s32 %v5464, %v8331
        %v8333 = vrot.slane %v5100, %v8332
        %v8334 = vsel %vm5469, %v8333, %v8329
        %v8335 = vlaneseq
        %v8336 = vshrl.u32 %v8335, 7
        %v8337 = vsub.s32 %v5471, %v8336
        %v8338 = vrot.slane %v5102, %v8337
        %v8339 = vsel %vm5476, %v8338, %v8334
        %v8340 = vlaneseq
        %v8341 = vshrl.u32 %v8340, 7
        %v8342 = vsub.s32 %v5478, %v8341
        %v8343 = vrot.slane %v5104, %v8342
        %v8344 = vsel %vm5483, %v8343, %v8339
        %v8345 = vlaneseq
        %v8346 = vshrl.u32 %v8345, 7
        %v8347 = vsub.s32 %v5485, %v8346
        %v8348 = vrot.slane %v5106, %v8347
        %v8349 = vsel %vm5490, %v8348, %v8344
        %v8350 = vlaneseq
        %v8351 = vshrl.u32 %v8350, 7
        %v8352 = vsub.s32 %v5492, %v8351
        %v8353 = vrot.slane %v5108, %v8352
        %v8354 = vsel %vm5497, %v8353, %v8349
        %v8355 = vlaneseq
        %v8356 = vshrl.u32 %v8355, 7
        %v8357 = vsub.s32 %v5499, %v8356
        %v8358 = vrot.slane %v5110, %v8357
        %v8359 = vsel %vm5504, %v8358, %v8354
        %v8360 = vlaneseq
        %v8361 = vshrl.u32 %v8360, 7
        %v8362 = vsub.s32 %v5506, %v8361
        %v8363 = vrot.slane %v5112, %v8362
        %v8364 = vsel %vm5511, %v8363, %v8359
        %v8365 = vlaneseq
        %v8366 = vshrl.u32 %v8365, 7
        %v8367 = vsub.s32 %v5513, %v8366
        %v8368 = vrot.slane %v5114, %v8367
        %v8369 = vsel %vm5518, %v8368, %v8364
        %v8387 = vlaneseq
        %v8388 = vshrl.u32 %v8387, 7
        %v8389 = vsub.s32 %v5410, %v8388
        %v8390 = vrot.slane %v5164, %v8389
        %v8391 = vlaneseq
        %v8392 = vshrl.u32 %v8391, 7
        %v8393 = vsub.s32 %v5415, %v8392
        %v8394 = vrot.slane %v5166, %v8393
        %v8395 = vsel %vm5420, %v8394, %v8390
        %v8396 = vlaneseq
        %v8397 = vshrl.u32 %v8396, 7
        %v8398 = vsub.s32 %v5422, %v8397
        %v8399 = vrot.slane %v5168, %v8398
        %v8400 = vsel %vm5427, %v8399, %v8395
        %v8401 = vlaneseq
        %v8402 = vshrl.u32 %v8401, 7
        %v8403 = vsub.s32 %v5429, %v8402
        %v8404 = vrot.slane %v5170, %v8403
        %v8405 = vsel %vm5434, %v8404, %v8400
        %v8406 = vlaneseq
        %v8407 = vshrl.u32 %v8406, 7
        %v8408 = vsub.s32 %v5436, %v8407
        %v8409 = vrot.slane %v5172, %v8408
        %v8410 = vsel %vm5441, %v8409, %v8405
        %v8411 = vlaneseq
        %v8412 = vshrl.u32 %v8411, 7
        %v8413 = vsub.s32 %v5443, %v8412
        %v8414 = vrot.slane %v5174, %v8413
        %v8415 = vsel %vm5448, %v8414, %v8410
        %v8416 = vlaneseq
        %v8417 = vshrl.u32 %v8416, 7
        %v8418 = vsub.s32 %v5450, %v8417
        %v8419 = vrot.slane %v5176, %v8418
        %v8420 = vsel %vm5455, %v8419, %v8415
        %v8421 = vlaneseq
        %v8422 = vshrl.u32 %v8421, 7
        %v8423 = vsub.s32 %v5457, %v8422
        %v8424 = vrot.slane %v5178, %v8423
        %v8425 = vsel %vm5462, %v8424, %v8420
        %v8426 = vlaneseq
        %v8427 = vshrl.u32 %v8426, 7
        %v8428 = vsub.s32 %v5464, %v8427
        %v8429 = vrot.slane %v5180, %v8428
        %v8430 = vsel %vm5469, %v8429, %v8425
        %v8431 = vlaneseq
        %v8432 = vshrl.u32 %v8431, 7
        %v8433 = vsub.s32 %v5471, %v8432
        %v8434 = vrot.slane %v5182, %v8433
        %v8435 = vsel %vm5476, %v8434, %v8430
        %v8436 = vlaneseq
        %v8437 = vshrl.u32 %v8436, 7
        %v8438 = vsub.s32 %v5478, %v8437
        %v8439 = vrot.slane %v5184, %v8438
        %v8440 = vsel %vm5483, %v8439, %v8435
        %v8441 = vlaneseq
        %v8442 = vshrl.u32 %v8441, 7
        %v8443 = vsub.s32 %v5485, %v8442
        %v8444 = vrot.slane %v5186, %v8443
        %v8445 = vsel %vm5490, %v8444, %v8440
        %v8446 = vlaneseq
        %v8447 = vshrl.u32 %v8446, 7
        %v8448 = vsub.s32 %v5492, %v8447
        %v8449 = vrot.slane %v5188, %v8448
        %v8450 = vsel %vm5497, %v8449, %v8445
        %v8451 = vlaneseq
        %v8452 = vshrl.u32 %v8451, 7
        %v8453 = vsub.s32 %v5499, %v8452
        %v8454 = vrot.slane %v5190, %v8453
        %v8455 = vsel %vm5504, %v8454, %v8450
        %v8456 = vlaneseq
        %v8457 = vshrl.u32 %v8456, 7
        %v8458 = vsub.s32 %v5506, %v8457
        %v8459 = vrot.slane %v5192, %v8458
        %v8460 = vsel %vm5511, %v8459, %v8455
        %v8461 = vlaneseq
        %v8462 = vshrl.u32 %v8461, 7
        %v8463 = vsub.s32 %v5513, %v8462
        %v8464 = vrot.slane %v5194, %v8463
        %v8465 = vsel %vm5518, %v8464, %v8460
        %v8483 = vlaneseq
        %v8484 = vshrl.u32 %v8483, 7
        %v8485 = vsub.s32 %v5410, %v8484
        %v8486 = vrot.slane %v5244, %v8485
        %v8487 = vlaneseq
        %v8488 = vshrl.u32 %v8487, 7
        %v8489 = vsub.s32 %v5415, %v8488
        %v8490 = vrot.slane %v5246, %v8489
        %v8491 = vsel %vm5420, %v8490, %v8486
        %v8492 = vlaneseq
        %v8493 = vshrl.u32 %v8492, 7
        %v8494 = vsub.s32 %v5422, %v8493
        %v8495 = vrot.slane %v5248, %v8494
        %v8496 = vsel %vm5427, %v8495, %v8491
        %v8497 = vlaneseq
        %v8498 = vshrl.u32 %v8497, 7
        %v8499 = vsub.s32 %v5429, %v8498
        %v8500 = vrot.slane %v5250, %v8499
        %v8501 = vsel %vm5434, %v8500, %v8496
        %v8502 = vlaneseq
        %v8503 = vshrl.u32 %v8502, 7
        %v8504 = vsub.s32 %v5436, %v8503
        %v8505 = vrot.slane %v5252, %v8504
        %v8506 = vsel %vm5441, %v8505, %v8501
        %v8507 = vlaneseq
        %v8508 = vshrl.u32 %v8507, 7
        %v8509 = vsub.s32 %v5443, %v8508
        %v8510 = vrot.slane %v5254, %v8509
        %v8511 = vsel %vm5448, %v8510, %v8506
        %v8512 = vlaneseq
        %v8513 = vshrl.u32 %v8512, 7
        %v8514 = vsub.s32 %v5450, %v8513
        %v8515 = vrot.slane %v5256, %v8514
        %v8516 = vsel %vm5455, %v8515, %v8511
        %v8517 = vlaneseq
        %v8518 = vshrl.u32 %v8517, 7
        %v8519 = vsub.s32 %v5457, %v8518
        %v8520 = vrot.slane %v5258, %v8519
        %v8521 = vsel %vm5462, %v8520, %v8516
        %v8522 = vlaneseq
        %v8523 = vshrl.u32 %v8522, 7
        %v8524 = vsub.s32 %v5464, %v8523
        %v8525 = vrot.slane %v5260, %v8524
        %v8526 = vsel %vm5469, %v8525, %v8521
        %v8527 = vlaneseq
        %v8528 = vshrl.u32 %v8527, 7
        %v8529 = vsub.s32 %v5471, %v8528
        %v8530 = vrot.slane %v5262, %v8529
        %v8531 = vsel %vm5476, %v8530, %v8526
        %v8532 = vlaneseq
        %v8533 = vshrl.u32 %v8532, 7
        %v8534 = vsub.s32 %v5478, %v8533
        %v8535 = vrot.slane %v5264, %v8534
        %v8536 = vsel %vm5483, %v8535, %v8531
        %v8537 = vlaneseq
        %v8538 = vshrl.u32 %v8537, 7
        %v8539 = vsub.s32 %v5485, %v8538
        %v8540 = vrot.slane %v5266, %v8539
        %v8541 = vsel %vm5490, %v8540, %v8536
        %v8542 = vlaneseq
        %v8543 = vshrl.u32 %v8542, 7
        %v8544 = vsub.s32 %v5492, %v8543
        %v8545 = vrot.slane %v5268, %v8544
        %v8546 = vsel %vm5497, %v8545, %v8541
        %v8547 = vlaneseq
        %v8548 = vshrl.u32 %v8547, 7
        %v8549 = vsub.s32 %v5499, %v8548
        %v8550 = vrot.slane %v5270, %v8549
        %v8551 = vsel %vm5504, %v8550, %v8546
        %v8552 = vlaneseq
        %v8553 = vshrl.u32 %v8552, 7
        %v8554 = vsub.s32 %v5506, %v8553
        %v8555 = vrot.slane %v5272, %v8554
        %v8556 = vsel %vm5511, %v8555, %v8551
        %v8557 = vlaneseq
        %v8558 = vshrl.u32 %v8557, 7
        %v8559 = vsub.s32 %v5513, %v8558
        %v8560 = vrot.slane %v5274, %v8559
        %v8561 = vsel %vm5518, %v8560, %v8556
        %v8565 = vrot.slane %v5340, 2
        %v8566 = vrot.slane %v5343, 2
        %v8567 = vsel %vm6778, %v8565, %v8566
        %v8573 = vrot.slane %v5368, 2
        %v8574 = vrot.slane %v5373, 2
        %v8575 = vsel %vm6778, %v8573, %v8574
        %v8576 = vrot.slane %v5378, 2
        %v8577 = vsel %vm6778, %v8574, %v8576
        %v8579 = vsel %vm6769, %v8081, %v8177
        %v8580 = vsel %vm6771, %v8579, %v8273
        %v8581 = vsel %vm6773, %v8580, %v8369
        %v8582 = vsel %vm990, %v8581, %v8465
        %v8583 = vsel %vm6776, %v8582, %v8561
        %v8584 = vsel %vm6778, %v8583, %v8565
        %v8585 = vsel %vm6778, %v8566, %v8573
        %v8592 = vrot.slane %v7974, 2
        %v8593 = vrot.slane %v6983, 2
        %v8594 = vsel %vm6778, %v8592, %v8593
        %v8595 = vrot.slane %v7975, 2
        %v8596 = vsel %vm6778, %v8593, %v8595
        %v8597 = vrot.slane %v6991, 2
        %v8598 = vsel %vm6778, %v8595, %v8597
        %v8599 = vrot.slane %v6993, 2
        %v8600 = vsel %vm6778, %v8597, %v8599
        %v8601 = vrot.slane %v7981, 2
        %v8602 = vsel %vm6778, %v8599, %v8601
        %v8603 = vrot.slane %v7983, 2
        %v8604 = vsel %vm6778, %v8601, %v8603
        %v8605 = vrot.slane %v7768, 2
        %v8606 = vsel %vm6778, %v8603, %v8605
        %v8607 = vrot.slane %v7984, 2
        %v8608 = vsel %vm6778, %v8605, %v8607
        %v8609 = vrot.slane %v7776, 2
        %v8610 = vsel %vm6778, %v8607, %v8609
        %v8611 = vrot.slane %v7778, 2
        %v8612 = vsel %vm6778, %v8609, %v8611
        %v8613 = vrot.slane %v7986, 2
        %v8614 = vsel %vm6778, %v8611, %v8613
        %v8630 = vrot.slane %v8584, 6
        %v8631 = vrot.slane %v8567, 6
        %v8632 = vsel %vm6771, %v8630, %v8631
        %v8633 = vrot.slane %v8585, 6
        %v8634 = vsel %vm6771, %v8631, %v8633
        %v8635 = vrot.slane %v8575, 6
        %v8636 = vsel %vm6771, %v8633, %v8635
        %v8637 = vrot.slane %v8577, 6
        %v8638 = vsel %vm6771, %v8635, %v8637
        %v8639 = vrot.slane %v8576, 6
        %v8640 = vsel %vm6771, %v8637, %v8639
        %v8647 = vsel %vm6778, %v6786, %v8592
        %v8648 = vsel %vm6771, %v8613, %v8630
        %v8649 = vld [vmem:[#allocation2] sm:$0xff]
        %v8650 = vld [vmem:[#allocation2 + $0x8] sm:$0xff]
        %v8651 = vld [vmem:[#allocation2 + $0x10] sm:$0xff]
        %v8652 = vld [vmem:[#allocation2 + $0x18] sm:$0xff]
        %v8653 = vld [vmem:[%s712] sm:$0xf]
        %v8654 = vld [vmem:[%s712 + $0x4] sm:$0xf]
        %v8655 = vld [vmem:[%s712 + $0x8] sm:$0xf]
        %v8656 = vld [vmem:[%s712 + $0xc] sm:$0xf]
        %v8657 = vld [vmem:[%s712 + $0x10] sm:$0xf]
        %v8658 = vld [vmem:[%s712 + $0x14] sm:$0xf]
        %v8659 = vld [vmem:[%s712 + $0x18] sm:$0xf]
        %v8660 = vld [vmem:[%s712 + $0x1c] sm:$0xf]
        %v8661 = vld [vmem:[%s712 + $0x20] sm:$0xf]
        %v8662 = vld [vmem:[%s712 + $0x24] sm:$0xf]
        %v8663 = vld [vmem:[%s712 + $0x28] sm:$0xf]
        %v8664 = vld [vmem:[%s712 + $0x2c] sm:$0xf]
        %v8665 = vld [vmem:[%s712 + $0x30] sm:$0xf]
        %v8666 = vld [vmem:[%s712 + $0x34] sm:$0xf]
        %v8667 = vld [vmem:[%s712 + $0x38] sm:$0xf]
        %v8668 = vld [vmem:[%s712 + $0x3c] sm:$0xf]
        %v8669 = vld [vmem:[%s712 + $0x40] sm:$0xf]
        %v8670 = vld [vmem:[%s712 + $0x44] sm:$0xf]
        %v8671 = vld [vmem:[%s712 + $0x48] sm:$0xf]
        %v8672 = vld [vmem:[%s712 + $0x4c] sm:$0xf]
        %v8673 = vld [vmem:[%s712 + $0x50] sm:$0xf]
        %v8674 = vld [vmem:[%s712 + $0x54] sm:$0xf]
        %v8675 = vld [vmem:[%s712 + $0x58] sm:$0xf]
        %v8676 = vld [vmem:[%s712 + $0x5c] sm:$0xf]
        %v8677 = vpack.c.bf16 %v2019, %v6781
        %v8678 = vpack.c.bf16 %v2047, %v2022
        %v8679 = vpack.c.bf16 %v2057, %v2052
        %v8680 = vpack.c.bf16 %v8594, %v8647
        %v8681 = vpack.c.bf16 %v8598, %v8596
        %v8682 = vpack.c.bf16 %v8602, %v8600
        %v8683 = vpack.c.bf16 %v8606, %v8604
        %v8684 = vpack.c.bf16 %v8610, %v8608
        %v8685 = vpack.c.bf16 %v8614, %v8612
        %v8686 = vpack.c.bf16 %v8632, %v8648
        %v8687 = vpack.c.bf16 %v8636, %v8634
        %v8688 = vpack.c.bf16 %v8640, %v8638
        %v8713 = vunpack.c.l.b16 %v8653
        %v8714 = vunpack.c.l.b16 %v8654
        %v8715 = vunpack.c.l.b16 %v8655
        %v8716 = vunpack.c.l.b16 %v8656
        %v8717 = vunpack.c.l.b16 %v8657
        %v8718 = vunpack.c.l.b16 %v8658
        %v8719 = vunpack.c.l.b16 %v8659
        %v8720 = vunpack.c.l.b16 %v8660
        %v8721 = vunpack.c.l.b16 %v8661
        %v8722 = vunpack.c.l.b16 %v8662
        %v8723 = vunpack.c.l.b16 %v8663
        %v8724 = vunpack.c.l.b16 %v8664
        %v8725 = vunpack.c.l.b16 %v8665
        %v8726 = vunpack.c.l.b16 %v8666
        %v8727 = vunpack.c.l.b16 %v8667
        %v8728 = vunpack.c.l.b16 %v8668
        %v8729 = vunpack.c.l.b16 %v8669
        %v8730 = vunpack.c.l.b16 %v8670
        %v8731 = vunpack.c.l.b16 %v8671
        %v8732 = vunpack.c.l.b16 %v8672
        %v8733 = vunpack.c.l.b16 %v8673
        %v8734 = vunpack.c.l.b16 %v8674
        %v8735 = vunpack.c.l.b16 %v8675
        %v8736 = vunpack.c.l.b16 %v8676
        %v8737 = vpack.c.b16 %v8714, %v8713
        %v8738 = vpack.c.b16 %v8716, %v8715
        %v8739 = vpack.c.b16 %v8718, %v8717
        %v8740 = vpack.c.b16 %v8720, %v8719
        %v8741 = vpack.c.b16 %v8722, %v8721
        %v8742 = vpack.c.b16 %v8724, %v8723
        %v8743 = vpack.c.b16 %v8726, %v8725
        %v8744 = vpack.c.b16 %v8728, %v8727
        %v8745 = vpack.c.b16 %v8730, %v8729
        %v8746 = vpack.c.b16 %v8732, %v8731
        %v8747 = vpack.c.b16 %v8734, %v8733
        %v8748 = vpack.c.b16 %v8736, %v8735
        %8761 = vxpose.xlu0.c.b16.start [1/8] %v8737, 128
        %8762 = vxpose.xlu0.c.b16.cont [2/8] %v8738, 128
        %8763 = vxpose.xlu0.c.b16.cont [3/8] %v8739, 128
        %8764 = vxpose.xlu0.c.b16.cont [4/8] %v8740, 128
        %8765 = vxpose.xlu0.c.b16.cont [5/8] %v8741, 128
        %8766 = vxpose.xlu0.c.b16.cont [6/8] %v8742, 128
        %8767 = vxpose.xlu0.c.b16.cont [7/8] %v8743, 128
        %8768 = vxpose.xlu0.c.b16.end [8/8] %v8744, 128
        %v8769 = vpop.trf.xlu0
        %v8770 = vpop.trf.xlu0
        %v8771 = vpop.trf.xlu0
        %v8772 = vpop.trf.xlu0
        %v8773 = vpop.trf.xlu0
        %v8774 = vpop.trf.xlu0
        %v8775 = vpop.trf.xlu0
        %v8776 = vpop.trf.xlu0
        %8777 = vxpose.xlu0.c.b16.start [1/8] %v8745, 128
        %8778 = vxpose.xlu0.c.b16.cont [2/8] %v8746, 128
        %8779 = vxpose.xlu0.c.b16.cont [3/8] %v8747, 128
        %8780 = vxpose.xlu0.c.b16.cont [4/8] %v8748, 128
        %8781 = vxpose.xlu0.c.b16.cont [5/8] 0, 128
        %8782 = vxpose.xlu0.c.b16.cont [6/8] 0, 128
        %8783 = vxpose.xlu0.c.b16.cont [7/8] 0, 128
        %8784 = vxpose.xlu0.c.b16.end [8/8] 0, 128
        %v8785 = vpop.trf.xlu0
        %v8786 = vpop.trf.xlu0
        %v8787 = vpop.trf.xlu0
        %v8788 = vpop.trf.xlu0
        %v8789 = vpop.trf.xlu0
        %v8790 = vpop.trf.xlu0
        %v8791 = vpop.trf.xlu0
        %v8792 = vpop.trf.xlu0
        %vm8793 = vcmask 523264
        %v8795 = vsel %vm8793, %v8785, 0
        %v8798 = vsel %vm8793, %v8786, 0
        %8800 = vmatprep.subr.bf16.mxu0 0
        %8801 = vmatpush1.bf16.msra.mxu0 %v8684
        %8802 = vmatprep.subr.bf16.mxu0 0
        %8803 = vmatpush1.bf16.msra.mxu0 %v8683
        %8804 = vmatprep.subr.bf16.mxu0 0
        %8805 = vmatpush1.bf16.msra.mxu0 %v8682
        %8806 = vmatprep.subr.bf16.mxu0 0
        %8807 = vmatpush1.bf16.msra.mxu0 %v8681
        %8808 = vmatprep.subr.bf16.mxu0 0
        %8809 = vmatpush1.bf16.msra.mxu0 %v8680
        %8810 = vmatprep.subr.bf16.mxu0 0
        %8811 = vmatpush1.bf16.msra.mxu0 %v8679
        %8812 = vmatprep.subr.bf16.mxu0 0
        %8813 = vmatpush1.bf16.msra.mxu0 %v8678
        %8814 = vmatprep.subr.bf16.mxu0 0
        %8815 = vmatpush1.bf16.msra.mxu0 %v8677
        %8816 = vmatprep.subr.bf16.mxu0 0
        %8817 = vmatpush2.bf16.msra.mxu0 0
        %8818 = vmatprep.subr.bf16.mxu0 0
        %8819 = vmatpush2.bf16.msra.mxu0 0
        %8820 = vmatprep.subr.bf16.mxu0 0
        %8821 = vmatpush2.bf16.msra.mxu0 0
        %8822 = vmatprep.subr.bf16.mxu0 0
        %8823 = vmatpush2.bf16.msra.mxu0 0
        %8824 = vmatprep.subr.bf16.mxu0 0
        %8825 = vmatpush2.bf16.msra.mxu0 %v8688
        %8826 = vmatprep.subr.bf16.mxu0 0
        %8827 = vmatpush2.bf16.msra.mxu0 %v8687
        %8828 = vmatprep.subr.bf16.mxu0 0
        %8829 = vmatpush2.bf16.msra.mxu0 %v8686
        %8830 = vmatprep.subr.bf16.mxu0 0
        %8831 = vmatpush2.bf16.msra.mxu0 %v8685
        %8832 = vmatprep.mubr.bf16.mxu0 %v8795
        %8833 = vmatmul.mubr.bf16.gmra.mxu0 %v8769
        %v8834 = vpop.f32.mrf.mxu0
        %v8835 = vadd.f32 0.0, %v8834
        %v8836 = vpop.f32.mrf.mxu0
        %v8837 = vpop.f32.mrf.mxu0
        %v8838 = vadd.f32 0.0, %v8837
        %v8839 = vpop.f32.mrf.mxu0
        %8840 = vmatprep.mubr.bf16.mxu0 %v8798
        %8841 = vmatmul.mubr.bf16.gmra.mxu0 %v8770
        %v8842 = vpop.f32.mrf.mxu0
        %v8843 = vadd.f32 0.0, %v8842
        %v8844 = vpop.f32.mrf.mxu0
        %v8845 = vpop.f32.mrf.mxu0
        %v8846 = vadd.f32 0.0, %v8845
        %v8847 = vpop.f32.mrf.mxu0
        %8848 = vdwg.mxu0
        %v8849 = vadd.f32 %v8649, %v8835
        %v8850 = vadd.f32 %v8650, %v8838
        %v8851 = vadd.f32 %v8651, %v8843
        %v8852 = vadd.f32 %v8652, %v8846
        %8853 = vst [vmem:[#allocation2] sm:$0xff] %v8849
        %8854 = vst [vmem:[#allocation2 + $0x8] sm:$0xff] %v8850
        %8855 = vst [vmem:[#allocation2 + $0x10] sm:$0xff] %v8851
        %8856 = vst [vmem:[#allocation2 + $0x18] sm:$0xff] %v8852
        %p8857 = scmp.eq.s32.totalorder %s41, 2
        // Predicated region
        $region89: #{tpu_custom_call.1} parent=63 // pred_check
          %p8858 = pneg %p8857
        $region90: #{tpu_custom_call.1} parent=63 // pred_check_branch
          %8860 = sbr.rel (%p8858) target = $region92
        $region91: #{tpu_custom_call.1} parent=63 // pred_region
          %v8861 = vld [vmem:[#allocation3] sm:$0x1]
          %v8862 = vrsqrt.pop %v8861
          %v8863 = vmul.f32 %v8861, %v8862
          %vm8864 = vcmp.eq.f32.partialorder %v8861, inf
          %v8865 = vsel %vm8864, %v8861, %v8863
          %vm8866 = vcmp.eq.f32.partialorder %v8861, 0.0
          %v8867 = vand.u32 %v8861, 2147483648
          %v8868 = vsel %vm8866, %v8867, %v8865
          %v8869 = vld [vmem:[#allocation2] sm:$0xff]
          %v8870 = vld [vmem:[#allocation2 + $0x8] sm:$0xff]
          %v8871 = vld [vmem:[#allocation2 + $0x10] sm:$0xff]
          %v8872 = vld [vmem:[#allocation2 + $0x18] sm:$0xff]
          %v8873 = vld [vmem:[%s9] sm:$0xff]
          %v8874 = vld [vmem:[%s9 + $0x8] sm:$0xff]
          %v8875 = vld [vmem:[%s9 + $0x10] sm:$0xff]
          %v8876 = vld [vmem:[%s9 + $0x18] sm:$0xff]
          %8878 = vset.pattern.permute.xlu0 0
          %8879 = vperm.xlu0 %8878, %v8873
          %v8880 = vpop.permute.xlu0 %8879
          %8883 = vset.pattern.permute.xlu0 0
          %8884 = vperm.xlu0 %8883, %v8874
          %v8885 = vpop.permute.xlu0 %8884
          %8888 = vset.pattern.permute.xlu0 0
          %8889 = vperm.xlu0 %8888, %v8875
          %v8890 = vpop.permute.xlu0 %8889
          %8893 = vset.pattern.permute.xlu0 0
          %8894 = vperm.xlu0 %8893, %v8876
          %v8895 = vpop.permute.xlu0 %8894
          %v8898 = vlaneseq
          %v8899 = vshrl.u32 %v8898, 7
          %v8900 = vsub.s32 0, %v8899
          %v8901 = vrot.slane %v8868, %v8900
          %v8903 = vmul.f32 %v8880, %v8901
          %v8904 = vmul.f32 %v8885, %v8901
          %v8905 = vmul.f32 %v8890, %v8901
          %v8906 = vmul.f32 %v8895, %v8901
          %v8907 = vadd.f32 %v8869, %v8903
          %v8908 = vadd.f32 %v8870, %v8904
          %v8909 = vadd.f32 %v8871, %v8905
          %v8910 = vadd.f32 %v8872, %v8906
          %v8911 = vld [vmem:[%s10] sm:$0xff]
          %v8912 = vld [vmem:[%s10 + $0x8] sm:$0xff]
          %v8913 = vld [vmem:[%s10 + $0x10] sm:$0xff]
          %v8914 = vld [vmem:[%s10 + $0x18] sm:$0xff]
          %8916 = vset.pattern.permute.xlu0 0
          %8917 = vperm.xlu0 %8916, %v8911
          %v8918 = vpop.permute.xlu0 %8917
          %8921 = vset.pattern.permute.xlu0 0
          %8922 = vperm.xlu0 %8921, %v8912
          %v8923 = vpop.permute.xlu0 %8922
          %8926 = vset.pattern.permute.xlu0 0
          %8927 = vperm.xlu0 %8926, %v8913
          %v8928 = vpop.permute.xlu0 %8927
          %8931 = vset.pattern.permute.xlu0 0
          %8932 = vperm.xlu0 %8931, %v8914
          %v8933 = vpop.permute.xlu0 %8932
          %v8935 = vadd.f32 %v8907, %v8918
          %v8936 = vadd.f32 %v8908, %v8923
          %v8937 = vadd.f32 %v8909, %v8928
          %v8938 = vadd.f32 %v8910, %v8933
          %8939 = vst [vmem:[%s681] sm:$0xff] %v8935
          %8940 = vst [vmem:[%s681 + $0x8] sm:$0xff] %v8936
          %8941 = vst [vmem:[%s681 + $0x10] sm:$0xff] %v8937
          %8942 = vst [vmem:[%s681 + $0x18] sm:$0xff] %v8938
        $region92: #{tpu_custom_call.1} parent=63 // pred_fallthru
          _
        %s8943 = sand.u32 %s355, 1
        %s8944 = scalar_lea.sflag [#allocation6], %s8943
        %s8945 = sand.u32 %s355, 1
        %s8946 = smul.addr %s8945, 32
        %s8947 = scalar_lea.vmem [#allocation13], %s8946
        // Predicated region
        $region93: #{tpu_custom_call.1} parent=63 // pred_check
          %p8948 = pneg %p365
        $region94: #{tpu_custom_call.1} parent=63 // pred_check_branch
          %8950 = sbr.rel (%p8948) target = $region96
        $region95: #{tpu_custom_call.1} parent=63 // pred_region
          %s8952 = ssub.s32 512, 512
          %8953 = vsyncadd %s8944, %s8952
          %s8954 = smul.addr %s39, 4
          %s8955 = sadd.s32 %s40, %s8954
          %s8956 = smul.addr %s8955, 128
          %s8957 = scalar_lea.hbm %s11, %s8956
          %s8958 = sshll.u32 %s8947, 4
          %s8959 = int_to_ptr.vmem [resolvable:$true] %s8958
          %8964 = dma.vmem_to_hbm [thread:$0]  %s8959, 512, %s8957, %s8944, 128, 128, 8
        $region96: #{tpu_custom_call.1} parent=63 // pred_fallthru
          _
      $region64: #{tpu_custom_call.1} parent=5 // pred_fallthru
        _
      %p8965 = scmp.le.s32.totalorder 2, %s29
      // Predicated region
      $region97: #{tpu_custom_call.1} parent=5 // pred_check
        %p8966 = pneg %p8965
      $region98: #{tpu_custom_call.1} parent=5 // pred_check_branch
        %8968 = sbr.rel (%p8966) target = $region100
      $region99: #{tpu_custom_call.1} parent=5 // pred_region
        %s8969 = ssub.s32 %s29, 2
        // Predicated region
        $region101: #{tpu_custom_call.1} parent=99 // pred_check
          %p8970 = pneg %p371
        $region102: #{tpu_custom_call.1} parent=99 // pred_check_branch
          %8972 = sbr.rel (%p8970) target = $region104
        $region103: #{tpu_custom_call.1} parent=99 // pred_region
          %s8973 = sand.u32 %s356, 1
          %s8974 = scalar_lea.sflag [#allocation6], %s8973
          %s8975 = sand.u32 %s356, 1
          %s8976 = smul.addr %s8975, 32
          %s8977 = scalar_lea.vmem [#allocation13], %s8976
          %8978 = dma.done %s8974, 512
        $region104: #{tpu_custom_call.1} parent=99 // pred_fallthru
          _
      $region100: #{tpu_custom_call.1} parent=5 // pred_fallthru
        _
    $region6: #{tpu_custom_call.1} parent=1 // loop_footer
      %s33 = sadd.s32 1, %s29
    $region7: #{tpu_custom_call.1} parent=1 // loop_footer_branch
      %28 = sbr.rel target = $region3
    $region8: #{tpu_custom_call.1} parent=1 // loop_exit
      _
    %8979 = vsyncpa [#allocation5], 1
    %s8980 = scalar_lea.sflag [#allocation5], 1
    %8981 = vsyncpa %s8980, 1
    %8982 = vsyncpa [#allocation8], 1
    %s8983 = scalar_lea.sflag [#allocation8], 1
    %8984 = vsyncpa %s8983, 1
    %8985 = vsyncpa [#allocation11], 1
    %s8986 = scalar_lea.sflag [#allocation11], 1
    %8987 = vsyncpa %s8986, 1
    %8988 = vsyncpa [#allocation6], 1
    %s8989 = scalar_lea.sflag [#allocation6], 1
    %8990 = vsyncpa %s8989, 1

</llo_original>
